<compile_context>
chip_gen: v7x
topology: tpu7x:2x2x1
jax: 0.10.0
libtpu: 0.0.40
codegen_flags: <defaults>
</compile_context>

<pallas_src>
import functools

import jax
import jax.numpy as jnp
from jax.experimental import pallas as pl
from jax.experimental.pallas import tpu as pltpu


def _round_up(x, m):
    return ((x + m - 1) // m) * m


def _vmem_limit_bytes():
    # Per-generation VMEM budget: ~70% of physical capacity, capped at 96 MiB.
    # v5e/v6e (128 MiB) -> ~90 MiB; v7x (64 MiB) -> ~45 MiB.
    try:
        cap = pltpu.get_tpu_info().vmem_capacity_bytes
    except Exception:
        cap = 64 * 1024 * 1024
    return int(min(96 * 1024 * 1024, max(32 * 1024 * 1024, 0.7 * cap)))


# ------------------- fused conv1/pool1/conv2/pool2 kernel --------------------

def _conv_stage(a_pad_ref, m_ref, b_ref, *, nb, hin, win, cin, cout):
    """5x5 'same' conv + bias + ReLU + 2x2/stride-2 max-pool for one batch tile.

    a_pad_ref : (nb, hin+4, (win+4)*cin) zero-padded input rows (f32 VMEM)
    m_ref     : ((win+4)*cin, 5*win*cout) banded weights, columns (dh, j%2, j//2, co)
    b_ref     : (1, 1, win*cout)          bias tiled over j (f32)
    returns   : (nb, hin//2, (win//2)*cout) f32 with flat (j, cout) lane layout
    """
    hp = hin + 4
    wc = win * cout
    a2d = a_pad_ref[...].reshape(nb * hp, (win + 4) * cin).astype(m_ref.dtype)
    acc = None
    for dh in range(5):  # 5 wide MXU matmuls, summed with row shifts
        g = jnp.dot(a2d, m_ref[:, dh * wc:(dh + 1) * wc],
                    preferred_element_type=jnp.float32)
        part = g.reshape(nb, hp, wc)[:, dh:dh + hin, :]
        acc = part if acc is None else acc + part
    y = jnp.maximum(acc + b_ref[...], 0.0)                     # bias + ReLU
    y = y.reshape(nb, hin // 2, 2, wc)                         # H-pool (row pairs)
    y = jnp.maximum(y[:, :, 0, :], y[:, :, 1, :])
    return jnp.maximum(y[..., : wc // 2], y[..., wc // 2:])    # W-pool (even|odd halves)


def _fused_conv_kernel(x_ref, m1_ref, b1_ref, m2_ref, b2_ref, o_ref,
                       xpad_ref, a1pad_ref, *, nb, h, w, c1, c2):
    h2, w2 = h // 2, w // 2
    # Halo padding lives only in VMEM (no HBM jnp.pad pass).
    xpad_ref[...] = jnp.zeros_like(xpad_ref)
    xpad_ref[:, 2:2 + h, 2:2 + w] = x_ref[...]
    # conv1 (Cin=1) in f32 operands; output stays in VMEM only.
    p1 = _conv_stage(xpad_ref, m1_ref, b1_ref,
                     nb=nb, hin=h, win=w, cin=1, cout=c1)      # (nb, h/2, (w/2)*c1)
    a1pad_ref[...] = jnp.zeros_like(a1pad_ref)
    a1pad_ref[:, 2:2 + h2, 2 * c1:(2 + w2) * c1] = p1
    # conv2 in bf16 operands with f32 accumulation.
    p2 = _conv_stage(a1pad_ref, m2_ref, b2_ref,
                     nb=nb, hin=h2, win=w2, cin=c1, cout=c2)   # (nb, h/4, (w/4)*c2)
    o_ref[...] = p2.astype(o_ref.dtype)                        # lane-dense bf16 store


def fused_conv_relu_pool_x2(x_nhw, m1, b1, m2, b2, *, nb):
    n, h, w = x_nhw.shape
    h2, w2, h4, w4 = h // 2, w // 2, h // 4, w // 4
    c1 = b1.shape[-1] // w
    c2 = b2.shape[-1] // w2
    kernel = functools.partial(_fused_conv_kernel, nb=nb, h=h, w=w, c1=c1, c2=c2)
    return pl.pallas_call(
        kernel,
        out_shape=jax.ShapeDtypeStruct((n, h4, w4 * c2), jnp.bfloat16),
        grid=(n // nb,),
        in_specs=[
            pl.BlockSpec((nb, h, w), lambda i: (i, 0, 0)),
            pl.BlockSpec(m1.shape, lambda i: (0, 0)),
            pl.BlockSpec(b1.shape, lambda i: (0, 0, 0)),
            pl.BlockSpec(m2.shape, lambda i: (0, 0)),
            pl.BlockSpec(b2.shape, lambda i: (0, 0, 0)),
        ],
        out_specs=pl.BlockSpec((nb, h4, w4 * c2), lambda i: (i, 0, 0)),
        scratch_shapes=[
            pltpu.VMEM((nb, h + 4, w + 4), jnp.float32),
            pltpu.VMEM((nb, h2 + 4, (w2 + 4) * c1), jnp.float32),
        ],
        compiler_params=pltpu.CompilerParams(
            dimension_semantics=("parallel",),
            vmem_limit_bytes=_vmem_limit_bytes(),
        ),
    )(x_nhw, m1, b1, m2, b2)


# ------------------------- VMEM-resident linear layers -----------------------

def _linear_kernel(x_ref, w_ref, b_ref, o_ref, *, activation):
    y = jnp.dot(x_ref[...], w_ref[...], preferred_element_type=jnp.float32)
    y = y + b_ref[...]
    if activation == "relu":
        y = jnp.maximum(y, 0.0)
    else:  # exact row softmax; the full N lives in this block
        y = y - jnp.max(y, axis=-1, keepdims=True)
        e = jnp.exp(y)
        y = e / jnp.sum(e, axis=-1, keepdims=True)
    o_ref[...] = y.astype(o_ref.dtype)


def pallas_linear(x, w, b, *, activation, out_dtype, tm_target=512):
    m, k = x.shape
    kw, n = w.shape
    assert k == kw
    tm = min(_round_up(m, 8), _round_up(tm_target, 8))
    mp = _round_up(m, tm)                    # pad M up rather than one giant tile
    if mp != m:
        x = jnp.pad(x, ((0, mp - m), (0, 0)))
    out = pl.pallas_call(
        functools.partial(_linear_kernel, activation=activation),
        out_shape=jax.ShapeDtypeStruct((mp, n), out_dtype),
        grid=(mp // tm,),
        in_specs=[
            pl.BlockSpec((tm, k), lambda i: (i, 0)),
            pl.BlockSpec((kw, n), lambda i: (0, 0)),   # whole weight VMEM-resident
            pl.BlockSpec((1, n), lambda i: (0, 0)),
        ],
        out_specs=pl.BlockSpec((tm, n), lambda i: (i, 0)),
        compiler_params=pltpu.CompilerParams(
            dimension_semantics=("parallel",),
            vmem_limit_bytes=_vmem_limit_bytes(),
        ),
    )(x, w, b)
    return out[:m] if mp != m else out


# --------------------------- params & forward pass ---------------------------

def init_pytorch_params(key, n_types, im_width):
    """Random params in PyTorch layouts (Conv2d: (Cout,Cin,5,5); Linear: (out,in))."""
    pooled = im_width // 4
    fc_in = 64 * pooled * pooled
    ks = jax.random.split(key, 8)
    s = 0.05
    return {
        "conv1_w": s * jax.random.normal(ks[0], (32, 1, 5, 5), jnp.float32),
        "conv1_b": s * jax.random.normal(ks[1], (32,), jnp.float32),
        "conv2_w": s * jax.random.normal(ks[2], (64, 32, 5, 5), jnp.float32),
        "conv2_b": s * jax.random.normal(ks[3], (64,), jnp.float32),
        "fc1_w": s * jax.random.normal(ks[4], (1024, fc_in), jnp.float32),
        "fc1_b": s * jax.random.normal(ks[5], (1024,), jnp.float32),
        "fc2_w": s * jax.random.normal(ks[6], (n_types, 1024), jnp.float32),
        "fc2_b": s * jax.random.normal(ks[7], (n_types,), jnp.float32),
    }


def _banded_conv_weight(w_pt, win):
    """PyTorch (Cout, Cin, 5, 5) conv weight -> ((win+4)*Cin, 5*win*Cout) banded
    matrix.  Column order is (dh, j%2, j//2, cout) so the kernel's W-pool is a
    lane-aligned halves-max.  Row order (w', ci) matches the padded flat rows."""
    cout, cin, kh, kw = w_pt.shape
    assert kh == 5 and kw == 5 and win % 2 == 0
    w = jnp.transpose(w_pt, (2, 3, 1, 0))                          # (dh, dw, ci, co)
    wt = jnp.transpose(w, (1, 2, 0, 3)).reshape(5 * cin, 5, cout)  # ((dw,ci), dh, co)
    m = jnp.zeros(((win + 4) * cin, 5, 2, win // 2, cout), jnp.float32)
    for j in range(win):
        m = m.at[j * cin:(j + 5) * cin, :, j % 2, j // 2, :].set(wt)
    return m.reshape((win + 4) * cin, 5 * win * cout)


def prepare_params(pt, n_types, im_width):
    """One-time conversion from PyTorch layouts to kernel-ready layouts."""
    w0, w2p, pooled = im_width, im_width // 2, im_width // 4
    c1, c2 = pt["conv1_w"].shape[0], pt["conv2_w"].shape[0]

    m1 = _banded_conv_weight(pt["conv1_w"], w0).astype(jnp.float32)    # conv1 stays f32
    m2 = _banded_conv_weight(pt["conv2_w"], w2p).astype(jnp.bfloat16)  # conv2 bf16/MXU
    b1 = jnp.tile(pt["conv1_b"].astype(jnp.float32), w0).reshape(1, 1, w0 * c1)
    b2 = jnp.tile(pt["conv2_b"].astype(jnp.float32), w2p).reshape(1, 1, w2p * c2)

    # fc1: permute in-features from PyTorch NCHW flatten (c,h,w) to the kernels'
    # NHWC flatten (h,w,c); transpose to (in,out); bf16 once.
    out_f = pt["fc1_w"].shape[0]
    fc1_w = pt["fc1_w"].reshape(out_f, c2, pooled, pooled)
    fc1_w = jnp.transpose(fc1_w, (2, 3, 1, 0)).reshape(pooled * pooled * c2, out_f)

    # fc2: transpose to (in,out); pad out-features to 128 lanes with exactly-zero
    # weight columns and -1e30 bias so softmax ignores the padding.
    n_pad = _round_up(n_types, 128)
    fc2_w = jnp.transpose(pt["fc2_w"], (1, 0))
    fc2_w = jnp.pad(fc2_w, ((0, 0), (0, n_pad - n_types)))
    fc2_b = jnp.pad(pt["fc2_b"].astype(jnp.float32), (0, n_pad - n_types),
                    constant_values=-1e30)
    assert bool(jnp.all(fc2_w[:, n_types:] == 0.0))  # padded-logit invariant

    return {
        "conv1_w": m1, "conv1_b": b1,
        "conv2_w": m2, "conv2_b": b2,
        "fc1_w": fc1_w.astype(jnp.bfloat16),
        "fc1_b": pt["fc1_b"].astype(jnp.float32).reshape(1, out_f),
        "fc2_w": fc2_w.astype(jnp.bfloat16),
        "fc2_b": fc2_b.reshape(1, n_pad),
    }


def astrodash_forward(x, params, *, im_width, n_types):
    # PyTorch: x.view(-1, 1, W, W); with Cin == 1 that is just (N, H, W).
    x = x.reshape(-1, im_width, im_width).astype(jnp.float32)
    n = x.shape[0]

    # Batch tile: up to 8 images per grid step, kept to >=2 "parallel" steps
    # (v7x has 2 TensorCores); pad the batch instead of one giant tile.
    nb = min(8, n)
    if n >= 2:
        nb = min(nb, -(-n // 2))
    n_pad = _round_up(n, nb)
    if n_pad != n:
        x = jnp.pad(x, ((0, n_pad - n), (0, 0), (0, 0)))

    feats = fused_conv_relu_pool_x2(x, params["conv1_w"], params["conv1_b"],
                                    params["conv2_w"], params["conv2_b"], nb=nb)
    feats = feats.reshape(n_pad, -1)                       # NHWC flatten (free)

    h1 = pallas_linear(feats, params["fc1_w"], params["fc1_b"],
                       activation="relu", out_dtype=jnp.bfloat16)
    # TODO(synk): torch.nn.Dropout implemented with eval-mode (identity) semantics.
    probs = pallas_linear(h1, params["fc2_w"], params["fc2_b"],
                          activation="softmax", out_dtype=jnp.float32)
    return probs[:n, :n_types]


if __name__ == "__main__":
    IM_WIDTH = 16
    N_TYPES = 10
    BATCH = 2

    key = jax.random.PRNGKey(0)
    k_params, k_x = jax.random.split(key)
    pt_params = init_pytorch_params(k_params, N_TYPES, IM_WIDTH)
    params = prepare_params(pt_params, N_TYPES, IM_WIDTH)
    x = jax.random.normal(k_x, (BATCH, 1, IM_WIDTH, IM_WIDTH), jnp.float32)

    fwd = jax.jit(functools.partial(astrodash_forward,
                                    im_width=IM_WIDTH, n_types=N_TYPES))
    out = jax.block_until_ready(fwd(x, params))

    assert out.shape == (BATCH, N_TYPES), out.shape
    assert bool(jnp.all(jnp.isfinite(out)))
    row_sums = jnp.sum(out, axis=1)
    assert bool(jnp.all(jnp.abs(row_sums - 1.0) < 5e-3)), row_sums

    print("KERNEL_OK")
</pallas_src>

<mosaic_0001>
module attributes {stable_mosaic.version = 11 : i64} {
  func.func @_linear_kernel(%arg0: i32, %arg1: memref<8x1024xbf16, #tpu.memory_space<vmem>>, %arg2: memref<1024x1024xbf16, #tpu.memory_space<vmem>>, %arg3: memref<1x1024xf32, #tpu.memory_space<vmem>>, %arg4: memref<8x1024xbf16, #tpu.memory_space<vmem>>) attributes {dimension_semantics = [#tpu.dimension_semantics<parallel>], iteration_bounds = array<i64: 1>, scalar_prefetch = 0 : i64, scratch_operands = 0 : i64, tpu.core_type = #tpu.core_type<tc>, window_params = [{transform_indices = @transform_0, window_bounds = array<i64: 8, 1024>}, {pipeline_mode = #tpu.pipeline_mode<synchronous>, transform_indices = @transform_1, window_bounds = array<i64: 1024, 1024>}, {pipeline_mode = #tpu.pipeline_mode<synchronous>, transform_indices = @transform_2, window_bounds = array<i64: 1, 1024>}, {transform_indices = @transform_3, window_bounds = array<i64: 8, 1024>}]} {
    %c0 = arith.constant 0 : index
    %c0_0 = arith.constant 0 : index
    %0 = vector.load %arg1[%c0, %c0_0] : memref<8x1024xbf16, #tpu.memory_space<vmem>>, vector<8x1024xbf16>
    %c0_1 = arith.constant 0 : index
    %c0_2 = arith.constant 0 : index
    %1 = vector.load %arg2[%c0_1, %c0_2] : memref<1024x1024xbf16, #tpu.memory_space<vmem>>, vector<1024x1024xbf16>
    %cst = arith.constant dense<0.000000e+00> : vector<8x1024xf32>
    %2 = tpu.matmul %0, %1, %cst {dimension_numbers = #tpu.dot_dimension_numbers<[1], [0], [0], [1], [0, 0, 1, 1], [], []>} : vector<8x1024xbf16>, vector<1024x1024xbf16>, vector<8x1024xf32> -> vector<8x1024xf32>
    %c0_3 = arith.constant 0 : index
    %c0_4 = arith.constant 0 : index
    %3 = vector.load %arg3[%c0_3, %c0_4] : memref<1x1024xf32, #tpu.memory_space<vmem>>, vector<1x1024xf32>
    %4 = vector.broadcast %3 : vector<1x1024xf32> to vector<8x1024xf32>
    %5 = arith.addf %2, %4 : vector<8x1024xf32>
    %cst_5 = arith.constant 0.000000e+00 : f32
    %6 = vector.broadcast %cst_5 : f32 to vector<8x1024xf32>
    %7 = arith.maximumf %5, %6 : vector<8x1024xf32>
    %8 = arith.truncf %7 : vector<8x1024xf32> to vector<8x1024xbf16>
    %c0_6 = arith.constant 0 : index
    %c0_7 = arith.constant 0 : index
    %9 = vector.load %arg4[%c0_6, %c0_7] : memref<8x1024xbf16, #tpu.memory_space<vmem>>, vector<8x1024xbf16>
    tpu.vector_store %arg4[%c0_6, %c0_7], %8 {strides = array<i32>} : memref<8x1024xbf16, #tpu.memory_space<vmem>>, vector<8x1024xbf16>,
    return
  }
  func.func @transform_0(%arg0: i32) -> (i32, i32) {
    %c0_i32 = arith.constant 0 : i32
    %c0_i32_0 = arith.constant 0 : i32
    return %arg0, %c0_i32 : i32, i32
  }
  func.func @transform_1(%arg0: i32) -> (i32, i32) {
    %c0_i32 = arith.constant 0 : i32
    %c0_i32_0 = arith.constant 0 : i32
    %c0_i32_1 = arith.constant 0 : i32
    return %c0_i32, %c0_i32_0 : i32, i32
  }
  func.func @transform_2(%arg0: i32) -> (i32, i32) {
    %c0_i32 = arith.constant 0 : i32
    %c0_i32_0 = arith.constant 0 : i32
    %c0_i32_1 = arith.constant 0 : i32
    return %c0_i32, %c0_i32_0 : i32, i32
  }
  func.func @transform_3(%arg0: i32) -> (i32, i32) {
    %c0_i32 = arith.constant 0 : i32
    %c0_i32_0 = arith.constant 0 : i32
    return %arg0, %c0_i32 : i32, i32
  }
}

module attributes {stable_mosaic.version = 11 : i64} {
  func.func @_fused_conv_kernel(%arg0: i32, %arg1: memref<1x16x16xf32, #tpu.memory_space<vmem>>, %arg2: memref<20x2560xf32, #tpu.memory_space<vmem>>, %arg3: memref<1x1x512xf32, #tpu.memory_space<vmem>>, %arg4: memref<384x2560xbf16, #tpu.memory_space<vmem>>, %arg5: memref<1x1x512xf32, #tpu.memory_space<vmem>>, %arg6: memref<1x4x256xbf16, #tpu.memory_space<vmem>>, %arg7: memref<1x20x20xf32, #tpu.memory_space<vmem>>, %arg8: memref<1x12x384xf32, #tpu.memory_space<vmem>>) attributes {dimension_semantics = [#tpu.dimension_semantics<parallel>], iteration_bounds = array<i64: 2>, scalar_prefetch = 0 : i64, scratch_operands = 2 : i64, tpu.core_type = #tpu.core_type<tc>, window_params = [{transform_indices = @transform_0, window_bounds = array<i64: 1, 16, 16>}, {pipeline_mode = #tpu.pipeline_mode<synchronous>, transform_indices = @transform_1, window_bounds = array<i64: 20, 2560>}, {pipeline_mode = #tpu.pipeline_mode<synchronous>, transform_indices = @transform_2, window_bounds = array<i64: 1, 1, 512>}, {pipeline_mode = #tpu.pipeline_mode<synchronous>, transform_indices = @transform_3, window_bounds = array<i64: 384, 2560>}, {pipeline_mode = #tpu.pipeline_mode<synchronous>, transform_indices = @transform_4, window_bounds = array<i64: 1, 1, 512>}, {transform_indices = @transform_5, window_bounds = array<i64: 1, 4, 256>}]} {
    %cst = arith.constant 0.000000e+00 : f32
    %0 = vector.broadcast %cst : f32 to vector<1x20x20xf32>
    %c0 = arith.constant 0 : index
    %c0_0 = arith.constant 0 : index
    %c0_1 = arith.constant 0 : index
    %1 = vector.load %arg7[%c0, %c0_0, %c0_1] : memref<1x20x20xf32, #tpu.memory_space<vmem>>, vector<1x20x20xf32>
    tpu.vector_store %arg7[%c0, %c0_0, %c0_1], %0 {strides = array<i32>} : memref<1x20x20xf32, #tpu.memory_space<vmem>>, vector<1x20x20xf32>,
    %c0_2 = arith.constant 0 : index
    %c0_3 = arith.constant 0 : index
    %c0_4 = arith.constant 0 : index
    %2 = vector.load %arg1[%c0_2, %c0_3, %c0_4] : memref<1x16x16xf32, #tpu.memory_space<vmem>>, vector<1x16x16xf32>
    %c0_5 = arith.constant 0 : index
    %c2 = arith.constant 2 : index
    %c2_6 = arith.constant 2 : index
    %3 = vector.load %arg7[%c0_5, %c2, %c2_6] : memref<1x20x20xf32, #tpu.memory_space<vmem>>, vector<1x16x16xf32>
    tpu.vector_store %arg7[%c0_5, %c2, %c2_6], %2 {strides = array<i32>} : memref<1x20x20xf32, #tpu.memory_space<vmem>>, vector<1x16x16xf32>,
    %c0_7 = arith.constant 0 : index
    %c0_8 = arith.constant 0 : index
    %c0_9 = arith.constant 0 : index
    %4 = vector.load %arg7[%c0_7, %c0_8, %c0_9] : memref<1x20x20xf32, #tpu.memory_space<vmem>>, vector<1x20x20xf32>
    %5 = vector.shape_cast %4 : vector<1x20x20xf32> to vector<20x20xf32>
    %c0_10 = arith.constant 0 : index
    %c0_11 = arith.constant 0 : index
    %6 = vector.load %arg2[%c0_10, %c0_11] : memref<20x2560xf32, #tpu.memory_space<vmem>>, vector<20x512xf32>
    %cst_12 = arith.constant dense<0.000000e+00> : vector<20x512xf32>
    %7 = tpu.matmul %5, %6, %cst_12 {dimension_numbers = #tpu.dot_dimension_numbers<[1], [0], [0], [1], [0, 0, 1, 1], [], []>} : vector<20x20xf32>, vector<20x512xf32>, vector<20x512xf32> -> vector<20x512xf32>
    %8 = vector.shape_cast %7 : vector<20x512xf32> to vector<1x20x512xf32>
    %9 = vector.extract_strided_slice %8 {offsets = [0, 0, 0], sizes = [1, 16, 512], strides = [1, 1, 1]} : vector<1x20x512xf32> to vector<1x16x512xf32>
    %c0_13 = arith.constant 0 : index
    %c512 = arith.constant 512 : index
    %10 = vector.load %arg2[%c0_13, %c512] : memref<20x2560xf32, #tpu.memory_space<vmem>>, vector<20x512xf32>
    %cst_14 = arith.constant dense<0.000000e+00> : vector<20x512xf32>
    %11 = tpu.matmul %5, %10, %cst_14 {dimension_numbers = #tpu.dot_dimension_numbers<[1], [0], [0], [1], [0, 0, 1, 1], [], []>} : vector<20x20xf32>, vector<20x512xf32>, vector<20x512xf32> -> vector<20x512xf32>
    %12 = vector.shape_cast %11 : vector<20x512xf32> to vector<1x20x512xf32>
    %13 = vector.extract_strided_slice %12 {offsets = [0, 1, 0], sizes = [1, 16, 512], strides = [1, 1, 1]} : vector<1x20x512xf32> to vector<1x16x512xf32>
    %14 = arith.addf %9, %13 : vector<1x16x512xf32>
    %c0_15 = arith.constant 0 : index
    %c1024 = arith.constant 1024 : index
    %15 = vector.load %arg2[%c0_15, %c1024] : memref<20x2560xf32, #tpu.memory_space<vmem>>, vector<20x512xf32>
    %cst_16 = arith.constant dense<0.000000e+00> : vector<20x512xf32>
    %16 = tpu.matmul %5, %15, %cst_16 {dimension_numbers = #tpu.dot_dimension_numbers<[1], [0], [0], [1], [0, 0, 1, 1], [], []>} : vector<20x20xf32>, vector<20x512xf32>, vector<20x512xf32> -> vector<20x512xf32>
    %17 = vector.shape_cast %16 : vector<20x512xf32> to vector<1x20x512xf32>
    %18 = vector.extract_strided_slice %17 {offsets = [0, 2, 0], sizes = [1, 16, 512], strides = [1, 1, 1]} : vector<1x20x512xf32> to vector<1x16x512xf32>
    %19 = arith.addf %14, %18 : vector<1x16x512xf32>
    %c0_17 = arith.constant 0 : index
    %c1536 = arith.constant 1536 : index
    %20 = vector.load %arg2[%c0_17, %c1536] : memref<20x2560xf32, #tpu.memory_space<vmem>>, vector<20x512xf32>
    %cst_18 = arith.constant dense<0.000000e+00> : vector<20x512xf32>
    %21 = tpu.matmul %5, %20, %cst_18 {dimension_numbers = #tpu.dot_dimension_numbers<[1], [0], [0], [1], [0, 0, 1, 1], [], []>} : vector<20x20xf32>, vector<20x512xf32>, vector<20x512xf32> -> vector<20x512xf32>
    %22 = vector.shape_cast %21 : vector<20x512xf32> to vector<1x20x512xf32>
    %23 = vector.extract_strided_slice %22 {offsets = [0, 3, 0], sizes = [1, 16, 512], strides = [1, 1, 1]} : vector<1x20x512xf32> to vector<1x16x512xf32>
    %24 = arith.addf %19, %23 : vector<1x16x512xf32>
    %c0_19 = arith.constant 0 : index
    %c2048 = arith.constant 2048 : index
    %25 = vector.load %arg2[%c0_19, %c2048] : memref<20x2560xf32, #tpu.memory_space<vmem>>, vector<20x512xf32>
    %cst_20 = arith.constant dense<0.000000e+00> : vector<20x512xf32>
    %26 = tpu.matmul %5, %25, %cst_20 {dimension_numbers = #tpu.dot_dimension_numbers<[1], [0], [0], [1], [0, 0, 1, 1], [], []>} : vector<20x20xf32>, vector<20x512xf32>, vector<20x512xf32> -> vector<20x512xf32>
    %27 = vector.shape_cast %26 : vector<20x512xf32> to vector<1x20x512xf32>
    %28 = vector.extract_strided_slice %27 {offsets = [0, 4, 0], sizes = [1, 16, 512], strides = [1, 1, 1]} : vector<1x20x512xf32> to vector<1x16x512xf32>
    %29 = arith.addf %24, %28 : vector<1x16x512xf32>
    %c0_21 = arith.constant 0 : index
    %c0_22 = arith.constant 0 : index
    %c0_23 = arith.constant 0 : index
    %30 = vector.load %arg3[%c0_21, %c0_22, %c0_23] : memref<1x1x512xf32, #tpu.memory_space<vmem>>, vector<1x1x512xf32>
    %31 = vector.broadcast %30 : vector<1x1x512xf32> to vector<1x16x512xf32>
    %32 = arith.addf %29, %31 : vector<1x16x512xf32>
    %cst_24 = arith.constant 0.000000e+00 : f32
    %33 = vector.broadcast %cst_24 : f32 to vector<1x16x512xf32>
    %34 = arith.maximumf %32, %33 : vector<1x16x512xf32>
    %35 = vector.shape_cast %34 : vector<1x16x512xf32> to vector<1x8x2x512xf32>
    %36 = vector.extract_strided_slice %35 {offsets = [0, 0, 0, 0], sizes = [1, 8, 1, 512], strides = [1, 1, 1, 1]} : vector<1x8x2x512xf32> to vector<1x8x1x512xf32>
    %37 = vector.shape_cast %36 : vector<1x8x1x512xf32> to vector<1x8x512xf32>
    %38 = vector.extract_strided_slice %35 {offsets = [0, 0, 1, 0], sizes = [1, 8, 1, 512], strides = [1, 1, 1, 1]} : vector<1x8x2x512xf32> to vector<1x8x1x512xf32>
    %39 = vector.shape_cast %38 : vector<1x8x1x512xf32> to vector<1x8x512xf32>
    %40 = arith.maximumf %37, %39 : vector<1x8x512xf32>
    %41 = vector.extract_strided_slice %40 {offsets = [0, 0, 0], sizes = [1, 8, 256], strides = [1, 1, 1]} : vector<1x8x512xf32> to vector<1x8x256xf32>
    %42 = vector.extract_strided_slice %40 {offsets = [0, 0, 256], sizes = [1, 8, 256], strides = [1, 1, 1]} : vector<1x8x512xf32> to vector<1x8x256xf32>
    %43 = arith.maximumf %41, %42 : vector<1x8x256xf32>
    %cst_25 = arith.constant 0.000000e+00 : f32
    %44 = vector.broadcast %cst_25 : f32 to vector<1x12x384xf32>
    %c0_26 = arith.constant 0 : index
    %c0_27 = arith.constant 0 : index
    %c0_28 = arith.constant 0 : index
    %45 = vector.load %arg8[%c0_26, %c0_27, %c0_28] : memref<1x12x384xf32, #tpu.memory_space<vmem>>, vector<1x12x384xf32>
    tpu.vector_store %arg8[%c0_26, %c0_27, %c0_28], %44 {strides = array<i32>} : memref<1x12x384xf32, #tpu.memory_space<vmem>>, vector<1x12x384xf32>,
    %c0_29 = arith.constant 0 : index
    %c2_30 = arith.constant 2 : index
    %c64 = arith.constant 64 : index
    %46 = vector.load %arg8[%c0_29, %c2_30, %c64] : memref<1x12x384xf32, #tpu.memory_space<vmem>>, vector<1x8x256xf32>
    tpu.vector_store %arg8[%c0_29, %c2_30, %c64], %43 {strides = array<i32>} : memref<1x12x384xf32, #tpu.memory_space<vmem>>, vector<1x8x256xf32>,
    %c0_31 = arith.constant 0 : index
    %c0_32 = arith.constant 0 : index
    %c0_33 = arith.constant 0 : index
    %47 = vector.load %arg8[%c0_31, %c0_32, %c0_33] : memref<1x12x384xf32, #tpu.memory_space<vmem>>, vector<1x12x384xf32>
    %48 = vector.shape_cast %47 : vector<1x12x384xf32> to vector<12x384xf32>
    %49 = arith.truncf %48 : vector<12x384xf32> to vector<12x384xbf16>
    %c0_34 = arith.constant 0 : index
    %c0_35 = arith.constant 0 : index
    %50 = vector.load %arg4[%c0_34, %c0_35] : memref<384x2560xbf16, #tpu.memory_space<vmem>>, vector<384x512xbf16>
    %cst_36 = arith.constant dense<0.000000e+00> : vector<12x512xf32>
    %51 = tpu.matmul %49, %50, %cst_36 {dimension_numbers = #tpu.dot_dimension_numbers<[1], [0], [0], [1], [0, 0, 1, 1], [], []>} : vector<12x384xbf16>, vector<384x512xbf16>, vector<12x512xf32> -> vector<12x512xf32>
    %52 = vector.shape_cast %51 : vector<12x512xf32> to vector<1x12x512xf32>
    %53 = vector.extract_strided_slice %52 {offsets = [0, 0, 0], sizes = [1, 8, 512], strides = [1, 1, 1]} : vector<1x12x512xf32> to vector<1x8x512xf32>
    %c0_37 = arith.constant 0 : index
    %c512_38 = arith.constant 512 : index
    %54 = vector.load %arg4[%c0_37, %c512_38] : memref<384x2560xbf16, #tpu.memory_space<vmem>>, vector<384x512xbf16>
    %cst_39 = arith.constant dense<0.000000e+00> : vector<12x512xf32>
    %55 = tpu.matmul %49, %54, %cst_39 {dimension_numbers = #tpu.dot_dimension_numbers<[1], [0], [0], [1], [0, 0, 1, 1], [], []>} : vector<12x384xbf16>, vector<384x512xbf16>, vector<12x512xf32> -> vector<12x512xf32>
    %56 = vector.shape_cast %55 : vector<12x512xf32> to vector<1x12x512xf32>
    %57 = vector.extract_strided_slice %56 {offsets = [0, 1, 0], sizes = [1, 8, 512], strides = [1, 1, 1]} : vector<1x12x512xf32> to vector<1x8x512xf32>
    %58 = arith.addf %53, %57 : vector<1x8x512xf32>
    %c0_40 = arith.constant 0 : index
    %c1024_41 = arith.constant 1024 : index
    %59 = vector.load %arg4[%c0_40, %c1024_41] : memref<384x2560xbf16, #tpu.memory_space<vmem>>, vector<384x512xbf16>
    %cst_42 = arith.constant dense<0.000000e+00> : vector<12x512xf32>
    %60 = tpu.matmul %49, %59, %cst_42 {dimension_numbers = #tpu.dot_dimension_numbers<[1], [0], [0], [1], [0, 0, 1, 1], [], []>} : vector<12x384xbf16>, vector<384x512xbf16>, vector<12x512xf32> -> vector<12x512xf32>
    %61 = vector.shape_cast %60 : vector<12x512xf32> to vector<1x12x512xf32>
    %62 = vector.extract_strided_slice %61 {offsets = [0, 2, 0], sizes = [1, 8, 512], strides = [1, 1, 1]} : vector<1x12x512xf32> to vector<1x8x512xf32>
    %63 = arith.addf %58, %62 : vector<1x8x512xf32>
    %c0_43 = arith.constant 0 : index
    %c1536_44 = arith.constant 1536 : index
    %64 = vector.load %arg4[%c0_43, %c1536_44] : memref<384x2560xbf16, #tpu.memory_space<vmem>>, vector<384x512xbf16>
    %cst_45 = arith.constant dense<0.000000e+00> : vector<12x512xf32>
    %65 = tpu.matmul %49, %64, %cst_45 {dimension_numbers = #tpu.dot_dimension_numbers<[1], [0], [0], [1], [0, 0, 1, 1], [], []>} : vector<12x384xbf16>, vector<384x512xbf16>, vector<12x512xf32> -> vector<12x512xf32>
    %66 = vector.shape_cast %65 : vector<12x512xf32> to vector<1x12x512xf32>
    %67 = vector.extract_strided_slice %66 {offsets = [0, 3, 0], sizes = [1, 8, 512], strides = [1, 1, 1]} : vector<1x12x512xf32> to vector<1x8x512xf32>
    %68 = arith.addf %63, %67 : vector<1x8x512xf32>
    %c0_46 = arith.constant 0 : index
    %c2048_47 = arith.constant 2048 : index
    %69 = vector.load %arg4[%c0_46, %c2048_47] : memref<384x2560xbf16, #tpu.memory_space<vmem>>, vector<384x512xbf16>
    %cst_48 = arith.constant dense<0.000000e+00> : vector<12x512xf32>
    %70 = tpu.matmul %49, %69, %cst_48 {dimension_numbers = #tpu.dot_dimension_numbers<[1], [0], [0], [1], [0, 0, 1, 1], [], []>} : vector<12x384xbf16>, vector<384x512xbf16>, vector<12x512xf32> -> vector<12x512xf32>
    %71 = vector.shape_cast %70 : vector<12x512xf32> to vector<1x12x512xf32>
    %72 = vector.extract_strided_slice %71 {offsets = [0, 4, 0], sizes = [1, 8, 512], strides = [1, 1, 1]} : vector<1x12x512xf32> to vector<1x8x512xf32>
    %73 = arith.addf %68, %72 : vector<1x8x512xf32>
    %c0_49 = arith.constant 0 : index
    %c0_50 = arith.constant 0 : index
    %c0_51 = arith.constant 0 : index
    %74 = vector.load %arg5[%c0_49, %c0_50, %c0_51] : memref<1x1x512xf32, #tpu.memory_space<vmem>>, vector<1x1x512xf32>
    %75 = vector.broadcast %74 : vector<1x1x512xf32> to vector<1x8x512xf32>
    %76 = arith.addf %73, %75 : vector<1x8x512xf32>
    %cst_52 = arith.constant 0.000000e+00 : f32
    %77 = vector.broadcast %cst_52 : f32 to vector<1x8x512xf32>
    %78 = arith.maximumf %76, %77 : vector<1x8x512xf32>
    %79 = vector.shape_cast %78 : vector<1x8x512xf32> to vector<1x4x2x512xf32>
    %80 = vector.extract_strided_slice %79 {offsets = [0, 0, 0, 0], sizes = [1, 4, 1, 512], strides = [1, 1, 1, 1]} : vector<1x4x2x512xf32> to vector<1x4x1x512xf32>
    %81 = vector.shape_cast %80 : vector<1x4x1x512xf32> to vector<1x4x512xf32>
    %82 = vector.extract_strided_slice %79 {offsets = [0, 0, 1, 0], sizes = [1, 4, 1, 512], strides = [1, 1, 1, 1]} : vector<1x4x2x512xf32> to vector<1x4x1x512xf32>
    %83 = vector.shape_cast %82 : vector<1x4x1x512xf32> to vector<1x4x512xf32>
    %84 = arith.maximumf %81, %83 : vector<1x4x512xf32>
    %85 = vector.extract_strided_slice %84 {offsets = [0, 0, 0], sizes = [1, 4, 256], strides = [1, 1, 1]} : vector<1x4x512xf32> to vector<1x4x256xf32>
    %86 = vector.extract_strided_slice %84 {offsets = [0, 0, 256], sizes = [1, 4, 256], strides = [1, 1, 1]} : vector<1x4x512xf32> to vector<1x4x256xf32>
    %87 = arith.maximumf %85, %86 : vector<1x4x256xf32>
    %88 = arith.truncf %87 : vector<1x4x256xf32> to vector<1x4x256xbf16>
    %c0_53 = arith.constant 0 : index
    %c0_54 = arith.constant 0 : index
    %c0_55 = arith.constant 0 : index
    %89 = vector.load %arg6[%c0_53, %c0_54, %c0_55] : memref<1x4x256xbf16, #tpu.memory_space<vmem>>, vector<1x4x256xbf16>
    tpu.vector_store %arg6[%c0_53, %c0_54, %c0_55], %88 {strides = array<i32>} : memref<1x4x256xbf16, #tpu.memory_space<vmem>>, vector<1x4x256xbf16>,
    return
  }
  func.func @transform_0(%arg0: i32) -> (i32, i32, i32) {
    %c0_i32 = arith.constant 0 : i32
    %c0_i32_0 = arith.constant 0 : i32
    %c0_i32_1 = arith.constant 0 : i32
    return %arg0, %c0_i32, %c0_i32_0 : i32, i32, i32
  }
  func.func @transform_1(%arg0: i32) -> (i32, i32) {
    %c0_i32 = arith.constant 0 : i32
    %c0_i32_0 = arith.constant 0 : i32
    %c0_i32_1 = arith.constant 0 : i32
    return %c0_i32, %c0_i32_0 : i32, i32
  }
  func.func @transform_2(%arg0: i32) -> (i32, i32, i32) {
    %c0_i32 = arith.constant 0 : i32
    %c0_i32_0 = arith.constant 0 : i32
    %c0_i32_1 = arith.constant 0 : i32
    %c0_i32_2 = arith.constant 0 : i32
    return %c0_i32, %c0_i32_0, %c0_i32_1 : i32, i32, i32
  }
  func.func @transform_3(%arg0: i32) -> (i32, i32) {
    %c0_i32 = arith.constant 0 : i32
    %c0_i32_0 = arith.constant 0 : i32
    %c0_i32_1 = arith.constant 0 : i32
    return %c0_i32, %c0_i32_0 : i32, i32
  }
  func.func @transform_4(%arg0: i32) -> (i32, i32, i32) {
    %c0_i32 = arith.constant 0 : i32
    %c0_i32_0 = arith.constant 0 : i32
    %c0_i32_1 = arith.constant 0 : i32
    %c0_i32_2 = arith.constant 0 : i32
    return %c0_i32, %c0_i32_0, %c0_i32_1 : i32, i32, i32
  }
  func.func @transform_5(%arg0: i32) -> (i32, i32, i32) {
    %c0_i32 = arith.constant 0 : i32
    %c0_i32_0 = arith.constant 0 : i32
    %c0_i32_1 = arith.constant 0 : i32
    return %arg0, %c0_i32, %c0_i32_0 : i32, i32, i32
  }
}

module attributes {stable_mosaic.version = 11 : i64} {
  func.func @_linear_kernel(%arg0: i32, %arg1: memref<8x1024xbf16, #tpu.memory_space<vmem>>, %arg2: memref<1024x128xbf16, #tpu.memory_space<vmem>>, %arg3: memref<1x128xf32, #tpu.memory_space<vmem>>, %arg4: memref<8x128xf32, #tpu.memory_space<vmem>>) attributes {dimension_semantics = [#tpu.dimension_semantics<parallel>], iteration_bounds = array<i64: 1>, scalar_prefetch = 0 : i64, scratch_operands = 0 : i64, tpu.core_type = #tpu.core_type<tc>, window_params = [{transform_indices = @transform_0, window_bounds = array<i64: 8, 1024>}, {pipeline_mode = #tpu.pipeline_mode<synchronous>, transform_indices = @transform_1, window_bounds = array<i64: 1024, 128>}, {pipeline_mode = #tpu.pipeline_mode<synchronous>, transform_indices = @transform_2, window_bounds = array<i64: 1, 128>}, {transform_indices = @transform_3, window_bounds = array<i64: 8, 128>}]} {
    %c0 = arith.constant 0 : index
    %c0_0 = arith.constant 0 : index
    %0 = vector.load %arg1[%c0, %c0_0] : memref<8x1024xbf16, #tpu.memory_space<vmem>>, vector<8x1024xbf16>
    %c0_1 = arith.constant 0 : index
    %c0_2 = arith.constant 0 : index
    %1 = vector.load %arg2[%c0_1, %c0_2] : memref<1024x128xbf16, #tpu.memory_space<vmem>>, vector<1024x128xbf16>
    %cst = arith.constant dense<0.000000e+00> : vector<8x128xf32>
    %2 = tpu.matmul %0, %1, %cst {dimension_numbers = #tpu.dot_dimension_numbers<[1], [0], [0], [1], [0, 0, 1, 1], [], []>} : vector<8x1024xbf16>, vector<1024x128xbf16>, vector<8x128xf32> -> vector<8x128xf32>
    %c0_3 = arith.constant 0 : index
    %c0_4 = arith.constant 0 : index
    %3 = vector.load %arg3[%c0_3, %c0_4] : memref<1x128xf32, #tpu.memory_space<vmem>>, vector<1x128xf32>
    %4 = vector.broadcast %3 : vector<1x128xf32> to vector<8x128xf32>
    %5 = arith.addf %2, %4 : vector<8x128xf32>
    %cst_5 = arith.constant dense<0xFF800000> : vector<8xf32>
    %6 = vector.multi_reduction <maximumf>, %5, %cst_5 [1] : vector<8x128xf32> to vector<8xf32>
    %7 = vector.shape_cast %6 : vector<8xf32> to vector<8x1xf32>
    %8 = vector.broadcast %7 : vector<8x1xf32> to vector<8x128xf32>
    %9 = arith.subf %5, %8 : vector<8x128xf32>
    %10 = math.exp %9 : vector<8x128xf32>
    %cst_6 = arith.constant dense<0.000000e+00> : vector<8xf32>
    %11 = vector.multi_reduction <add>, %10, %cst_6 [1] : vector<8x128xf32> to vector<8xf32>
    %12 = vector.shape_cast %11 : vector<8xf32> to vector<8x1xf32>
    %13 = vector.broadcast %12 : vector<8x1xf32> to vector<8x128xf32>
    %14 = arith.divf %10, %13 : vector<8x128xf32>
    %c0_7 = arith.constant 0 : index
    %c0_8 = arith.constant 0 : index
    %15 = vector.load %arg4[%c0_7, %c0_8] : memref<8x128xf32, #tpu.memory_space<vmem>>, vector<8x128xf32>
    tpu.vector_store %arg4[%c0_7, %c0_8], %14 {strides = array<i32>} : memref<8x128xf32, #tpu.memory_space<vmem>>, vector<8x128xf32>,
    return
  }
  func.func @transform_0(%arg0: i32) -> (i32, i32) {
    %c0_i32 = arith.constant 0 : i32
    %c0_i32_0 = arith.constant 0 : i32
    return %arg0, %c0_i32 : i32, i32
  }
  func.func @transform_1(%arg0: i32) -> (i32, i32) {
    %c0_i32 = arith.constant 0 : i32
    %c0_i32_0 = arith.constant 0 : i32
    %c0_i32_1 = arith.constant 0 : i32
    return %c0_i32, %c0_i32_0 : i32, i32
  }
  func.func @transform_2(%arg0: i32) -> (i32, i32) {
    %c0_i32 = arith.constant 0 : i32
    %c0_i32_0 = arith.constant 0 : i32
    %c0_i32_1 = arith.constant 0 : i32
    return %c0_i32, %c0_i32_0 : i32, i32
  }
  func.func @transform_3(%arg0: i32) -> (i32, i32) {
    %c0_i32 = arith.constant 0 : i32
    %c0_i32_0 = arith.constant 0 : i32
    return %arg0, %c0_i32 : i32, i32
  }
}

</mosaic_0001>

<llo_original>
// kernel: astrodash_forward.5
$region0: #{astrodash_forward.5}
  #allocation0 [shape = 'u32[]', space=smem, size = 0x4, offset = 0x4, fixed_abs, tag = 'smem constant byte address 0x4 - core index']
  #allocation1 [shape = 'u32[144,128]{1,0:T(1,128)}', space=vmem, size = 0x12000, scoped, tag = 'internal scratch']
  %s0 = inlined_call_operand.vmem [shape: bf16[8,1024], index: 0, kind: input, shape index: {}]
  %s1 = inlined_call_operand.vmem [shape: bf16[1024,128], index: 1, kind: input, shape index: {}]
  %s2 = inlined_call_operand.vmem [shape: f32[1,128], index: 2, kind: input, shape index: {}]
  %s3 = inlined_call_operand.vmem [shape: f32[8,128], index: 3, kind: output, shape index: {}]
  %s4 = sld [smem:[#allocation0]]
  $region22: #{astrodash_forward.5} parent=0
    _
  %s6 = ssub.s32 1, %s4
  %s7 = scalar_select 0, %s6, %s4
  // Predicated region
  $region2: #{astrodash_forward.5} parent=0 // pred_check
    _
  $region3: #{astrodash_forward.5} parent=0 // pred_check_branch
    %9 = sbr.rel (0) target = $region5
  $region4: #{astrodash_forward.5} parent=0 // pred_region
    _
  $region5: #{astrodash_forward.5} parent=0 // pred_fallthru
    _
  // Predicated region
  $region6: #{astrodash_forward.5} parent=0 // pred_check
    _
  $region7: #{astrodash_forward.5} parent=0 // pred_check_branch
    %11 = sbr.rel (0) target = $region9
  $region8: #{astrodash_forward.5} parent=0 // pred_region
    _
  $region9: #{astrodash_forward.5} parent=0 // pred_fallthru
    _
  // Predicated region
  $region10: #{astrodash_forward.5} parent=0 // pred_check
    _
  $region11: #{astrodash_forward.5} parent=0 // pred_check_branch
    %13 = sbr.rel (0) target = $region13
  $region12: #{astrodash_forward.5} parent=0 // pred_region
    _
  $region13: #{astrodash_forward.5} parent=0 // pred_fallthru
    _
  %v15 = vld [vmem:[%s0] sm:$0xff]
  %v16 = vld [vmem:[%s0 + $0x8] sm:$0xff]
  %v17 = vld [vmem:[%s0 + $0x10] sm:$0xff]
  %v18 = vld [vmem:[%s0 + $0x18] sm:$0xff]
  %v19 = vld [vmem:[%s1] sm:$0xf]
  %v20 = vld [vmem:[%s1 + $0x4] sm:$0xf]
  %v21 = vld [vmem:[%s1 + $0x8] sm:$0xf]
  %v22 = vld [vmem:[%s1 + $0xc] sm:$0xf]
  %v23 = vld [vmem:[%s1 + $0x10] sm:$0xf]
  %v24 = vld [vmem:[%s1 + $0x14] sm:$0xf]
  %v25 = vld [vmem:[%s1 + $0x18] sm:$0xf]
  %v26 = vld [vmem:[%s1 + $0x1c] sm:$0xf]
  %v27 = vld [vmem:[%s1 + $0x20] sm:$0xf]
  %v28 = vld [vmem:[%s1 + $0x24] sm:$0xf]
  %v29 = vld [vmem:[%s1 + $0x28] sm:$0xf]
  %v30 = vld [vmem:[%s1 + $0x2c] sm:$0xf]
  %v31 = vld [vmem:[%s1 + $0x30] sm:$0xf]
  %v32 = vld [vmem:[%s1 + $0x34] sm:$0xf]
  %v33 = vld [vmem:[%s1 + $0x38] sm:$0xf]
  %v34 = vld [vmem:[%s1 + $0x3c] sm:$0xf]
  %v35 = vld [vmem:[%s1 + $0x40] sm:$0xf]
  %v36 = vld [vmem:[%s1 + $0x44] sm:$0xf]
  %v37 = vld [vmem:[%s1 + $0x48] sm:$0xf]
  %v38 = vld [vmem:[%s1 + $0x4c] sm:$0xf]
  %v39 = vld [vmem:[%s1 + $0x50] sm:$0xf]
  %v40 = vld [vmem:[%s1 + $0x54] sm:$0xf]
  %v41 = vld [vmem:[%s1 + $0x58] sm:$0xf]
  %v42 = vld [vmem:[%s1 + $0x5c] sm:$0xf]
  %v43 = vld [vmem:[%s1 + $0x60] sm:$0xf]
  %v44 = vld [vmem:[%s1 + $0x64] sm:$0xf]
  %v45 = vld [vmem:[%s1 + $0x68] sm:$0xf]
  %v46 = vld [vmem:[%s1 + $0x6c] sm:$0xf]
  %v47 = vld [vmem:[%s1 + $0x70] sm:$0xf]
  %v48 = vld [vmem:[%s1 + $0x74] sm:$0xf]
  %v49 = vld [vmem:[%s1 + $0x78] sm:$0xf]
  %v50 = vld [vmem:[%s1 + $0x7c] sm:$0xf]
  %v51 = vld [vmem:[%s1 + $0x80] sm:$0xf]
  %v52 = vld [vmem:[%s1 + $0x84] sm:$0xf]
  %v53 = vld [vmem:[%s1 + $0x88] sm:$0xf]
  %v54 = vld [vmem:[%s1 + $0x8c] sm:$0xf]
  %v55 = vld [vmem:[%s1 + $0x90] sm:$0xf]
  %v56 = vld [vmem:[%s1 + $0x94] sm:$0xf]
  %v57 = vld [vmem:[%s1 + $0x98] sm:$0xf]
  %v58 = vld [vmem:[%s1 + $0x9c] sm:$0xf]
  %v59 = vld [vmem:[%s1 + $0xa0] sm:$0xf]
  %v60 = vld [vmem:[%s1 + $0xa4] sm:$0xf]
  %v61 = vld [vmem:[%s1 + $0xa8] sm:$0xf]
  %v62 = vld [vmem:[%s1 + $0xac] sm:$0xf]
  %v63 = vld [vmem:[%s1 + $0xb0] sm:$0xf]
  %v64 = vld [vmem:[%s1 + $0xb4] sm:$0xf]
  %v65 = vld [vmem:[%s1 + $0xb8] sm:$0xf]
  %v66 = vld [vmem:[%s1 + $0xbc] sm:$0xf]
  %v67 = vld [vmem:[%s1 + $0xc0] sm:$0xf]
  %v68 = vld [vmem:[%s1 + $0xc4] sm:$0xf]
  %v69 = vld [vmem:[%s1 + $0xc8] sm:$0xf]
  %v70 = vld [vmem:[%s1 + $0xcc] sm:$0xf]
  %v71 = vld [vmem:[%s1 + $0xd0] sm:$0xf]
  %v72 = vld [vmem:[%s1 + $0xd4] sm:$0xf]
  %v73 = vld [vmem:[%s1 + $0xd8] sm:$0xf]
  %v74 = vld [vmem:[%s1 + $0xdc] sm:$0xf]
  %v75 = vld [vmem:[%s1 + $0xe0] sm:$0xf]
  %v76 = vld [vmem:[%s1 + $0xe4] sm:$0xf]
  %v77 = vld [vmem:[%s1 + $0xe8] sm:$0xf]
  %v78 = vld [vmem:[%s1 + $0xec] sm:$0xf]
  %v79 = vld [vmem:[%s1 + $0xf0] sm:$0xf]
  %v80 = vld [vmem:[%s1 + $0xf4] sm:$0xf]
  %v81 = vld [vmem:[%s1 + $0xf8] sm:$0xf]
  %v82 = vld [vmem:[%s1 + $0xfc] sm:$0xf]
  %v83 = vld [vmem:[%s1 + $0x100] sm:$0xf]
  %v84 = vld [vmem:[%s1 + $0x104] sm:$0xf]
  %v85 = vld [vmem:[%s1 + $0x108] sm:$0xf]
  %v86 = vld [vmem:[%s1 + $0x10c] sm:$0xf]
  %v87 = vld [vmem:[%s1 + $0x110] sm:$0xf]
  %v88 = vld [vmem:[%s1 + $0x114] sm:$0xf]
  %v89 = vld [vmem:[%s1 + $0x118] sm:$0xf]
  %v90 = vld [vmem:[%s1 + $0x11c] sm:$0xf]
  %v91 = vld [vmem:[%s1 + $0x120] sm:$0xf]
  %v92 = vld [vmem:[%s1 + $0x124] sm:$0xf]
  %v93 = vld [vmem:[%s1 + $0x128] sm:$0xf]
  %v94 = vld [vmem:[%s1 + $0x12c] sm:$0xf]
  %v95 = vld [vmem:[%s1 + $0x130] sm:$0xf]
  %v96 = vld [vmem:[%s1 + $0x134] sm:$0xf]
  %v97 = vld [vmem:[%s1 + $0x138] sm:$0xf]
  %v98 = vld [vmem:[%s1 + $0x13c] sm:$0xf]
  %v99 = vld [vmem:[%s1 + $0x140] sm:$0xf]
  %v100 = vld [vmem:[%s1 + $0x144] sm:$0xf]
  %v101 = vld [vmem:[%s1 + $0x148] sm:$0xf]
  %v102 = vld [vmem:[%s1 + $0x14c] sm:$0xf]
  %v103 = vld [vmem:[%s1 + $0x150] sm:$0xf]
  %v104 = vld [vmem:[%s1 + $0x154] sm:$0xf]
  %v105 = vld [vmem:[%s1 + $0x158] sm:$0xf]
  %v106 = vld [vmem:[%s1 + $0x15c] sm:$0xf]
  %v107 = vld [vmem:[%s1 + $0x160] sm:$0xf]
  %v108 = vld [vmem:[%s1 + $0x164] sm:$0xf]
  %v109 = vld [vmem:[%s1 + $0x168] sm:$0xf]
  %v110 = vld [vmem:[%s1 + $0x16c] sm:$0xf]
  %v111 = vld [vmem:[%s1 + $0x170] sm:$0xf]
  %v112 = vld [vmem:[%s1 + $0x174] sm:$0xf]
  %v113 = vld [vmem:[%s1 + $0x178] sm:$0xf]
  %v114 = vld [vmem:[%s1 + $0x17c] sm:$0xf]
  %v115 = vld [vmem:[%s1 + $0x180] sm:$0xf]
  %v116 = vld [vmem:[%s1 + $0x184] sm:$0xf]
  %v117 = vld [vmem:[%s1 + $0x188] sm:$0xf]
  %v118 = vld [vmem:[%s1 + $0x18c] sm:$0xf]
  %v119 = vld [vmem:[%s1 + $0x190] sm:$0xf]
  %v120 = vld [vmem:[%s1 + $0x194] sm:$0xf]
  %v121 = vld [vmem:[%s1 + $0x198] sm:$0xf]
  %v122 = vld [vmem:[%s1 + $0x19c] sm:$0xf]
  %v123 = vld [vmem:[%s1 + $0x1a0] sm:$0xf]
  %v124 = vld [vmem:[%s1 + $0x1a4] sm:$0xf]
  %v125 = vld [vmem:[%s1 + $0x1a8] sm:$0xf]
  %v126 = vld [vmem:[%s1 + $0x1ac] sm:$0xf]
  %v127 = vld [vmem:[%s1 + $0x1b0] sm:$0xf]
  %v128 = vld [vmem:[%s1 + $0x1b4] sm:$0xf]
  %v129 = vld [vmem:[%s1 + $0x1b8] sm:$0xf]
  %v130 = vld [vmem:[%s1 + $0x1bc] sm:$0xf]
  %v131 = vld [vmem:[%s1 + $0x1c0] sm:$0xf]
  %v132 = vld [vmem:[%s1 + $0x1c4] sm:$0xf]
  %v133 = vld [vmem:[%s1 + $0x1c8] sm:$0xf]
  %v134 = vld [vmem:[%s1 + $0x1cc] sm:$0xf]
  %v135 = vld [vmem:[%s1 + $0x1d0] sm:$0xf]
  %v136 = vld [vmem:[%s1 + $0x1d4] sm:$0xf]
  %v137 = vld [vmem:[%s1 + $0x1d8] sm:$0xf]
  %v138 = vld [vmem:[%s1 + $0x1dc] sm:$0xf]
  %v139 = vld [vmem:[%s1 + $0x1e0] sm:$0xf]
  %v140 = vld [vmem:[%s1 + $0x1e4] sm:$0xf]
  %v141 = vld [vmem:[%s1 + $0x1e8] sm:$0xf]
  %v142 = vld [vmem:[%s1 + $0x1ec] sm:$0xf]
  %v143 = vld [vmem:[%s1 + $0x1f0] sm:$0xf]
  %v144 = vld [vmem:[%s1 + $0x1f4] sm:$0xf]
  %v145 = vld [vmem:[%s1 + $0x1f8] sm:$0xf]
  %v146 = vld [vmem:[%s1 + $0x1fc] sm:$0xf]
  %v147 = vld [vmem:[%s2] sm:$0x1]
  %v149 = vlaneseq
  %v150 = vshrl.u32 %v149, 7
  %v151 = vsub.s32 0, %v150
  %v152 = vrot.slane %v147, %v151
  %v158 = vunpack.c.l.b16 %v15
  %v159 = vunpack.c.h.b16 %v15
  %v160 = vunpack.c.l.b16 %v16
  %v161 = vunpack.c.h.b16 %v16
  %v162 = vunpack.c.l.b16 %v17
  %v163 = vunpack.c.h.b16 %v17
  %v164 = vunpack.c.l.b16 %v18
  %v165 = vunpack.c.h.b16 %v18
  %v166 = vpack.c.b16 %v158, %v158
  %v167 = vpack.c.b16 %v159, %v159
  %v168 = vpack.c.b16 %v160, %v160
  %v169 = vpack.c.b16 %v161, %v161
  %v170 = vpack.c.b16 %v162, %v162
  %v171 = vpack.c.b16 %v163, %v163
  %v172 = vpack.c.b16 %v164, %v164
  %v173 = vpack.c.b16 %v165, %v165
  %v310 = vunpack.c.l.b16 %v19
  %v311 = vunpack.c.l.b16 %v20
  %v312 = vunpack.c.l.b16 %v21
  %v313 = vunpack.c.l.b16 %v22
  %v314 = vunpack.c.l.b16 %v23
  %v315 = vunpack.c.l.b16 %v24
  %v316 = vunpack.c.l.b16 %v25
  %v317 = vunpack.c.l.b16 %v26
  %v318 = vunpack.c.l.b16 %v27
  %v319 = vunpack.c.l.b16 %v28
  %v320 = vunpack.c.l.b16 %v29
  %v321 = vunpack.c.l.b16 %v30
  %v322 = vunpack.c.l.b16 %v31
  %v323 = vunpack.c.l.b16 %v32
  %v324 = vunpack.c.l.b16 %v33
  %v325 = vunpack.c.l.b16 %v34
  %v326 = vunpack.c.l.b16 %v35
  %v327 = vunpack.c.l.b16 %v36
  %v328 = vunpack.c.l.b16 %v37
  %v329 = vunpack.c.l.b16 %v38
  %v330 = vunpack.c.l.b16 %v39
  %v331 = vunpack.c.l.b16 %v40
  %v332 = vunpack.c.l.b16 %v41
  %v333 = vunpack.c.l.b16 %v42
  %v334 = vunpack.c.l.b16 %v43
  %v335 = vunpack.c.l.b16 %v44
  %v336 = vunpack.c.l.b16 %v45
  %v337 = vunpack.c.l.b16 %v46
  %v338 = vunpack.c.l.b16 %v47
  %v339 = vunpack.c.l.b16 %v48
  %v340 = vunpack.c.l.b16 %v49
  %v341 = vunpack.c.l.b16 %v50
  %v342 = vunpack.c.l.b16 %v51
  %v343 = vunpack.c.l.b16 %v52
  %v344 = vunpack.c.l.b16 %v53
  %v345 = vunpack.c.l.b16 %v54
  %v346 = vunpack.c.l.b16 %v55
  %v347 = vunpack.c.l.b16 %v56
  %v348 = vunpack.c.l.b16 %v57
  %v349 = vunpack.c.l.b16 %v58
  %v350 = vunpack.c.l.b16 %v59
  %v351 = vunpack.c.l.b16 %v60
  %v352 = vunpack.c.l.b16 %v61
  %v353 = vunpack.c.l.b16 %v62
  %v354 = vunpack.c.l.b16 %v63
  %v355 = vunpack.c.l.b16 %v64
  %v356 = vunpack.c.l.b16 %v65
  %v357 = vunpack.c.l.b16 %v66
  %v358 = vunpack.c.l.b16 %v67
  %v359 = vunpack.c.l.b16 %v68
  %v360 = vunpack.c.l.b16 %v69
  %v361 = vunpack.c.l.b16 %v70
  %v362 = vunpack.c.l.b16 %v71
  %v363 = vunpack.c.l.b16 %v72
  %v364 = vunpack.c.l.b16 %v73
  %v365 = vunpack.c.l.b16 %v74
  %v366 = vunpack.c.l.b16 %v75
  %v367 = vunpack.c.l.b16 %v76
  %v368 = vunpack.c.l.b16 %v77
  %v369 = vunpack.c.l.b16 %v78
  %v370 = vunpack.c.l.b16 %v79
  %v371 = vunpack.c.l.b16 %v80
  %v372 = vunpack.c.l.b16 %v81
  %v373 = vunpack.c.l.b16 %v82
  %v374 = vunpack.c.l.b16 %v83
  %v375 = vunpack.c.l.b16 %v84
  %v376 = vunpack.c.l.b16 %v85
  %v377 = vunpack.c.l.b16 %v86
  %v378 = vunpack.c.l.b16 %v87
  %v379 = vunpack.c.l.b16 %v88
  %v380 = vunpack.c.l.b16 %v89
  %v381 = vunpack.c.l.b16 %v90
  %v382 = vunpack.c.l.b16 %v91
  %v383 = vunpack.c.l.b16 %v92
  %v384 = vunpack.c.l.b16 %v93
  %v385 = vunpack.c.l.b16 %v94
  %v386 = vunpack.c.l.b16 %v95
  %v387 = vunpack.c.l.b16 %v96
  %v388 = vunpack.c.l.b16 %v97
  %v389 = vunpack.c.l.b16 %v98
  %v390 = vunpack.c.l.b16 %v99
  %v391 = vunpack.c.l.b16 %v100
  %v392 = vunpack.c.l.b16 %v101
  %v393 = vunpack.c.l.b16 %v102
  %v394 = vunpack.c.l.b16 %v103
  %v395 = vunpack.c.l.b16 %v104
  %v396 = vunpack.c.l.b16 %v105
  %v397 = vunpack.c.l.b16 %v106
  %v398 = vunpack.c.l.b16 %v107
  %v399 = vunpack.c.l.b16 %v108
  %v400 = vunpack.c.l.b16 %v109
  %v401 = vunpack.c.l.b16 %v110
  %v402 = vunpack.c.l.b16 %v111
  %v403 = vunpack.c.l.b16 %v112
  %v404 = vunpack.c.l.b16 %v113
  %v405 = vunpack.c.l.b16 %v114
  %v406 = vunpack.c.l.b16 %v115
  %v407 = vunpack.c.l.b16 %v116
  %v408 = vunpack.c.l.b16 %v117
  %v409 = vunpack.c.l.b16 %v118
  %v410 = vunpack.c.l.b16 %v119
  %v411 = vunpack.c.l.b16 %v120
  %v412 = vunpack.c.l.b16 %v121
  %v413 = vunpack.c.l.b16 %v122
  %v414 = vunpack.c.l.b16 %v123
  %v415 = vunpack.c.l.b16 %v124
  %v416 = vunpack.c.l.b16 %v125
  %v417 = vunpack.c.l.b16 %v126
  %v418 = vunpack.c.l.b16 %v127
  %v419 = vunpack.c.l.b16 %v128
  %v420 = vunpack.c.l.b16 %v129
  %v421 = vunpack.c.l.b16 %v130
  %v422 = vunpack.c.l.b16 %v131
  %v423 = vunpack.c.l.b16 %v132
  %v424 = vunpack.c.l.b16 %v133
  %v425 = vunpack.c.l.b16 %v134
  %v426 = vunpack.c.l.b16 %v135
  %v427 = vunpack.c.l.b16 %v136
  %v428 = vunpack.c.l.b16 %v137
  %v429 = vunpack.c.l.b16 %v138
  %v430 = vunpack.c.l.b16 %v139
  %v431 = vunpack.c.l.b16 %v140
  %v432 = vunpack.c.l.b16 %v141
  %v433 = vunpack.c.l.b16 %v142
  %v434 = vunpack.c.l.b16 %v143
  %v435 = vunpack.c.l.b16 %v144
  %v436 = vunpack.c.l.b16 %v145
  %v437 = vunpack.c.l.b16 %v146
  %v438 = vpack.c.b16 %v311, %v310
  %v439 = vpack.c.b16 %v313, %v312
  %v440 = vpack.c.b16 %v315, %v314
  %v441 = vpack.c.b16 %v317, %v316
  %v442 = vpack.c.b16 %v319, %v318
  %v443 = vpack.c.b16 %v321, %v320
  %v444 = vpack.c.b16 %v323, %v322
  %v445 = vpack.c.b16 %v325, %v324
  %v446 = vpack.c.b16 %v327, %v326
  %v447 = vpack.c.b16 %v329, %v328
  %v448 = vpack.c.b16 %v331, %v330
  %v449 = vpack.c.b16 %v333, %v332
  %v450 = vpack.c.b16 %v335, %v334
  %v451 = vpack.c.b16 %v337, %v336
  %v452 = vpack.c.b16 %v339, %v338
  %v453 = vpack.c.b16 %v341, %v340
  %v454 = vpack.c.b16 %v343, %v342
  %v455 = vpack.c.b16 %v345, %v344
  %v456 = vpack.c.b16 %v347, %v346
  %v457 = vpack.c.b16 %v349, %v348
  %v458 = vpack.c.b16 %v351, %v350
  %v459 = vpack.c.b16 %v353, %v352
  %v460 = vpack.c.b16 %v355, %v354
  %v461 = vpack.c.b16 %v357, %v356
  %v462 = vpack.c.b16 %v359, %v358
  %v463 = vpack.c.b16 %v361, %v360
  %v464 = vpack.c.b16 %v363, %v362
  %v465 = vpack.c.b16 %v365, %v364
  %v466 = vpack.c.b16 %v367, %v366
  %v467 = vpack.c.b16 %v369, %v368
  %v468 = vpack.c.b16 %v371, %v370
  %v469 = vpack.c.b16 %v373, %v372
  %v470 = vpack.c.b16 %v375, %v374
  %v471 = vpack.c.b16 %v377, %v376
  %v472 = vpack.c.b16 %v379, %v378
  %v473 = vpack.c.b16 %v381, %v380
  %v474 = vpack.c.b16 %v383, %v382
  %v475 = vpack.c.b16 %v385, %v384
  %v476 = vpack.c.b16 %v387, %v386
  %v477 = vpack.c.b16 %v389, %v388
  %v478 = vpack.c.b16 %v391, %v390
  %v479 = vpack.c.b16 %v393, %v392
  %v480 = vpack.c.b16 %v395, %v394
  %v481 = vpack.c.b16 %v397, %v396
  %v482 = vpack.c.b16 %v399, %v398
  %v483 = vpack.c.b16 %v401, %v400
  %v484 = vpack.c.b16 %v403, %v402
  %v485 = vpack.c.b16 %v405, %v404
  %v486 = vpack.c.b16 %v407, %v406
  %v487 = vpack.c.b16 %v409, %v408
  %v488 = vpack.c.b16 %v411, %v410
  %v489 = vpack.c.b16 %v413, %v412
  %v490 = vpack.c.b16 %v415, %v414
  %v491 = vpack.c.b16 %v417, %v416
  %v492 = vpack.c.b16 %v419, %v418
  %v493 = vpack.c.b16 %v421, %v420
  %v494 = vpack.c.b16 %v423, %v422
  %v495 = vpack.c.b16 %v425, %v424
  %v496 = vpack.c.b16 %v427, %v426
  %v497 = vpack.c.b16 %v429, %v428
  %v498 = vpack.c.b16 %v431, %v430
  %v499 = vpack.c.b16 %v433, %v432
  %v500 = vpack.c.b16 %v435, %v434
  %v501 = vpack.c.b16 %v437, %v436
  %566 = vmatprep.subr.bf16.mxu0 0
  %567 = vmatpush1.bf16.msra.mxu0 %v438
  %568 = vmatprep.subr.bf16.mxu0 0
  %569 = vmatpush1.bf16.msra.mxu0 %v439
  %570 = vmatprep.subr.bf16.mxu0 0
  %571 = vmatpush1.bf16.msra.mxu0 %v440
  %572 = vmatprep.subr.bf16.mxu0 0
  %573 = vmatpush1.bf16.msra.mxu0 %v441
  %574 = vmatprep.subr.bf16.mxu0 0
  %575 = vmatpush1.bf16.msra.mxu0 %v442
  %576 = vmatprep.subr.bf16.mxu0 0
  %577 = vmatpush1.bf16.msra.mxu0 %v443
  %578 = vmatprep.subr.bf16.mxu0 0
  %579 = vmatpush1.bf16.msra.mxu0 %v444
  %580 = vmatprep.subr.bf16.mxu0 0
  %581 = vmatpush1.bf16.msra.mxu0 %v445
  %582 = vmatprep.subr.bf16.mxu0 0
  %583 = vmatpush1.bf16.msra.mxu0 %v446
  %584 = vmatprep.subr.bf16.mxu0 0
  %585 = vmatpush1.bf16.msra.mxu0 %v447
  %586 = vmatprep.subr.bf16.mxu0 0
  %587 = vmatpush1.bf16.msra.mxu0 %v448
  %588 = vmatprep.subr.bf16.mxu0 0
  %589 = vmatpush1.bf16.msra.mxu0 %v449
  %590 = vmatprep.subr.bf16.mxu0 0
  %591 = vmatpush1.bf16.msra.mxu0 %v450
  %592 = vmatprep.subr.bf16.mxu0 0
  %593 = vmatpush1.bf16.msra.mxu0 %v451
  %594 = vmatprep.subr.bf16.mxu0 0
  %595 = vmatpush1.bf16.msra.mxu0 %v452
  %596 = vmatprep.subr.bf16.mxu0 0
  %597 = vmatpush1.bf16.msra.mxu0 %v453
  %598 = vmatprep.mubr.bf16.mxu0 %v167
  %599 = vmatmul.mubr.bf16.gmra.mrb[0].mxu0 %v166
  %v600 = vpop.f32.mrb[0].mxu0
  %v601 = vadd.f32 %v152, %v600
  %v602 = vpop.f32.mrb[0].mxu0
  %v603 = vpop.f32.mrb[0].mxu0
  %v604 = vpop.f32.mrb[0].mxu0
  %605 = vdwg.mxu0
  %606 = vmatprep.subr.bf16.mxu0 0
  %607 = vmatpush1.bf16.msra.mxu0 %v454
  %608 = vmatprep.subr.bf16.mxu0 0
  %609 = vmatpush1.bf16.msra.mxu0 %v455
  %610 = vmatprep.subr.bf16.mxu0 0
  %611 = vmatpush1.bf16.msra.mxu0 %v456
  %612 = vmatprep.subr.bf16.mxu0 0
  %613 = vmatpush1.bf16.msra.mxu0 %v457
  %614 = vmatprep.subr.bf16.mxu0 0
  %615 = vmatpush1.bf16.msra.mxu0 %v458
  %616 = vmatprep.subr.bf16.mxu0 0
  %617 = vmatpush1.bf16.msra.mxu0 %v459
  %618 = vmatprep.subr.bf16.mxu0 0
  %619 = vmatpush1.bf16.msra.mxu0 %v460
  %620 = vmatprep.subr.bf16.mxu0 0
  %621 = vmatpush1.bf16.msra.mxu0 %v461
  %622 = vmatprep.subr.bf16.mxu0 0
  %623 = vmatpush1.bf16.msra.mxu0 %v462
  %624 = vmatprep.subr.bf16.mxu0 0
  %625 = vmatpush1.bf16.msra.mxu0 %v463
  %626 = vmatprep.subr.bf16.mxu0 0
  %627 = vmatpush1.bf16.msra.mxu0 %v464
  %628 = vmatprep.subr.bf16.mxu0 0
  %629 = vmatpush1.bf16.msra.mxu0 %v465
  %630 = vmatprep.subr.bf16.mxu0 0
  %631 = vmatpush1.bf16.msra.mxu0 %v466
  %632 = vmatprep.subr.bf16.mxu0 0
  %633 = vmatpush1.bf16.msra.mxu0 %v467
  %634 = vmatprep.subr.bf16.mxu0 0
  %635 = vmatpush1.bf16.msra.mxu0 %v468
  %636 = vmatprep.subr.bf16.mxu0 0
  %637 = vmatpush1.bf16.msra.mxu0 %v469
  %638 = vmatprep.mubr.bf16.mxu0 %v169
  %639 = vmatmul.mubr.bf16.gmra.mrb[0].mxu0 %v168
  %v640 = vpop.f32.mrb[0].mxu0
  %v641 = vadd.f32 %v601, %v640
  %v642 = vpop.f32.mrb[0].mxu0
  %v643 = vpop.f32.mrb[0].mxu0
  %v644 = vpop.f32.mrb[0].mxu0
  %645 = vdwg.mxu0
  %646 = vmatprep.subr.bf16.mxu0 0
  %647 = vmatpush1.bf16.msra.mxu0 %v470
  %648 = vmatprep.subr.bf16.mxu0 0
  %649 = vmatpush1.bf16.msra.mxu0 %v471
  %650 = vmatprep.subr.bf16.mxu0 0
  %651 = vmatpush1.bf16.msra.mxu0 %v472
  %652 = vmatprep.subr.bf16.mxu0 0
  %653 = vmatpush1.bf16.msra.mxu0 %v473
  %654 = vmatprep.subr.bf16.mxu0 0
  %655 = vmatpush1.bf16.msra.mxu0 %v474
  %656 = vmatprep.subr.bf16.mxu0 0
  %657 = vmatpush1.bf16.msra.mxu0 %v475
  %658 = vmatprep.subr.bf16.mxu0 0
  %659 = vmatpush1.bf16.msra.mxu0 %v476
  %660 = vmatprep.subr.bf16.mxu0 0
  %661 = vmatpush1.bf16.msra.mxu0 %v477
  %662 = vmatprep.subr.bf16.mxu0 0
  %663 = vmatpush1.bf16.msra.mxu0 %v478
  %664 = vmatprep.subr.bf16.mxu0 0
  %665 = vmatpush1.bf16.msra.mxu0 %v479
  %666 = vmatprep.subr.bf16.mxu0 0
  %667 = vmatpush1.bf16.msra.mxu0 %v480
  %668 = vmatprep.subr.bf16.mxu0 0
  %669 = vmatpush1.bf16.msra.mxu0 %v481
  %670 = vmatprep.subr.bf16.mxu0 0
  %671 = vmatpush1.bf16.msra.mxu0 %v482
  %672 = vmatprep.subr.bf16.mxu0 0
  %673 = vmatpush1.bf16.msra.mxu0 %v483
  %674 = vmatprep.subr.bf16.mxu0 0
  %675 = vmatpush1.bf16.msra.mxu0 %v484
  %676 = vmatprep.subr.bf16.mxu0 0
  %677 = vmatpush1.bf16.msra.mxu0 %v485
  %678 = vmatprep.mubr.bf16.mxu0 %v171
  %679 = vmatmul.mubr.bf16.gmra.mrb[0].mxu0 %v170
  %v680 = vpop.f32.mrb[0].mxu0
  %v681 = vadd.f32 %v641, %v680
  %v682 = vpop.f32.mrb[0].mxu0
  %v683 = vpop.f32.mrb[0].mxu0
  %v684 = vpop.f32.mrb[0].mxu0
  %685 = vdwg.mxu0
  %686 = vmatprep.subr.bf16.mxu0 0
  %687 = vmatpush1.bf16.msra.mxu0 %v486
  %688 = vmatprep.subr.bf16.mxu0 0
  %689 = vmatpush1.bf16.msra.mxu0 %v487
  %690 = vmatprep.subr.bf16.mxu0 0
  %691 = vmatpush1.bf16.msra.mxu0 %v488
  %692 = vmatprep.subr.bf16.mxu0 0
  %693 = vmatpush1.bf16.msra.mxu0 %v489
  %694 = vmatprep.subr.bf16.mxu0 0
  %695 = vmatpush1.bf16.msra.mxu0 %v490
  %696 = vmatprep.subr.bf16.mxu0 0
  %697 = vmatpush1.bf16.msra.mxu0 %v491
  %698 = vmatprep.subr.bf16.mxu0 0
  %699 = vmatpush1.bf16.msra.mxu0 %v492
  %700 = vmatprep.subr.bf16.mxu0 0
  %701 = vmatpush1.bf16.msra.mxu0 %v493
  %702 = vmatprep.subr.bf16.mxu0 0
  %703 = vmatpush1.bf16.msra.mxu0 %v494
  %704 = vmatprep.subr.bf16.mxu0 0
  %705 = vmatpush1.bf16.msra.mxu0 %v495
  %706 = vmatprep.subr.bf16.mxu0 0
  %707 = vmatpush1.bf16.msra.mxu0 %v496
  %708 = vmatprep.subr.bf16.mxu0 0
  %709 = vmatpush1.bf16.msra.mxu0 %v497
  %710 = vmatprep.subr.bf16.mxu0 0
  %711 = vmatpush1.bf16.msra.mxu0 %v498
  %712 = vmatprep.subr.bf16.mxu0 0
  %713 = vmatpush1.bf16.msra.mxu0 %v499
  %714 = vmatprep.subr.bf16.mxu0 0
  %715 = vmatpush1.bf16.msra.mxu0 %v500
  %716 = vmatprep.subr.bf16.mxu0 0
  %717 = vmatpush1.bf16.msra.mxu0 %v501
  %718 = vmatprep.mubr.bf16.mxu0 %v173
  %719 = vmatmul.mubr.bf16.gmra.mrb[0].mxu0 %v172
  %v720 = vpop.f32.mrb[0].mxu0
  %v721 = vadd.f32 %v681, %v720
  %v722 = vpop.f32.mrb[0].mxu0
  %v723 = vpop.f32.mrb[0].mxu0
  %v724 = vpop.f32.mrb[0].mxu0
  %725 = vdwg.mxu0
  %726 = vmax.xlane.f32.xlu0 %v721
  %v727 = vpop.xlane.xlu0 %726
  %v728 = vsub.f32 %v721, %v727
  %v729 = vmul.f32 %v728, 1.442695
  %v730 = vpow.pop %v729
  %731 = vadd.xlane.f32.xlu0 %v730
  %v732 = vpop.xlane.xlu0 %731
  %v733 = vrcp.pop %v732
  %v734 = vmul.f32 %v730, %v733
  %735 = vst [vmem:[%s3] sm:$0xff] %v734
  // Predicated region
  $region14: #{astrodash_forward.5} parent=0 // pred_check
    _
  $region15: #{astrodash_forward.5} parent=0 // pred_check_branch
    %737 = sbr.rel (0) target = $region17
  $region16: #{astrodash_forward.5} parent=0 // pred_region
    _
  $region17: #{astrodash_forward.5} parent=0 // pred_fallthru
    _
  // Predicated region
  $region18: #{astrodash_forward.5} parent=0 // pred_check
    _
  $region19: #{astrodash_forward.5} parent=0 // pred_check_branch
    %739 = sbr.rel (0) target = $region21
  $region20: #{astrodash_forward.5} parent=0 // pred_region
    _
  $region21: #{astrodash_forward.5} parent=0 // pred_fallthru
    _

// kernel: astrodash_forward.4
$region0: #{astrodash_forward.4}
  #allocation0 [shape = 'u32[]', space=smem, size = 0x4, offset = 0x4, fixed_abs, tag = 'smem constant byte address 0x4 - core index']
  #allocation1 [shape = 'u32[144,128]{1,0:T(1,128)}', space=vmem, size = 0x12000, scoped, tag = 'internal scratch']
  %s0 = inlined_call_operand.vmem [shape: bf16[8,1024], index: 0, kind: input, shape index: {}]
  %s1 = inlined_call_operand.vmem [shape: bf16[1024,1024], index: 1, kind: input, shape index: {}]
  %s2 = inlined_call_operand.vmem [shape: f32[1,1024], index: 2, kind: input, shape index: {}]
  %s3 = inlined_call_operand.vmem [shape: bf16[8,1024], index: 3, kind: output, shape index: {}]
  %s4 = sld [smem:[#allocation0]]
  $region22: #{astrodash_forward.4} parent=0
    _
  %s6 = ssub.s32 1, %s4
  %s7 = scalar_select 0, %s6, %s4
  // Predicated region
  $region2: #{astrodash_forward.4} parent=0 // pred_check
    _
  $region3: #{astrodash_forward.4} parent=0 // pred_check_branch
    %9 = sbr.rel (0) target = $region5
  $region4: #{astrodash_forward.4} parent=0 // pred_region
    _
  $region5: #{astrodash_forward.4} parent=0 // pred_fallthru
    _
  // Predicated region
  $region6: #{astrodash_forward.4} parent=0 // pred_check
    _
  $region7: #{astrodash_forward.4} parent=0 // pred_check_branch
    %11 = sbr.rel (0) target = $region9
  $region8: #{astrodash_forward.4} parent=0 // pred_region
    _
  $region9: #{astrodash_forward.4} parent=0 // pred_fallthru
    _
  // Predicated region
  $region10: #{astrodash_forward.4} parent=0 // pred_check
    _
  $region11: #{astrodash_forward.4} parent=0 // pred_check_branch
    %13 = sbr.rel (0) target = $region13
  $region12: #{astrodash_forward.4} parent=0 // pred_region
    _
  $region13: #{astrodash_forward.4} parent=0 // pred_fallthru
    _
  %v14 = vld [vmem:[%s0] sm:$0xff]
  %v15 = vld [vmem:[%s0 + $0x8] sm:$0xff]
  %v16 = vld [vmem:[%s0 + $0x10] sm:$0xff]
  %v17 = vld [vmem:[%s0 + $0x18] sm:$0xff]
  %v18 = vld [vmem:[%s1] sm:$0xff]
  %v19 = vld [vmem:[%s1 + $0x8] sm:$0xff]
  %v20 = vld [vmem:[%s1 + $0x10] sm:$0xff]
  %v21 = vld [vmem:[%s1 + $0x18] sm:$0xff]
  %v22 = vld [vmem:[%s1 + $0x20] sm:$0xff]
  %v23 = vld [vmem:[%s1 + $0x28] sm:$0xff]
  %v24 = vld [vmem:[%s1 + $0x30] sm:$0xff]
  %v25 = vld [vmem:[%s1 + $0x38] sm:$0xff]
  %v26 = vld [vmem:[%s1 + $0x40] sm:$0xff]
  %v27 = vld [vmem:[%s1 + $0x48] sm:$0xff]
  %v28 = vld [vmem:[%s1 + $0x50] sm:$0xff]
  %v29 = vld [vmem:[%s1 + $0x58] sm:$0xff]
  %v30 = vld [vmem:[%s1 + $0x60] sm:$0xff]
  %v31 = vld [vmem:[%s1 + $0x68] sm:$0xff]
  %v32 = vld [vmem:[%s1 + $0x70] sm:$0xff]
  %v33 = vld [vmem:[%s1 + $0x78] sm:$0xff]
  %v34 = vld [vmem:[%s1 + $0x80] sm:$0xff]
  %v35 = vld [vmem:[%s1 + $0x88] sm:$0xff]
  %v36 = vld [vmem:[%s1 + $0x90] sm:$0xff]
  %v37 = vld [vmem:[%s1 + $0x98] sm:$0xff]
  %v38 = vld [vmem:[%s1 + $0xa0] sm:$0xff]
  %v39 = vld [vmem:[%s1 + $0xa8] sm:$0xff]
  %v40 = vld [vmem:[%s1 + $0xb0] sm:$0xff]
  %v41 = vld [vmem:[%s1 + $0xb8] sm:$0xff]
  %v42 = vld [vmem:[%s1 + $0xc0] sm:$0xff]
  %v43 = vld [vmem:[%s1 + $0xc8] sm:$0xff]
  %v44 = vld [vmem:[%s1 + $0xd0] sm:$0xff]
  %v45 = vld [vmem:[%s1 + $0xd8] sm:$0xff]
  %v46 = vld [vmem:[%s1 + $0xe0] sm:$0xff]
  %v47 = vld [vmem:[%s1 + $0xe8] sm:$0xff]
  %v48 = vld [vmem:[%s1 + $0xf0] sm:$0xff]
  %v49 = vld [vmem:[%s1 + $0xf8] sm:$0xff]
  %v50 = vld [vmem:[%s1 + $0x100] sm:$0xff]
  %v51 = vld [vmem:[%s1 + $0x108] sm:$0xff]
  %v52 = vld [vmem:[%s1 + $0x110] sm:$0xff]
  %v53 = vld [vmem:[%s1 + $0x118] sm:$0xff]
  %v54 = vld [vmem:[%s1 + $0x120] sm:$0xff]
  %v55 = vld [vmem:[%s1 + $0x128] sm:$0xff]
  %v56 = vld [vmem:[%s1 + $0x130] sm:$0xff]
  %v57 = vld [vmem:[%s1 + $0x138] sm:$0xff]
  %v58 = vld [vmem:[%s1 + $0x140] sm:$0xff]
  %v59 = vld [vmem:[%s1 + $0x148] sm:$0xff]
  %v60 = vld [vmem:[%s1 + $0x150] sm:$0xff]
  %v61 = vld [vmem:[%s1 + $0x158] sm:$0xff]
  %v62 = vld [vmem:[%s1 + $0x160] sm:$0xff]
  %v63 = vld [vmem:[%s1 + $0x168] sm:$0xff]
  %v64 = vld [vmem:[%s1 + $0x170] sm:$0xff]
  %v65 = vld [vmem:[%s1 + $0x178] sm:$0xff]
  %v66 = vld [vmem:[%s1 + $0x180] sm:$0xff]
  %v67 = vld [vmem:[%s1 + $0x188] sm:$0xff]
  %v68 = vld [vmem:[%s1 + $0x190] sm:$0xff]
  %v69 = vld [vmem:[%s1 + $0x198] sm:$0xff]
  %v70 = vld [vmem:[%s1 + $0x1a0] sm:$0xff]
  %v71 = vld [vmem:[%s1 + $0x1a8] sm:$0xff]
  %v72 = vld [vmem:[%s1 + $0x1b0] sm:$0xff]
  %v73 = vld [vmem:[%s1 + $0x1b8] sm:$0xff]
  %v74 = vld [vmem:[%s1 + $0x1c0] sm:$0xff]
  %v75 = vld [vmem:[%s1 + $0x1c8] sm:$0xff]
  %v76 = vld [vmem:[%s1 + $0x1d0] sm:$0xff]
  %v77 = vld [vmem:[%s1 + $0x1d8] sm:$0xff]
  %v78 = vld [vmem:[%s1 + $0x1e0] sm:$0xff]
  %v79 = vld [vmem:[%s1 + $0x1e8] sm:$0xff]
  %v80 = vld [vmem:[%s1 + $0x1f0] sm:$0xff]
  %v81 = vld [vmem:[%s1 + $0x1f8] sm:$0xff]
  %v82 = vld [vmem:[%s1 + $0x200] sm:$0xff]
  %v83 = vld [vmem:[%s1 + $0x208] sm:$0xff]
  %v84 = vld [vmem:[%s1 + $0x210] sm:$0xff]
  %v85 = vld [vmem:[%s1 + $0x218] sm:$0xff]
  %v86 = vld [vmem:[%s1 + $0x220] sm:$0xff]
  %v87 = vld [vmem:[%s1 + $0x228] sm:$0xff]
  %v88 = vld [vmem:[%s1 + $0x230] sm:$0xff]
  %v89 = vld [vmem:[%s1 + $0x238] sm:$0xff]
  %v90 = vld [vmem:[%s1 + $0x240] sm:$0xff]
  %v91 = vld [vmem:[%s1 + $0x248] sm:$0xff]
  %v92 = vld [vmem:[%s1 + $0x250] sm:$0xff]
  %v93 = vld [vmem:[%s1 + $0x258] sm:$0xff]
  %v94 = vld [vmem:[%s1 + $0x260] sm:$0xff]
  %v95 = vld [vmem:[%s1 + $0x268] sm:$0xff]
  %v96 = vld [vmem:[%s1 + $0x270] sm:$0xff]
  %v97 = vld [vmem:[%s1 + $0x278] sm:$0xff]
  %v98 = vld [vmem:[%s1 + $0x280] sm:$0xff]
  %v99 = vld [vmem:[%s1 + $0x288] sm:$0xff]
  %v100 = vld [vmem:[%s1 + $0x290] sm:$0xff]
  %v101 = vld [vmem:[%s1 + $0x298] sm:$0xff]
  %v102 = vld [vmem:[%s1 + $0x2a0] sm:$0xff]
  %v103 = vld [vmem:[%s1 + $0x2a8] sm:$0xff]
  %v104 = vld [vmem:[%s1 + $0x2b0] sm:$0xff]
  %v105 = vld [vmem:[%s1 + $0x2b8] sm:$0xff]
  %v106 = vld [vmem:[%s1 + $0x2c0] sm:$0xff]
  %v107 = vld [vmem:[%s1 + $0x2c8] sm:$0xff]
  %v108 = vld [vmem:[%s1 + $0x2d0] sm:$0xff]
  %v109 = vld [vmem:[%s1 + $0x2d8] sm:$0xff]
  %v110 = vld [vmem:[%s1 + $0x2e0] sm:$0xff]
  %v111 = vld [vmem:[%s1 + $0x2e8] sm:$0xff]
  %v112 = vld [vmem:[%s1 + $0x2f0] sm:$0xff]
  %v113 = vld [vmem:[%s1 + $0x2f8] sm:$0xff]
  %v114 = vld [vmem:[%s1 + $0x300] sm:$0xff]
  %v115 = vld [vmem:[%s1 + $0x308] sm:$0xff]
  %v116 = vld [vmem:[%s1 + $0x310] sm:$0xff]
  %v117 = vld [vmem:[%s1 + $0x318] sm:$0xff]
  %v118 = vld [vmem:[%s1 + $0x320] sm:$0xff]
  %v119 = vld [vmem:[%s1 + $0x328] sm:$0xff]
  %v120 = vld [vmem:[%s1 + $0x330] sm:$0xff]
  %v121 = vld [vmem:[%s1 + $0x338] sm:$0xff]
  %v122 = vld [vmem:[%s1 + $0x340] sm:$0xff]
  %v123 = vld [vmem:[%s1 + $0x348] sm:$0xff]
  %v124 = vld [vmem:[%s1 + $0x350] sm:$0xff]
  %v125 = vld [vmem:[%s1 + $0x358] sm:$0xff]
  %v126 = vld [vmem:[%s1 + $0x360] sm:$0xff]
  %v127 = vld [vmem:[%s1 + $0x368] sm:$0xff]
  %v128 = vld [vmem:[%s1 + $0x370] sm:$0xff]
  %v129 = vld [vmem:[%s1 + $0x378] sm:$0xff]
  %v130 = vld [vmem:[%s1 + $0x380] sm:$0xff]
  %v131 = vld [vmem:[%s1 + $0x388] sm:$0xff]
  %v132 = vld [vmem:[%s1 + $0x390] sm:$0xff]
  %v133 = vld [vmem:[%s1 + $0x398] sm:$0xff]
  %v134 = vld [vmem:[%s1 + $0x3a0] sm:$0xff]
  %v135 = vld [vmem:[%s1 + $0x3a8] sm:$0xff]
  %v136 = vld [vmem:[%s1 + $0x3b0] sm:$0xff]
  %v137 = vld [vmem:[%s1 + $0x3b8] sm:$0xff]
  %v138 = vld [vmem:[%s1 + $0x3c0] sm:$0xff]
  %v139 = vld [vmem:[%s1 + $0x3c8] sm:$0xff]
  %v140 = vld [vmem:[%s1 + $0x3d0] sm:$0xff]
  %v141 = vld [vmem:[%s1 + $0x3d8] sm:$0xff]
  %v142 = vld [vmem:[%s1 + $0x3e0] sm:$0xff]
  %v143 = vld [vmem:[%s1 + $0x3e8] sm:$0xff]
  %v144 = vld [vmem:[%s1 + $0x3f0] sm:$0xff]
  %v145 = vld [vmem:[%s1 + $0x3f8] sm:$0xff]
  %v146 = vld [vmem:[%s1 + $0x400] sm:$0xff]
  %v147 = vld [vmem:[%s1 + $0x408] sm:$0xff]
  %v148 = vld [vmem:[%s1 + $0x410] sm:$0xff]
  %v149 = vld [vmem:[%s1 + $0x418] sm:$0xff]
  %v150 = vld [vmem:[%s1 + $0x420] sm:$0xff]
  %v151 = vld [vmem:[%s1 + $0x428] sm:$0xff]
  %v152 = vld [vmem:[%s1 + $0x430] sm:$0xff]
  %v153 = vld [vmem:[%s1 + $0x438] sm:$0xff]
  %v154 = vld [vmem:[%s1 + $0x440] sm:$0xff]
  %v155 = vld [vmem:[%s1 + $0x448] sm:$0xff]
  %v156 = vld [vmem:[%s1 + $0x450] sm:$0xff]
  %v157 = vld [vmem:[%s1 + $0x458] sm:$0xff]
  %v158 = vld [vmem:[%s1 + $0x460] sm:$0xff]
  %v159 = vld [vmem:[%s1 + $0x468] sm:$0xff]
  %v160 = vld [vmem:[%s1 + $0x470] sm:$0xff]
  %v161 = vld [vmem:[%s1 + $0x478] sm:$0xff]
  %v162 = vld [vmem:[%s1 + $0x480] sm:$0xff]
  %v163 = vld [vmem:[%s1 + $0x488] sm:$0xff]
  %v164 = vld [vmem:[%s1 + $0x490] sm:$0xff]
  %v165 = vld [vmem:[%s1 + $0x498] sm:$0xff]
  %v166 = vld [vmem:[%s1 + $0x4a0] sm:$0xff]
  %v167 = vld [vmem:[%s1 + $0x4a8] sm:$0xff]
  %v168 = vld [vmem:[%s1 + $0x4b0] sm:$0xff]
  %v169 = vld [vmem:[%s1 + $0x4b8] sm:$0xff]
  %v170 = vld [vmem:[%s1 + $0x4c0] sm:$0xff]
  %v171 = vld [vmem:[%s1 + $0x4c8] sm:$0xff]
  %v172 = vld [vmem:[%s1 + $0x4d0] sm:$0xff]
  %v173 = vld [vmem:[%s1 + $0x4d8] sm:$0xff]
  %v174 = vld [vmem:[%s1 + $0x4e0] sm:$0xff]
  %v175 = vld [vmem:[%s1 + $0x4e8] sm:$0xff]
  %v176 = vld [vmem:[%s1 + $0x4f0] sm:$0xff]
  %v177 = vld [vmem:[%s1 + $0x4f8] sm:$0xff]
  %v178 = vld [vmem:[%s1 + $0x500] sm:$0xff]
  %v179 = vld [vmem:[%s1 + $0x508] sm:$0xff]
  %v180 = vld [vmem:[%s1 + $0x510] sm:$0xff]
  %v181 = vld [vmem:[%s1 + $0x518] sm:$0xff]
  %v182 = vld [vmem:[%s1 + $0x520] sm:$0xff]
  %v183 = vld [vmem:[%s1 + $0x528] sm:$0xff]
  %v184 = vld [vmem:[%s1 + $0x530] sm:$0xff]
  %v185 = vld [vmem:[%s1 + $0x538] sm:$0xff]
  %v186 = vld [vmem:[%s1 + $0x540] sm:$0xff]
  %v187 = vld [vmem:[%s1 + $0x548] sm:$0xff]
  %v188 = vld [vmem:[%s1 + $0x550] sm:$0xff]
  %v189 = vld [vmem:[%s1 + $0x558] sm:$0xff]
  %v190 = vld [vmem:[%s1 + $0x560] sm:$0xff]
  %v191 = vld [vmem:[%s1 + $0x568] sm:$0xff]
  %v192 = vld [vmem:[%s1 + $0x570] sm:$0xff]
  %v193 = vld [vmem:[%s1 + $0x578] sm:$0xff]
  %v194 = vld [vmem:[%s1 + $0x580] sm:$0xff]
  %v195 = vld [vmem:[%s1 + $0x588] sm:$0xff]
  %v196 = vld [vmem:[%s1 + $0x590] sm:$0xff]
  %v197 = vld [vmem:[%s1 + $0x598] sm:$0xff]
  %v198 = vld [vmem:[%s1 + $0x5a0] sm:$0xff]
  %v199 = vld [vmem:[%s1 + $0x5a8] sm:$0xff]
  %v200 = vld [vmem:[%s1 + $0x5b0] sm:$0xff]
  %v201 = vld [vmem:[%s1 + $0x5b8] sm:$0xff]
  %v202 = vld [vmem:[%s1 + $0x5c0] sm:$0xff]
  %v203 = vld [vmem:[%s1 + $0x5c8] sm:$0xff]
  %v204 = vld [vmem:[%s1 + $0x5d0] sm:$0xff]
  %v205 = vld [vmem:[%s1 + $0x5d8] sm:$0xff]
  %v206 = vld [vmem:[%s1 + $0x5e0] sm:$0xff]
  %v207 = vld [vmem:[%s1 + $0x5e8] sm:$0xff]
  %v208 = vld [vmem:[%s1 + $0x5f0] sm:$0xff]
  %v209 = vld [vmem:[%s1 + $0x5f8] sm:$0xff]
  %v210 = vld [vmem:[%s1 + $0x600] sm:$0xff]
  %v211 = vld [vmem:[%s1 + $0x608] sm:$0xff]
  %v212 = vld [vmem:[%s1 + $0x610] sm:$0xff]
  %v213 = vld [vmem:[%s1 + $0x618] sm:$0xff]
  %v214 = vld [vmem:[%s1 + $0x620] sm:$0xff]
  %v215 = vld [vmem:[%s1 + $0x628] sm:$0xff]
  %v216 = vld [vmem:[%s1 + $0x630] sm:$0xff]
  %v217 = vld [vmem:[%s1 + $0x638] sm:$0xff]
  %v218 = vld [vmem:[%s1 + $0x640] sm:$0xff]
  %v219 = vld [vmem:[%s1 + $0x648] sm:$0xff]
  %v220 = vld [vmem:[%s1 + $0x650] sm:$0xff]
  %v221 = vld [vmem:[%s1 + $0x658] sm:$0xff]
  %v222 = vld [vmem:[%s1 + $0x660] sm:$0xff]
  %v223 = vld [vmem:[%s1 + $0x668] sm:$0xff]
  %v224 = vld [vmem:[%s1 + $0x670] sm:$0xff]
  %v225 = vld [vmem:[%s1 + $0x678] sm:$0xff]
  %v226 = vld [vmem:[%s1 + $0x680] sm:$0xff]
  %v227 = vld [vmem:[%s1 + $0x688] sm:$0xff]
  %v228 = vld [vmem:[%s1 + $0x690] sm:$0xff]
  %v229 = vld [vmem:[%s1 + $0x698] sm:$0xff]
  %v230 = vld [vmem:[%s1 + $0x6a0] sm:$0xff]
  %v231 = vld [vmem:[%s1 + $0x6a8] sm:$0xff]
  %v232 = vld [vmem:[%s1 + $0x6b0] sm:$0xff]
  %v233 = vld [vmem:[%s1 + $0x6b8] sm:$0xff]
  %v234 = vld [vmem:[%s1 + $0x6c0] sm:$0xff]
  %v235 = vld [vmem:[%s1 + $0x6c8] sm:$0xff]
  %v236 = vld [vmem:[%s1 + $0x6d0] sm:$0xff]
  %v237 = vld [vmem:[%s1 + $0x6d8] sm:$0xff]
  %v238 = vld [vmem:[%s1 + $0x6e0] sm:$0xff]
  %v239 = vld [vmem:[%s1 + $0x6e8] sm:$0xff]
  %v240 = vld [vmem:[%s1 + $0x6f0] sm:$0xff]
  %v241 = vld [vmem:[%s1 + $0x6f8] sm:$0xff]
  %v242 = vld [vmem:[%s1 + $0x700] sm:$0xff]
  %v243 = vld [vmem:[%s1 + $0x708] sm:$0xff]
  %v244 = vld [vmem:[%s1 + $0x710] sm:$0xff]
  %v245 = vld [vmem:[%s1 + $0x718] sm:$0xff]
  %v246 = vld [vmem:[%s1 + $0x720] sm:$0xff]
  %v247 = vld [vmem:[%s1 + $0x728] sm:$0xff]
  %v248 = vld [vmem:[%s1 + $0x730] sm:$0xff]
  %v249 = vld [vmem:[%s1 + $0x738] sm:$0xff]
  %v250 = vld [vmem:[%s1 + $0x740] sm:$0xff]
  %v251 = vld [vmem:[%s1 + $0x748] sm:$0xff]
  %v252 = vld [vmem:[%s1 + $0x750] sm:$0xff]
  %v253 = vld [vmem:[%s1 + $0x758] sm:$0xff]
  %v254 = vld [vmem:[%s1 + $0x760] sm:$0xff]
  %v255 = vld [vmem:[%s1 + $0x768] sm:$0xff]
  %v256 = vld [vmem:[%s1 + $0x770] sm:$0xff]
  %v257 = vld [vmem:[%s1 + $0x778] sm:$0xff]
  %v258 = vld [vmem:[%s1 + $0x780] sm:$0xff]
  %v259 = vld [vmem:[%s1 + $0x788] sm:$0xff]
  %v260 = vld [vmem:[%s1 + $0x790] sm:$0xff]
  %v261 = vld [vmem:[%s1 + $0x798] sm:$0xff]
  %v262 = vld [vmem:[%s1 + $0x7a0] sm:$0xff]
  %v263 = vld [vmem:[%s1 + $0x7a8] sm:$0xff]
  %v264 = vld [vmem:[%s1 + $0x7b0] sm:$0xff]
  %v265 = vld [vmem:[%s1 + $0x7b8] sm:$0xff]
  %v266 = vld [vmem:[%s1 + $0x7c0] sm:$0xff]
  %v267 = vld [vmem:[%s1 + $0x7c8] sm:$0xff]
  %v268 = vld [vmem:[%s1 + $0x7d0] sm:$0xff]
  %v269 = vld [vmem:[%s1 + $0x7d8] sm:$0xff]
  %v270 = vld [vmem:[%s1 + $0x7e0] sm:$0xff]
  %v271 = vld [vmem:[%s1 + $0x7e8] sm:$0xff]
  %v272 = vld [vmem:[%s1 + $0x7f0] sm:$0xff]
  %v273 = vld [vmem:[%s1 + $0x7f8] sm:$0xff]
  %v274 = vld [vmem:[%s1 + $0x800] sm:$0xff]
  %v275 = vld [vmem:[%s1 + $0x808] sm:$0xff]
  %v276 = vld [vmem:[%s1 + $0x810] sm:$0xff]
  %v277 = vld [vmem:[%s1 + $0x818] sm:$0xff]
  %v278 = vld [vmem:[%s1 + $0x820] sm:$0xff]
  %v279 = vld [vmem:[%s1 + $0x828] sm:$0xff]
  %v280 = vld [vmem:[%s1 + $0x830] sm:$0xff]
  %v281 = vld [vmem:[%s1 + $0x838] sm:$0xff]
  %v282 = vld [vmem:[%s1 + $0x840] sm:$0xff]
  %v283 = vld [vmem:[%s1 + $0x848] sm:$0xff]
  %v284 = vld [vmem:[%s1 + $0x850] sm:$0xff]
  %v285 = vld [vmem:[%s1 + $0x858] sm:$0xff]
  %v286 = vld [vmem:[%s1 + $0x860] sm:$0xff]
  %v287 = vld [vmem:[%s1 + $0x868] sm:$0xff]
  %v288 = vld [vmem:[%s1 + $0x870] sm:$0xff]
  %v289 = vld [vmem:[%s1 + $0x878] sm:$0xff]
  %v290 = vld [vmem:[%s1 + $0x880] sm:$0xff]
  %v291 = vld [vmem:[%s1 + $0x888] sm:$0xff]
  %v292 = vld [vmem:[%s1 + $0x890] sm:$0xff]
  %v293 = vld [vmem:[%s1 + $0x898] sm:$0xff]
  %v294 = vld [vmem:[%s1 + $0x8a0] sm:$0xff]
  %v295 = vld [vmem:[%s1 + $0x8a8] sm:$0xff]
  %v296 = vld [vmem:[%s1 + $0x8b0] sm:$0xff]
  %v297 = vld [vmem:[%s1 + $0x8b8] sm:$0xff]
  %v298 = vld [vmem:[%s1 + $0x8c0] sm:$0xff]
  %v299 = vld [vmem:[%s1 + $0x8c8] sm:$0xff]
  %v300 = vld [vmem:[%s1 + $0x8d0] sm:$0xff]
  %v301 = vld [vmem:[%s1 + $0x8d8] sm:$0xff]
  %v302 = vld [vmem:[%s1 + $0x8e0] sm:$0xff]
  %v303 = vld [vmem:[%s1 + $0x8e8] sm:$0xff]
  %v304 = vld [vmem:[%s1 + $0x8f0] sm:$0xff]
  %v305 = vld [vmem:[%s1 + $0x8f8] sm:$0xff]
  %v306 = vld [vmem:[%s1 + $0x900] sm:$0xff]
  %v307 = vld [vmem:[%s1 + $0x908] sm:$0xff]
  %v308 = vld [vmem:[%s1 + $0x910] sm:$0xff]
  %v309 = vld [vmem:[%s1 + $0x918] sm:$0xff]
  %v310 = vld [vmem:[%s1 + $0x920] sm:$0xff]
  %v311 = vld [vmem:[%s1 + $0x928] sm:$0xff]
  %v312 = vld [vmem:[%s1 + $0x930] sm:$0xff]
  %v313 = vld [vmem:[%s1 + $0x938] sm:$0xff]
  %v314 = vld [vmem:[%s1 + $0x940] sm:$0xff]
  %v315 = vld [vmem:[%s1 + $0x948] sm:$0xff]
  %v316 = vld [vmem:[%s1 + $0x950] sm:$0xff]
  %v317 = vld [vmem:[%s1 + $0x958] sm:$0xff]
  %v318 = vld [vmem:[%s1 + $0x960] sm:$0xff]
  %v319 = vld [vmem:[%s1 + $0x968] sm:$0xff]
  %v320 = vld [vmem:[%s1 + $0x970] sm:$0xff]
  %v321 = vld [vmem:[%s1 + $0x978] sm:$0xff]
  %v322 = vld [vmem:[%s1 + $0x980] sm:$0xff]
  %v323 = vld [vmem:[%s1 + $0x988] sm:$0xff]
  %v324 = vld [vmem:[%s1 + $0x990] sm:$0xff]
  %v325 = vld [vmem:[%s1 + $0x998] sm:$0xff]
  %v326 = vld [vmem:[%s1 + $0x9a0] sm:$0xff]
  %v327 = vld [vmem:[%s1 + $0x9a8] sm:$0xff]
  %v328 = vld [vmem:[%s1 + $0x9b0] sm:$0xff]
  %v329 = vld [vmem:[%s1 + $0x9b8] sm:$0xff]
  %v330 = vld [vmem:[%s1 + $0x9c0] sm:$0xff]
  %v331 = vld [vmem:[%s1 + $0x9c8] sm:$0xff]
  %v332 = vld [vmem:[%s1 + $0x9d0] sm:$0xff]
  %v333 = vld [vmem:[%s1 + $0x9d8] sm:$0xff]
  %v334 = vld [vmem:[%s1 + $0x9e0] sm:$0xff]
  %v335 = vld [vmem:[%s1 + $0x9e8] sm:$0xff]
  %v336 = vld [vmem:[%s1 + $0x9f0] sm:$0xff]
  %v337 = vld [vmem:[%s1 + $0x9f8] sm:$0xff]
  %v338 = vld [vmem:[%s1 + $0xa00] sm:$0xff]
  %v339 = vld [vmem:[%s1 + $0xa08] sm:$0xff]
  %v340 = vld [vmem:[%s1 + $0xa10] sm:$0xff]
  %v341 = vld [vmem:[%s1 + $0xa18] sm:$0xff]
  %v342 = vld [vmem:[%s1 + $0xa20] sm:$0xff]
  %v343 = vld [vmem:[%s1 + $0xa28] sm:$0xff]
  %v344 = vld [vmem:[%s1 + $0xa30] sm:$0xff]
  %v345 = vld [vmem:[%s1 + $0xa38] sm:$0xff]
  %v346 = vld [vmem:[%s1 + $0xa40] sm:$0xff]
  %v347 = vld [vmem:[%s1 + $0xa48] sm:$0xff]
  %v348 = vld [vmem:[%s1 + $0xa50] sm:$0xff]
  %v349 = vld [vmem:[%s1 + $0xa58] sm:$0xff]
  %v350 = vld [vmem:[%s1 + $0xa60] sm:$0xff]
  %v351 = vld [vmem:[%s1 + $0xa68] sm:$0xff]
  %v352 = vld [vmem:[%s1 + $0xa70] sm:$0xff]
  %v353 = vld [vmem:[%s1 + $0xa78] sm:$0xff]
  %v354 = vld [vmem:[%s1 + $0xa80] sm:$0xff]
  %v355 = vld [vmem:[%s1 + $0xa88] sm:$0xff]
  %v356 = vld [vmem:[%s1 + $0xa90] sm:$0xff]
  %v357 = vld [vmem:[%s1 + $0xa98] sm:$0xff]
  %v358 = vld [vmem:[%s1 + $0xaa0] sm:$0xff]
  %v359 = vld [vmem:[%s1 + $0xaa8] sm:$0xff]
  %v360 = vld [vmem:[%s1 + $0xab0] sm:$0xff]
  %v361 = vld [vmem:[%s1 + $0xab8] sm:$0xff]
  %v362 = vld [vmem:[%s1 + $0xac0] sm:$0xff]
  %v363 = vld [vmem:[%s1 + $0xac8] sm:$0xff]
  %v364 = vld [vmem:[%s1 + $0xad0] sm:$0xff]
  %v365 = vld [vmem:[%s1 + $0xad8] sm:$0xff]
  %v366 = vld [vmem:[%s1 + $0xae0] sm:$0xff]
  %v367 = vld [vmem:[%s1 + $0xae8] sm:$0xff]
  %v368 = vld [vmem:[%s1 + $0xaf0] sm:$0xff]
  %v369 = vld [vmem:[%s1 + $0xaf8] sm:$0xff]
  %v370 = vld [vmem:[%s1 + $0xb00] sm:$0xff]
  %v371 = vld [vmem:[%s1 + $0xb08] sm:$0xff]
  %v372 = vld [vmem:[%s1 + $0xb10] sm:$0xff]
  %v373 = vld [vmem:[%s1 + $0xb18] sm:$0xff]
  %v374 = vld [vmem:[%s1 + $0xb20] sm:$0xff]
  %v375 = vld [vmem:[%s1 + $0xb28] sm:$0xff]
  %v376 = vld [vmem:[%s1 + $0xb30] sm:$0xff]
  %v377 = vld [vmem:[%s1 + $0xb38] sm:$0xff]
  %v378 = vld [vmem:[%s1 + $0xb40] sm:$0xff]
  %v379 = vld [vmem:[%s1 + $0xb48] sm:$0xff]
  %v380 = vld [vmem:[%s1 + $0xb50] sm:$0xff]
  %v381 = vld [vmem:[%s1 + $0xb58] sm:$0xff]
  %v382 = vld [vmem:[%s1 + $0xb60] sm:$0xff]
  %v383 = vld [vmem:[%s1 + $0xb68] sm:$0xff]
  %v384 = vld [vmem:[%s1 + $0xb70] sm:$0xff]
  %v385 = vld [vmem:[%s1 + $0xb78] sm:$0xff]
  %v386 = vld [vmem:[%s1 + $0xb80] sm:$0xff]
  %v387 = vld [vmem:[%s1 + $0xb88] sm:$0xff]
  %v388 = vld [vmem:[%s1 + $0xb90] sm:$0xff]
  %v389 = vld [vmem:[%s1 + $0xb98] sm:$0xff]
  %v390 = vld [vmem:[%s1 + $0xba0] sm:$0xff]
  %v391 = vld [vmem:[%s1 + $0xba8] sm:$0xff]
  %v392 = vld [vmem:[%s1 + $0xbb0] sm:$0xff]
  %v393 = vld [vmem:[%s1 + $0xbb8] sm:$0xff]
  %v394 = vld [vmem:[%s1 + $0xbc0] sm:$0xff]
  %v395 = vld [vmem:[%s1 + $0xbc8] sm:$0xff]
  %v396 = vld [vmem:[%s1 + $0xbd0] sm:$0xff]
  %v397 = vld [vmem:[%s1 + $0xbd8] sm:$0xff]
  %v398 = vld [vmem:[%s1 + $0xbe0] sm:$0xff]
  %v399 = vld [vmem:[%s1 + $0xbe8] sm:$0xff]
  %v400 = vld [vmem:[%s1 + $0xbf0] sm:$0xff]
  %v401 = vld [vmem:[%s1 + $0xbf8] sm:$0xff]
  %v402 = vld [vmem:[%s1 + $0xc00] sm:$0xff]
  %v403 = vld [vmem:[%s1 + $0xc08] sm:$0xff]
  %v404 = vld [vmem:[%s1 + $0xc10] sm:$0xff]
  %v405 = vld [vmem:[%s1 + $0xc18] sm:$0xff]
  %v406 = vld [vmem:[%s1 + $0xc20] sm:$0xff]
  %v407 = vld [vmem:[%s1 + $0xc28] sm:$0xff]
  %v408 = vld [vmem:[%s1 + $0xc30] sm:$0xff]
  %v409 = vld [vmem:[%s1 + $0xc38] sm:$0xff]
  %v410 = vld [vmem:[%s1 + $0xc40] sm:$0xff]
  %v411 = vld [vmem:[%s1 + $0xc48] sm:$0xff]
  %v412 = vld [vmem:[%s1 + $0xc50] sm:$0xff]
  %v413 = vld [vmem:[%s1 + $0xc58] sm:$0xff]
  %v414 = vld [vmem:[%s1 + $0xc60] sm:$0xff]
  %v415 = vld [vmem:[%s1 + $0xc68] sm:$0xff]
  %v416 = vld [vmem:[%s1 + $0xc70] sm:$0xff]
  %v417 = vld [vmem:[%s1 + $0xc78] sm:$0xff]
  %v418 = vld [vmem:[%s1 + $0xc80] sm:$0xff]
  %v419 = vld [vmem:[%s1 + $0xc88] sm:$0xff]
  %v420 = vld [vmem:[%s1 + $0xc90] sm:$0xff]
  %v421 = vld [vmem:[%s1 + $0xc98] sm:$0xff]
  %v422 = vld [vmem:[%s1 + $0xca0] sm:$0xff]
  %v423 = vld [vmem:[%s1 + $0xca8] sm:$0xff]
  %v424 = vld [vmem:[%s1 + $0xcb0] sm:$0xff]
  %v425 = vld [vmem:[%s1 + $0xcb8] sm:$0xff]
  %v426 = vld [vmem:[%s1 + $0xcc0] sm:$0xff]
  %v427 = vld [vmem:[%s1 + $0xcc8] sm:$0xff]
  %v428 = vld [vmem:[%s1 + $0xcd0] sm:$0xff]
  %v429 = vld [vmem:[%s1 + $0xcd8] sm:$0xff]
  %v430 = vld [vmem:[%s1 + $0xce0] sm:$0xff]
  %v431 = vld [vmem:[%s1 + $0xce8] sm:$0xff]
  %v432 = vld [vmem:[%s1 + $0xcf0] sm:$0xff]
  %v433 = vld [vmem:[%s1 + $0xcf8] sm:$0xff]
  %v434 = vld [vmem:[%s1 + $0xd00] sm:$0xff]
  %v435 = vld [vmem:[%s1 + $0xd08] sm:$0xff]
  %v436 = vld [vmem:[%s1 + $0xd10] sm:$0xff]
  %v437 = vld [vmem:[%s1 + $0xd18] sm:$0xff]
  %v438 = vld [vmem:[%s1 + $0xd20] sm:$0xff]
  %v439 = vld [vmem:[%s1 + $0xd28] sm:$0xff]
  %v440 = vld [vmem:[%s1 + $0xd30] sm:$0xff]
  %v441 = vld [vmem:[%s1 + $0xd38] sm:$0xff]
  %v442 = vld [vmem:[%s1 + $0xd40] sm:$0xff]
  %v443 = vld [vmem:[%s1 + $0xd48] sm:$0xff]
  %v444 = vld [vmem:[%s1 + $0xd50] sm:$0xff]
  %v445 = vld [vmem:[%s1 + $0xd58] sm:$0xff]
  %v446 = vld [vmem:[%s1 + $0xd60] sm:$0xff]
  %v447 = vld [vmem:[%s1 + $0xd68] sm:$0xff]
  %v448 = vld [vmem:[%s1 + $0xd70] sm:$0xff]
  %v449 = vld [vmem:[%s1 + $0xd78] sm:$0xff]
  %v450 = vld [vmem:[%s1 + $0xd80] sm:$0xff]
  %v451 = vld [vmem:[%s1 + $0xd88] sm:$0xff]
  %v452 = vld [vmem:[%s1 + $0xd90] sm:$0xff]
  %v453 = vld [vmem:[%s1 + $0xd98] sm:$0xff]
  %v454 = vld [vmem:[%s1 + $0xda0] sm:$0xff]
  %v455 = vld [vmem:[%s1 + $0xda8] sm:$0xff]
  %v456 = vld [vmem:[%s1 + $0xdb0] sm:$0xff]
  %v457 = vld [vmem:[%s1 + $0xdb8] sm:$0xff]
  %v458 = vld [vmem:[%s1 + $0xdc0] sm:$0xff]
  %v459 = vld [vmem:[%s1 + $0xdc8] sm:$0xff]
  %v460 = vld [vmem:[%s1 + $0xdd0] sm:$0xff]
  %v461 = vld [vmem:[%s1 + $0xdd8] sm:$0xff]
  %v462 = vld [vmem:[%s1 + $0xde0] sm:$0xff]
  %v463 = vld [vmem:[%s1 + $0xde8] sm:$0xff]
  %v464 = vld [vmem:[%s1 + $0xdf0] sm:$0xff]
  %v465 = vld [vmem:[%s1 + $0xdf8] sm:$0xff]
  %v466 = vld [vmem:[%s1 + $0xe00] sm:$0xff]
  %v467 = vld [vmem:[%s1 + $0xe08] sm:$0xff]
  %v468 = vld [vmem:[%s1 + $0xe10] sm:$0xff]
  %v469 = vld [vmem:[%s1 + $0xe18] sm:$0xff]
  %v470 = vld [vmem:[%s1 + $0xe20] sm:$0xff]
  %v471 = vld [vmem:[%s1 + $0xe28] sm:$0xff]
  %v472 = vld [vmem:[%s1 + $0xe30] sm:$0xff]
  %v473 = vld [vmem:[%s1 + $0xe38] sm:$0xff]
  %v474 = vld [vmem:[%s1 + $0xe40] sm:$0xff]
  %v475 = vld [vmem:[%s1 + $0xe48] sm:$0xff]
  %v476 = vld [vmem:[%s1 + $0xe50] sm:$0xff]
  %v477 = vld [vmem:[%s1 + $0xe58] sm:$0xff]
  %v478 = vld [vmem:[%s1 + $0xe60] sm:$0xff]
  %v479 = vld [vmem:[%s1 + $0xe68] sm:$0xff]
  %v480 = vld [vmem:[%s1 + $0xe70] sm:$0xff]
  %v481 = vld [vmem:[%s1 + $0xe78] sm:$0xff]
  %v482 = vld [vmem:[%s1 + $0xe80] sm:$0xff]
  %v483 = vld [vmem:[%s1 + $0xe88] sm:$0xff]
  %v484 = vld [vmem:[%s1 + $0xe90] sm:$0xff]
  %v485 = vld [vmem:[%s1 + $0xe98] sm:$0xff]
  %v486 = vld [vmem:[%s1 + $0xea0] sm:$0xff]
  %v487 = vld [vmem:[%s1 + $0xea8] sm:$0xff]
  %v488 = vld [vmem:[%s1 + $0xeb0] sm:$0xff]
  %v489 = vld [vmem:[%s1 + $0xeb8] sm:$0xff]
  %v490 = vld [vmem:[%s1 + $0xec0] sm:$0xff]
  %v491 = vld [vmem:[%s1 + $0xec8] sm:$0xff]
  %v492 = vld [vmem:[%s1 + $0xed0] sm:$0xff]
  %v493 = vld [vmem:[%s1 + $0xed8] sm:$0xff]
  %v494 = vld [vmem:[%s1 + $0xee0] sm:$0xff]
  %v495 = vld [vmem:[%s1 + $0xee8] sm:$0xff]
  %v496 = vld [vmem:[%s1 + $0xef0] sm:$0xff]
  %v497 = vld [vmem:[%s1 + $0xef8] sm:$0xff]
  %v498 = vld [vmem:[%s1 + $0xf00] sm:$0xff]
  %v499 = vld [vmem:[%s1 + $0xf08] sm:$0xff]
  %v500 = vld [vmem:[%s1 + $0xf10] sm:$0xff]
  %v501 = vld [vmem:[%s1 + $0xf18] sm:$0xff]
  %v502 = vld [vmem:[%s1 + $0xf20] sm:$0xff]
  %v503 = vld [vmem:[%s1 + $0xf28] sm:$0xff]
  %v504 = vld [vmem:[%s1 + $0xf30] sm:$0xff]
  %v505 = vld [vmem:[%s1 + $0xf38] sm:$0xff]
  %v506 = vld [vmem:[%s1 + $0xf40] sm:$0xff]
  %v507 = vld [vmem:[%s1 + $0xf48] sm:$0xff]
  %v508 = vld [vmem:[%s1 + $0xf50] sm:$0xff]
  %v509 = vld [vmem:[%s1 + $0xf58] sm:$0xff]
  %v510 = vld [vmem:[%s1 + $0xf60] sm:$0xff]
  %v511 = vld [vmem:[%s1 + $0xf68] sm:$0xff]
  %v512 = vld [vmem:[%s1 + $0xf70] sm:$0xff]
  %v513 = vld [vmem:[%s1 + $0xf78] sm:$0xff]
  %v514 = vld [vmem:[%s1 + $0xf80] sm:$0xff]
  %v515 = vld [vmem:[%s1 + $0xf88] sm:$0xff]
  %v516 = vld [vmem:[%s1 + $0xf90] sm:$0xff]
  %v517 = vld [vmem:[%s1 + $0xf98] sm:$0xff]
  %v518 = vld [vmem:[%s1 + $0xfa0] sm:$0xff]
  %v519 = vld [vmem:[%s1 + $0xfa8] sm:$0xff]
  %v520 = vld [vmem:[%s1 + $0xfb0] sm:$0xff]
  %v521 = vld [vmem:[%s1 + $0xfb8] sm:$0xff]
  %v522 = vld [vmem:[%s1 + $0xfc0] sm:$0xff]
  %v523 = vld [vmem:[%s1 + $0xfc8] sm:$0xff]
  %v524 = vld [vmem:[%s1 + $0xfd0] sm:$0xff]
  %v525 = vld [vmem:[%s1 + $0xfd8] sm:$0xff]
  %v526 = vld [vmem:[%s1 + $0xfe0] sm:$0xff]
  %v527 = vld [vmem:[%s1 + $0xfe8] sm:$0xff]
  %v528 = vld [vmem:[%s1 + $0xff0] sm:$0xff]
  %v529 = vld [vmem:[%s1 + $0xff8] sm:$0xff]
  %v530 = vld [vmem:[%s2] sm:$0xff]
  %v532 = vlaneseq
  %v533 = vshrl.u32 %v532, 7
  %v534 = vsub.s32 0, %v533
  %v535 = vrot.slane %v530, %v534
  %v536 = vlaneseq
  %v537 = vshrl.u32 %v536, 7
  %v538 = vsub.s32 1, %v537
  %v539 = vrot.slane %v530, %v538
  %v540 = vlaneseq
  %v541 = vshrl.u32 %v540, 7
  %v542 = vsub.s32 2, %v541
  %v543 = vrot.slane %v530, %v542
  %v544 = vlaneseq
  %v545 = vshrl.u32 %v544, 7
  %v546 = vsub.s32 3, %v545
  %v547 = vrot.slane %v530, %v546
  %v548 = vlaneseq
  %v549 = vshrl.u32 %v548, 7
  %v550 = vsub.s32 4, %v549
  %v551 = vrot.slane %v530, %v550
  %v552 = vlaneseq
  %v553 = vshrl.u32 %v552, 7
  %v554 = vsub.s32 5, %v553
  %v555 = vrot.slane %v530, %v554
  %v556 = vlaneseq
  %v557 = vshrl.u32 %v556, 7
  %v558 = vsub.s32 6, %v557
  %v559 = vrot.slane %v530, %v558
  %v560 = vlaneseq
  %v561 = vshrl.u32 %v560, 7
  %v562 = vsub.s32 7, %v561
  %v563 = vrot.slane %v530, %v562
  %v576 = vunpack.c.l.b16 %v14
  %v577 = vunpack.c.h.b16 %v14
  %v578 = vunpack.c.l.b16 %v15
  %v579 = vunpack.c.h.b16 %v15
  %v580 = vunpack.c.l.b16 %v16
  %v581 = vunpack.c.h.b16 %v16
  %v582 = vunpack.c.l.b16 %v17
  %v583 = vunpack.c.h.b16 %v17
  %v584 = vpack.c.b16 %v576, %v576
  %v585 = vpack.c.b16 %v577, %v577
  %v586 = vpack.c.b16 %v578, %v578
  %v587 = vpack.c.b16 %v579, %v579
  %v588 = vpack.c.b16 %v580, %v580
  %v589 = vpack.c.b16 %v581, %v581
  %v590 = vpack.c.b16 %v582, %v582
  %v591 = vpack.c.b16 %v583, %v583
  %v1112 = vunpack.c.l.b16 %v18
  %v1113 = vunpack.c.h.b16 %v18
  %v1114 = vunpack.c.l.b16 %v19
  %v1115 = vunpack.c.h.b16 %v19
  %v1116 = vunpack.c.l.b16 %v20
  %v1117 = vunpack.c.h.b16 %v20
  %v1118 = vunpack.c.l.b16 %v21
  %v1119 = vunpack.c.h.b16 %v21
  %v1120 = vunpack.c.l.b16 %v22
  %v1121 = vunpack.c.h.b16 %v22
  %v1122 = vunpack.c.l.b16 %v23
  %v1123 = vunpack.c.h.b16 %v23
  %v1124 = vunpack.c.l.b16 %v24
  %v1125 = vunpack.c.h.b16 %v24
  %v1126 = vunpack.c.l.b16 %v25
  %v1127 = vunpack.c.h.b16 %v25
  %v1128 = vunpack.c.l.b16 %v26
  %v1129 = vunpack.c.h.b16 %v26
  %v1130 = vunpack.c.l.b16 %v27
  %v1131 = vunpack.c.h.b16 %v27
  %v1132 = vunpack.c.l.b16 %v28
  %v1133 = vunpack.c.h.b16 %v28
  %v1134 = vunpack.c.l.b16 %v29
  %v1135 = vunpack.c.h.b16 %v29
  %v1136 = vunpack.c.l.b16 %v30
  %v1137 = vunpack.c.h.b16 %v30
  %v1138 = vunpack.c.l.b16 %v31
  %v1139 = vunpack.c.h.b16 %v31
  %v1140 = vunpack.c.l.b16 %v32
  %v1141 = vunpack.c.h.b16 %v32
  %v1142 = vunpack.c.l.b16 %v33
  %v1143 = vunpack.c.h.b16 %v33
  %v1144 = vunpack.c.l.b16 %v34
  %v1145 = vunpack.c.h.b16 %v34
  %v1146 = vunpack.c.l.b16 %v35
  %v1147 = vunpack.c.h.b16 %v35
  %v1148 = vunpack.c.l.b16 %v36
  %v1149 = vunpack.c.h.b16 %v36
  %v1150 = vunpack.c.l.b16 %v37
  %v1151 = vunpack.c.h.b16 %v37
  %v1152 = vunpack.c.l.b16 %v38
  %v1153 = vunpack.c.h.b16 %v38
  %v1154 = vunpack.c.l.b16 %v39
  %v1155 = vunpack.c.h.b16 %v39
  %v1156 = vunpack.c.l.b16 %v40
  %v1157 = vunpack.c.h.b16 %v40
  %v1158 = vunpack.c.l.b16 %v41
  %v1159 = vunpack.c.h.b16 %v41
  %v1160 = vunpack.c.l.b16 %v42
  %v1161 = vunpack.c.h.b16 %v42
  %v1162 = vunpack.c.l.b16 %v43
  %v1163 = vunpack.c.h.b16 %v43
  %v1164 = vunpack.c.l.b16 %v44
  %v1165 = vunpack.c.h.b16 %v44
  %v1166 = vunpack.c.l.b16 %v45
  %v1167 = vunpack.c.h.b16 %v45
  %v1168 = vunpack.c.l.b16 %v46
  %v1169 = vunpack.c.h.b16 %v46
  %v1170 = vunpack.c.l.b16 %v47
  %v1171 = vunpack.c.h.b16 %v47
  %v1172 = vunpack.c.l.b16 %v48
  %v1173 = vunpack.c.h.b16 %v48
  %v1174 = vunpack.c.l.b16 %v49
  %v1175 = vunpack.c.h.b16 %v49
  %v1176 = vunpack.c.l.b16 %v50
  %v1177 = vunpack.c.h.b16 %v50
  %v1178 = vunpack.c.l.b16 %v51
  %v1179 = vunpack.c.h.b16 %v51
  %v1180 = vunpack.c.l.b16 %v52
  %v1181 = vunpack.c.h.b16 %v52
  %v1182 = vunpack.c.l.b16 %v53
  %v1183 = vunpack.c.h.b16 %v53
  %v1184 = vunpack.c.l.b16 %v54
  %v1185 = vunpack.c.h.b16 %v54
  %v1186 = vunpack.c.l.b16 %v55
  %v1187 = vunpack.c.h.b16 %v55
  %v1188 = vunpack.c.l.b16 %v56
  %v1189 = vunpack.c.h.b16 %v56
  %v1190 = vunpack.c.l.b16 %v57
  %v1191 = vunpack.c.h.b16 %v57
  %v1192 = vunpack.c.l.b16 %v58
  %v1193 = vunpack.c.h.b16 %v58
  %v1194 = vunpack.c.l.b16 %v59
  %v1195 = vunpack.c.h.b16 %v59
  %v1196 = vunpack.c.l.b16 %v60
  %v1197 = vunpack.c.h.b16 %v60
  %v1198 = vunpack.c.l.b16 %v61
  %v1199 = vunpack.c.h.b16 %v61
  %v1200 = vunpack.c.l.b16 %v62
  %v1201 = vunpack.c.h.b16 %v62
  %v1202 = vunpack.c.l.b16 %v63
  %v1203 = vunpack.c.h.b16 %v63
  %v1204 = vunpack.c.l.b16 %v64
  %v1205 = vunpack.c.h.b16 %v64
  %v1206 = vunpack.c.l.b16 %v65
  %v1207 = vunpack.c.h.b16 %v65
  %v1208 = vunpack.c.l.b16 %v66
  %v1209 = vunpack.c.h.b16 %v66
  %v1210 = vunpack.c.l.b16 %v67
  %v1211 = vunpack.c.h.b16 %v67
  %v1212 = vunpack.c.l.b16 %v68
  %v1213 = vunpack.c.h.b16 %v68
  %v1214 = vunpack.c.l.b16 %v69
  %v1215 = vunpack.c.h.b16 %v69
  %v1216 = vunpack.c.l.b16 %v70
  %v1217 = vunpack.c.h.b16 %v70
  %v1218 = vunpack.c.l.b16 %v71
  %v1219 = vunpack.c.h.b16 %v71
  %v1220 = vunpack.c.l.b16 %v72
  %v1221 = vunpack.c.h.b16 %v72
  %v1222 = vunpack.c.l.b16 %v73
  %v1223 = vunpack.c.h.b16 %v73
  %v1224 = vunpack.c.l.b16 %v74
  %v1225 = vunpack.c.h.b16 %v74
  %v1226 = vunpack.c.l.b16 %v75
  %v1227 = vunpack.c.h.b16 %v75
  %v1228 = vunpack.c.l.b16 %v76
  %v1229 = vunpack.c.h.b16 %v76
  %v1230 = vunpack.c.l.b16 %v77
  %v1231 = vunpack.c.h.b16 %v77
  %v1232 = vunpack.c.l.b16 %v78
  %v1233 = vunpack.c.h.b16 %v78
  %v1234 = vunpack.c.l.b16 %v79
  %v1235 = vunpack.c.h.b16 %v79
  %v1236 = vunpack.c.l.b16 %v80
  %v1237 = vunpack.c.h.b16 %v80
  %v1238 = vunpack.c.l.b16 %v81
  %v1239 = vunpack.c.h.b16 %v81
  %v1240 = vunpack.c.l.b16 %v82
  %v1241 = vunpack.c.h.b16 %v82
  %v1242 = vunpack.c.l.b16 %v83
  %v1243 = vunpack.c.h.b16 %v83
  %v1244 = vunpack.c.l.b16 %v84
  %v1245 = vunpack.c.h.b16 %v84
  %v1246 = vunpack.c.l.b16 %v85
  %v1247 = vunpack.c.h.b16 %v85
  %v1248 = vunpack.c.l.b16 %v86
  %v1249 = vunpack.c.h.b16 %v86
  %v1250 = vunpack.c.l.b16 %v87
  %v1251 = vunpack.c.h.b16 %v87
  %v1252 = vunpack.c.l.b16 %v88
  %v1253 = vunpack.c.h.b16 %v88
  %v1254 = vunpack.c.l.b16 %v89
  %v1255 = vunpack.c.h.b16 %v89
  %v1256 = vunpack.c.l.b16 %v90
  %v1257 = vunpack.c.h.b16 %v90
  %v1258 = vunpack.c.l.b16 %v91
  %v1259 = vunpack.c.h.b16 %v91
  %v1260 = vunpack.c.l.b16 %v92
  %v1261 = vunpack.c.h.b16 %v92
  %v1262 = vunpack.c.l.b16 %v93
  %v1263 = vunpack.c.h.b16 %v93
  %v1264 = vunpack.c.l.b16 %v94
  %v1265 = vunpack.c.h.b16 %v94
  %v1266 = vunpack.c.l.b16 %v95
  %v1267 = vunpack.c.h.b16 %v95
  %v1268 = vunpack.c.l.b16 %v96
  %v1269 = vunpack.c.h.b16 %v96
  %v1270 = vunpack.c.l.b16 %v97
  %v1271 = vunpack.c.h.b16 %v97
  %v1272 = vunpack.c.l.b16 %v98
  %v1273 = vunpack.c.h.b16 %v98
  %v1274 = vunpack.c.l.b16 %v99
  %v1275 = vunpack.c.h.b16 %v99
  %v1276 = vunpack.c.l.b16 %v100
  %v1277 = vunpack.c.h.b16 %v100
  %v1278 = vunpack.c.l.b16 %v101
  %v1279 = vunpack.c.h.b16 %v101
  %v1280 = vunpack.c.l.b16 %v102
  %v1281 = vunpack.c.h.b16 %v102
  %v1282 = vunpack.c.l.b16 %v103
  %v1283 = vunpack.c.h.b16 %v103
  %v1284 = vunpack.c.l.b16 %v104
  %v1285 = vunpack.c.h.b16 %v104
  %v1286 = vunpack.c.l.b16 %v105
  %v1287 = vunpack.c.h.b16 %v105
  %v1288 = vunpack.c.l.b16 %v106
  %v1289 = vunpack.c.h.b16 %v106
  %v1290 = vunpack.c.l.b16 %v107
  %v1291 = vunpack.c.h.b16 %v107
  %v1292 = vunpack.c.l.b16 %v108
  %v1293 = vunpack.c.h.b16 %v108
  %v1294 = vunpack.c.l.b16 %v109
  %v1295 = vunpack.c.h.b16 %v109
  %v1296 = vunpack.c.l.b16 %v110
  %v1297 = vunpack.c.h.b16 %v110
  %v1298 = vunpack.c.l.b16 %v111
  %v1299 = vunpack.c.h.b16 %v111
  %v1300 = vunpack.c.l.b16 %v112
  %v1301 = vunpack.c.h.b16 %v112
  %v1302 = vunpack.c.l.b16 %v113
  %v1303 = vunpack.c.h.b16 %v113
  %v1304 = vunpack.c.l.b16 %v114
  %v1305 = vunpack.c.h.b16 %v114
  %v1306 = vunpack.c.l.b16 %v115
  %v1307 = vunpack.c.h.b16 %v115
  %v1308 = vunpack.c.l.b16 %v116
  %v1309 = vunpack.c.h.b16 %v116
  %v1310 = vunpack.c.l.b16 %v117
  %v1311 = vunpack.c.h.b16 %v117
  %v1312 = vunpack.c.l.b16 %v118
  %v1313 = vunpack.c.h.b16 %v118
  %v1314 = vunpack.c.l.b16 %v119
  %v1315 = vunpack.c.h.b16 %v119
  %v1316 = vunpack.c.l.b16 %v120
  %v1317 = vunpack.c.h.b16 %v120
  %v1318 = vunpack.c.l.b16 %v121
  %v1319 = vunpack.c.h.b16 %v121
  %v1320 = vunpack.c.l.b16 %v122
  %v1321 = vunpack.c.h.b16 %v122
  %v1322 = vunpack.c.l.b16 %v123
  %v1323 = vunpack.c.h.b16 %v123
  %v1324 = vunpack.c.l.b16 %v124
  %v1325 = vunpack.c.h.b16 %v124
  %v1326 = vunpack.c.l.b16 %v125
  %v1327 = vunpack.c.h.b16 %v125
  %v1328 = vunpack.c.l.b16 %v126
  %v1329 = vunpack.c.h.b16 %v126
  %v1330 = vunpack.c.l.b16 %v127
  %v1331 = vunpack.c.h.b16 %v127
  %v1332 = vunpack.c.l.b16 %v128
  %v1333 = vunpack.c.h.b16 %v128
  %v1334 = vunpack.c.l.b16 %v129
  %v1335 = vunpack.c.h.b16 %v129
  %v1336 = vunpack.c.l.b16 %v130
  %v1337 = vunpack.c.h.b16 %v130
  %v1338 = vunpack.c.l.b16 %v131
  %v1339 = vunpack.c.h.b16 %v131
  %v1340 = vunpack.c.l.b16 %v132
  %v1341 = vunpack.c.h.b16 %v132
  %v1342 = vunpack.c.l.b16 %v133
  %v1343 = vunpack.c.h.b16 %v133
  %v1344 = vunpack.c.l.b16 %v134
  %v1345 = vunpack.c.h.b16 %v134
  %v1346 = vunpack.c.l.b16 %v135
  %v1347 = vunpack.c.h.b16 %v135
  %v1348 = vunpack.c.l.b16 %v136
  %v1349 = vunpack.c.h.b16 %v136
  %v1350 = vunpack.c.l.b16 %v137
  %v1351 = vunpack.c.h.b16 %v137
  %v1352 = vunpack.c.l.b16 %v138
  %v1353 = vunpack.c.h.b16 %v138
  %v1354 = vunpack.c.l.b16 %v139
  %v1355 = vunpack.c.h.b16 %v139
  %v1356 = vunpack.c.l.b16 %v140
  %v1357 = vunpack.c.h.b16 %v140
  %v1358 = vunpack.c.l.b16 %v141
  %v1359 = vunpack.c.h.b16 %v141
  %v1360 = vunpack.c.l.b16 %v142
  %v1361 = vunpack.c.h.b16 %v142
  %v1362 = vunpack.c.l.b16 %v143
  %v1363 = vunpack.c.h.b16 %v143
  %v1364 = vunpack.c.l.b16 %v144
  %v1365 = vunpack.c.h.b16 %v144
  %v1366 = vunpack.c.l.b16 %v145
  %v1367 = vunpack.c.h.b16 %v145
  %v1368 = vunpack.c.l.b16 %v146
  %v1369 = vunpack.c.h.b16 %v146
  %v1370 = vunpack.c.l.b16 %v147
  %v1371 = vunpack.c.h.b16 %v147
  %v1372 = vunpack.c.l.b16 %v148
  %v1373 = vunpack.c.h.b16 %v148
  %v1374 = vunpack.c.l.b16 %v149
  %v1375 = vunpack.c.h.b16 %v149
  %v1376 = vunpack.c.l.b16 %v150
  %v1377 = vunpack.c.h.b16 %v150
  %v1378 = vunpack.c.l.b16 %v151
  %v1379 = vunpack.c.h.b16 %v151
  %v1380 = vunpack.c.l.b16 %v152
  %v1381 = vunpack.c.h.b16 %v152
  %v1382 = vunpack.c.l.b16 %v153
  %v1383 = vunpack.c.h.b16 %v153
  %v1384 = vunpack.c.l.b16 %v154
  %v1385 = vunpack.c.h.b16 %v154
  %v1386 = vunpack.c.l.b16 %v155
  %v1387 = vunpack.c.h.b16 %v155
  %v1388 = vunpack.c.l.b16 %v156
  %v1389 = vunpack.c.h.b16 %v156
  %v1390 = vunpack.c.l.b16 %v157
  %v1391 = vunpack.c.h.b16 %v157
  %v1392 = vunpack.c.l.b16 %v158
  %v1393 = vunpack.c.h.b16 %v158
  %v1394 = vunpack.c.l.b16 %v159
  %v1395 = vunpack.c.h.b16 %v159
  %v1396 = vunpack.c.l.b16 %v160
  %v1397 = vunpack.c.h.b16 %v160
  %v1398 = vunpack.c.l.b16 %v161
  %v1399 = vunpack.c.h.b16 %v161
  %v1400 = vunpack.c.l.b16 %v162
  %v1401 = vunpack.c.h.b16 %v162
  %v1402 = vunpack.c.l.b16 %v163
  %v1403 = vunpack.c.h.b16 %v163
  %v1404 = vunpack.c.l.b16 %v164
  %v1405 = vunpack.c.h.b16 %v164
  %v1406 = vunpack.c.l.b16 %v165
  %v1407 = vunpack.c.h.b16 %v165
  %v1408 = vunpack.c.l.b16 %v166
  %v1409 = vunpack.c.h.b16 %v166
  %v1410 = vunpack.c.l.b16 %v167
  %v1411 = vunpack.c.h.b16 %v167
  %v1412 = vunpack.c.l.b16 %v168
  %v1413 = vunpack.c.h.b16 %v168
  %v1414 = vunpack.c.l.b16 %v169
  %v1415 = vunpack.c.h.b16 %v169
  %v1416 = vunpack.c.l.b16 %v170
  %v1417 = vunpack.c.h.b16 %v170
  %v1418 = vunpack.c.l.b16 %v171
  %v1419 = vunpack.c.h.b16 %v171
  %v1420 = vunpack.c.l.b16 %v172
  %v1421 = vunpack.c.h.b16 %v172
  %v1422 = vunpack.c.l.b16 %v173
  %v1423 = vunpack.c.h.b16 %v173
  %v1424 = vunpack.c.l.b16 %v174
  %v1425 = vunpack.c.h.b16 %v174
  %v1426 = vunpack.c.l.b16 %v175
  %v1427 = vunpack.c.h.b16 %v175
  %v1428 = vunpack.c.l.b16 %v176
  %v1429 = vunpack.c.h.b16 %v176
  %v1430 = vunpack.c.l.b16 %v177
  %v1431 = vunpack.c.h.b16 %v177
  %v1432 = vunpack.c.l.b16 %v178
  %v1433 = vunpack.c.h.b16 %v178
  %v1434 = vunpack.c.l.b16 %v179
  %v1435 = vunpack.c.h.b16 %v179
  %v1436 = vunpack.c.l.b16 %v180
  %v1437 = vunpack.c.h.b16 %v180
  %v1438 = vunpack.c.l.b16 %v181
  %v1439 = vunpack.c.h.b16 %v181
  %v1440 = vunpack.c.l.b16 %v182
  %v1441 = vunpack.c.h.b16 %v182
  %v1442 = vunpack.c.l.b16 %v183
  %v1443 = vunpack.c.h.b16 %v183
  %v1444 = vunpack.c.l.b16 %v184
  %v1445 = vunpack.c.h.b16 %v184
  %v1446 = vunpack.c.l.b16 %v185
  %v1447 = vunpack.c.h.b16 %v185
  %v1448 = vunpack.c.l.b16 %v186
  %v1449 = vunpack.c.h.b16 %v186
  %v1450 = vunpack.c.l.b16 %v187
  %v1451 = vunpack.c.h.b16 %v187
  %v1452 = vunpack.c.l.b16 %v188
  %v1453 = vunpack.c.h.b16 %v188
  %v1454 = vunpack.c.l.b16 %v189
  %v1455 = vunpack.c.h.b16 %v189
  %v1456 = vunpack.c.l.b16 %v190
  %v1457 = vunpack.c.h.b16 %v190
  %v1458 = vunpack.c.l.b16 %v191
  %v1459 = vunpack.c.h.b16 %v191
  %v1460 = vunpack.c.l.b16 %v192
  %v1461 = vunpack.c.h.b16 %v192
  %v1462 = vunpack.c.l.b16 %v193
  %v1463 = vunpack.c.h.b16 %v193
  %v1464 = vunpack.c.l.b16 %v194
  %v1465 = vunpack.c.h.b16 %v194
  %v1466 = vunpack.c.l.b16 %v195
  %v1467 = vunpack.c.h.b16 %v195
  %v1468 = vunpack.c.l.b16 %v196
  %v1469 = vunpack.c.h.b16 %v196
  %v1470 = vunpack.c.l.b16 %v197
  %v1471 = vunpack.c.h.b16 %v197
  %v1472 = vunpack.c.l.b16 %v198
  %v1473 = vunpack.c.h.b16 %v198
  %v1474 = vunpack.c.l.b16 %v199
  %v1475 = vunpack.c.h.b16 %v199
  %v1476 = vunpack.c.l.b16 %v200
  %v1477 = vunpack.c.h.b16 %v200
  %v1478 = vunpack.c.l.b16 %v201
  %v1479 = vunpack.c.h.b16 %v201
  %v1480 = vunpack.c.l.b16 %v202
  %v1481 = vunpack.c.h.b16 %v202
  %v1482 = vunpack.c.l.b16 %v203
  %v1483 = vunpack.c.h.b16 %v203
  %v1484 = vunpack.c.l.b16 %v204
  %v1485 = vunpack.c.h.b16 %v204
  %v1486 = vunpack.c.l.b16 %v205
  %v1487 = vunpack.c.h.b16 %v205
  %v1488 = vunpack.c.l.b16 %v206
  %v1489 = vunpack.c.h.b16 %v206
  %v1490 = vunpack.c.l.b16 %v207
  %v1491 = vunpack.c.h.b16 %v207
  %v1492 = vunpack.c.l.b16 %v208
  %v1493 = vunpack.c.h.b16 %v208
  %v1494 = vunpack.c.l.b16 %v209
  %v1495 = vunpack.c.h.b16 %v209
  %v1496 = vunpack.c.l.b16 %v210
  %v1497 = vunpack.c.h.b16 %v210
  %v1498 = vunpack.c.l.b16 %v211
  %v1499 = vunpack.c.h.b16 %v211
  %v1500 = vunpack.c.l.b16 %v212
  %v1501 = vunpack.c.h.b16 %v212
  %v1502 = vunpack.c.l.b16 %v213
  %v1503 = vunpack.c.h.b16 %v213
  %v1504 = vunpack.c.l.b16 %v214
  %v1505 = vunpack.c.h.b16 %v214
  %v1506 = vunpack.c.l.b16 %v215
  %v1507 = vunpack.c.h.b16 %v215
  %v1508 = vunpack.c.l.b16 %v216
  %v1509 = vunpack.c.h.b16 %v216
  %v1510 = vunpack.c.l.b16 %v217
  %v1511 = vunpack.c.h.b16 %v217
  %v1512 = vunpack.c.l.b16 %v218
  %v1513 = vunpack.c.h.b16 %v218
  %v1514 = vunpack.c.l.b16 %v219
  %v1515 = vunpack.c.h.b16 %v219
  %v1516 = vunpack.c.l.b16 %v220
  %v1517 = vunpack.c.h.b16 %v220
  %v1518 = vunpack.c.l.b16 %v221
  %v1519 = vunpack.c.h.b16 %v221
  %v1520 = vunpack.c.l.b16 %v222
  %v1521 = vunpack.c.h.b16 %v222
  %v1522 = vunpack.c.l.b16 %v223
  %v1523 = vunpack.c.h.b16 %v223
  %v1524 = vunpack.c.l.b16 %v224
  %v1525 = vunpack.c.h.b16 %v224
  %v1526 = vunpack.c.l.b16 %v225
  %v1527 = vunpack.c.h.b16 %v225
  %v1528 = vunpack.c.l.b16 %v226
  %v1529 = vunpack.c.h.b16 %v226
  %v1530 = vunpack.c.l.b16 %v227
  %v1531 = vunpack.c.h.b16 %v227
  %v1532 = vunpack.c.l.b16 %v228
  %v1533 = vunpack.c.h.b16 %v228
  %v1534 = vunpack.c.l.b16 %v229
  %v1535 = vunpack.c.h.b16 %v229
  %v1536 = vunpack.c.l.b16 %v230
  %v1537 = vunpack.c.h.b16 %v230
  %v1538 = vunpack.c.l.b16 %v231
  %v1539 = vunpack.c.h.b16 %v231
  %v1540 = vunpack.c.l.b16 %v232
  %v1541 = vunpack.c.h.b16 %v232
  %v1542 = vunpack.c.l.b16 %v233
  %v1543 = vunpack.c.h.b16 %v233
  %v1544 = vunpack.c.l.b16 %v234
  %v1545 = vunpack.c.h.b16 %v234
  %v1546 = vunpack.c.l.b16 %v235
  %v1547 = vunpack.c.h.b16 %v235
  %v1548 = vunpack.c.l.b16 %v236
  %v1549 = vunpack.c.h.b16 %v236
  %v1550 = vunpack.c.l.b16 %v237
  %v1551 = vunpack.c.h.b16 %v237
  %v1552 = vunpack.c.l.b16 %v238
  %v1553 = vunpack.c.h.b16 %v238
  %v1554 = vunpack.c.l.b16 %v239
  %v1555 = vunpack.c.h.b16 %v239
  %v1556 = vunpack.c.l.b16 %v240
  %v1557 = vunpack.c.h.b16 %v240
  %v1558 = vunpack.c.l.b16 %v241
  %v1559 = vunpack.c.h.b16 %v241
  %v1560 = vunpack.c.l.b16 %v242
  %v1561 = vunpack.c.h.b16 %v242
  %v1562 = vunpack.c.l.b16 %v243
  %v1563 = vunpack.c.h.b16 %v243
  %v1564 = vunpack.c.l.b16 %v244
  %v1565 = vunpack.c.h.b16 %v244
  %v1566 = vunpack.c.l.b16 %v245
  %v1567 = vunpack.c.h.b16 %v245
  %v1568 = vunpack.c.l.b16 %v246
  %v1569 = vunpack.c.h.b16 %v246
  %v1570 = vunpack.c.l.b16 %v247
  %v1571 = vunpack.c.h.b16 %v247
  %v1572 = vunpack.c.l.b16 %v248
  %v1573 = vunpack.c.h.b16 %v248
  %v1574 = vunpack.c.l.b16 %v249
  %v1575 = vunpack.c.h.b16 %v249
  %v1576 = vunpack.c.l.b16 %v250
  %v1577 = vunpack.c.h.b16 %v250
  %v1578 = vunpack.c.l.b16 %v251
  %v1579 = vunpack.c.h.b16 %v251
  %v1580 = vunpack.c.l.b16 %v252
  %v1581 = vunpack.c.h.b16 %v252
  %v1582 = vunpack.c.l.b16 %v253
  %v1583 = vunpack.c.h.b16 %v253
  %v1584 = vunpack.c.l.b16 %v254
  %v1585 = vunpack.c.h.b16 %v254
  %v1586 = vunpack.c.l.b16 %v255
  %v1587 = vunpack.c.h.b16 %v255
  %v1588 = vunpack.c.l.b16 %v256
  %v1589 = vunpack.c.h.b16 %v256
  %v1590 = vunpack.c.l.b16 %v257
  %v1591 = vunpack.c.h.b16 %v257
  %v1592 = vunpack.c.l.b16 %v258
  %v1593 = vunpack.c.h.b16 %v258
  %v1594 = vunpack.c.l.b16 %v259
  %v1595 = vunpack.c.h.b16 %v259
  %v1596 = vunpack.c.l.b16 %v260
  %v1597 = vunpack.c.h.b16 %v260
  %v1598 = vunpack.c.l.b16 %v261
  %v1599 = vunpack.c.h.b16 %v261
  %v1600 = vunpack.c.l.b16 %v262
  %v1601 = vunpack.c.h.b16 %v262
  %v1602 = vunpack.c.l.b16 %v263
  %v1603 = vunpack.c.h.b16 %v263
  %v1604 = vunpack.c.l.b16 %v264
  %v1605 = vunpack.c.h.b16 %v264
  %v1606 = vunpack.c.l.b16 %v265
  %v1607 = vunpack.c.h.b16 %v265
  %v1608 = vunpack.c.l.b16 %v266
  %v1609 = vunpack.c.h.b16 %v266
  %v1610 = vunpack.c.l.b16 %v267
  %v1611 = vunpack.c.h.b16 %v267
  %v1612 = vunpack.c.l.b16 %v268
  %v1613 = vunpack.c.h.b16 %v268
  %v1614 = vunpack.c.l.b16 %v269
  %v1615 = vunpack.c.h.b16 %v269
  %v1616 = vunpack.c.l.b16 %v270
  %v1617 = vunpack.c.h.b16 %v270
  %v1618 = vunpack.c.l.b16 %v271
  %v1619 = vunpack.c.h.b16 %v271
  %v1620 = vunpack.c.l.b16 %v272
  %v1621 = vunpack.c.h.b16 %v272
  %v1622 = vunpack.c.l.b16 %v273
  %v1623 = vunpack.c.h.b16 %v273
  %v1624 = vunpack.c.l.b16 %v274
  %v1625 = vunpack.c.h.b16 %v274
  %v1626 = vunpack.c.l.b16 %v275
  %v1627 = vunpack.c.h.b16 %v275
  %v1628 = vunpack.c.l.b16 %v276
  %v1629 = vunpack.c.h.b16 %v276
  %v1630 = vunpack.c.l.b16 %v277
  %v1631 = vunpack.c.h.b16 %v277
  %v1632 = vunpack.c.l.b16 %v278
  %v1633 = vunpack.c.h.b16 %v278
  %v1634 = vunpack.c.l.b16 %v279
  %v1635 = vunpack.c.h.b16 %v279
  %v1636 = vunpack.c.l.b16 %v280
  %v1637 = vunpack.c.h.b16 %v280
  %v1638 = vunpack.c.l.b16 %v281
  %v1639 = vunpack.c.h.b16 %v281
  %v1640 = vunpack.c.l.b16 %v282
  %v1641 = vunpack.c.h.b16 %v282
  %v1642 = vunpack.c.l.b16 %v283
  %v1643 = vunpack.c.h.b16 %v283
  %v1644 = vunpack.c.l.b16 %v284
  %v1645 = vunpack.c.h.b16 %v284
  %v1646 = vunpack.c.l.b16 %v285
  %v1647 = vunpack.c.h.b16 %v285
  %v1648 = vunpack.c.l.b16 %v286
  %v1649 = vunpack.c.h.b16 %v286
  %v1650 = vunpack.c.l.b16 %v287
  %v1651 = vunpack.c.h.b16 %v287
  %v1652 = vunpack.c.l.b16 %v288
  %v1653 = vunpack.c.h.b16 %v288
  %v1654 = vunpack.c.l.b16 %v289
  %v1655 = vunpack.c.h.b16 %v289
  %v1656 = vunpack.c.l.b16 %v290
  %v1657 = vunpack.c.h.b16 %v290
  %v1658 = vunpack.c.l.b16 %v291
  %v1659 = vunpack.c.h.b16 %v291
  %v1660 = vunpack.c.l.b16 %v292
  %v1661 = vunpack.c.h.b16 %v292
  %v1662 = vunpack.c.l.b16 %v293
  %v1663 = vunpack.c.h.b16 %v293
  %v1664 = vunpack.c.l.b16 %v294
  %v1665 = vunpack.c.h.b16 %v294
  %v1666 = vunpack.c.l.b16 %v295
  %v1667 = vunpack.c.h.b16 %v295
  %v1668 = vunpack.c.l.b16 %v296
  %v1669 = vunpack.c.h.b16 %v296
  %v1670 = vunpack.c.l.b16 %v297
  %v1671 = vunpack.c.h.b16 %v297
  %v1672 = vunpack.c.l.b16 %v298
  %v1673 = vunpack.c.h.b16 %v298
  %v1674 = vunpack.c.l.b16 %v299
  %v1675 = vunpack.c.h.b16 %v299
  %v1676 = vunpack.c.l.b16 %v300
  %v1677 = vunpack.c.h.b16 %v300
  %v1678 = vunpack.c.l.b16 %v301
  %v1679 = vunpack.c.h.b16 %v301
  %v1680 = vunpack.c.l.b16 %v302
  %v1681 = vunpack.c.h.b16 %v302
  %v1682 = vunpack.c.l.b16 %v303
  %v1683 = vunpack.c.h.b16 %v303
  %v1684 = vunpack.c.l.b16 %v304
  %v1685 = vunpack.c.h.b16 %v304
  %v1686 = vunpack.c.l.b16 %v305
  %v1687 = vunpack.c.h.b16 %v305
  %v1688 = vunpack.c.l.b16 %v306
  %v1689 = vunpack.c.h.b16 %v306
  %v1690 = vunpack.c.l.b16 %v307
  %v1691 = vunpack.c.h.b16 %v307
  %v1692 = vunpack.c.l.b16 %v308
  %v1693 = vunpack.c.h.b16 %v308
  %v1694 = vunpack.c.l.b16 %v309
  %v1695 = vunpack.c.h.b16 %v309
  %v1696 = vunpack.c.l.b16 %v310
  %v1697 = vunpack.c.h.b16 %v310
  %v1698 = vunpack.c.l.b16 %v311
  %v1699 = vunpack.c.h.b16 %v311
  %v1700 = vunpack.c.l.b16 %v312
  %v1701 = vunpack.c.h.b16 %v312
  %v1702 = vunpack.c.l.b16 %v313
  %v1703 = vunpack.c.h.b16 %v313
  %v1704 = vunpack.c.l.b16 %v314
  %v1705 = vunpack.c.h.b16 %v314
  %v1706 = vunpack.c.l.b16 %v315
  %v1707 = vunpack.c.h.b16 %v315
  %v1708 = vunpack.c.l.b16 %v316
  %v1709 = vunpack.c.h.b16 %v316
  %v1710 = vunpack.c.l.b16 %v317
  %v1711 = vunpack.c.h.b16 %v317
  %v1712 = vunpack.c.l.b16 %v318
  %v1713 = vunpack.c.h.b16 %v318
  %v1714 = vunpack.c.l.b16 %v319
  %v1715 = vunpack.c.h.b16 %v319
  %v1716 = vunpack.c.l.b16 %v320
  %v1717 = vunpack.c.h.b16 %v320
  %v1718 = vunpack.c.l.b16 %v321
  %v1719 = vunpack.c.h.b16 %v321
  %v1720 = vunpack.c.l.b16 %v322
  %v1721 = vunpack.c.h.b16 %v322
  %v1722 = vunpack.c.l.b16 %v323
  %v1723 = vunpack.c.h.b16 %v323
  %v1724 = vunpack.c.l.b16 %v324
  %v1725 = vunpack.c.h.b16 %v324
  %v1726 = vunpack.c.l.b16 %v325
  %v1727 = vunpack.c.h.b16 %v325
  %v1728 = vunpack.c.l.b16 %v326
  %v1729 = vunpack.c.h.b16 %v326
  %v1730 = vunpack.c.l.b16 %v327
  %v1731 = vunpack.c.h.b16 %v327
  %v1732 = vunpack.c.l.b16 %v328
  %v1733 = vunpack.c.h.b16 %v328
  %v1734 = vunpack.c.l.b16 %v329
  %v1735 = vunpack.c.h.b16 %v329
  %v1736 = vunpack.c.l.b16 %v330
  %v1737 = vunpack.c.h.b16 %v330
  %v1738 = vunpack.c.l.b16 %v331
  %v1739 = vunpack.c.h.b16 %v331
  %v1740 = vunpack.c.l.b16 %v332
  %v1741 = vunpack.c.h.b16 %v332
  %v1742 = vunpack.c.l.b16 %v333
  %v1743 = vunpack.c.h.b16 %v333
  %v1744 = vunpack.c.l.b16 %v334
  %v1745 = vunpack.c.h.b16 %v334
  %v1746 = vunpack.c.l.b16 %v335
  %v1747 = vunpack.c.h.b16 %v335
  %v1748 = vunpack.c.l.b16 %v336
  %v1749 = vunpack.c.h.b16 %v336
  %v1750 = vunpack.c.l.b16 %v337
  %v1751 = vunpack.c.h.b16 %v337
  %v1752 = vunpack.c.l.b16 %v338
  %v1753 = vunpack.c.h.b16 %v338
  %v1754 = vunpack.c.l.b16 %v339
  %v1755 = vunpack.c.h.b16 %v339
  %v1756 = vunpack.c.l.b16 %v340
  %v1757 = vunpack.c.h.b16 %v340
  %v1758 = vunpack.c.l.b16 %v341
  %v1759 = vunpack.c.h.b16 %v341
  %v1760 = vunpack.c.l.b16 %v342
  %v1761 = vunpack.c.h.b16 %v342
  %v1762 = vunpack.c.l.b16 %v343
  %v1763 = vunpack.c.h.b16 %v343
  %v1764 = vunpack.c.l.b16 %v344
  %v1765 = vunpack.c.h.b16 %v344
  %v1766 = vunpack.c.l.b16 %v345
  %v1767 = vunpack.c.h.b16 %v345
  %v1768 = vunpack.c.l.b16 %v346
  %v1769 = vunpack.c.h.b16 %v346
  %v1770 = vunpack.c.l.b16 %v347
  %v1771 = vunpack.c.h.b16 %v347
  %v1772 = vunpack.c.l.b16 %v348
  %v1773 = vunpack.c.h.b16 %v348
  %v1774 = vunpack.c.l.b16 %v349
  %v1775 = vunpack.c.h.b16 %v349
  %v1776 = vunpack.c.l.b16 %v350
  %v1777 = vunpack.c.h.b16 %v350
  %v1778 = vunpack.c.l.b16 %v351
  %v1779 = vunpack.c.h.b16 %v351
  %v1780 = vunpack.c.l.b16 %v352
  %v1781 = vunpack.c.h.b16 %v352
  %v1782 = vunpack.c.l.b16 %v353
  %v1783 = vunpack.c.h.b16 %v353
  %v1784 = vunpack.c.l.b16 %v354
  %v1785 = vunpack.c.h.b16 %v354
  %v1786 = vunpack.c.l.b16 %v355
  %v1787 = vunpack.c.h.b16 %v355
  %v1788 = vunpack.c.l.b16 %v356
  %v1789 = vunpack.c.h.b16 %v356
  %v1790 = vunpack.c.l.b16 %v357
  %v1791 = vunpack.c.h.b16 %v357
  %v1792 = vunpack.c.l.b16 %v358
  %v1793 = vunpack.c.h.b16 %v358
  %v1794 = vunpack.c.l.b16 %v359
  %v1795 = vunpack.c.h.b16 %v359
  %v1796 = vunpack.c.l.b16 %v360
  %v1797 = vunpack.c.h.b16 %v360
  %v1798 = vunpack.c.l.b16 %v361
  %v1799 = vunpack.c.h.b16 %v361
  %v1800 = vunpack.c.l.b16 %v362
  %v1801 = vunpack.c.h.b16 %v362
  %v1802 = vunpack.c.l.b16 %v363
  %v1803 = vunpack.c.h.b16 %v363
  %v1804 = vunpack.c.l.b16 %v364
  %v1805 = vunpack.c.h.b16 %v364
  %v1806 = vunpack.c.l.b16 %v365
  %v1807 = vunpack.c.h.b16 %v365
  %v1808 = vunpack.c.l.b16 %v366
  %v1809 = vunpack.c.h.b16 %v366
  %v1810 = vunpack.c.l.b16 %v367
  %v1811 = vunpack.c.h.b16 %v367
  %v1812 = vunpack.c.l.b16 %v368
  %v1813 = vunpack.c.h.b16 %v368
  %v1814 = vunpack.c.l.b16 %v369
  %v1815 = vunpack.c.h.b16 %v369
  %v1816 = vunpack.c.l.b16 %v370
  %v1817 = vunpack.c.h.b16 %v370
  %v1818 = vunpack.c.l.b16 %v371
  %v1819 = vunpack.c.h.b16 %v371
  %v1820 = vunpack.c.l.b16 %v372
  %v1821 = vunpack.c.h.b16 %v372
  %v1822 = vunpack.c.l.b16 %v373
  %v1823 = vunpack.c.h.b16 %v373
  %v1824 = vunpack.c.l.b16 %v374
  %v1825 = vunpack.c.h.b16 %v374
  %v1826 = vunpack.c.l.b16 %v375
  %v1827 = vunpack.c.h.b16 %v375
  %v1828 = vunpack.c.l.b16 %v376
  %v1829 = vunpack.c.h.b16 %v376
  %v1830 = vunpack.c.l.b16 %v377
  %v1831 = vunpack.c.h.b16 %v377
  %v1832 = vunpack.c.l.b16 %v378
  %v1833 = vunpack.c.h.b16 %v378
  %v1834 = vunpack.c.l.b16 %v379
  %v1835 = vunpack.c.h.b16 %v379
  %v1836 = vunpack.c.l.b16 %v380
  %v1837 = vunpack.c.h.b16 %v380
  %v1838 = vunpack.c.l.b16 %v381
  %v1839 = vunpack.c.h.b16 %v381
  %v1840 = vunpack.c.l.b16 %v382
  %v1841 = vunpack.c.h.b16 %v382
  %v1842 = vunpack.c.l.b16 %v383
  %v1843 = vunpack.c.h.b16 %v383
  %v1844 = vunpack.c.l.b16 %v384
  %v1845 = vunpack.c.h.b16 %v384
  %v1846 = vunpack.c.l.b16 %v385
  %v1847 = vunpack.c.h.b16 %v385
  %v1848 = vunpack.c.l.b16 %v386
  %v1849 = vunpack.c.h.b16 %v386
  %v1850 = vunpack.c.l.b16 %v387
  %v1851 = vunpack.c.h.b16 %v387
  %v1852 = vunpack.c.l.b16 %v388
  %v1853 = vunpack.c.h.b16 %v388
  %v1854 = vunpack.c.l.b16 %v389
  %v1855 = vunpack.c.h.b16 %v389
  %v1856 = vunpack.c.l.b16 %v390
  %v1857 = vunpack.c.h.b16 %v390
  %v1858 = vunpack.c.l.b16 %v391
  %v1859 = vunpack.c.h.b16 %v391
  %v1860 = vunpack.c.l.b16 %v392
  %v1861 = vunpack.c.h.b16 %v392
  %v1862 = vunpack.c.l.b16 %v393
  %v1863 = vunpack.c.h.b16 %v393
  %v1864 = vunpack.c.l.b16 %v394
  %v1865 = vunpack.c.h.b16 %v394
  %v1866 = vunpack.c.l.b16 %v395
  %v1867 = vunpack.c.h.b16 %v395
  %v1868 = vunpack.c.l.b16 %v396
  %v1869 = vunpack.c.h.b16 %v396
  %v1870 = vunpack.c.l.b16 %v397
  %v1871 = vunpack.c.h.b16 %v397
  %v1872 = vunpack.c.l.b16 %v398
  %v1873 = vunpack.c.h.b16 %v398
  %v1874 = vunpack.c.l.b16 %v399
  %v1875 = vunpack.c.h.b16 %v399
  %v1876 = vunpack.c.l.b16 %v400
  %v1877 = vunpack.c.h.b16 %v400
  %v1878 = vunpack.c.l.b16 %v401
  %v1879 = vunpack.c.h.b16 %v401
  %v1880 = vunpack.c.l.b16 %v402
  %v1881 = vunpack.c.h.b16 %v402
  %v1882 = vunpack.c.l.b16 %v403
  %v1883 = vunpack.c.h.b16 %v403
  %v1884 = vunpack.c.l.b16 %v404
  %v1885 = vunpack.c.h.b16 %v404
  %v1886 = vunpack.c.l.b16 %v405
  %v1887 = vunpack.c.h.b16 %v405
  %v1888 = vunpack.c.l.b16 %v406
  %v1889 = vunpack.c.h.b16 %v406
  %v1890 = vunpack.c.l.b16 %v407
  %v1891 = vunpack.c.h.b16 %v407
  %v1892 = vunpack.c.l.b16 %v408
  %v1893 = vunpack.c.h.b16 %v408
  %v1894 = vunpack.c.l.b16 %v409
  %v1895 = vunpack.c.h.b16 %v409
  %v1896 = vunpack.c.l.b16 %v410
  %v1897 = vunpack.c.h.b16 %v410
  %v1898 = vunpack.c.l.b16 %v411
  %v1899 = vunpack.c.h.b16 %v411
  %v1900 = vunpack.c.l.b16 %v412
  %v1901 = vunpack.c.h.b16 %v412
  %v1902 = vunpack.c.l.b16 %v413
  %v1903 = vunpack.c.h.b16 %v413
  %v1904 = vunpack.c.l.b16 %v414
  %v1905 = vunpack.c.h.b16 %v414
  %v1906 = vunpack.c.l.b16 %v415
  %v1907 = vunpack.c.h.b16 %v415
  %v1908 = vunpack.c.l.b16 %v416
  %v1909 = vunpack.c.h.b16 %v416
  %v1910 = vunpack.c.l.b16 %v417
  %v1911 = vunpack.c.h.b16 %v417
  %v1912 = vunpack.c.l.b16 %v418
  %v1913 = vunpack.c.h.b16 %v418
  %v1914 = vunpack.c.l.b16 %v419
  %v1915 = vunpack.c.h.b16 %v419
  %v1916 = vunpack.c.l.b16 %v420
  %v1917 = vunpack.c.h.b16 %v420
  %v1918 = vunpack.c.l.b16 %v421
  %v1919 = vunpack.c.h.b16 %v421
  %v1920 = vunpack.c.l.b16 %v422
  %v1921 = vunpack.c.h.b16 %v422
  %v1922 = vunpack.c.l.b16 %v423
  %v1923 = vunpack.c.h.b16 %v423
  %v1924 = vunpack.c.l.b16 %v424
  %v1925 = vunpack.c.h.b16 %v424
  %v1926 = vunpack.c.l.b16 %v425
  %v1927 = vunpack.c.h.b16 %v425
  %v1928 = vunpack.c.l.b16 %v426
  %v1929 = vunpack.c.h.b16 %v426
  %v1930 = vunpack.c.l.b16 %v427
  %v1931 = vunpack.c.h.b16 %v427
  %v1932 = vunpack.c.l.b16 %v428
  %v1933 = vunpack.c.h.b16 %v428
  %v1934 = vunpack.c.l.b16 %v429
  %v1935 = vunpack.c.h.b16 %v429
  %v1936 = vunpack.c.l.b16 %v430
  %v1937 = vunpack.c.h.b16 %v430
  %v1938 = vunpack.c.l.b16 %v431
  %v1939 = vunpack.c.h.b16 %v431
  %v1940 = vunpack.c.l.b16 %v432
  %v1941 = vunpack.c.h.b16 %v432
  %v1942 = vunpack.c.l.b16 %v433
  %v1943 = vunpack.c.h.b16 %v433
  %v1944 = vunpack.c.l.b16 %v434
  %v1945 = vunpack.c.h.b16 %v434
  %v1946 = vunpack.c.l.b16 %v435
  %v1947 = vunpack.c.h.b16 %v435
  %v1948 = vunpack.c.l.b16 %v436
  %v1949 = vunpack.c.h.b16 %v436
  %v1950 = vunpack.c.l.b16 %v437
  %v1951 = vunpack.c.h.b16 %v437
  %v1952 = vunpack.c.l.b16 %v438
  %v1953 = vunpack.c.h.b16 %v438
  %v1954 = vunpack.c.l.b16 %v439
  %v1955 = vunpack.c.h.b16 %v439
  %v1956 = vunpack.c.l.b16 %v440
  %v1957 = vunpack.c.h.b16 %v440
  %v1958 = vunpack.c.l.b16 %v441
  %v1959 = vunpack.c.h.b16 %v441
  %v1960 = vunpack.c.l.b16 %v442
  %v1961 = vunpack.c.h.b16 %v442
  %v1962 = vunpack.c.l.b16 %v443
  %v1963 = vunpack.c.h.b16 %v443
  %v1964 = vunpack.c.l.b16 %v444
  %v1965 = vunpack.c.h.b16 %v444
  %v1966 = vunpack.c.l.b16 %v445
  %v1967 = vunpack.c.h.b16 %v445
  %v1968 = vunpack.c.l.b16 %v446
  %v1969 = vunpack.c.h.b16 %v446
  %v1970 = vunpack.c.l.b16 %v447
  %v1971 = vunpack.c.h.b16 %v447
  %v1972 = vunpack.c.l.b16 %v448
  %v1973 = vunpack.c.h.b16 %v448
  %v1974 = vunpack.c.l.b16 %v449
  %v1975 = vunpack.c.h.b16 %v449
  %v1976 = vunpack.c.l.b16 %v450
  %v1977 = vunpack.c.h.b16 %v450
  %v1978 = vunpack.c.l.b16 %v451
  %v1979 = vunpack.c.h.b16 %v451
  %v1980 = vunpack.c.l.b16 %v452
  %v1981 = vunpack.c.h.b16 %v452
  %v1982 = vunpack.c.l.b16 %v453
  %v1983 = vunpack.c.h.b16 %v453
  %v1984 = vunpack.c.l.b16 %v454
  %v1985 = vunpack.c.h.b16 %v454
  %v1986 = vunpack.c.l.b16 %v455
  %v1987 = vunpack.c.h.b16 %v455
  %v1988 = vunpack.c.l.b16 %v456
  %v1989 = vunpack.c.h.b16 %v456
  %v1990 = vunpack.c.l.b16 %v457
  %v1991 = vunpack.c.h.b16 %v457
  %v1992 = vunpack.c.l.b16 %v458
  %v1993 = vunpack.c.h.b16 %v458
  %v1994 = vunpack.c.l.b16 %v459
  %v1995 = vunpack.c.h.b16 %v459
  %v1996 = vunpack.c.l.b16 %v460
  %v1997 = vunpack.c.h.b16 %v460
  %v1998 = vunpack.c.l.b16 %v461
  %v1999 = vunpack.c.h.b16 %v461
  %v2000 = vunpack.c.l.b16 %v462
  %v2001 = vunpack.c.h.b16 %v462
  %v2002 = vunpack.c.l.b16 %v463
  %v2003 = vunpack.c.h.b16 %v463
  %v2004 = vunpack.c.l.b16 %v464
  %v2005 = vunpack.c.h.b16 %v464
  %v2006 = vunpack.c.l.b16 %v465
  %v2007 = vunpack.c.h.b16 %v465
  %v2008 = vunpack.c.l.b16 %v466
  %v2009 = vunpack.c.h.b16 %v466
  %v2010 = vunpack.c.l.b16 %v467
  %v2011 = vunpack.c.h.b16 %v467
  %v2012 = vunpack.c.l.b16 %v468
  %v2013 = vunpack.c.h.b16 %v468
  %v2014 = vunpack.c.l.b16 %v469
  %v2015 = vunpack.c.h.b16 %v469
  %v2016 = vunpack.c.l.b16 %v470
  %v2017 = vunpack.c.h.b16 %v470
  %v2018 = vunpack.c.l.b16 %v471
  %v2019 = vunpack.c.h.b16 %v471
  %v2020 = vunpack.c.l.b16 %v472
  %v2021 = vunpack.c.h.b16 %v472
  %v2022 = vunpack.c.l.b16 %v473
  %v2023 = vunpack.c.h.b16 %v473
  %v2024 = vunpack.c.l.b16 %v474
  %v2025 = vunpack.c.h.b16 %v474
  %v2026 = vunpack.c.l.b16 %v475
  %v2027 = vunpack.c.h.b16 %v475
  %v2028 = vunpack.c.l.b16 %v476
  %v2029 = vunpack.c.h.b16 %v476
  %v2030 = vunpack.c.l.b16 %v477
  %v2031 = vunpack.c.h.b16 %v477
  %v2032 = vunpack.c.l.b16 %v478
  %v2033 = vunpack.c.h.b16 %v478
  %v2034 = vunpack.c.l.b16 %v479
  %v2035 = vunpack.c.h.b16 %v479
  %v2036 = vunpack.c.l.b16 %v480
  %v2037 = vunpack.c.h.b16 %v480
  %v2038 = vunpack.c.l.b16 %v481
  %v2039 = vunpack.c.h.b16 %v481
  %v2040 = vunpack.c.l.b16 %v482
  %v2041 = vunpack.c.h.b16 %v482
  %v2042 = vunpack.c.l.b16 %v483
  %v2043 = vunpack.c.h.b16 %v483
  %v2044 = vunpack.c.l.b16 %v484
  %v2045 = vunpack.c.h.b16 %v484
  %v2046 = vunpack.c.l.b16 %v485
  %v2047 = vunpack.c.h.b16 %v485
  %v2048 = vunpack.c.l.b16 %v486
  %v2049 = vunpack.c.h.b16 %v486
  %v2050 = vunpack.c.l.b16 %v487
  %v2051 = vunpack.c.h.b16 %v487
  %v2052 = vunpack.c.l.b16 %v488
  %v2053 = vunpack.c.h.b16 %v488
  %v2054 = vunpack.c.l.b16 %v489
  %v2055 = vunpack.c.h.b16 %v489
  %v2056 = vunpack.c.l.b16 %v490
  %v2057 = vunpack.c.h.b16 %v490
  %v2058 = vunpack.c.l.b16 %v491
  %v2059 = vunpack.c.h.b16 %v491
  %v2060 = vunpack.c.l.b16 %v492
  %v2061 = vunpack.c.h.b16 %v492
  %v2062 = vunpack.c.l.b16 %v493
  %v2063 = vunpack.c.h.b16 %v493
  %v2064 = vunpack.c.l.b16 %v494
  %v2065 = vunpack.c.h.b16 %v494
  %v2066 = vunpack.c.l.b16 %v495
  %v2067 = vunpack.c.h.b16 %v495
  %v2068 = vunpack.c.l.b16 %v496
  %v2069 = vunpack.c.h.b16 %v496
  %v2070 = vunpack.c.l.b16 %v497
  %v2071 = vunpack.c.h.b16 %v497
  %v2072 = vunpack.c.l.b16 %v498
  %v2073 = vunpack.c.h.b16 %v498
  %v2074 = vunpack.c.l.b16 %v499
  %v2075 = vunpack.c.h.b16 %v499
  %v2076 = vunpack.c.l.b16 %v500
  %v2077 = vunpack.c.h.b16 %v500
  %v2078 = vunpack.c.l.b16 %v501
  %v2079 = vunpack.c.h.b16 %v501
  %v2080 = vunpack.c.l.b16 %v502
  %v2081 = vunpack.c.h.b16 %v502
  %v2082 = vunpack.c.l.b16 %v503
  %v2083 = vunpack.c.h.b16 %v503
  %v2084 = vunpack.c.l.b16 %v504
  %v2085 = vunpack.c.h.b16 %v504
  %v2086 = vunpack.c.l.b16 %v505
  %v2087 = vunpack.c.h.b16 %v505
  %v2088 = vunpack.c.l.b16 %v506
  %v2089 = vunpack.c.h.b16 %v506
  %v2090 = vunpack.c.l.b16 %v507
  %v2091 = vunpack.c.h.b16 %v507
  %v2092 = vunpack.c.l.b16 %v508
  %v2093 = vunpack.c.h.b16 %v508
  %v2094 = vunpack.c.l.b16 %v509
  %v2095 = vunpack.c.h.b16 %v509
  %v2096 = vunpack.c.l.b16 %v510
  %v2097 = vunpack.c.h.b16 %v510
  %v2098 = vunpack.c.l.b16 %v511
  %v2099 = vunpack.c.h.b16 %v511
  %v2100 = vunpack.c.l.b16 %v512
  %v2101 = vunpack.c.h.b16 %v512
  %v2102 = vunpack.c.l.b16 %v513
  %v2103 = vunpack.c.h.b16 %v513
  %v2104 = vunpack.c.l.b16 %v514
  %v2105 = vunpack.c.h.b16 %v514
  %v2106 = vunpack.c.l.b16 %v515
  %v2107 = vunpack.c.h.b16 %v515
  %v2108 = vunpack.c.l.b16 %v516
  %v2109 = vunpack.c.h.b16 %v516
  %v2110 = vunpack.c.l.b16 %v517
  %v2111 = vunpack.c.h.b16 %v517
  %v2112 = vunpack.c.l.b16 %v518
  %v2113 = vunpack.c.h.b16 %v518
  %v2114 = vunpack.c.l.b16 %v519
  %v2115 = vunpack.c.h.b16 %v519
  %v2116 = vunpack.c.l.b16 %v520
  %v2117 = vunpack.c.h.b16 %v520
  %v2118 = vunpack.c.l.b16 %v521
  %v2119 = vunpack.c.h.b16 %v521
  %v2120 = vunpack.c.l.b16 %v522
  %v2121 = vunpack.c.h.b16 %v522
  %v2122 = vunpack.c.l.b16 %v523
  %v2123 = vunpack.c.h.b16 %v523
  %v2124 = vunpack.c.l.b16 %v524
  %v2125 = vunpack.c.h.b16 %v524
  %v2126 = vunpack.c.l.b16 %v525
  %v2127 = vunpack.c.h.b16 %v525
  %v2128 = vunpack.c.l.b16 %v526
  %v2129 = vunpack.c.h.b16 %v526
  %v2130 = vunpack.c.l.b16 %v527
  %v2131 = vunpack.c.h.b16 %v527
  %v2132 = vunpack.c.l.b16 %v528
  %v2133 = vunpack.c.h.b16 %v528
  %v2134 = vunpack.c.l.b16 %v529
  %v2135 = vunpack.c.h.b16 %v529
  %v2136 = vpack.c.b16 %v1120, %v1112
  %v2137 = vpack.c.b16 %v1121, %v1113
  %v2138 = vpack.c.b16 %v1122, %v1114
  %v2139 = vpack.c.b16 %v1123, %v1115
  %v2140 = vpack.c.b16 %v1124, %v1116
  %v2141 = vpack.c.b16 %v1125, %v1117
  %v2142 = vpack.c.b16 %v1126, %v1118
  %v2143 = vpack.c.b16 %v1127, %v1119
  %v2144 = vpack.c.b16 %v1136, %v1128
  %v2145 = vpack.c.b16 %v1137, %v1129
  %v2146 = vpack.c.b16 %v1138, %v1130
  %v2147 = vpack.c.b16 %v1139, %v1131
  %v2148 = vpack.c.b16 %v1140, %v1132
  %v2149 = vpack.c.b16 %v1141, %v1133
  %v2150 = vpack.c.b16 %v1142, %v1134
  %v2151 = vpack.c.b16 %v1143, %v1135
  %v2152 = vpack.c.b16 %v1152, %v1144
  %v2153 = vpack.c.b16 %v1153, %v1145
  %v2154 = vpack.c.b16 %v1154, %v1146
  %v2155 = vpack.c.b16 %v1155, %v1147
  %v2156 = vpack.c.b16 %v1156, %v1148
  %v2157 = vpack.c.b16 %v1157, %v1149
  %v2158 = vpack.c.b16 %v1158, %v1150
  %v2159 = vpack.c.b16 %v1159, %v1151
  %v2160 = vpack.c.b16 %v1168, %v1160
  %v2161 = vpack.c.b16 %v1169, %v1161
  %v2162 = vpack.c.b16 %v1170, %v1162
  %v2163 = vpack.c.b16 %v1171, %v1163
  %v2164 = vpack.c.b16 %v1172, %v1164
  %v2165 = vpack.c.b16 %v1173, %v1165
  %v2166 = vpack.c.b16 %v1174, %v1166
  %v2167 = vpack.c.b16 %v1175, %v1167
  %v2168 = vpack.c.b16 %v1184, %v1176
  %v2169 = vpack.c.b16 %v1185, %v1177
  %v2170 = vpack.c.b16 %v1186, %v1178
  %v2171 = vpack.c.b16 %v1187, %v1179
  %v2172 = vpack.c.b16 %v1188, %v1180
  %v2173 = vpack.c.b16 %v1189, %v1181
  %v2174 = vpack.c.b16 %v1190, %v1182
  %v2175 = vpack.c.b16 %v1191, %v1183
  %v2176 = vpack.c.b16 %v1200, %v1192
  %v2177 = vpack.c.b16 %v1201, %v1193
  %v2178 = vpack.c.b16 %v1202, %v1194
  %v2179 = vpack.c.b16 %v1203, %v1195
  %v2180 = vpack.c.b16 %v1204, %v1196
  %v2181 = vpack.c.b16 %v1205, %v1197
  %v2182 = vpack.c.b16 %v1206, %v1198
  %v2183 = vpack.c.b16 %v1207, %v1199
  %v2184 = vpack.c.b16 %v1216, %v1208
  %v2185 = vpack.c.b16 %v1217, %v1209
  %v2186 = vpack.c.b16 %v1218, %v1210
  %v2187 = vpack.c.b16 %v1219, %v1211
  %v2188 = vpack.c.b16 %v1220, %v1212
  %v2189 = vpack.c.b16 %v1221, %v1213
  %v2190 = vpack.c.b16 %v1222, %v1214
  %v2191 = vpack.c.b16 %v1223, %v1215
  %v2192 = vpack.c.b16 %v1232, %v1224
  %v2193 = vpack.c.b16 %v1233, %v1225
  %v2194 = vpack.c.b16 %v1234, %v1226
  %v2195 = vpack.c.b16 %v1235, %v1227
  %v2196 = vpack.c.b16 %v1236, %v1228
  %v2197 = vpack.c.b16 %v1237, %v1229
  %v2198 = vpack.c.b16 %v1238, %v1230
  %v2199 = vpack.c.b16 %v1239, %v1231
  %v2200 = vpack.c.b16 %v1248, %v1240
  %v2201 = vpack.c.b16 %v1249, %v1241
  %v2202 = vpack.c.b16 %v1250, %v1242
  %v2203 = vpack.c.b16 %v1251, %v1243
  %v2204 = vpack.c.b16 %v1252, %v1244
  %v2205 = vpack.c.b16 %v1253, %v1245
  %v2206 = vpack.c.b16 %v1254, %v1246
  %v2207 = vpack.c.b16 %v1255, %v1247
  %v2208 = vpack.c.b16 %v1264, %v1256
  %v2209 = vpack.c.b16 %v1265, %v1257
  %v2210 = vpack.c.b16 %v1266, %v1258
  %v2211 = vpack.c.b16 %v1267, %v1259
  %v2212 = vpack.c.b16 %v1268, %v1260
  %v2213 = vpack.c.b16 %v1269, %v1261
  %v2214 = vpack.c.b16 %v1270, %v1262
  %v2215 = vpack.c.b16 %v1271, %v1263
  %v2216 = vpack.c.b16 %v1280, %v1272
  %v2217 = vpack.c.b16 %v1281, %v1273
  %v2218 = vpack.c.b16 %v1282, %v1274
  %v2219 = vpack.c.b16 %v1283, %v1275
  %v2220 = vpack.c.b16 %v1284, %v1276
  %v2221 = vpack.c.b16 %v1285, %v1277
  %v2222 = vpack.c.b16 %v1286, %v1278
  %v2223 = vpack.c.b16 %v1287, %v1279
  %v2224 = vpack.c.b16 %v1296, %v1288
  %v2225 = vpack.c.b16 %v1297, %v1289
  %v2226 = vpack.c.b16 %v1298, %v1290
  %v2227 = vpack.c.b16 %v1299, %v1291
  %v2228 = vpack.c.b16 %v1300, %v1292
  %v2229 = vpack.c.b16 %v1301, %v1293
  %v2230 = vpack.c.b16 %v1302, %v1294
  %v2231 = vpack.c.b16 %v1303, %v1295
  %v2232 = vpack.c.b16 %v1312, %v1304
  %v2233 = vpack.c.b16 %v1313, %v1305
  %v2234 = vpack.c.b16 %v1314, %v1306
  %v2235 = vpack.c.b16 %v1315, %v1307
  %v2236 = vpack.c.b16 %v1316, %v1308
  %v2237 = vpack.c.b16 %v1317, %v1309
  %v2238 = vpack.c.b16 %v1318, %v1310
  %v2239 = vpack.c.b16 %v1319, %v1311
  %v2240 = vpack.c.b16 %v1328, %v1320
  %v2241 = vpack.c.b16 %v1329, %v1321
  %v2242 = vpack.c.b16 %v1330, %v1322
  %v2243 = vpack.c.b16 %v1331, %v1323
  %v2244 = vpack.c.b16 %v1332, %v1324
  %v2245 = vpack.c.b16 %v1333, %v1325
  %v2246 = vpack.c.b16 %v1334, %v1326
  %v2247 = vpack.c.b16 %v1335, %v1327
  %v2248 = vpack.c.b16 %v1344, %v1336
  %v2249 = vpack.c.b16 %v1345, %v1337
  %v2250 = vpack.c.b16 %v1346, %v1338
  %v2251 = vpack.c.b16 %v1347, %v1339
  %v2252 = vpack.c.b16 %v1348, %v1340
  %v2253 = vpack.c.b16 %v1349, %v1341
  %v2254 = vpack.c.b16 %v1350, %v1342
  %v2255 = vpack.c.b16 %v1351, %v1343
  %v2256 = vpack.c.b16 %v1360, %v1352
  %v2257 = vpack.c.b16 %v1361, %v1353
  %v2258 = vpack.c.b16 %v1362, %v1354
  %v2259 = vpack.c.b16 %v1363, %v1355
  %v2260 = vpack.c.b16 %v1364, %v1356
  %v2261 = vpack.c.b16 %v1365, %v1357
  %v2262 = vpack.c.b16 %v1366, %v1358
  %v2263 = vpack.c.b16 %v1367, %v1359
  %v2264 = vpack.c.b16 %v1376, %v1368
  %v2265 = vpack.c.b16 %v1377, %v1369
  %v2266 = vpack.c.b16 %v1378, %v1370
  %v2267 = vpack.c.b16 %v1379, %v1371
  %v2268 = vpack.c.b16 %v1380, %v1372
  %v2269 = vpack.c.b16 %v1381, %v1373
  %v2270 = vpack.c.b16 %v1382, %v1374
  %v2271 = vpack.c.b16 %v1383, %v1375
  %v2272 = vpack.c.b16 %v1392, %v1384
  %v2273 = vpack.c.b16 %v1393, %v1385
  %v2274 = vpack.c.b16 %v1394, %v1386
  %v2275 = vpack.c.b16 %v1395, %v1387
  %v2276 = vpack.c.b16 %v1396, %v1388
  %v2277 = vpack.c.b16 %v1397, %v1389
  %v2278 = vpack.c.b16 %v1398, %v1390
  %v2279 = vpack.c.b16 %v1399, %v1391
  %v2280 = vpack.c.b16 %v1408, %v1400
  %v2281 = vpack.c.b16 %v1409, %v1401
  %v2282 = vpack.c.b16 %v1410, %v1402
  %v2283 = vpack.c.b16 %v1411, %v1403
  %v2284 = vpack.c.b16 %v1412, %v1404
  %v2285 = vpack.c.b16 %v1413, %v1405
  %v2286 = vpack.c.b16 %v1414, %v1406
  %v2287 = vpack.c.b16 %v1415, %v1407
  %v2288 = vpack.c.b16 %v1424, %v1416
  %v2289 = vpack.c.b16 %v1425, %v1417
  %v2290 = vpack.c.b16 %v1426, %v1418
  %v2291 = vpack.c.b16 %v1427, %v1419
  %v2292 = vpack.c.b16 %v1428, %v1420
  %v2293 = vpack.c.b16 %v1429, %v1421
  %v2294 = vpack.c.b16 %v1430, %v1422
  %v2295 = vpack.c.b16 %v1431, %v1423
  %v2296 = vpack.c.b16 %v1440, %v1432
  %v2297 = vpack.c.b16 %v1441, %v1433
  %v2298 = vpack.c.b16 %v1442, %v1434
  %v2299 = vpack.c.b16 %v1443, %v1435
  %v2300 = vpack.c.b16 %v1444, %v1436
  %v2301 = vpack.c.b16 %v1445, %v1437
  %v2302 = vpack.c.b16 %v1446, %v1438
  %v2303 = vpack.c.b16 %v1447, %v1439
  %v2304 = vpack.c.b16 %v1456, %v1448
  %v2305 = vpack.c.b16 %v1457, %v1449
  %v2306 = vpack.c.b16 %v1458, %v1450
  %v2307 = vpack.c.b16 %v1459, %v1451
  %v2308 = vpack.c.b16 %v1460, %v1452
  %v2309 = vpack.c.b16 %v1461, %v1453
  %v2310 = vpack.c.b16 %v1462, %v1454
  %v2311 = vpack.c.b16 %v1463, %v1455
  %v2312 = vpack.c.b16 %v1472, %v1464
  %v2313 = vpack.c.b16 %v1473, %v1465
  %v2314 = vpack.c.b16 %v1474, %v1466
  %v2315 = vpack.c.b16 %v1475, %v1467
  %v2316 = vpack.c.b16 %v1476, %v1468
  %v2317 = vpack.c.b16 %v1477, %v1469
  %v2318 = vpack.c.b16 %v1478, %v1470
  %v2319 = vpack.c.b16 %v1479, %v1471
  %v2320 = vpack.c.b16 %v1488, %v1480
  %v2321 = vpack.c.b16 %v1489, %v1481
  %v2322 = vpack.c.b16 %v1490, %v1482
  %v2323 = vpack.c.b16 %v1491, %v1483
  %v2324 = vpack.c.b16 %v1492, %v1484
  %v2325 = vpack.c.b16 %v1493, %v1485
  %v2326 = vpack.c.b16 %v1494, %v1486
  %v2327 = vpack.c.b16 %v1495, %v1487
  %v2328 = vpack.c.b16 %v1504, %v1496
  %v2329 = vpack.c.b16 %v1505, %v1497
  %v2330 = vpack.c.b16 %v1506, %v1498
  %v2331 = vpack.c.b16 %v1507, %v1499
  %v2332 = vpack.c.b16 %v1508, %v1500
  %v2333 = vpack.c.b16 %v1509, %v1501
  %v2334 = vpack.c.b16 %v1510, %v1502
  %v2335 = vpack.c.b16 %v1511, %v1503
  %v2336 = vpack.c.b16 %v1520, %v1512
  %v2337 = vpack.c.b16 %v1521, %v1513
  %v2338 = vpack.c.b16 %v1522, %v1514
  %v2339 = vpack.c.b16 %v1523, %v1515
  %v2340 = vpack.c.b16 %v1524, %v1516
  %v2341 = vpack.c.b16 %v1525, %v1517
  %v2342 = vpack.c.b16 %v1526, %v1518
  %v2343 = vpack.c.b16 %v1527, %v1519
  %v2344 = vpack.c.b16 %v1536, %v1528
  %v2345 = vpack.c.b16 %v1537, %v1529
  %v2346 = vpack.c.b16 %v1538, %v1530
  %v2347 = vpack.c.b16 %v1539, %v1531
  %v2348 = vpack.c.b16 %v1540, %v1532
  %v2349 = vpack.c.b16 %v1541, %v1533
  %v2350 = vpack.c.b16 %v1542, %v1534
  %v2351 = vpack.c.b16 %v1543, %v1535
  %v2352 = vpack.c.b16 %v1552, %v1544
  %v2353 = vpack.c.b16 %v1553, %v1545
  %v2354 = vpack.c.b16 %v1554, %v1546
  %v2355 = vpack.c.b16 %v1555, %v1547
  %v2356 = vpack.c.b16 %v1556, %v1548
  %v2357 = vpack.c.b16 %v1557, %v1549
  %v2358 = vpack.c.b16 %v1558, %v1550
  %v2359 = vpack.c.b16 %v1559, %v1551
  %v2360 = vpack.c.b16 %v1568, %v1560
  %v2361 = vpack.c.b16 %v1569, %v1561
  %v2362 = vpack.c.b16 %v1570, %v1562
  %v2363 = vpack.c.b16 %v1571, %v1563
  %v2364 = vpack.c.b16 %v1572, %v1564
  %v2365 = vpack.c.b16 %v1573, %v1565
  %v2366 = vpack.c.b16 %v1574, %v1566
  %v2367 = vpack.c.b16 %v1575, %v1567
  %v2368 = vpack.c.b16 %v1584, %v1576
  %v2369 = vpack.c.b16 %v1585, %v1577
  %v2370 = vpack.c.b16 %v1586, %v1578
  %v2371 = vpack.c.b16 %v1587, %v1579
  %v2372 = vpack.c.b16 %v1588, %v1580
  %v2373 = vpack.c.b16 %v1589, %v1581
  %v2374 = vpack.c.b16 %v1590, %v1582
  %v2375 = vpack.c.b16 %v1591, %v1583
  %v2376 = vpack.c.b16 %v1600, %v1592
  %v2377 = vpack.c.b16 %v1601, %v1593
  %v2378 = vpack.c.b16 %v1602, %v1594
  %v2379 = vpack.c.b16 %v1603, %v1595
  %v2380 = vpack.c.b16 %v1604, %v1596
  %v2381 = vpack.c.b16 %v1605, %v1597
  %v2382 = vpack.c.b16 %v1606, %v1598
  %v2383 = vpack.c.b16 %v1607, %v1599
  %v2384 = vpack.c.b16 %v1616, %v1608
  %v2385 = vpack.c.b16 %v1617, %v1609
  %v2386 = vpack.c.b16 %v1618, %v1610
  %v2387 = vpack.c.b16 %v1619, %v1611
  %v2388 = vpack.c.b16 %v1620, %v1612
  %v2389 = vpack.c.b16 %v1621, %v1613
  %v2390 = vpack.c.b16 %v1622, %v1614
  %v2391 = vpack.c.b16 %v1623, %v1615
  %v2392 = vpack.c.b16 %v1632, %v1624
  %v2393 = vpack.c.b16 %v1633, %v1625
  %v2394 = vpack.c.b16 %v1634, %v1626
  %v2395 = vpack.c.b16 %v1635, %v1627
  %v2396 = vpack.c.b16 %v1636, %v1628
  %v2397 = vpack.c.b16 %v1637, %v1629
  %v2398 = vpack.c.b16 %v1638, %v1630
  %v2399 = vpack.c.b16 %v1639, %v1631
  %v2400 = vpack.c.b16 %v1648, %v1640
  %v2401 = vpack.c.b16 %v1649, %v1641
  %v2402 = vpack.c.b16 %v1650, %v1642
  %v2403 = vpack.c.b16 %v1651, %v1643
  %v2404 = vpack.c.b16 %v1652, %v1644
  %v2405 = vpack.c.b16 %v1653, %v1645
  %v2406 = vpack.c.b16 %v1654, %v1646
  %v2407 = vpack.c.b16 %v1655, %v1647
  %v2408 = vpack.c.b16 %v1664, %v1656
  %v2409 = vpack.c.b16 %v1665, %v1657
  %v2410 = vpack.c.b16 %v1666, %v1658
  %v2411 = vpack.c.b16 %v1667, %v1659
  %v2412 = vpack.c.b16 %v1668, %v1660
  %v2413 = vpack.c.b16 %v1669, %v1661
  %v2414 = vpack.c.b16 %v1670, %v1662
  %v2415 = vpack.c.b16 %v1671, %v1663
  %v2416 = vpack.c.b16 %v1680, %v1672
  %v2417 = vpack.c.b16 %v1681, %v1673
  %v2418 = vpack.c.b16 %v1682, %v1674
  %v2419 = vpack.c.b16 %v1683, %v1675
  %v2420 = vpack.c.b16 %v1684, %v1676
  %v2421 = vpack.c.b16 %v1685, %v1677
  %v2422 = vpack.c.b16 %v1686, %v1678
  %v2423 = vpack.c.b16 %v1687, %v1679
  %v2424 = vpack.c.b16 %v1696, %v1688
  %v2425 = vpack.c.b16 %v1697, %v1689
  %v2426 = vpack.c.b16 %v1698, %v1690
  %v2427 = vpack.c.b16 %v1699, %v1691
  %v2428 = vpack.c.b16 %v1700, %v1692
  %v2429 = vpack.c.b16 %v1701, %v1693
  %v2430 = vpack.c.b16 %v1702, %v1694
  %v2431 = vpack.c.b16 %v1703, %v1695
  %v2432 = vpack.c.b16 %v1712, %v1704
  %v2433 = vpack.c.b16 %v1713, %v1705
  %v2434 = vpack.c.b16 %v1714, %v1706
  %v2435 = vpack.c.b16 %v1715, %v1707
  %v2436 = vpack.c.b16 %v1716, %v1708
  %v2437 = vpack.c.b16 %v1717, %v1709
  %v2438 = vpack.c.b16 %v1718, %v1710
  %v2439 = vpack.c.b16 %v1719, %v1711
  %v2440 = vpack.c.b16 %v1728, %v1720
  %v2441 = vpack.c.b16 %v1729, %v1721
  %v2442 = vpack.c.b16 %v1730, %v1722
  %v2443 = vpack.c.b16 %v1731, %v1723
  %v2444 = vpack.c.b16 %v1732, %v1724
  %v2445 = vpack.c.b16 %v1733, %v1725
  %v2446 = vpack.c.b16 %v1734, %v1726
  %v2447 = vpack.c.b16 %v1735, %v1727
  %v2448 = vpack.c.b16 %v1744, %v1736
  %v2449 = vpack.c.b16 %v1745, %v1737
  %v2450 = vpack.c.b16 %v1746, %v1738
  %v2451 = vpack.c.b16 %v1747, %v1739
  %v2452 = vpack.c.b16 %v1748, %v1740
  %v2453 = vpack.c.b16 %v1749, %v1741
  %v2454 = vpack.c.b16 %v1750, %v1742
  %v2455 = vpack.c.b16 %v1751, %v1743
  %v2456 = vpack.c.b16 %v1760, %v1752
  %v2457 = vpack.c.b16 %v1761, %v1753
  %v2458 = vpack.c.b16 %v1762, %v1754
  %v2459 = vpack.c.b16 %v1763, %v1755
  %v2460 = vpack.c.b16 %v1764, %v1756
  %v2461 = vpack.c.b16 %v1765, %v1757
  %v2462 = vpack.c.b16 %v1766, %v1758
  %v2463 = vpack.c.b16 %v1767, %v1759
  %v2464 = vpack.c.b16 %v1776, %v1768
  %v2465 = vpack.c.b16 %v1777, %v1769
  %v2466 = vpack.c.b16 %v1778, %v1770
  %v2467 = vpack.c.b16 %v1779, %v1771
  %v2468 = vpack.c.b16 %v1780, %v1772
  %v2469 = vpack.c.b16 %v1781, %v1773
  %v2470 = vpack.c.b16 %v1782, %v1774
  %v2471 = vpack.c.b16 %v1783, %v1775
  %v2472 = vpack.c.b16 %v1792, %v1784
  %v2473 = vpack.c.b16 %v1793, %v1785
  %v2474 = vpack.c.b16 %v1794, %v1786
  %v2475 = vpack.c.b16 %v1795, %v1787
  %v2476 = vpack.c.b16 %v1796, %v1788
  %v2477 = vpack.c.b16 %v1797, %v1789
  %v2478 = vpack.c.b16 %v1798, %v1790
  %v2479 = vpack.c.b16 %v1799, %v1791
  %v2480 = vpack.c.b16 %v1808, %v1800
  %v2481 = vpack.c.b16 %v1809, %v1801
  %v2482 = vpack.c.b16 %v1810, %v1802
  %v2483 = vpack.c.b16 %v1811, %v1803
  %v2484 = vpack.c.b16 %v1812, %v1804
  %v2485 = vpack.c.b16 %v1813, %v1805
  %v2486 = vpack.c.b16 %v1814, %v1806
  %v2487 = vpack.c.b16 %v1815, %v1807
  %v2488 = vpack.c.b16 %v1824, %v1816
  %v2489 = vpack.c.b16 %v1825, %v1817
  %v2490 = vpack.c.b16 %v1826, %v1818
  %v2491 = vpack.c.b16 %v1827, %v1819
  %v2492 = vpack.c.b16 %v1828, %v1820
  %v2493 = vpack.c.b16 %v1829, %v1821
  %v2494 = vpack.c.b16 %v1830, %v1822
  %v2495 = vpack.c.b16 %v1831, %v1823
  %v2496 = vpack.c.b16 %v1840, %v1832
  %v2497 = vpack.c.b16 %v1841, %v1833
  %v2498 = vpack.c.b16 %v1842, %v1834
  %v2499 = vpack.c.b16 %v1843, %v1835
  %v2500 = vpack.c.b16 %v1844, %v1836
  %v2501 = vpack.c.b16 %v1845, %v1837
  %v2502 = vpack.c.b16 %v1846, %v1838
  %v2503 = vpack.c.b16 %v1847, %v1839
  %v2504 = vpack.c.b16 %v1856, %v1848
  %v2505 = vpack.c.b16 %v1857, %v1849
  %v2506 = vpack.c.b16 %v1858, %v1850
  %v2507 = vpack.c.b16 %v1859, %v1851
  %v2508 = vpack.c.b16 %v1860, %v1852
  %v2509 = vpack.c.b16 %v1861, %v1853
  %v2510 = vpack.c.b16 %v1862, %v1854
  %v2511 = vpack.c.b16 %v1863, %v1855
  %v2512 = vpack.c.b16 %v1872, %v1864
  %v2513 = vpack.c.b16 %v1873, %v1865
  %v2514 = vpack.c.b16 %v1874, %v1866
  %v2515 = vpack.c.b16 %v1875, %v1867
  %v2516 = vpack.c.b16 %v1876, %v1868
  %v2517 = vpack.c.b16 %v1877, %v1869
  %v2518 = vpack.c.b16 %v1878, %v1870
  %v2519 = vpack.c.b16 %v1879, %v1871
  %v2520 = vpack.c.b16 %v1888, %v1880
  %v2521 = vpack.c.b16 %v1889, %v1881
  %v2522 = vpack.c.b16 %v1890, %v1882
  %v2523 = vpack.c.b16 %v1891, %v1883
  %v2524 = vpack.c.b16 %v1892, %v1884
  %v2525 = vpack.c.b16 %v1893, %v1885
  %v2526 = vpack.c.b16 %v1894, %v1886
  %v2527 = vpack.c.b16 %v1895, %v1887
  %v2528 = vpack.c.b16 %v1904, %v1896
  %v2529 = vpack.c.b16 %v1905, %v1897
  %v2530 = vpack.c.b16 %v1906, %v1898
  %v2531 = vpack.c.b16 %v1907, %v1899
  %v2532 = vpack.c.b16 %v1908, %v1900
  %v2533 = vpack.c.b16 %v1909, %v1901
  %v2534 = vpack.c.b16 %v1910, %v1902
  %v2535 = vpack.c.b16 %v1911, %v1903
  %v2536 = vpack.c.b16 %v1920, %v1912
  %v2537 = vpack.c.b16 %v1921, %v1913
  %v2538 = vpack.c.b16 %v1922, %v1914
  %v2539 = vpack.c.b16 %v1923, %v1915
  %v2540 = vpack.c.b16 %v1924, %v1916
  %v2541 = vpack.c.b16 %v1925, %v1917
  %v2542 = vpack.c.b16 %v1926, %v1918
  %v2543 = vpack.c.b16 %v1927, %v1919
  %v2544 = vpack.c.b16 %v1936, %v1928
  %v2545 = vpack.c.b16 %v1937, %v1929
  %v2546 = vpack.c.b16 %v1938, %v1930
  %v2547 = vpack.c.b16 %v1939, %v1931
  %v2548 = vpack.c.b16 %v1940, %v1932
  %v2549 = vpack.c.b16 %v1941, %v1933
  %v2550 = vpack.c.b16 %v1942, %v1934
  %v2551 = vpack.c.b16 %v1943, %v1935
  %v2552 = vpack.c.b16 %v1952, %v1944
  %v2553 = vpack.c.b16 %v1953, %v1945
  %v2554 = vpack.c.b16 %v1954, %v1946
  %v2555 = vpack.c.b16 %v1955, %v1947
  %v2556 = vpack.c.b16 %v1956, %v1948
  %v2557 = vpack.c.b16 %v1957, %v1949
  %v2558 = vpack.c.b16 %v1958, %v1950
  %v2559 = vpack.c.b16 %v1959, %v1951
  %v2560 = vpack.c.b16 %v1968, %v1960
  %v2561 = vpack.c.b16 %v1969, %v1961
  %v2562 = vpack.c.b16 %v1970, %v1962
  %v2563 = vpack.c.b16 %v1971, %v1963
  %v2564 = vpack.c.b16 %v1972, %v1964
  %v2565 = vpack.c.b16 %v1973, %v1965
  %v2566 = vpack.c.b16 %v1974, %v1966
  %v2567 = vpack.c.b16 %v1975, %v1967
  %v2568 = vpack.c.b16 %v1984, %v1976
  %v2569 = vpack.c.b16 %v1985, %v1977
  %v2570 = vpack.c.b16 %v1986, %v1978
  %v2571 = vpack.c.b16 %v1987, %v1979
  %v2572 = vpack.c.b16 %v1988, %v1980
  %v2573 = vpack.c.b16 %v1989, %v1981
  %v2574 = vpack.c.b16 %v1990, %v1982
  %v2575 = vpack.c.b16 %v1991, %v1983
  %v2576 = vpack.c.b16 %v2000, %v1992
  %v2577 = vpack.c.b16 %v2001, %v1993
  %v2578 = vpack.c.b16 %v2002, %v1994
  %v2579 = vpack.c.b16 %v2003, %v1995
  %v2580 = vpack.c.b16 %v2004, %v1996
  %v2581 = vpack.c.b16 %v2005, %v1997
  %v2582 = vpack.c.b16 %v2006, %v1998
  %v2583 = vpack.c.b16 %v2007, %v1999
  %v2584 = vpack.c.b16 %v2016, %v2008
  %v2585 = vpack.c.b16 %v2017, %v2009
  %v2586 = vpack.c.b16 %v2018, %v2010
  %v2587 = vpack.c.b16 %v2019, %v2011
  %v2588 = vpack.c.b16 %v2020, %v2012
  %v2589 = vpack.c.b16 %v2021, %v2013
  %v2590 = vpack.c.b16 %v2022, %v2014
  %v2591 = vpack.c.b16 %v2023, %v2015
  %v2592 = vpack.c.b16 %v2032, %v2024
  %v2593 = vpack.c.b16 %v2033, %v2025
  %v2594 = vpack.c.b16 %v2034, %v2026
  %v2595 = vpack.c.b16 %v2035, %v2027
  %v2596 = vpack.c.b16 %v2036, %v2028
  %v2597 = vpack.c.b16 %v2037, %v2029
  %v2598 = vpack.c.b16 %v2038, %v2030
  %v2599 = vpack.c.b16 %v2039, %v2031
  %v2600 = vpack.c.b16 %v2048, %v2040
  %v2601 = vpack.c.b16 %v2049, %v2041
  %v2602 = vpack.c.b16 %v2050, %v2042
  %v2603 = vpack.c.b16 %v2051, %v2043
  %v2604 = vpack.c.b16 %v2052, %v2044
  %v2605 = vpack.c.b16 %v2053, %v2045
  %v2606 = vpack.c.b16 %v2054, %v2046
  %v2607 = vpack.c.b16 %v2055, %v2047
  %v2608 = vpack.c.b16 %v2064, %v2056
  %v2609 = vpack.c.b16 %v2065, %v2057
  %v2610 = vpack.c.b16 %v2066, %v2058
  %v2611 = vpack.c.b16 %v2067, %v2059
  %v2612 = vpack.c.b16 %v2068, %v2060
  %v2613 = vpack.c.b16 %v2069, %v2061
  %v2614 = vpack.c.b16 %v2070, %v2062
  %v2615 = vpack.c.b16 %v2071, %v2063
  %v2616 = vpack.c.b16 %v2080, %v2072
  %v2617 = vpack.c.b16 %v2081, %v2073
  %v2618 = vpack.c.b16 %v2082, %v2074
  %v2619 = vpack.c.b16 %v2083, %v2075
  %v2620 = vpack.c.b16 %v2084, %v2076
  %v2621 = vpack.c.b16 %v2085, %v2077
  %v2622 = vpack.c.b16 %v2086, %v2078
  %v2623 = vpack.c.b16 %v2087, %v2079
  %v2624 = vpack.c.b16 %v2096, %v2088
  %v2625 = vpack.c.b16 %v2097, %v2089
  %v2626 = vpack.c.b16 %v2098, %v2090
  %v2627 = vpack.c.b16 %v2099, %v2091
  %v2628 = vpack.c.b16 %v2100, %v2092
  %v2629 = vpack.c.b16 %v2101, %v2093
  %v2630 = vpack.c.b16 %v2102, %v2094
  %v2631 = vpack.c.b16 %v2103, %v2095
  %v2632 = vpack.c.b16 %v2112, %v2104
  %v2633 = vpack.c.b16 %v2113, %v2105
  %v2634 = vpack.c.b16 %v2114, %v2106
  %v2635 = vpack.c.b16 %v2115, %v2107
  %v2636 = vpack.c.b16 %v2116, %v2108
  %v2637 = vpack.c.b16 %v2117, %v2109
  %v2638 = vpack.c.b16 %v2118, %v2110
  %v2639 = vpack.c.b16 %v2119, %v2111
  %v2640 = vpack.c.b16 %v2128, %v2120
  %v2641 = vpack.c.b16 %v2129, %v2121
  %v2642 = vpack.c.b16 %v2130, %v2122
  %v2643 = vpack.c.b16 %v2131, %v2123
  %v2644 = vpack.c.b16 %v2132, %v2124
  %v2645 = vpack.c.b16 %v2133, %v2125
  %v2646 = vpack.c.b16 %v2134, %v2126
  %v2647 = vpack.c.b16 %v2135, %v2127
  %3160 = vmatprep.subr.bf16.mxu0 %v2137
  %3161 = vmatpush1.bf16.msra.mxu0 %v2136
  %3162 = vmatprep.subr.bf16.mxu0 %v2145
  %3163 = vmatpush1.bf16.msra.mxu0 %v2144
  %3164 = vmatprep.subr.bf16.mxu0 %v2153
  %3165 = vmatpush1.bf16.msra.mxu0 %v2152
  %3166 = vmatprep.subr.bf16.mxu0 %v2161
  %3167 = vmatpush1.bf16.msra.mxu0 %v2160
  %3168 = vmatprep.subr.bf16.mxu0 %v2169
  %3169 = vmatpush1.bf16.msra.mxu0 %v2168
  %3170 = vmatprep.subr.bf16.mxu0 %v2177
  %3171 = vmatpush1.bf16.msra.mxu0 %v2176
  %3172 = vmatprep.subr.bf16.mxu0 %v2185
  %3173 = vmatpush1.bf16.msra.mxu0 %v2184
  %3174 = vmatprep.subr.bf16.mxu0 %v2193
  %3175 = vmatpush1.bf16.msra.mxu0 %v2192
  %3176 = vmatprep.subr.bf16.mxu0 %v2201
  %3177 = vmatpush1.bf16.msra.mxu0 %v2200
  %3178 = vmatprep.subr.bf16.mxu0 %v2209
  %3179 = vmatpush1.bf16.msra.mxu0 %v2208
  %3180 = vmatprep.subr.bf16.mxu0 %v2217
  %3181 = vmatpush1.bf16.msra.mxu0 %v2216
  %3182 = vmatprep.subr.bf16.mxu0 %v2225
  %3183 = vmatpush1.bf16.msra.mxu0 %v2224
  %3184 = vmatprep.subr.bf16.mxu0 %v2233
  %3185 = vmatpush1.bf16.msra.mxu0 %v2232
  %3186 = vmatprep.subr.bf16.mxu0 %v2241
  %3187 = vmatpush1.bf16.msra.mxu0 %v2240
  %3188 = vmatprep.subr.bf16.mxu0 %v2249
  %3189 = vmatpush1.bf16.msra.mxu0 %v2248
  %3190 = vmatprep.subr.bf16.mxu0 %v2257
  %3191 = vmatpush1.bf16.msra.mxu0 %v2256
  %3192 = vmatprep.mubr.bf16.mxu0 %v585
  %3193 = vmatmul.mubr.bf16.gmra.mrb[0].mxu0 %v584
  %v3194 = vpop.f32.mrb[0].mxu0
  %v3195 = vadd.f32 %v535, %v3194
  %v3196 = vpop.f32.mrb[0].mxu0
  %v3197 = vadd.f32 %v539, %v3196
  %v3198 = vpop.f32.mrb[0].mxu0
  %v3199 = vpop.f32.mrb[0].mxu0
  %3200 = vdwg.mxu0
  %3201 = vmatprep.subr.bf16.mxu0 %v2265
  %3202 = vmatpush1.bf16.msra.mxu0 %v2264
  %3203 = vmatprep.subr.bf16.mxu0 %v2273
  %3204 = vmatpush1.bf16.msra.mxu0 %v2272
  %3205 = vmatprep.subr.bf16.mxu0 %v2281
  %3206 = vmatpush1.bf16.msra.mxu0 %v2280
  %3207 = vmatprep.subr.bf16.mxu0 %v2289
  %3208 = vmatpush1.bf16.msra.mxu0 %v2288
  %3209 = vmatprep.subr.bf16.mxu0 %v2297
  %3210 = vmatpush1.bf16.msra.mxu0 %v2296
  %3211 = vmatprep.subr.bf16.mxu0 %v2305
  %3212 = vmatpush1.bf16.msra.mxu0 %v2304
  %3213 = vmatprep.subr.bf16.mxu0 %v2313
  %3214 = vmatpush1.bf16.msra.mxu0 %v2312
  %3215 = vmatprep.subr.bf16.mxu0 %v2321
  %3216 = vmatpush1.bf16.msra.mxu0 %v2320
  %3217 = vmatprep.subr.bf16.mxu0 %v2329
  %3218 = vmatpush1.bf16.msra.mxu0 %v2328
  %3219 = vmatprep.subr.bf16.mxu0 %v2337
  %3220 = vmatpush1.bf16.msra.mxu0 %v2336
  %3221 = vmatprep.subr.bf16.mxu0 %v2345
  %3222 = vmatpush1.bf16.msra.mxu0 %v2344
  %3223 = vmatprep.subr.bf16.mxu0 %v2353
  %3224 = vmatpush1.bf16.msra.mxu0 %v2352
  %3225 = vmatprep.subr.bf16.mxu0 %v2361
  %3226 = vmatpush1.bf16.msra.mxu0 %v2360
  %3227 = vmatprep.subr.bf16.mxu0 %v2369
  %3228 = vmatpush1.bf16.msra.mxu0 %v2368
  %3229 = vmatprep.subr.bf16.mxu0 %v2377
  %3230 = vmatpush1.bf16.msra.mxu0 %v2376
  %3231 = vmatprep.subr.bf16.mxu0 %v2385
  %3232 = vmatpush1.bf16.msra.mxu0 %v2384
  %3233 = vmatprep.mubr.bf16.mxu0 %v587
  %3234 = vmatmul.mubr.bf16.gmra.mrb[0].mxu0 %v586
  %v3235 = vpop.f32.mrb[0].mxu0
  %v3236 = vadd.f32 %v3195, %v3235
  %v3237 = vpop.f32.mrb[0].mxu0
  %v3238 = vadd.f32 %v3197, %v3237
  %v3239 = vpop.f32.mrb[0].mxu0
  %v3240 = vpop.f32.mrb[0].mxu0
  %3241 = vdwg.mxu0
  %3242 = vmatprep.subr.bf16.mxu0 %v2393
  %3243 = vmatpush1.bf16.msra.mxu0 %v2392
  %3244 = vmatprep.subr.bf16.mxu0 %v2401
  %3245 = vmatpush1.bf16.msra.mxu0 %v2400
  %3246 = vmatprep.subr.bf16.mxu0 %v2409
  %3247 = vmatpush1.bf16.msra.mxu0 %v2408
  %3248 = vmatprep.subr.bf16.mxu0 %v2417
  %3249 = vmatpush1.bf16.msra.mxu0 %v2416
  %3250 = vmatprep.subr.bf16.mxu0 %v2425
  %3251 = vmatpush1.bf16.msra.mxu0 %v2424
  %3252 = vmatprep.subr.bf16.mxu0 %v2433
  %3253 = vmatpush1.bf16.msra.mxu0 %v2432
  %3254 = vmatprep.subr.bf16.mxu0 %v2441
  %3255 = vmatpush1.bf16.msra.mxu0 %v2440
  %3256 = vmatprep.subr.bf16.mxu0 %v2449
  %3257 = vmatpush1.bf16.msra.mxu0 %v2448
  %3258 = vmatprep.subr.bf16.mxu0 %v2457
  %3259 = vmatpush1.bf16.msra.mxu0 %v2456
  %3260 = vmatprep.subr.bf16.mxu0 %v2465
  %3261 = vmatpush1.bf16.msra.mxu0 %v2464
  %3262 = vmatprep.subr.bf16.mxu0 %v2473
  %3263 = vmatpush1.bf16.msra.mxu0 %v2472
  %3264 = vmatprep.subr.bf16.mxu0 %v2481
  %3265 = vmatpush1.bf16.msra.mxu0 %v2480
  %3266 = vmatprep.subr.bf16.mxu0 %v2489
  %3267 = vmatpush1.bf16.msra.mxu0 %v2488
  %3268 = vmatprep.subr.bf16.mxu0 %v2497
  %3269 = vmatpush1.bf16.msra.mxu0 %v2496
  %3270 = vmatprep.subr.bf16.mxu0 %v2505
  %3271 = vmatpush1.bf16.msra.mxu0 %v2504
  %3272 = vmatprep.subr.bf16.mxu0 %v2513
  %3273 = vmatpush1.bf16.msra.mxu0 %v2512
  %3274 = vmatprep.mubr.bf16.mxu0 %v589
  %3275 = vmatmul.mubr.bf16.gmra.mrb[0].mxu0 %v588
  %v3276 = vpop.f32.mrb[0].mxu0
  %v3277 = vadd.f32 %v3236, %v3276
  %v3278 = vpop.f32.mrb[0].mxu0
  %v3279 = vadd.f32 %v3238, %v3278
  %v3280 = vpop.f32.mrb[0].mxu0
  %v3281 = vpop.f32.mrb[0].mxu0
  %3282 = vdwg.mxu0
  %3283 = vmatprep.subr.bf16.mxu0 %v2521
  %3284 = vmatpush1.bf16.msra.mxu0 %v2520
  %3285 = vmatprep.subr.bf16.mxu0 %v2529
  %3286 = vmatpush1.bf16.msra.mxu0 %v2528
  %3287 = vmatprep.subr.bf16.mxu0 %v2537
  %3288 = vmatpush1.bf16.msra.mxu0 %v2536
  %3289 = vmatprep.subr.bf16.mxu0 %v2545
  %3290 = vmatpush1.bf16.msra.mxu0 %v2544
  %3291 = vmatprep.subr.bf16.mxu0 %v2553
  %3292 = vmatpush1.bf16.msra.mxu0 %v2552
  %3293 = vmatprep.subr.bf16.mxu0 %v2561
  %3294 = vmatpush1.bf16.msra.mxu0 %v2560
  %3295 = vmatprep.subr.bf16.mxu0 %v2569
  %3296 = vmatpush1.bf16.msra.mxu0 %v2568
  %3297 = vmatprep.subr.bf16.mxu0 %v2577
  %3298 = vmatpush1.bf16.msra.mxu0 %v2576
  %3299 = vmatprep.subr.bf16.mxu0 %v2585
  %3300 = vmatpush1.bf16.msra.mxu0 %v2584
  %3301 = vmatprep.subr.bf16.mxu0 %v2593
  %3302 = vmatpush1.bf16.msra.mxu0 %v2592
  %3303 = vmatprep.subr.bf16.mxu0 %v2601
  %3304 = vmatpush1.bf16.msra.mxu0 %v2600
  %3305 = vmatprep.subr.bf16.mxu0 %v2609
  %3306 = vmatpush1.bf16.msra.mxu0 %v2608
  %3307 = vmatprep.subr.bf16.mxu0 %v2617
  %3308 = vmatpush1.bf16.msra.mxu0 %v2616
  %3309 = vmatprep.subr.bf16.mxu0 %v2625
  %3310 = vmatpush1.bf16.msra.mxu0 %v2624
  %3311 = vmatprep.subr.bf16.mxu0 %v2633
  %3312 = vmatpush1.bf16.msra.mxu0 %v2632
  %3313 = vmatprep.subr.bf16.mxu0 %v2641
  %3314 = vmatpush1.bf16.msra.mxu0 %v2640
  %3315 = vmatprep.mubr.bf16.mxu0 %v591
  %3316 = vmatmul.mubr.bf16.gmra.mrb[0].mxu0 %v590
  %v3317 = vpop.f32.mrb[0].mxu0
  %v3318 = vadd.f32 %v3277, %v3317
  %v3319 = vpop.f32.mrb[0].mxu0
  %v3320 = vadd.f32 %v3279, %v3319
  %v3321 = vpop.f32.mrb[0].mxu0
  %v3322 = vpop.f32.mrb[0].mxu0
  %3323 = vdwg.mxu0
  %3324 = vmatprep.subr.bf16.mxu0 %v2139
  %3325 = vmatpush1.bf16.msra.mxu0 %v2138
  %3326 = vmatprep.subr.bf16.mxu0 %v2147
  %3327 = vmatpush1.bf16.msra.mxu0 %v2146
  %3328 = vmatprep.subr.bf16.mxu0 %v2155
  %3329 = vmatpush1.bf16.msra.mxu0 %v2154
  %3330 = vmatprep.subr.bf16.mxu0 %v2163
  %3331 = vmatpush1.bf16.msra.mxu0 %v2162
  %3332 = vmatprep.subr.bf16.mxu0 %v2171
  %3333 = vmatpush1.bf16.msra.mxu0 %v2170
  %3334 = vmatprep.subr.bf16.mxu0 %v2179
  %3335 = vmatpush1.bf16.msra.mxu0 %v2178
  %3336 = vmatprep.subr.bf16.mxu0 %v2187
  %3337 = vmatpush1.bf16.msra.mxu0 %v2186
  %3338 = vmatprep.subr.bf16.mxu0 %v2195
  %3339 = vmatpush1.bf16.msra.mxu0 %v2194
  %3340 = vmatprep.subr.bf16.mxu0 %v2203
  %3341 = vmatpush1.bf16.msra.mxu0 %v2202
  %3342 = vmatprep.subr.bf16.mxu0 %v2211
  %3343 = vmatpush1.bf16.msra.mxu0 %v2210
  %3344 = vmatprep.subr.bf16.mxu0 %v2219
  %3345 = vmatpush1.bf16.msra.mxu0 %v2218
  %3346 = vmatprep.subr.bf16.mxu0 %v2227
  %3347 = vmatpush1.bf16.msra.mxu0 %v2226
  %3348 = vmatprep.subr.bf16.mxu0 %v2235
  %3349 = vmatpush1.bf16.msra.mxu0 %v2234
  %3350 = vmatprep.subr.bf16.mxu0 %v2243
  %3351 = vmatpush1.bf16.msra.mxu0 %v2242
  %3352 = vmatprep.subr.bf16.mxu0 %v2251
  %3353 = vmatpush1.bf16.msra.mxu0 %v2250
  %3354 = vmatprep.subr.bf16.mxu0 %v2259
  %3355 = vmatpush1.bf16.msra.mxu0 %v2258
  %3356 = vmatprep.mubr.bf16.mxu0 %v585
  %3357 = vmatmul.mubr.bf16.gmra.mrb[0].mxu0 %v584
  %v3358 = vpop.f32.mrb[0].mxu0
  %v3359 = vadd.f32 %v543, %v3358
  %v3360 = vpop.f32.mrb[0].mxu0
  %v3361 = vadd.f32 %v547, %v3360
  %v3362 = vpop.f32.mrb[0].mxu0
  %v3363 = vpop.f32.mrb[0].mxu0
  %3364 = vdwg.mxu0
  %3365 = vmatprep.subr.bf16.mxu0 %v2267
  %3366 = vmatpush1.bf16.msra.mxu0 %v2266
  %3367 = vmatprep.subr.bf16.mxu0 %v2275
  %3368 = vmatpush1.bf16.msra.mxu0 %v2274
  %3369 = vmatprep.subr.bf16.mxu0 %v2283
  %3370 = vmatpush1.bf16.msra.mxu0 %v2282
  %3371 = vmatprep.subr.bf16.mxu0 %v2291
  %3372 = vmatpush1.bf16.msra.mxu0 %v2290
  %3373 = vmatprep.subr.bf16.mxu0 %v2299
  %3374 = vmatpush1.bf16.msra.mxu0 %v2298
  %3375 = vmatprep.subr.bf16.mxu0 %v2307
  %3376 = vmatpush1.bf16.msra.mxu0 %v2306
  %3377 = vmatprep.subr.bf16.mxu0 %v2315
  %3378 = vmatpush1.bf16.msra.mxu0 %v2314
  %3379 = vmatprep.subr.bf16.mxu0 %v2323
  %3380 = vmatpush1.bf16.msra.mxu0 %v2322
  %3381 = vmatprep.subr.bf16.mxu0 %v2331
  %3382 = vmatpush1.bf16.msra.mxu0 %v2330
  %3383 = vmatprep.subr.bf16.mxu0 %v2339
  %3384 = vmatpush1.bf16.msra.mxu0 %v2338
  %3385 = vmatprep.subr.bf16.mxu0 %v2347
  %3386 = vmatpush1.bf16.msra.mxu0 %v2346
  %3387 = vmatprep.subr.bf16.mxu0 %v2355
  %3388 = vmatpush1.bf16.msra.mxu0 %v2354
  %3389 = vmatprep.subr.bf16.mxu0 %v2363
  %3390 = vmatpush1.bf16.msra.mxu0 %v2362
  %3391 = vmatprep.subr.bf16.mxu0 %v2371
  %3392 = vmatpush1.bf16.msra.mxu0 %v2370
  %3393 = vmatprep.subr.bf16.mxu0 %v2379
  %3394 = vmatpush1.bf16.msra.mxu0 %v2378
  %3395 = vmatprep.subr.bf16.mxu0 %v2387
  %3396 = vmatpush1.bf16.msra.mxu0 %v2386
  %3397 = vmatprep.mubr.bf16.mxu0 %v587
  %3398 = vmatmul.mubr.bf16.gmra.mrb[0].mxu0 %v586
  %v3399 = vpop.f32.mrb[0].mxu0
  %v3400 = vadd.f32 %v3359, %v3399
  %v3401 = vpop.f32.mrb[0].mxu0
  %v3402 = vadd.f32 %v3361, %v3401
  %v3403 = vpop.f32.mrb[0].mxu0
  %v3404 = vpop.f32.mrb[0].mxu0
  %3405 = vdwg.mxu0
  %3406 = vmatprep.subr.bf16.mxu0 %v2395
  %3407 = vmatpush1.bf16.msra.mxu0 %v2394
  %3408 = vmatprep.subr.bf16.mxu0 %v2403
  %3409 = vmatpush1.bf16.msra.mxu0 %v2402
  %3410 = vmatprep.subr.bf16.mxu0 %v2411
  %3411 = vmatpush1.bf16.msra.mxu0 %v2410
  %3412 = vmatprep.subr.bf16.mxu0 %v2419
  %3413 = vmatpush1.bf16.msra.mxu0 %v2418
  %3414 = vmatprep.subr.bf16.mxu0 %v2427
  %3415 = vmatpush1.bf16.msra.mxu0 %v2426
  %3416 = vmatprep.subr.bf16.mxu0 %v2435
  %3417 = vmatpush1.bf16.msra.mxu0 %v2434
  %3418 = vmatprep.subr.bf16.mxu0 %v2443
  %3419 = vmatpush1.bf16.msra.mxu0 %v2442
  %3420 = vmatprep.subr.bf16.mxu0 %v2451
  %3421 = vmatpush1.bf16.msra.mxu0 %v2450
  %3422 = vmatprep.subr.bf16.mxu0 %v2459
  %3423 = vmatpush1.bf16.msra.mxu0 %v2458
  %3424 = vmatprep.subr.bf16.mxu0 %v2467
  %3425 = vmatpush1.bf16.msra.mxu0 %v2466
  %3426 = vmatprep.subr.bf16.mxu0 %v2475
  %3427 = vmatpush1.bf16.msra.mxu0 %v2474
  %3428 = vmatprep.subr.bf16.mxu0 %v2483
  %3429 = vmatpush1.bf16.msra.mxu0 %v2482
  %3430 = vmatprep.subr.bf16.mxu0 %v2491
  %3431 = vmatpush1.bf16.msra.mxu0 %v2490
  %3432 = vmatprep.subr.bf16.mxu0 %v2499
  %3433 = vmatpush1.bf16.msra.mxu0 %v2498
  %3434 = vmatprep.subr.bf16.mxu0 %v2507
  %3435 = vmatpush1.bf16.msra.mxu0 %v2506
  %3436 = vmatprep.subr.bf16.mxu0 %v2515
  %3437 = vmatpush1.bf16.msra.mxu0 %v2514
  %3438 = vmatprep.mubr.bf16.mxu0 %v589
  %3439 = vmatmul.mubr.bf16.gmra.mrb[0].mxu0 %v588
  %v3440 = vpop.f32.mrb[0].mxu0
  %v3441 = vadd.f32 %v3400, %v3440
  %v3442 = vpop.f32.mrb[0].mxu0
  %v3443 = vadd.f32 %v3402, %v3442
  %v3444 = vpop.f32.mrb[0].mxu0
  %v3445 = vpop.f32.mrb[0].mxu0
  %3446 = vdwg.mxu0
  %3447 = vmatprep.subr.bf16.mxu0 %v2523
  %3448 = vmatpush1.bf16.msra.mxu0 %v2522
  %3449 = vmatprep.subr.bf16.mxu0 %v2531
  %3450 = vmatpush1.bf16.msra.mxu0 %v2530
  %3451 = vmatprep.subr.bf16.mxu0 %v2539
  %3452 = vmatpush1.bf16.msra.mxu0 %v2538
  %3453 = vmatprep.subr.bf16.mxu0 %v2547
  %3454 = vmatpush1.bf16.msra.mxu0 %v2546
  %3455 = vmatprep.subr.bf16.mxu0 %v2555
  %3456 = vmatpush1.bf16.msra.mxu0 %v2554
  %3457 = vmatprep.subr.bf16.mxu0 %v2563
  %3458 = vmatpush1.bf16.msra.mxu0 %v2562
  %3459 = vmatprep.subr.bf16.mxu0 %v2571
  %3460 = vmatpush1.bf16.msra.mxu0 %v2570
  %3461 = vmatprep.subr.bf16.mxu0 %v2579
  %3462 = vmatpush1.bf16.msra.mxu0 %v2578
  %3463 = vmatprep.subr.bf16.mxu0 %v2587
  %3464 = vmatpush1.bf16.msra.mxu0 %v2586
  %3465 = vmatprep.subr.bf16.mxu0 %v2595
  %3466 = vmatpush1.bf16.msra.mxu0 %v2594
  %3467 = vmatprep.subr.bf16.mxu0 %v2603
  %3468 = vmatpush1.bf16.msra.mxu0 %v2602
  %3469 = vmatprep.subr.bf16.mxu0 %v2611
  %3470 = vmatpush1.bf16.msra.mxu0 %v2610
  %3471 = vmatprep.subr.bf16.mxu0 %v2619
  %3472 = vmatpush1.bf16.msra.mxu0 %v2618
  %3473 = vmatprep.subr.bf16.mxu0 %v2627
  %3474 = vmatpush1.bf16.msra.mxu0 %v2626
  %3475 = vmatprep.subr.bf16.mxu0 %v2635
  %3476 = vmatpush1.bf16.msra.mxu0 %v2634
  %3477 = vmatprep.subr.bf16.mxu0 %v2643
  %3478 = vmatpush1.bf16.msra.mxu0 %v2642
  %3479 = vmatprep.mubr.bf16.mxu0 %v591
  %3480 = vmatmul.mubr.bf16.gmra.mrb[0].mxu0 %v590
  %v3481 = vpop.f32.mrb[0].mxu0
  %v3482 = vadd.f32 %v3441, %v3481
  %v3483 = vpop.f32.mrb[0].mxu0
  %v3484 = vadd.f32 %v3443, %v3483
  %v3485 = vpop.f32.mrb[0].mxu0
  %v3486 = vpop.f32.mrb[0].mxu0
  %3487 = vdwg.mxu0
  %3488 = vmatprep.subr.bf16.mxu0 %v2141
  %3489 = vmatpush1.bf16.msra.mxu0 %v2140
  %3490 = vmatprep.subr.bf16.mxu0 %v2149
  %3491 = vmatpush1.bf16.msra.mxu0 %v2148
  %3492 = vmatprep.subr.bf16.mxu0 %v2157
  %3493 = vmatpush1.bf16.msra.mxu0 %v2156
  %3494 = vmatprep.subr.bf16.mxu0 %v2165
  %3495 = vmatpush1.bf16.msra.mxu0 %v2164
  %3496 = vmatprep.subr.bf16.mxu0 %v2173
  %3497 = vmatpush1.bf16.msra.mxu0 %v2172
  %3498 = vmatprep.subr.bf16.mxu0 %v2181
  %3499 = vmatpush1.bf16.msra.mxu0 %v2180
  %3500 = vmatprep.subr.bf16.mxu0 %v2189
  %3501 = vmatpush1.bf16.msra.mxu0 %v2188
  %3502 = vmatprep.subr.bf16.mxu0 %v2197
  %3503 = vmatpush1.bf16.msra.mxu0 %v2196
  %3504 = vmatprep.subr.bf16.mxu0 %v2205
  %3505 = vmatpush1.bf16.msra.mxu0 %v2204
  %3506 = vmatprep.subr.bf16.mxu0 %v2213
  %3507 = vmatpush1.bf16.msra.mxu0 %v2212
  %3508 = vmatprep.subr.bf16.mxu0 %v2221
  %3509 = vmatpush1.bf16.msra.mxu0 %v2220
  %3510 = vmatprep.subr.bf16.mxu0 %v2229
  %3511 = vmatpush1.bf16.msra.mxu0 %v2228
  %3512 = vmatprep.subr.bf16.mxu0 %v2237
  %3513 = vmatpush1.bf16.msra.mxu0 %v2236
  %3514 = vmatprep.subr.bf16.mxu0 %v2245
  %3515 = vmatpush1.bf16.msra.mxu0 %v2244
  %3516 = vmatprep.subr.bf16.mxu0 %v2253
  %3517 = vmatpush1.bf16.msra.mxu0 %v2252
  %3518 = vmatprep.subr.bf16.mxu0 %v2261
  %3519 = vmatpush1.bf16.msra.mxu0 %v2260
  %3520 = vmatprep.mubr.bf16.mxu0 %v585
  %3521 = vmatmul.mubr.bf16.gmra.mrb[0].mxu0 %v584
  %v3522 = vpop.f32.mrb[0].mxu0
  %v3523 = vadd.f32 %v551, %v3522
  %v3524 = vpop.f32.mrb[0].mxu0
  %v3525 = vadd.f32 %v555, %v3524
  %v3526 = vpop.f32.mrb[0].mxu0
  %v3527 = vpop.f32.mrb[0].mxu0
  %3528 = vdwg.mxu0
  %3529 = vmatprep.subr.bf16.mxu0 %v2269
  %3530 = vmatpush1.bf16.msra.mxu0 %v2268
  %3531 = vmatprep.subr.bf16.mxu0 %v2277
  %3532 = vmatpush1.bf16.msra.mxu0 %v2276
  %3533 = vmatprep.subr.bf16.mxu0 %v2285
  %3534 = vmatpush1.bf16.msra.mxu0 %v2284
  %3535 = vmatprep.subr.bf16.mxu0 %v2293
  %3536 = vmatpush1.bf16.msra.mxu0 %v2292
  %3537 = vmatprep.subr.bf16.mxu0 %v2301
  %3538 = vmatpush1.bf16.msra.mxu0 %v2300
  %3539 = vmatprep.subr.bf16.mxu0 %v2309
  %3540 = vmatpush1.bf16.msra.mxu0 %v2308
  %3541 = vmatprep.subr.bf16.mxu0 %v2317
  %3542 = vmatpush1.bf16.msra.mxu0 %v2316
  %3543 = vmatprep.subr.bf16.mxu0 %v2325
  %3544 = vmatpush1.bf16.msra.mxu0 %v2324
  %3545 = vmatprep.subr.bf16.mxu0 %v2333
  %3546 = vmatpush1.bf16.msra.mxu0 %v2332
  %3547 = vmatprep.subr.bf16.mxu0 %v2341
  %3548 = vmatpush1.bf16.msra.mxu0 %v2340
  %3549 = vmatprep.subr.bf16.mxu0 %v2349
  %3550 = vmatpush1.bf16.msra.mxu0 %v2348
  %3551 = vmatprep.subr.bf16.mxu0 %v2357
  %3552 = vmatpush1.bf16.msra.mxu0 %v2356
  %3553 = vmatprep.subr.bf16.mxu0 %v2365
  %3554 = vmatpush1.bf16.msra.mxu0 %v2364
  %3555 = vmatprep.subr.bf16.mxu0 %v2373
  %3556 = vmatpush1.bf16.msra.mxu0 %v2372
  %3557 = vmatprep.subr.bf16.mxu0 %v2381
  %3558 = vmatpush1.bf16.msra.mxu0 %v2380
  %3559 = vmatprep.subr.bf16.mxu0 %v2389
  %3560 = vmatpush1.bf16.msra.mxu0 %v2388
  %3561 = vmatprep.mubr.bf16.mxu0 %v587
  %3562 = vmatmul.mubr.bf16.gmra.mrb[0].mxu0 %v586
  %v3563 = vpop.f32.mrb[0].mxu0
  %v3564 = vadd.f32 %v3523, %v3563
  %v3565 = vpop.f32.mrb[0].mxu0
  %v3566 = vadd.f32 %v3525, %v3565
  %v3567 = vpop.f32.mrb[0].mxu0
  %v3568 = vpop.f32.mrb[0].mxu0
  %3569 = vdwg.mxu0
  %3570 = vmatprep.subr.bf16.mxu0 %v2397
  %3571 = vmatpush1.bf16.msra.mxu0 %v2396
  %3572 = vmatprep.subr.bf16.mxu0 %v2405
  %3573 = vmatpush1.bf16.msra.mxu0 %v2404
  %3574 = vmatprep.subr.bf16.mxu0 %v2413
  %3575 = vmatpush1.bf16.msra.mxu0 %v2412
  %3576 = vmatprep.subr.bf16.mxu0 %v2421
  %3577 = vmatpush1.bf16.msra.mxu0 %v2420
  %3578 = vmatprep.subr.bf16.mxu0 %v2429
  %3579 = vmatpush1.bf16.msra.mxu0 %v2428
  %3580 = vmatprep.subr.bf16.mxu0 %v2437
  %3581 = vmatpush1.bf16.msra.mxu0 %v2436
  %3582 = vmatprep.subr.bf16.mxu0 %v2445
  %3583 = vmatpush1.bf16.msra.mxu0 %v2444
  %3584 = vmatprep.subr.bf16.mxu0 %v2453
  %3585 = vmatpush1.bf16.msra.mxu0 %v2452
  %3586 = vmatprep.subr.bf16.mxu0 %v2461
  %3587 = vmatpush1.bf16.msra.mxu0 %v2460
  %3588 = vmatprep.subr.bf16.mxu0 %v2469
  %3589 = vmatpush1.bf16.msra.mxu0 %v2468
  %3590 = vmatprep.subr.bf16.mxu0 %v2477
  %3591 = vmatpush1.bf16.msra.mxu0 %v2476
  %3592 = vmatprep.subr.bf16.mxu0 %v2485
  %3593 = vmatpush1.bf16.msra.mxu0 %v2484
  %3594 = vmatprep.subr.bf16.mxu0 %v2493
  %3595 = vmatpush1.bf16.msra.mxu0 %v2492
  %3596 = vmatprep.subr.bf16.mxu0 %v2501
  %3597 = vmatpush1.bf16.msra.mxu0 %v2500
  %3598 = vmatprep.subr.bf16.mxu0 %v2509
  %3599 = vmatpush1.bf16.msra.mxu0 %v2508
  %3600 = vmatprep.subr.bf16.mxu0 %v2517
  %3601 = vmatpush1.bf16.msra.mxu0 %v2516
  %3602 = vmatprep.mubr.bf16.mxu0 %v589
  %3603 = vmatmul.mubr.bf16.gmra.mrb[0].mxu0 %v588
  %v3604 = vpop.f32.mrb[0].mxu0
  %v3605 = vadd.f32 %v3564, %v3604
  %v3606 = vpop.f32.mrb[0].mxu0
  %v3607 = vadd.f32 %v3566, %v3606
  %v3608 = vpop.f32.mrb[0].mxu0
  %v3609 = vpop.f32.mrb[0].mxu0
  %3610 = vdwg.mxu0
  %3611 = vmatprep.subr.bf16.mxu0 %v2525
  %3612 = vmatpush1.bf16.msra.mxu0 %v2524
  %3613 = vmatprep.subr.bf16.mxu0 %v2533
  %3614 = vmatpush1.bf16.msra.mxu0 %v2532
  %3615 = vmatprep.subr.bf16.mxu0 %v2541
  %3616 = vmatpush1.bf16.msra.mxu0 %v2540
  %3617 = vmatprep.subr.bf16.mxu0 %v2549
  %3618 = vmatpush1.bf16.msra.mxu0 %v2548
  %3619 = vmatprep.subr.bf16.mxu0 %v2557
  %3620 = vmatpush1.bf16.msra.mxu0 %v2556
  %3621 = vmatprep.subr.bf16.mxu0 %v2565
  %3622 = vmatpush1.bf16.msra.mxu0 %v2564
  %3623 = vmatprep.subr.bf16.mxu0 %v2573
  %3624 = vmatpush1.bf16.msra.mxu0 %v2572
  %3625 = vmatprep.subr.bf16.mxu0 %v2581
  %3626 = vmatpush1.bf16.msra.mxu0 %v2580
  %3627 = vmatprep.subr.bf16.mxu0 %v2589
  %3628 = vmatpush1.bf16.msra.mxu0 %v2588
  %3629 = vmatprep.subr.bf16.mxu0 %v2597
  %3630 = vmatpush1.bf16.msra.mxu0 %v2596
  %3631 = vmatprep.subr.bf16.mxu0 %v2605
  %3632 = vmatpush1.bf16.msra.mxu0 %v2604
  %3633 = vmatprep.subr.bf16.mxu0 %v2613
  %3634 = vmatpush1.bf16.msra.mxu0 %v2612
  %3635 = vmatprep.subr.bf16.mxu0 %v2621
  %3636 = vmatpush1.bf16.msra.mxu0 %v2620
  %3637 = vmatprep.subr.bf16.mxu0 %v2629
  %3638 = vmatpush1.bf16.msra.mxu0 %v2628
  %3639 = vmatprep.subr.bf16.mxu0 %v2637
  %3640 = vmatpush1.bf16.msra.mxu0 %v2636
  %3641 = vmatprep.subr.bf16.mxu0 %v2645
  %3642 = vmatpush1.bf16.msra.mxu0 %v2644
  %3643 = vmatprep.mubr.bf16.mxu0 %v591
  %3644 = vmatmul.mubr.bf16.gmra.mrb[0].mxu0 %v590
  %v3645 = vpop.f32.mrb[0].mxu0
  %v3646 = vadd.f32 %v3605, %v3645
  %v3647 = vpop.f32.mrb[0].mxu0
  %v3648 = vadd.f32 %v3607, %v3647
  %v3649 = vpop.f32.mrb[0].mxu0
  %v3650 = vpop.f32.mrb[0].mxu0
  %3651 = vdwg.mxu0
  %3652 = vmatprep.subr.bf16.mxu0 %v2143
  %3653 = vmatpush1.bf16.msra.mxu0 %v2142
  %3654 = vmatprep.subr.bf16.mxu0 %v2151
  %3655 = vmatpush1.bf16.msra.mxu0 %v2150
  %3656 = vmatprep.subr.bf16.mxu0 %v2159
  %3657 = vmatpush1.bf16.msra.mxu0 %v2158
  %3658 = vmatprep.subr.bf16.mxu0 %v2167
  %3659 = vmatpush1.bf16.msra.mxu0 %v2166
  %3660 = vmatprep.subr.bf16.mxu0 %v2175
  %3661 = vmatpush1.bf16.msra.mxu0 %v2174
  %3662 = vmatprep.subr.bf16.mxu0 %v2183
  %3663 = vmatpush1.bf16.msra.mxu0 %v2182
  %3664 = vmatprep.subr.bf16.mxu0 %v2191
  %3665 = vmatpush1.bf16.msra.mxu0 %v2190
  %3666 = vmatprep.subr.bf16.mxu0 %v2199
  %3667 = vmatpush1.bf16.msra.mxu0 %v2198
  %3668 = vmatprep.subr.bf16.mxu0 %v2207
  %3669 = vmatpush1.bf16.msra.mxu0 %v2206
  %3670 = vmatprep.subr.bf16.mxu0 %v2215
  %3671 = vmatpush1.bf16.msra.mxu0 %v2214
  %3672 = vmatprep.subr.bf16.mxu0 %v2223
  %3673 = vmatpush1.bf16.msra.mxu0 %v2222
  %3674 = vmatprep.subr.bf16.mxu0 %v2231
  %3675 = vmatpush1.bf16.msra.mxu0 %v2230
  %3676 = vmatprep.subr.bf16.mxu0 %v2239
  %3677 = vmatpush1.bf16.msra.mxu0 %v2238
  %3678 = vmatprep.subr.bf16.mxu0 %v2247
  %3679 = vmatpush1.bf16.msra.mxu0 %v2246
  %3680 = vmatprep.subr.bf16.mxu0 %v2255
  %3681 = vmatpush1.bf16.msra.mxu0 %v2254
  %3682 = vmatprep.subr.bf16.mxu0 %v2263
  %3683 = vmatpush1.bf16.msra.mxu0 %v2262
  %3684 = vmatprep.mubr.bf16.mxu0 %v585
  %3685 = vmatmul.mubr.bf16.gmra.mrb[0].mxu0 %v584
  %v3686 = vpop.f32.mrb[0].mxu0
  %v3687 = vadd.f32 %v559, %v3686
  %v3688 = vpop.f32.mrb[0].mxu0
  %v3689 = vadd.f32 %v563, %v3688
  %v3690 = vpop.f32.mrb[0].mxu0
  %v3691 = vpop.f32.mrb[0].mxu0
  %3692 = vdwg.mxu0
  %3693 = vmatprep.subr.bf16.mxu0 %v2271
  %3694 = vmatpush1.bf16.msra.mxu0 %v2270
  %3695 = vmatprep.subr.bf16.mxu0 %v2279
  %3696 = vmatpush1.bf16.msra.mxu0 %v2278
  %3697 = vmatprep.subr.bf16.mxu0 %v2287
  %3698 = vmatpush1.bf16.msra.mxu0 %v2286
  %3699 = vmatprep.subr.bf16.mxu0 %v2295
  %3700 = vmatpush1.bf16.msra.mxu0 %v2294
  %3701 = vmatprep.subr.bf16.mxu0 %v2303
  %3702 = vmatpush1.bf16.msra.mxu0 %v2302
  %3703 = vmatprep.subr.bf16.mxu0 %v2311
  %3704 = vmatpush1.bf16.msra.mxu0 %v2310
  %3705 = vmatprep.subr.bf16.mxu0 %v2319
  %3706 = vmatpush1.bf16.msra.mxu0 %v2318
  %3707 = vmatprep.subr.bf16.mxu0 %v2327
  %3708 = vmatpush1.bf16.msra.mxu0 %v2326
  %3709 = vmatprep.subr.bf16.mxu0 %v2335
  %3710 = vmatpush1.bf16.msra.mxu0 %v2334
  %3711 = vmatprep.subr.bf16.mxu0 %v2343
  %3712 = vmatpush1.bf16.msra.mxu0 %v2342
  %3713 = vmatprep.subr.bf16.mxu0 %v2351
  %3714 = vmatpush1.bf16.msra.mxu0 %v2350
  %3715 = vmatprep.subr.bf16.mxu0 %v2359
  %3716 = vmatpush1.bf16.msra.mxu0 %v2358
  %3717 = vmatprep.subr.bf16.mxu0 %v2367
  %3718 = vmatpush1.bf16.msra.mxu0 %v2366
  %3719 = vmatprep.subr.bf16.mxu0 %v2375
  %3720 = vmatpush1.bf16.msra.mxu0 %v2374
  %3721 = vmatprep.subr.bf16.mxu0 %v2383
  %3722 = vmatpush1.bf16.msra.mxu0 %v2382
  %3723 = vmatprep.subr.bf16.mxu0 %v2391
  %3724 = vmatpush1.bf16.msra.mxu0 %v2390
  %3725 = vmatprep.mubr.bf16.mxu0 %v587
  %3726 = vmatmul.mubr.bf16.gmra.mrb[0].mxu0 %v586
  %v3727 = vpop.f32.mrb[0].mxu0
  %v3728 = vadd.f32 %v3687, %v3727
  %v3729 = vpop.f32.mrb[0].mxu0
  %v3730 = vadd.f32 %v3689, %v3729
  %v3731 = vpop.f32.mrb[0].mxu0
  %v3732 = vpop.f32.mrb[0].mxu0
  %3733 = vdwg.mxu0
  %3734 = vmatprep.subr.bf16.mxu0 %v2399
  %3735 = vmatpush1.bf16.msra.mxu0 %v2398
  %3736 = vmatprep.subr.bf16.mxu0 %v2407
  %3737 = vmatpush1.bf16.msra.mxu0 %v2406
  %3738 = vmatprep.subr.bf16.mxu0 %v2415
  %3739 = vmatpush1.bf16.msra.mxu0 %v2414
  %3740 = vmatprep.subr.bf16.mxu0 %v2423
  %3741 = vmatpush1.bf16.msra.mxu0 %v2422
  %3742 = vmatprep.subr.bf16.mxu0 %v2431
  %3743 = vmatpush1.bf16.msra.mxu0 %v2430
  %3744 = vmatprep.subr.bf16.mxu0 %v2439
  %3745 = vmatpush1.bf16.msra.mxu0 %v2438
  %3746 = vmatprep.subr.bf16.mxu0 %v2447
  %3747 = vmatpush1.bf16.msra.mxu0 %v2446
  %3748 = vmatprep.subr.bf16.mxu0 %v2455
  %3749 = vmatpush1.bf16.msra.mxu0 %v2454
  %3750 = vmatprep.subr.bf16.mxu0 %v2463
  %3751 = vmatpush1.bf16.msra.mxu0 %v2462
  %3752 = vmatprep.subr.bf16.mxu0 %v2471
  %3753 = vmatpush1.bf16.msra.mxu0 %v2470
  %3754 = vmatprep.subr.bf16.mxu0 %v2479
  %3755 = vmatpush1.bf16.msra.mxu0 %v2478
  %3756 = vmatprep.subr.bf16.mxu0 %v2487
  %3757 = vmatpush1.bf16.msra.mxu0 %v2486
  %3758 = vmatprep.subr.bf16.mxu0 %v2495
  %3759 = vmatpush1.bf16.msra.mxu0 %v2494
  %3760 = vmatprep.subr.bf16.mxu0 %v2503
  %3761 = vmatpush1.bf16.msra.mxu0 %v2502
  %3762 = vmatprep.subr.bf16.mxu0 %v2511
  %3763 = vmatpush1.bf16.msra.mxu0 %v2510
  %3764 = vmatprep.subr.bf16.mxu0 %v2519
  %3765 = vmatpush1.bf16.msra.mxu0 %v2518
  %3766 = vmatprep.mubr.bf16.mxu0 %v589
  %3767 = vmatmul.mubr.bf16.gmra.mrb[0].mxu0 %v588
  %v3768 = vpop.f32.mrb[0].mxu0
  %v3769 = vadd.f32 %v3728, %v3768
  %v3770 = vpop.f32.mrb[0].mxu0
  %v3771 = vadd.f32 %v3730, %v3770
  %v3772 = vpop.f32.mrb[0].mxu0
  %v3773 = vpop.f32.mrb[0].mxu0
  %3774 = vdwg.mxu0
  %3775 = vmatprep.subr.bf16.mxu0 %v2527
  %3776 = vmatpush1.bf16.msra.mxu0 %v2526
  %3777 = vmatprep.subr.bf16.mxu0 %v2535
  %3778 = vmatpush1.bf16.msra.mxu0 %v2534
  %3779 = vmatprep.subr.bf16.mxu0 %v2543
  %3780 = vmatpush1.bf16.msra.mxu0 %v2542
  %3781 = vmatprep.subr.bf16.mxu0 %v2551
  %3782 = vmatpush1.bf16.msra.mxu0 %v2550
  %3783 = vmatprep.subr.bf16.mxu0 %v2559
  %3784 = vmatpush1.bf16.msra.mxu0 %v2558
  %3785 = vmatprep.subr.bf16.mxu0 %v2567
  %3786 = vmatpush1.bf16.msra.mxu0 %v2566
  %3787 = vmatprep.subr.bf16.mxu0 %v2575
  %3788 = vmatpush1.bf16.msra.mxu0 %v2574
  %3789 = vmatprep.subr.bf16.mxu0 %v2583
  %3790 = vmatpush1.bf16.msra.mxu0 %v2582
  %3791 = vmatprep.subr.bf16.mxu0 %v2591
  %3792 = vmatpush1.bf16.msra.mxu0 %v2590
  %3793 = vmatprep.subr.bf16.mxu0 %v2599
  %3794 = vmatpush1.bf16.msra.mxu0 %v2598
  %3795 = vmatprep.subr.bf16.mxu0 %v2607
  %3796 = vmatpush1.bf16.msra.mxu0 %v2606
  %3797 = vmatprep.subr.bf16.mxu0 %v2615
  %3798 = vmatpush1.bf16.msra.mxu0 %v2614
  %3799 = vmatprep.subr.bf16.mxu0 %v2623
  %3800 = vmatpush1.bf16.msra.mxu0 %v2622
  %3801 = vmatprep.subr.bf16.mxu0 %v2631
  %3802 = vmatpush1.bf16.msra.mxu0 %v2630
  %3803 = vmatprep.subr.bf16.mxu0 %v2639
  %3804 = vmatpush1.bf16.msra.mxu0 %v2638
  %3805 = vmatprep.subr.bf16.mxu0 %v2647
  %3806 = vmatpush1.bf16.msra.mxu0 %v2646
  %3807 = vmatprep.mubr.bf16.mxu0 %v591
  %3808 = vmatmul.mubr.bf16.gmra.mrb[0].mxu0 %v590
  %v3809 = vpop.f32.mrb[0].mxu0
  %v3810 = vadd.f32 %v3769, %v3809
  %v3811 = vpop.f32.mrb[0].mxu0
  %v3812 = vadd.f32 %v3771, %v3811
  %v3813 = vpop.f32.mrb[0].mxu0
  %v3814 = vpop.f32.mrb[0].mxu0
  %3815 = vdwg.mxu0
  %v3816 = vmax.f32 %v3318, 0.0
  %v3817 = vmax.f32 %v3320, 0.0
  %v3818 = vmax.f32 %v3482, 0.0
  %v3819 = vmax.f32 %v3484, 0.0
  %v3820 = vmax.f32 %v3646, 0.0
  %v3821 = vmax.f32 %v3648, 0.0
  %v3822 = vmax.f32 %v3810, 0.0
  %v3823 = vmax.f32 %v3812, 0.0
  %v3824 = vpack.c.bf16 %v3816, %v3816
  %v3825 = vpack.c.bf16 %v3817, %v3817
  %v3826 = vpack.c.bf16 %v3818, %v3818
  %v3827 = vpack.c.bf16 %v3819, %v3819
  %v3828 = vpack.c.bf16 %v3820, %v3820
  %v3829 = vpack.c.bf16 %v3821, %v3821
  %v3830 = vpack.c.bf16 %v3822, %v3822
  %v3831 = vpack.c.bf16 %v3823, %v3823
  %v3840 = vunpack.c.l.b16 %v3824
  %v3841 = vunpack.c.l.b16 %v3825
  %v3842 = vunpack.c.l.b16 %v3826
  %v3843 = vunpack.c.l.b16 %v3827
  %v3844 = vunpack.c.l.b16 %v3828
  %v3845 = vunpack.c.l.b16 %v3829
  %v3846 = vunpack.c.l.b16 %v3830
  %v3847 = vunpack.c.l.b16 %v3831
  %v3848 = vpack.c.b16 %v3841, %v3840
  %v3849 = vpack.c.b16 %v3843, %v3842
  %v3850 = vpack.c.b16 %v3845, %v3844
  %v3851 = vpack.c.b16 %v3847, %v3846
  %3856 = vst [vmem:[%s3] sm:$0xff] %v3848
  %3857 = vst [vmem:[%s3 + $0x8] sm:$0xff] %v3849
  %3858 = vst [vmem:[%s3 + $0x10] sm:$0xff] %v3850
  %3859 = vst [vmem:[%s3 + $0x18] sm:$0xff] %v3851
  // Predicated region
  $region14: #{astrodash_forward.4} parent=0 // pred_check
    _
  $region15: #{astrodash_forward.4} parent=0 // pred_check_branch
    %3861 = sbr.rel (0) target = $region17
  $region16: #{astrodash_forward.4} parent=0 // pred_region
    _
  $region17: #{astrodash_forward.4} parent=0 // pred_fallthru
    _
  // Predicated region
  $region18: #{astrodash_forward.4} parent=0 // pred_check
    _
  $region19: #{astrodash_forward.4} parent=0 // pred_check_branch
    %3863 = sbr.rel (0) target = $region21
  $region20: #{astrodash_forward.4} parent=0 // pred_region
    _
  $region21: #{astrodash_forward.4} parent=0 // pred_fallthru
    _

// kernel: astrodash_forward.3
$region0: #{astrodash_forward.3}
  #allocation0 [shape = 'u32[]', space=smem, size = 0x4, offset = 0x4, fixed_abs, tag = 'smem constant byte address 0x4 - core index']
  #allocation1 [shape = 'u32[144,128]{1,0:T(1,128)}', space=vmem, size = 0x12000, scoped, tag = 'internal scratch']
  #allocation2 [shape = 'f32[1,20,20]{2,1,0:T(8,128)}', space=vmem, size = 0x3000, scoped, tag = 'scratch operand']
  #allocation3 [shape = 'f32[1,12,384]{2,1,0:T(8,128)}', space=vmem, size = 0x6000, scoped, tag = 'scratch operand']
  %s0 = inlined_call_operand.hbm [shape: f32[2,16,16], index: 0, kind: input, shape index: {}]
  %s1 = inlined_call_operand.hbm [shape: f32[20,2560], index: 1, kind: input, shape index: {}]
  %s2 = inlined_call_operand.hbm [shape: f32[1,1,512], index: 2, kind: input, shape index: {}]
  %s3 = inlined_call_operand.hbm [shape: bf16[384,2560], index: 3, kind: input, shape index: {}]
  %s4 = inlined_call_operand.hbm [shape: f32[1,1,512], index: 4, kind: input, shape index: {}]
  %s5 = inlined_call_operand.vmem [shape: bf16[2,4,256], index: 5, kind: output, shape index: {}]
  %s6 = sld [smem:[#allocation0]]
  $region73: #{astrodash_forward.3} parent=0
    _
  %s8 = ssub.s32 1, %s6
  %s9 = scalar_select 0, %s8, %s6
  $region1: #{astrodash_forward.3} parent=0
    #allocation4 [shape = 'u8[16384]{0}', space=vmem, size = 0x4000, scoped, tag = 'input window, operand 0']
    #allocation5 [shape = 's32[2]{0}', space=sflag, size = 0x8, scoped, tag = 'scoped memory for astrodash_forward.3']
    #allocation6 [shape = 'u8[245760]{0}', space=vmem, size = 0x3c000, scoped, tag = 'input window, operand 1, single buffered']
    #allocation7 [shape = 's32[1]{0}', space=sflag, size = 0x4, scoped, tag = 'scoped memory for astrodash_forward.3']
    #allocation8 [shape = 'u8[2048]{0}', space=vmem, size = 0x800, scoped, tag = 'input window, operand 2, single buffered']
    #allocation9 [shape = 'u8[1966080]{0}', space=vmem, size = 0x1e0000, scoped, tag = 'input window, operand 3, single buffered']
    #allocation10 [shape = 's32[1]{0}', space=sflag, size = 0x4, scoped, tag = 'scoped memory for astrodash_forward.3']
    #allocation11 [shape = 'u8[2048]{0}', space=vmem, size = 0x800, scoped, tag = 'input window, operand 4, single buffered']
    %10 = vsyncpa [#allocation5], 0
    %s11 = scalar_lea.sflag [#allocation5], 1
    %12 = vsyncpa %s11, 0
    %13 = vsyncpa [#allocation7], 0
    %14 = vsyncpa [#allocation10], 0
    loop: start=0, step=1, limit=4
    $region2: #{astrodash_forward.3} parent=1 // loop_pre_header
      _
    $region3: #{astrodash_forward.3} parent=1 // loop_header
      %s16 = sphi 0, %s20
      %p17 = scmp.ge.s32.totalorder %s16, 4
      %s26 = sphi 0, %s28
      %s29 = sphi 0, %s26
      %s30 = sphi 0, %s29
      %s46 = sphi 0, %s30
      %s50 = sphi 0, %s50
      %s52 = sphi 0, %s50
      %s53 = sphi 0, %s52
      %s67 = sphi 0, %s53
      %s71 = sphi 0, %s71
      %s73 = sphi 0, %s71
      %s74 = sphi 0, %s73
      %s88 = sphi 0, %s74
      %s92 = sphi 0, %s92
      %s94 = sphi 0, %s92
      %s95 = sphi 0, %s94
      %s109 = sphi 0, %s95
      %s113 = sphi 0, %s113
      %s115 = sphi 0, %s113
      %s116 = sphi 0, %s115
      %s130 = sphi 0, %s116
      %s136 = sphi 0, %s138
      %s139 = sphi 0, %s136
      %s140 = sphi 0, %s139
      %s156 = sphi 0, %s140
    $region4: #{astrodash_forward.3} parent=1 // loop_header_branch
      %19 = sbr.rel (%p17) target = $region8
    $region5: #{astrodash_forward.3} parent=1 // loop_body
      %s21 = ssub.s32 %s16, 1
      %s22 = ssub.s32 %s16, 2
      %s23 = sadd.s32 %s16, 1
      %s24 = ssub.s32 %s16, %s23
      %p25 = scmp.eq.s32.totalorder %s24, 0
      %s27 = sadd.s32 %s26, 1
      %s28 = scalar_select %p25, %s26, %s27
      %p31 = pneg %p25
      %p32 = scmp.eq.s32.totalorder %s16, 1
      %p33 = por %p31, %p32
      %p34 = scmp.ne.s32.totalorder %s26, %s29
      %p35 = scmp.eq.s32.totalorder %s16, 0
      %p36 = por %p34, %p35
      %p37 = scmp.ne.s32.totalorder %s26, %s29
      %p38 = scmp.eq.s32.totalorder %s21, 1
      %p39 = por %p37, %p38
      %p40 = scmp.ne.s32.totalorder %s29, %s30
      %p41 = scmp.eq.s32.totalorder %s21, 0
      %p42 = por %p40, %p41
      %p43 = scmp.ne.s32.totalorder %s29, %s30
      %p44 = scmp.eq.s32.totalorder %s22, 1
      %p45 = por %p43, %p44
      %p47 = scmp.ne.s32.totalorder %s30, %s46
      %p48 = scmp.eq.s32.totalorder %s22, 0
      %p49 = por %p47, %p48
      %s51 = sadd.s32 %s50, 1
      %p54 = scmp.eq.s32.totalorder %s16, 1
      %p55 = scmp.ne.s32.totalorder %s50, %s52
      %p56 = scmp.eq.s32.totalorder %s16, 0
      %p57 = por %p55, %p56
      %p58 = scmp.ne.s32.totalorder %s50, %s52
      %p59 = scmp.eq.s32.totalorder %s21, 1
      %p60 = por %p58, %p59
      %p61 = scmp.ne.s32.totalorder %s52, %s53
      %p62 = scmp.eq.s32.totalorder %s21, 0
      %p63 = por %p61, %p62
      %p64 = scmp.ne.s32.totalorder %s52, %s53
      %p65 = scmp.eq.s32.totalorder %s22, 1
      %p66 = por %p64, %p65
      %p68 = scmp.ne.s32.totalorder %s53, %s67
      %p69 = scmp.eq.s32.totalorder %s22, 0
      %p70 = por %p68, %p69
      %s72 = sadd.s32 %s71, 1
      %p75 = scmp.eq.s32.totalorder %s16, 1
      %p76 = scmp.ne.s32.totalorder %s71, %s73
      %p77 = scmp.eq.s32.totalorder %s16, 0
      %p78 = por %p76, %p77
      %p79 = scmp.ne.s32.totalorder %s71, %s73
      %p80 = scmp.eq.s32.totalorder %s21, 1
      %p81 = por %p79, %p80
      %p82 = scmp.ne.s32.totalorder %s73, %s74
      %p83 = scmp.eq.s32.totalorder %s21, 0
      %p84 = por %p82, %p83
      %p85 = scmp.ne.s32.totalorder %s73, %s74
      %p86 = scmp.eq.s32.totalorder %s22, 1
      %p87 = por %p85, %p86
      %p89 = scmp.ne.s32.totalorder %s74, %s88
      %p90 = scmp.eq.s32.totalorder %s22, 0
      %p91 = por %p89, %p90
      %s93 = sadd.s32 %s92, 1
      %p96 = scmp.eq.s32.totalorder %s16, 1
      %p97 = scmp.ne.s32.totalorder %s92, %s94
      %p98 = scmp.eq.s32.totalorder %s16, 0
      %p99 = por %p97, %p98
      %p100 = scmp.ne.s32.totalorder %s92, %s94
      %p101 = scmp.eq.s32.totalorder %s21, 1
      %p102 = por %p100, %p101
      %p103 = scmp.ne.s32.totalorder %s94, %s95
      %p104 = scmp.eq.s32.totalorder %s21, 0
      %p105 = por %p103, %p104
      %p106 = scmp.ne.s32.totalorder %s94, %s95
      %p107 = scmp.eq.s32.totalorder %s22, 1
      %p108 = por %p106, %p107
      %p110 = scmp.ne.s32.totalorder %s95, %s109
      %p111 = scmp.eq.s32.totalorder %s22, 0
      %p112 = por %p110, %p111
      %s114 = sadd.s32 %s113, 1
      %p117 = scmp.eq.s32.totalorder %s16, 1
      %p118 = scmp.ne.s32.totalorder %s113, %s115
      %p119 = scmp.eq.s32.totalorder %s16, 0
      %p120 = por %p118, %p119
      %p121 = scmp.ne.s32.totalorder %s113, %s115
      %p122 = scmp.eq.s32.totalorder %s21, 1
      %p123 = por %p121, %p122
      %p124 = scmp.ne.s32.totalorder %s115, %s116
      %p125 = scmp.eq.s32.totalorder %s21, 0
      %p126 = por %p124, %p125
      %p127 = scmp.ne.s32.totalorder %s115, %s116
      %p128 = scmp.eq.s32.totalorder %s22, 1
      %p129 = por %p127, %p128
      %p131 = scmp.ne.s32.totalorder %s116, %s130
      %p132 = scmp.eq.s32.totalorder %s22, 0
      %p133 = por %p131, %p132
      %s134 = ssub.s32 %s16, %s23
      %p135 = scmp.eq.s32.totalorder %s134, 0
      %s137 = sadd.s32 %s136, 1
      %s138 = scalar_select %p135, %s136, %s137
      %p141 = pneg %p135
      %p142 = scmp.eq.s32.totalorder %s16, 1
      %p143 = por %p141, %p142
      %p144 = scmp.ne.s32.totalorder %s136, %s139
      %p145 = scmp.eq.s32.totalorder %s16, 0
      %p146 = por %p144, %p145
      %p147 = scmp.ne.s32.totalorder %s136, %s139
      %p148 = scmp.eq.s32.totalorder %s21, 1
      %p149 = por %p147, %p148
      %p150 = scmp.ne.s32.totalorder %s139, %s140
      %p151 = scmp.eq.s32.totalorder %s21, 0
      %p152 = por %p150, %p151
      %p153 = scmp.ne.s32.totalorder %s139, %s140
      %p154 = scmp.eq.s32.totalorder %s22, 1
      %p155 = por %p153, %p154
      %p157 = scmp.ne.s32.totalorder %s140, %s156
      %p158 = scmp.eq.s32.totalorder %s22, 0
      %p159 = por %p157, %p158
      %p160 = scmp.le.s32.totalorder 1, %s16
      %p161 = scmp.lt.s32.totalorder %s16, 3
      %p162 = pnand %p160, %p161
      %p163 = pneg %p162
      // Predicated region
      $region9: #{astrodash_forward.3} parent=5 // pred_check
        _
      $region10: #{astrodash_forward.3} parent=5 // pred_check_branch
        %165 = sbr.rel (%p162) target = $region12
      $region11: #{astrodash_forward.3} parent=5 // pred_region
        %s166 = ssub.s32 %s16, 1
        // Predicated region
        $region13: #{astrodash_forward.3} parent=11 // pred_check
          %p167 = pneg %p63
        $region14: #{astrodash_forward.3} parent=11 // pred_check_branch
          %169 = sbr.rel (%p167) target = $region16
        $region15: #{astrodash_forward.3} parent=11 // pred_region
          %s171 = ssub.s32 7680, 7680
          %172 = vsyncadd [#allocation7], %s171
          %s173 = sshll.u32 [#allocation6], 4
          %s174 = int_to_ptr.vmem [resolvable:$true] %s173
          %179 = dma.hbm_to_vmem [thread:$0]  %s1, 7680, %s174, [#allocation7], 2560, 2560, 160
        $region16: #{astrodash_forward.3} parent=11 // pred_fallthru
          _
        // Predicated region
        $region17: #{astrodash_forward.3} parent=11 // pred_check
          %p180 = pneg %p84
        $region18: #{astrodash_forward.3} parent=11 // pred_check_branch
          %182 = sbr.rel (%p180) target = $region20
        $region19: #{astrodash_forward.3} parent=11 // pred_region
          %s184 = ssub.s32 64, 64
          %185 = vsyncadd [#allocation7], %s184
          %s187 = sshll.u32 [#allocation8], 4
          %s188 = int_to_ptr.vmem [resolvable:$true] %s187
          %190 = dma.hbm_to_vmem [thread:$0]  %s2, 64, %s188, [#allocation7]
        $region20: #{astrodash_forward.3} parent=11 // pred_fallthru
          _
        // Predicated region
        $region21: #{astrodash_forward.3} parent=11 // pred_check
          %p191 = pneg %p105
        $region22: #{astrodash_forward.3} parent=11 // pred_check_branch
          %193 = sbr.rel (%p191) target = $region24
        $region23: #{astrodash_forward.3} parent=11 // pred_region
          %s195 = ssub.s32 61440, 61440
          %196 = vsyncadd [#allocation10], %s195
          %s197 = sshll.u32 [#allocation9], 4
          %s198 = int_to_ptr.vmem [resolvable:$true] %s197
          %203 = dma.hbm_to_vmem [thread:$0]  %s3, 61440, %s198, [#allocation10], 1280, 1280, 80
        $region24: #{astrodash_forward.3} parent=11 // pred_fallthru
          _
        // Predicated region
        $region25: #{astrodash_forward.3} parent=11 // pred_check
          %p204 = pneg %p126
        $region26: #{astrodash_forward.3} parent=11 // pred_check_branch
          %206 = sbr.rel (%p204) target = $region28
        $region27: #{astrodash_forward.3} parent=11 // pred_region
          %s208 = ssub.s32 64, 64
          %209 = vsyncadd [#allocation10], %s208
          %s211 = sshll.u32 [#allocation11], 4
          %s212 = int_to_ptr.vmem [resolvable:$true] %s211
          %214 = dma.hbm_to_vmem [thread:$0]  %s4, 64, %s212, [#allocation10]
        $region28: #{astrodash_forward.3} parent=11 // pred_fallthru
          _
      $region12: #{astrodash_forward.3} parent=5 // pred_fallthru
        _
      %p215 = scmp.lt.s32.totalorder %s16, 2
      // Predicated region
      $region29: #{astrodash_forward.3} parent=5 // pred_check
        %p216 = pneg %p215
      $region30: #{astrodash_forward.3} parent=5 // pred_check_branch
        %218 = sbr.rel (%p216) target = $region32
      $region31: #{astrodash_forward.3} parent=5 // pred_region
        // Predicated region
        $region33: #{astrodash_forward.3} parent=31 // pred_check
          %p219 = pneg %p36
        $region34: #{astrodash_forward.3} parent=31 // pred_check_branch
          %221 = sbr.rel (%p219) target = $region36
        $region35: #{astrodash_forward.3} parent=31 // pred_region
          %s222 = sand.u32 %s26, 1
          %s223 = scalar_lea.sflag [#allocation5], %s222
          %s224 = sand.u32 %s26, 1
          %s225 = smul.addr %s224, 16
          %s226 = scalar_lea.vmem [#allocation4], %s225
          %s228 = ssub.s32 256, 256
          %229 = vsyncadd %s223, %s228
          %s230 = smul.addr %s16, 2
          %s231 = smul.addr %s230, 128
          %s232 = scalar_lea.hbm %s0, %s231
          %s233 = sshll.u32 %s226, 4
          %s234 = int_to_ptr.vmem [resolvable:$true] %s233
          %239 = dma.hbm_to_vmem [thread:$0]  %s232, 256, %s234, %s223, 128, 128, 8
        $region36: #{astrodash_forward.3} parent=31 // pred_fallthru
          _
      $region32: #{astrodash_forward.3} parent=5 // pred_fallthru
        _
      %p240 = scmp.le.s32.totalorder 1, %s16
      %p241 = scmp.lt.s32.totalorder %s16, 3
      %p242 = pnand %p240, %p241
      %p243 = pneg %p242
      // Predicated region
      $region37: #{astrodash_forward.3} parent=5 // pred_check
        _
      $region38: #{astrodash_forward.3} parent=5 // pred_check_branch
        %245 = sbr.rel (%p242) target = $region40
      $region39: #{astrodash_forward.3} parent=5 // pred_region
        %s246 = ssub.s32 %s16, 1
        %s247 = sand.u32 %s29, 1
        %s248 = scalar_lea.sflag [#allocation5], %s247
        %s249 = sand.u32 %s29, 1
        %s250 = smul.addr %s249, 16
        %s251 = scalar_lea.vmem [#allocation4], %s250
        // Predicated region
        $region41: #{astrodash_forward.3} parent=39 // pred_check
          %p252 = pneg %p42
        $region42: #{astrodash_forward.3} parent=39 // pred_check_branch
          %254 = sbr.rel (%p252) target = $region44
        $region43: #{astrodash_forward.3} parent=39 // pred_region
          %255 = dma.done %s248, 256
        $region44: #{astrodash_forward.3} parent=39 // pred_fallthru
          _
        // Predicated region
        $region45: #{astrodash_forward.3} parent=39 // pred_check
          %p256 = pneg %p63
        $region46: #{astrodash_forward.3} parent=39 // pred_check_branch
          %258 = sbr.rel (%p256) target = $region48
        $region47: #{astrodash_forward.3} parent=39 // pred_region
          %259 = dma.done [#allocation7], 7680
        $region48: #{astrodash_forward.3} parent=39 // pred_fallthru
          _
        // Predicated region
        $region49: #{astrodash_forward.3} parent=39 // pred_check
          %p260 = pneg %p84
        $region50: #{astrodash_forward.3} parent=39 // pred_check_branch
          %262 = sbr.rel (%p260) target = $region52
        $region51: #{astrodash_forward.3} parent=39 // pred_region
          %263 = dma.done [#allocation7], 64
        $region52: #{astrodash_forward.3} parent=39 // pred_fallthru
          _
        // Predicated region
        $region53: #{astrodash_forward.3} parent=39 // pred_check
          %p264 = pneg %p105
        $region54: #{astrodash_forward.3} parent=39 // pred_check_branch
          %266 = sbr.rel (%p264) target = $region56
        $region55: #{astrodash_forward.3} parent=39 // pred_region
          %267 = dma.done [#allocation10], 61440
        $region56: #{astrodash_forward.3} parent=39 // pred_fallthru
          _
        // Predicated region
        $region57: #{astrodash_forward.3} parent=39 // pred_check
          %p268 = pneg %p126
        $region58: #{astrodash_forward.3} parent=39 // pred_check_branch
          %270 = sbr.rel (%p268) target = $region60
        $region59: #{astrodash_forward.3} parent=39 // pred_region
          %271 = dma.done [#allocation10], 64
        $region60: #{astrodash_forward.3} parent=39 // pred_fallthru
          _
        %s272 = sand.u32 %s29, 1
        %s273 = scalar_lea.sflag [#allocation5], %s272
        %s274 = sand.u32 %s29, 1
        %s275 = smul.addr %s274, 16
        %s276 = scalar_lea.vmem [#allocation4], %s275
        %p277 = pneg %p42
        %p278 = pneg %p39
        %p279 = pneg %p63
        %p280 = pneg %p60
        %p281 = pneg %p84
        %p282 = pneg %p81
        %p283 = pneg %p105
        %p284 = pneg %p102
        %p285 = pneg %p126
        %p286 = pneg %p123
        %p287 = pneg %p152
        %p288 = pneg %p149
        %p289 = scmp.lt.s32.totalorder %s21, 1
        %s290 = scalar_select %p289, %s21, 1
        %s291 = smul.addr %s290, 2
        %s292 = smul.addr %s291, 2
        %s293 = scalar_lea.vmem %s5, %s292
        %p294 = scmp.lt.s32.totalorder %s21, 1
        %s295 = scalar_select %p294, %s21, 1
        %s296 = smul.addr %s295, 2
        %s297 = smul.addr %s296, 2
        %s298 = scalar_lea.vmem %s5, %s297
        %vm300 = vcmask 162816
        %301 = vst.msk [vmem:[#allocation2] sm:$0xff] %vm300, 0.0
        %302 = vst.msk [vmem:[#allocation2 + $0x8] sm:$0xff] %vm300, 0.0
        %vm303 = vcmask 158720
        %304 = vst.msk [vmem:[#allocation2 + $0x10] sm:$0xf] %vm303, 0.0
        %v305 = vld [vmem:[%s251] sm:$0xff]
        %v306 = vld [vmem:[%s251 + $0x8] sm:$0xff]
        %309 = vrot.lane.b32.xlu0 %v305, 2
        %v310 = vpop.permute.xlu0 %309
        %311 = vrot.lane.b32.xlu0 %v306, 2
        %v312 = vpop.permute.xlu0 %311
        %vm315 = vcmask 146448
        %316 = vst.msk [vmem:[#allocation2 + $0x2] sm:$0xff] %vm315, %v310
        %317 = vst.msk [vmem:[#allocation2 + $0xa] sm:$0xff] %vm315, %v312
        %v318 = vld [vmem:[#allocation2] sm:$0xff]
        %v319 = vld [vmem:[#allocation2 + $0x8] sm:$0xff]
        %v320 = vld [vmem:[#allocation2 + $0x10] sm:$0xf]
        %v321 = vld [vmem:[#allocation6] sm:$0xff]
        %v322 = vld [vmem:[#allocation6 + $0x8] sm:$0xff]
        %v323 = vld [vmem:[#allocation6 + $0x10] sm:$0xff]
        %v324 = vld [vmem:[#allocation6 + $0x18] sm:$0xff]
        %v325 = vld [vmem:[#allocation6 + $0xa0] sm:$0xff]
        %v326 = vld [vmem:[#allocation6 + $0xa8] sm:$0xff]
        %v327 = vld [vmem:[#allocation6 + $0xb0] sm:$0xff]
        %v328 = vld [vmem:[#allocation6 + $0xb8] sm:$0xff]
        %v329 = vld [vmem:[#allocation6 + $0x140] sm:$0xf]
        %v330 = vld [vmem:[#allocation6 + $0x148] sm:$0xf]
        %v331 = vld [vmem:[#allocation6 + $0x150] sm:$0xf]
        %v332 = vld [vmem:[#allocation6 + $0x158] sm:$0xf]
        %v334 = vsel %vm300, %v318, 0
        %v337 = vsel %vm300, %v319, 0
        %v340 = vsel %vm300, %v320, 0
        %vm342 = vcmask 1043456
        %v344 = vsel %vm342, %v329, 0
        %v347 = vsel %vm342, %v330, 0
        %v350 = vsel %vm342, %v331, 0
        %v353 = vsel %vm342, %v332, 0
        %355 = vmatprep.subr.mxu0 %v322
        %356 = vmatpush1.msra.mxu0 %v321
        %357 = vmatprep.subr.mxu0 %v326
        %358 = vmatpush1.msra.mxu0 %v325
        %359 = vmatprep.subr.mxu0 %v347
        %360 = vmatpush1.msra.mxu0 %v344
        %361 = vmatprep.subr.mxu0 0.0
        %362 = vmatpush1.msra.mxu0 0.0
        %363 = vmatprep.subr.mxu0 0.0
        %364 = vmatpush1.msra.mxu0 0.0
        %365 = vmatprep.subr.mxu0 0.0
        %366 = vmatpush1.msra.mxu0 0.0
        %367 = vmatprep.subr.mxu0 0.0
        %368 = vmatpush1.msra.mxu0 0.0
        %369 = vmatprep.subr.mxu0 0.0
        %370 = vmatpush1.msra.mxu0 0.0
        %371 = vmatprep.subr.mxu0 0.0
        %372 = vmatpush1.msra.mxu0 0.0
        %373 = vmatprep.subr.mxu0 0.0
        %374 = vmatpush1.msra.mxu0 0.0
        %375 = vmatprep.subr.mxu0 0.0
        %376 = vmatpush1.msra.mxu0 0.0
        %377 = vmatprep.subr.mxu0 0.0
        %378 = vmatpush1.msra.mxu0 0.0
        %379 = vmatprep.subr.mxu0 0.0
        %380 = vmatpush1.msra.mxu0 0.0
        %381 = vmatprep.subr.mxu0 0.0
        %382 = vmatpush1.msra.mxu0 0.0
        %383 = vmatprep.subr.mxu0 0.0
        %384 = vmatpush1.msra.mxu0 0.0
        %385 = vmatprep.subr.mxu0 0.0
        %386 = vmatpush1.msra.mxu0 0.0
        %387 = vmatprep.subr.mxu0 0.0
        %388 = vmatpush1.msra.mxu0 0.0
        %389 = vmatprep.subr.mxu0 0.0
        %390 = vmatpush1.msra.mxu0 0.0
        %391 = vmatprep.subr.mxu0 0.0
        %392 = vmatpush1.msra.mxu0 0.0
        %393 = vmatprep.subr.mxu0 0.0
        %394 = vmatpush1.msra.mxu0 0.0
        %395 = vmatprep.subr.mxu0 0.0
        %396 = vmatpush1.msra.mxu0 0.0
        %397 = vmatprep.subr.mxu0 0.0
        %398 = vmatpush1.msra.mxu0 0.0
        %399 = vmatprep.subr.mxu0 0.0
        %400 = vmatpush1.msra.mxu0 0.0
        %401 = vmatprep.subr.mxu0 0.0
        %402 = vmatpush1.msra.mxu0 0.0
        %403 = vmatprep.subr.mxu0 0.0
        %404 = vmatpush1.msra.mxu0 0.0
        %405 = vmatprep.subr.mxu0 0.0
        %406 = vmatpush1.msra.mxu0 0.0
        %407 = vmatprep.subr.mxu0 0.0
        %408 = vmatpush1.msra.mxu0 0.0
        %409 = vmatprep.subr.mxu0 0.0
        %410 = vmatpush1.msra.mxu0 0.0
        %411 = vmatprep.subr.mxu0 0.0
        %412 = vmatpush1.msra.mxu0 0.0
        %413 = vmatprep.subr.mxu0 0.0
        %414 = vmatpush1.msra.mxu0 0.0
        %415 = vmatprep.subr.mxu0 0.0
        %416 = vmatpush1.msra.mxu0 0.0
        %417 = vmatprep.subr.mxu0 0.0
        %418 = vmatpush1.msra.mxu0 0.0
        %419 = vmatprep.mubr.f32.mxu0 0.0
        %420 = vmatmul.mubr.f32.gmra.mrb[0].mxu0 %v334
        %v421 = vpop.f32.mrb[0].mxu0
        %v422 = vadd.f32 0.0, %v421
        %v423 = vpop.f32.mrb[0].mxu0
        %v424 = vadd.f32 0.0, %v423
        %425 = vmatprep.mubr.f32.mxu0 0.0
        %426 = vmatmul.mubr.f32.gmra.mrb[0].mxu0 %v337
        %v427 = vpop.f32.mrb[0].mxu0
        %v428 = vadd.f32 0.0, %v427
        %v429 = vpop.f32.mrb[0].mxu0
        %v430 = vadd.f32 0.0, %v429
        %431 = vmatprep.mubr.f32.mxu0 0.0
        %432 = vmatmul.mubr.f32.gmra.mrb[0].mxu0 %v340
        %v433 = vpop.f32.mrb[0].mxu0
        %v434 = vpop.f32.mrb[0].mxu0
        %435 = vdwg.mxu0
        %436 = vmatprep.subr.mxu0 %v324
        %437 = vmatpush1.msra.mxu0 %v323
        %438 = vmatprep.subr.mxu0 %v328
        %439 = vmatpush1.msra.mxu0 %v327
        %440 = vmatprep.subr.mxu0 %v353
        %441 = vmatpush1.msra.mxu0 %v350
        %442 = vmatprep.subr.mxu0 0.0
        %443 = vmatpush1.msra.mxu0 0.0
        %444 = vmatprep.subr.mxu0 0.0
        %445 = vmatpush1.msra.mxu0 0.0
        %446 = vmatprep.subr.mxu0 0.0
        %447 = vmatpush1.msra.mxu0 0.0
        %448 = vmatprep.subr.mxu0 0.0
        %449 = vmatpush1.msra.mxu0 0.0
        %450 = vmatprep.subr.mxu0 0.0
        %451 = vmatpush1.msra.mxu0 0.0
        %452 = vmatprep.subr.mxu0 0.0
        %453 = vmatpush1.msra.mxu0 0.0
        %454 = vmatprep.subr.mxu0 0.0
        %455 = vmatpush1.msra.mxu0 0.0
        %456 = vmatprep.subr.mxu0 0.0
        %457 = vmatpush1.msra.mxu0 0.0
        %458 = vmatprep.subr.mxu0 0.0
        %459 = vmatpush1.msra.mxu0 0.0
        %460 = vmatprep.subr.mxu0 0.0
        %461 = vmatpush1.msra.mxu0 0.0
        %462 = vmatprep.subr.mxu0 0.0
        %463 = vmatpush1.msra.mxu0 0.0
        %464 = vmatprep.subr.mxu0 0.0
        %465 = vmatpush1.msra.mxu0 0.0
        %466 = vmatprep.subr.mxu0 0.0
        %467 = vmatpush1.msra.mxu0 0.0
        %468 = vmatprep.subr.mxu0 0.0
        %469 = vmatpush1.msra.mxu0 0.0
        %470 = vmatprep.subr.mxu0 0.0
        %471 = vmatpush1.msra.mxu0 0.0
        %472 = vmatprep.subr.mxu0 0.0
        %473 = vmatpush1.msra.mxu0 0.0
        %474 = vmatprep.subr.mxu0 0.0
        %475 = vmatpush1.msra.mxu0 0.0
        %476 = vmatprep.subr.mxu0 0.0
        %477 = vmatpush1.msra.mxu0 0.0
        %478 = vmatprep.subr.mxu0 0.0
        %479 = vmatpush1.msra.mxu0 0.0
        %480 = vmatprep.subr.mxu0 0.0
        %481 = vmatpush1.msra.mxu0 0.0
        %482 = vmatprep.subr.mxu0 0.0
        %483 = vmatpush1.msra.mxu0 0.0
        %484 = vmatprep.subr.mxu0 0.0
        %485 = vmatpush1.msra.mxu0 0.0
        %486 = vmatprep.subr.mxu0 0.0
        %487 = vmatpush1.msra.mxu0 0.0
        %488 = vmatprep.subr.mxu0 0.0
        %489 = vmatpush1.msra.mxu0 0.0
        %490 = vmatprep.subr.mxu0 0.0
        %491 = vmatpush1.msra.mxu0 0.0
        %492 = vmatprep.subr.mxu0 0.0
        %493 = vmatpush1.msra.mxu0 0.0
        %494 = vmatprep.subr.mxu0 0.0
        %495 = vmatpush1.msra.mxu0 0.0
        %496 = vmatprep.subr.mxu0 0.0
        %497 = vmatpush1.msra.mxu0 0.0
        %498 = vmatprep.subr.mxu0 0.0
        %499 = vmatpush1.msra.mxu0 0.0
        %500 = vmatprep.mubr.f32.mxu0 0.0
        %501 = vmatmul.mubr.f32.gmra.mrb[0].mxu0 %v334
        %v502 = vpop.f32.mrb[0].mxu0
        %v503 = vadd.f32 0.0, %v502
        %v504 = vpop.f32.mrb[0].mxu0
        %v505 = vadd.f32 0.0, %v504
        %506 = vmatprep.mubr.f32.mxu0 0.0
        %507 = vmatmul.mubr.f32.gmra.mrb[0].mxu0 %v337
        %v508 = vpop.f32.mrb[0].mxu0
        %v509 = vadd.f32 0.0, %v508
        %v510 = vpop.f32.mrb[0].mxu0
        %v511 = vadd.f32 0.0, %v510
        %512 = vmatprep.mubr.f32.mxu0 0.0
        %513 = vmatmul.mubr.f32.gmra.mrb[0].mxu0 %v340
        %v514 = vpop.f32.mrb[0].mxu0
        %v515 = vpop.f32.mrb[0].mxu0
        %516 = vdwg.mxu0
        %v517 = vld [vmem:[#allocation6 + $0x20] sm:$0xff]
        %v518 = vld [vmem:[#allocation6 + $0x28] sm:$0xff]
        %v519 = vld [vmem:[#allocation6 + $0x30] sm:$0xff]
        %v520 = vld [vmem:[#allocation6 + $0x38] sm:$0xff]
        %v521 = vld [vmem:[#allocation6 + $0xc0] sm:$0xff]
        %v522 = vld [vmem:[#allocation6 + $0xc8] sm:$0xff]
        %v523 = vld [vmem:[#allocation6 + $0xd0] sm:$0xff]
        %v524 = vld [vmem:[#allocation6 + $0xd8] sm:$0xff]
        %v525 = vld [vmem:[#allocation6 + $0x160] sm:$0xf]
        %v526 = vld [vmem:[#allocation6 + $0x168] sm:$0xf]
        %v527 = vld [vmem:[#allocation6 + $0x170] sm:$0xf]
        %v528 = vld [vmem:[#allocation6 + $0x178] sm:$0xf]
        %v530 = vsel %vm342, %v525, 0
        %v533 = vsel %vm342, %v526, 0
        %v536 = vsel %vm342, %v527, 0
        %v539 = vsel %vm342, %v528, 0
        %541 = vmatprep.subr.mxu0 %v518
        %542 = vmatpush1.msra.mxu0 %v517
        %543 = vmatprep.subr.mxu0 %v522
        %544 = vmatpush1.msra.mxu0 %v521
        %545 = vmatprep.subr.mxu0 %v533
        %546 = vmatpush1.msra.mxu0 %v530
        %547 = vmatprep.subr.mxu0 0.0
        %548 = vmatpush1.msra.mxu0 0.0
        %549 = vmatprep.subr.mxu0 0.0
        %550 = vmatpush1.msra.mxu0 0.0
        %551 = vmatprep.subr.mxu0 0.0
        %552 = vmatpush1.msra.mxu0 0.0
        %553 = vmatprep.subr.mxu0 0.0
        %554 = vmatpush1.msra.mxu0 0.0
        %555 = vmatprep.subr.mxu0 0.0
        %556 = vmatpush1.msra.mxu0 0.0
        %557 = vmatprep.subr.mxu0 0.0
        %558 = vmatpush1.msra.mxu0 0.0
        %559 = vmatprep.subr.mxu0 0.0
        %560 = vmatpush1.msra.mxu0 0.0
        %561 = vmatprep.subr.mxu0 0.0
        %562 = vmatpush1.msra.mxu0 0.0
        %563 = vmatprep.subr.mxu0 0.0
        %564 = vmatpush1.msra.mxu0 0.0
        %565 = vmatprep.subr.mxu0 0.0
        %566 = vmatpush1.msra.mxu0 0.0
        %567 = vmatprep.subr.mxu0 0.0
        %568 = vmatpush1.msra.mxu0 0.0
        %569 = vmatprep.subr.mxu0 0.0
        %570 = vmatpush1.msra.mxu0 0.0
        %571 = vmatprep.subr.mxu0 0.0
        %572 = vmatpush1.msra.mxu0 0.0
        %573 = vmatprep.subr.mxu0 0.0
        %574 = vmatpush1.msra.mxu0 0.0
        %575 = vmatprep.subr.mxu0 0.0
        %576 = vmatpush1.msra.mxu0 0.0
        %577 = vmatprep.subr.mxu0 0.0
        %578 = vmatpush1.msra.mxu0 0.0
        %579 = vmatprep.subr.mxu0 0.0
        %580 = vmatpush1.msra.mxu0 0.0
        %581 = vmatprep.subr.mxu0 0.0
        %582 = vmatpush1.msra.mxu0 0.0
        %583 = vmatprep.subr.mxu0 0.0
        %584 = vmatpush1.msra.mxu0 0.0
        %585 = vmatprep.subr.mxu0 0.0
        %586 = vmatpush1.msra.mxu0 0.0
        %587 = vmatprep.subr.mxu0 0.0
        %588 = vmatpush1.msra.mxu0 0.0
        %589 = vmatprep.subr.mxu0 0.0
        %590 = vmatpush1.msra.mxu0 0.0
        %591 = vmatprep.subr.mxu0 0.0
        %592 = vmatpush1.msra.mxu0 0.0
        %593 = vmatprep.subr.mxu0 0.0
        %594 = vmatpush1.msra.mxu0 0.0
        %595 = vmatprep.subr.mxu0 0.0
        %596 = vmatpush1.msra.mxu0 0.0
        %597 = vmatprep.subr.mxu0 0.0
        %598 = vmatpush1.msra.mxu0 0.0
        %599 = vmatprep.subr.mxu0 0.0
        %600 = vmatpush1.msra.mxu0 0.0
        %601 = vmatprep.subr.mxu0 0.0
        %602 = vmatpush1.msra.mxu0 0.0
        %603 = vmatprep.subr.mxu0 0.0
        %604 = vmatpush1.msra.mxu0 0.0
        %605 = vmatprep.mubr.f32.mxu0 0.0
        %606 = vmatmul.mubr.f32.gmra.mrb[0].mxu0 %v334
        %v607 = vpop.f32.mrb[0].mxu0
        %v608 = vadd.f32 0.0, %v607
        %v609 = vpop.f32.mrb[0].mxu0
        %v610 = vadd.f32 0.0, %v609
        %611 = vmatprep.mubr.f32.mxu0 0.0
        %612 = vmatmul.mubr.f32.gmra.mrb[0].mxu0 %v337
        %v613 = vpop.f32.mrb[0].mxu0
        %v614 = vadd.f32 0.0, %v613
        %v615 = vpop.f32.mrb[0].mxu0
        %v616 = vadd.f32 0.0, %v615
        %617 = vmatprep.mubr.f32.mxu0 0.0
        %618 = vmatmul.mubr.f32.gmra.mrb[0].mxu0 %v340
        %v619 = vpop.f32.mrb[0].mxu0
        %v620 = vadd.f32 0.0, %v619
        %v621 = vpop.f32.mrb[0].mxu0
        %v622 = vadd.f32 0.0, %v621
        %623 = vdwg.mxu0
        %624 = vmatprep.subr.mxu0 %v520
        %625 = vmatpush1.msra.mxu0 %v519
        %626 = vmatprep.subr.mxu0 %v524
        %627 = vmatpush1.msra.mxu0 %v523
        %628 = vmatprep.subr.mxu0 %v539
        %629 = vmatpush1.msra.mxu0 %v536
        %630 = vmatprep.subr.mxu0 0.0
        %631 = vmatpush1.msra.mxu0 0.0
        %632 = vmatprep.subr.mxu0 0.0
        %633 = vmatpush1.msra.mxu0 0.0
        %634 = vmatprep.subr.mxu0 0.0
        %635 = vmatpush1.msra.mxu0 0.0
        %636 = vmatprep.subr.mxu0 0.0
        %637 = vmatpush1.msra.mxu0 0.0
        %638 = vmatprep.subr.mxu0 0.0
        %639 = vmatpush1.msra.mxu0 0.0
        %640 = vmatprep.subr.mxu0 0.0
        %641 = vmatpush1.msra.mxu0 0.0
        %642 = vmatprep.subr.mxu0 0.0
        %643 = vmatpush1.msra.mxu0 0.0
        %644 = vmatprep.subr.mxu0 0.0
        %645 = vmatpush1.msra.mxu0 0.0
        %646 = vmatprep.subr.mxu0 0.0
        %647 = vmatpush1.msra.mxu0 0.0
        %648 = vmatprep.subr.mxu0 0.0
        %649 = vmatpush1.msra.mxu0 0.0
        %650 = vmatprep.subr.mxu0 0.0
        %651 = vmatpush1.msra.mxu0 0.0
        %652 = vmatprep.subr.mxu0 0.0
        %653 = vmatpush1.msra.mxu0 0.0
        %654 = vmatprep.subr.mxu0 0.0
        %655 = vmatpush1.msra.mxu0 0.0
        %656 = vmatprep.subr.mxu0 0.0
        %657 = vmatpush1.msra.mxu0 0.0
        %658 = vmatprep.subr.mxu0 0.0
        %659 = vmatpush1.msra.mxu0 0.0
        %660 = vmatprep.subr.mxu0 0.0
        %661 = vmatpush1.msra.mxu0 0.0
        %662 = vmatprep.subr.mxu0 0.0
        %663 = vmatpush1.msra.mxu0 0.0
        %664 = vmatprep.subr.mxu0 0.0
        %665 = vmatpush1.msra.mxu0 0.0
        %666 = vmatprep.subr.mxu0 0.0
        %667 = vmatpush1.msra.mxu0 0.0
        %668 = vmatprep.subr.mxu0 0.0
        %669 = vmatpush1.msra.mxu0 0.0
        %670 = vmatprep.subr.mxu0 0.0
        %671 = vmatpush1.msra.mxu0 0.0
        %672 = vmatprep.subr.mxu0 0.0
        %673 = vmatpush1.msra.mxu0 0.0
        %674 = vmatprep.subr.mxu0 0.0
        %675 = vmatpush1.msra.mxu0 0.0
        %676 = vmatprep.subr.mxu0 0.0
        %677 = vmatpush1.msra.mxu0 0.0
        %678 = vmatprep.subr.mxu0 0.0
        %679 = vmatpush1.msra.mxu0 0.0
        %680 = vmatprep.subr.mxu0 0.0
        %681 = vmatpush1.msra.mxu0 0.0
        %682 = vmatprep.subr.mxu0 0.0
        %683 = vmatpush1.msra.mxu0 0.0
        %684 = vmatprep.subr.mxu0 0.0
        %685 = vmatpush1.msra.mxu0 0.0
        %686 = vmatprep.subr.mxu0 0.0
        %687 = vmatpush1.msra.mxu0 0.0
        %688 = vmatprep.mubr.f32.mxu0 0.0
        %689 = vmatmul.mubr.f32.gmra.mrb[0].mxu0 %v334
        %v690 = vpop.f32.mrb[0].mxu0
        %v691 = vadd.f32 0.0, %v690
        %v692 = vpop.f32.mrb[0].mxu0
        %v693 = vadd.f32 0.0, %v692
        %694 = vmatprep.mubr.f32.mxu0 0.0
        %695 = vmatmul.mubr.f32.gmra.mrb[0].mxu0 %v337
        %v696 = vpop.f32.mrb[0].mxu0
        %v697 = vadd.f32 0.0, %v696
        %v698 = vpop.f32.mrb[0].mxu0
        %v699 = vadd.f32 0.0, %v698
        %700 = vmatprep.mubr.f32.mxu0 0.0
        %701 = vmatmul.mubr.f32.gmra.mrb[0].mxu0 %v340
        %v702 = vpop.f32.mrb[0].mxu0
        %v703 = vadd.f32 0.0, %v702
        %v704 = vpop.f32.mrb[0].mxu0
        %v705 = vadd.f32 0.0, %v704
        %706 = vdwg.mxu0
        %vm719 = vcmask 1046528
        %v720 = vrot.slane %v608, 1
        %v721 = vrot.slane %v614, 1
        %v722 = vsel %vm719, %v720, %v721
        %v723 = vrot.slane %v610, 1
        %v724 = vrot.slane %v616, 1
        %v725 = vsel %vm719, %v723, %v724
        %v726 = vrot.slane %v691, 1
        %v727 = vrot.slane %v697, 1
        %v728 = vsel %vm719, %v726, %v727
        %v729 = vrot.slane %v693, 1
        %v730 = vrot.slane %v699, 1
        %v731 = vsel %vm719, %v729, %v730
        %v732 = vrot.slane %v620, 1
        %v733 = vsel %vm719, %v721, %v732
        %v734 = vrot.slane %v622, 1
        %v735 = vsel %vm719, %v724, %v734
        %v736 = vrot.slane %v703, 1
        %v737 = vsel %vm719, %v727, %v736
        %v738 = vrot.slane %v705, 1
        %v739 = vsel %vm719, %v730, %v738
        %v748 = vadd.f32 %v422, %v722
        %v749 = vadd.f32 %v424, %v725
        %v750 = vadd.f32 %v503, %v728
        %v751 = vadd.f32 %v505, %v731
        %v752 = vadd.f32 %v428, %v733
        %v753 = vadd.f32 %v430, %v735
        %v754 = vadd.f32 %v509, %v737
        %v755 = vadd.f32 %v511, %v739
        %v756 = vld [vmem:[#allocation6 + $0x40] sm:$0xff]
        %v757 = vld [vmem:[#allocation6 + $0x48] sm:$0xff]
        %v758 = vld [vmem:[#allocation6 + $0x50] sm:$0xff]
        %v759 = vld [vmem:[#allocation6 + $0x58] sm:$0xff]
        %v760 = vld [vmem:[#allocation6 + $0xe0] sm:$0xff]
        %v761 = vld [vmem:[#allocation6 + $0xe8] sm:$0xff]
        %v762 = vld [vmem:[#allocation6 + $0xf0] sm:$0xff]
        %v763 = vld [vmem:[#allocation6 + $0xf8] sm:$0xff]
        %v764 = vld [vmem:[#allocation6 + $0x180] sm:$0xf]
        %v765 = vld [vmem:[#allocation6 + $0x188] sm:$0xf]
        %v766 = vld [vmem:[#allocation6 + $0x190] sm:$0xf]
        %v767 = vld [vmem:[#allocation6 + $0x198] sm:$0xf]
        %v769 = vsel %vm342, %v764, 0
        %v772 = vsel %vm342, %v765, 0
        %v775 = vsel %vm342, %v766, 0
        %v778 = vsel %vm342, %v767, 0
        %780 = vmatprep.subr.mxu0 %v757
        %781 = vmatpush1.msra.mxu0 %v756
        %782 = vmatprep.subr.mxu0 %v761
        %783 = vmatpush1.msra.mxu0 %v760
        %784 = vmatprep.subr.mxu0 %v772
        %785 = vmatpush1.msra.mxu0 %v769
        %786 = vmatprep.subr.mxu0 0.0
        %787 = vmatpush1.msra.mxu0 0.0
        %788 = vmatprep.subr.mxu0 0.0
        %789 = vmatpush1.msra.mxu0 0.0
        %790 = vmatprep.subr.mxu0 0.0
        %791 = vmatpush1.msra.mxu0 0.0
        %792 = vmatprep.subr.mxu0 0.0
        %793 = vmatpush1.msra.mxu0 0.0
        %794 = vmatprep.subr.mxu0 0.0
        %795 = vmatpush1.msra.mxu0 0.0
        %796 = vmatprep.subr.mxu0 0.0
        %797 = vmatpush1.msra.mxu0 0.0
        %798 = vmatprep.subr.mxu0 0.0
        %799 = vmatpush1.msra.mxu0 0.0
        %800 = vmatprep.subr.mxu0 0.0
        %801 = vmatpush1.msra.mxu0 0.0
        %802 = vmatprep.subr.mxu0 0.0
        %803 = vmatpush1.msra.mxu0 0.0
        %804 = vmatprep.subr.mxu0 0.0
        %805 = vmatpush1.msra.mxu0 0.0
        %806 = vmatprep.subr.mxu0 0.0
        %807 = vmatpush1.msra.mxu0 0.0
        %808 = vmatprep.subr.mxu0 0.0
        %809 = vmatpush1.msra.mxu0 0.0
        %810 = vmatprep.subr.mxu0 0.0
        %811 = vmatpush1.msra.mxu0 0.0
        %812 = vmatprep.subr.mxu0 0.0
        %813 = vmatpush1.msra.mxu0 0.0
        %814 = vmatprep.subr.mxu0 0.0
        %815 = vmatpush1.msra.mxu0 0.0
        %816 = vmatprep.subr.mxu0 0.0
        %817 = vmatpush1.msra.mxu0 0.0
        %818 = vmatprep.subr.mxu0 0.0
        %819 = vmatpush1.msra.mxu0 0.0
        %820 = vmatprep.subr.mxu0 0.0
        %821 = vmatpush1.msra.mxu0 0.0
        %822 = vmatprep.subr.mxu0 0.0
        %823 = vmatpush1.msra.mxu0 0.0
        %824 = vmatprep.subr.mxu0 0.0
        %825 = vmatpush1.msra.mxu0 0.0
        %826 = vmatprep.subr.mxu0 0.0
        %827 = vmatpush1.msra.mxu0 0.0
        %828 = vmatprep.subr.mxu0 0.0
        %829 = vmatpush1.msra.mxu0 0.0
        %830 = vmatprep.subr.mxu0 0.0
        %831 = vmatpush1.msra.mxu0 0.0
        %832 = vmatprep.subr.mxu0 0.0
        %833 = vmatpush1.msra.mxu0 0.0
        %834 = vmatprep.subr.mxu0 0.0
        %835 = vmatpush1.msra.mxu0 0.0
        %836 = vmatprep.subr.mxu0 0.0
        %837 = vmatpush1.msra.mxu0 0.0
        %838 = vmatprep.subr.mxu0 0.0
        %839 = vmatpush1.msra.mxu0 0.0
        %840 = vmatprep.subr.mxu0 0.0
        %841 = vmatpush1.msra.mxu0 0.0
        %842 = vmatprep.subr.mxu0 0.0
        %843 = vmatpush1.msra.mxu0 0.0
        %844 = vmatprep.mubr.f32.mxu0 0.0
        %845 = vmatmul.mubr.f32.gmra.mrb[0].mxu0 %v334
        %v846 = vpop.f32.mrb[0].mxu0
        %v847 = vadd.f32 0.0, %v846
        %v848 = vpop.f32.mrb[0].mxu0
        %v849 = vadd.f32 0.0, %v848
        %850 = vmatprep.mubr.f32.mxu0 0.0
        %851 = vmatmul.mubr.f32.gmra.mrb[0].mxu0 %v337
        %v852 = vpop.f32.mrb[0].mxu0
        %v853 = vadd.f32 0.0, %v852
        %v854 = vpop.f32.mrb[0].mxu0
        %v855 = vadd.f32 0.0, %v854
        %856 = vmatprep.mubr.f32.mxu0 0.0
        %857 = vmatmul.mubr.f32.gmra.mrb[0].mxu0 %v340
        %v858 = vpop.f32.mrb[0].mxu0
        %v859 = vadd.f32 0.0, %v858
        %v860 = vpop.f32.mrb[0].mxu0
        %v861 = vadd.f32 0.0, %v860
        %862 = vdwg.mxu0
        %863 = vmatprep.subr.mxu0 %v759
        %864 = vmatpush1.msra.mxu0 %v758
        %865 = vmatprep.subr.mxu0 %v763
        %866 = vmatpush1.msra.mxu0 %v762
        %867 = vmatprep.subr.mxu0 %v778
        %868 = vmatpush1.msra.mxu0 %v775
        %869 = vmatprep.subr.mxu0 0.0
        %870 = vmatpush1.msra.mxu0 0.0
        %871 = vmatprep.subr.mxu0 0.0
        %872 = vmatpush1.msra.mxu0 0.0
        %873 = vmatprep.subr.mxu0 0.0
        %874 = vmatpush1.msra.mxu0 0.0
        %875 = vmatprep.subr.mxu0 0.0
        %876 = vmatpush1.msra.mxu0 0.0
        %877 = vmatprep.subr.mxu0 0.0
        %878 = vmatpush1.msra.mxu0 0.0
        %879 = vmatprep.subr.mxu0 0.0
        %880 = vmatpush1.msra.mxu0 0.0
        %881 = vmatprep.subr.mxu0 0.0
        %882 = vmatpush1.msra.mxu0 0.0
        %883 = vmatprep.subr.mxu0 0.0
        %884 = vmatpush1.msra.mxu0 0.0
        %885 = vmatprep.subr.mxu0 0.0
        %886 = vmatpush1.msra.mxu0 0.0
        %887 = vmatprep.subr.mxu0 0.0
        %888 = vmatpush1.msra.mxu0 0.0
        %889 = vmatprep.subr.mxu0 0.0
        %890 = vmatpush1.msra.mxu0 0.0
        %891 = vmatprep.subr.mxu0 0.0
        %892 = vmatpush1.msra.mxu0 0.0
        %893 = vmatprep.subr.mxu0 0.0
        %894 = vmatpush1.msra.mxu0 0.0
        %895 = vmatprep.subr.mxu0 0.0
        %896 = vmatpush1.msra.mxu0 0.0
        %897 = vmatprep.subr.mxu0 0.0
        %898 = vmatpush1.msra.mxu0 0.0
        %899 = vmatprep.subr.mxu0 0.0
        %900 = vmatpush1.msra.mxu0 0.0
        %901 = vmatprep.subr.mxu0 0.0
        %902 = vmatpush1.msra.mxu0 0.0
        %903 = vmatprep.subr.mxu0 0.0
        %904 = vmatpush1.msra.mxu0 0.0
        %905 = vmatprep.subr.mxu0 0.0
        %906 = vmatpush1.msra.mxu0 0.0
        %907 = vmatprep.subr.mxu0 0.0
        %908 = vmatpush1.msra.mxu0 0.0
        %909 = vmatprep.subr.mxu0 0.0
        %910 = vmatpush1.msra.mxu0 0.0
        %911 = vmatprep.subr.mxu0 0.0
        %912 = vmatpush1.msra.mxu0 0.0
        %913 = vmatprep.subr.mxu0 0.0
        %914 = vmatpush1.msra.mxu0 0.0
        %915 = vmatprep.subr.mxu0 0.0
        %916 = vmatpush1.msra.mxu0 0.0
        %917 = vmatprep.subr.mxu0 0.0
        %918 = vmatpush1.msra.mxu0 0.0
        %919 = vmatprep.subr.mxu0 0.0
        %920 = vmatpush1.msra.mxu0 0.0
        %921 = vmatprep.subr.mxu0 0.0
        %922 = vmatpush1.msra.mxu0 0.0
        %923 = vmatprep.subr.mxu0 0.0
        %924 = vmatpush1.msra.mxu0 0.0
        %925 = vmatprep.subr.mxu0 0.0
        %926 = vmatpush1.msra.mxu0 0.0
        %927 = vmatprep.mubr.f32.mxu0 0.0
        %928 = vmatmul.mubr.f32.gmra.mrb[0].mxu0 %v334
        %v929 = vpop.f32.mrb[0].mxu0
        %v930 = vadd.f32 0.0, %v929
        %v931 = vpop.f32.mrb[0].mxu0
        %v932 = vadd.f32 0.0, %v931
        %933 = vmatprep.mubr.f32.mxu0 0.0
        %934 = vmatmul.mubr.f32.gmra.mrb[0].mxu0 %v337
        %v935 = vpop.f32.mrb[0].mxu0
        %v936 = vadd.f32 0.0, %v935
        %v937 = vpop.f32.mrb[0].mxu0
        %v938 = vadd.f32 0.0, %v937
        %939 = vmatprep.mubr.f32.mxu0 0.0
        %940 = vmatmul.mubr.f32.gmra.mrb[0].mxu0 %v340
        %v941 = vpop.f32.mrb[0].mxu0
        %v942 = vadd.f32 0.0, %v941
        %v943 = vpop.f32.mrb[0].mxu0
        %v944 = vadd.f32 0.0, %v943
        %945 = vdwg.mxu0
        %vm958 = vcmask 1045504
        %v959 = vrot.slane %v847, 2
        %v960 = vrot.slane %v853, 2
        %v961 = vsel %vm958, %v959, %v960
        %v962 = vrot.slane %v849, 2
        %v963 = vrot.slane %v855, 2
        %v964 = vsel %vm958, %v962, %v963
        %v965 = vrot.slane %v930, 2
        %v966 = vrot.slane %v936, 2
        %v967 = vsel %vm958, %v965, %v966
        %v968 = vrot.slane %v932, 2
        %v969 = vrot.slane %v938, 2
        %v970 = vsel %vm958, %v968, %v969
        %v971 = vrot.slane %v859, 2
        %v972 = vsel %vm958, %v960, %v971
        %v973 = vrot.slane %v861, 2
        %v974 = vsel %vm958, %v963, %v973
        %v975 = vrot.slane %v942, 2
        %v976 = vsel %vm958, %v966, %v975
        %v977 = vrot.slane %v944, 2
        %v978 = vsel %vm958, %v969, %v977
        %v987 = vadd.f32 %v748, %v961
        %v988 = vadd.f32 %v749, %v964
        %v989 = vadd.f32 %v750, %v967
        %v990 = vadd.f32 %v751, %v970
        %v991 = vadd.f32 %v752, %v972
        %v992 = vadd.f32 %v753, %v974
        %v993 = vadd.f32 %v754, %v976
        %v994 = vadd.f32 %v755, %v978
        %v995 = vld [vmem:[#allocation6 + $0x60] sm:$0xff]
        %v996 = vld [vmem:[#allocation6 + $0x68] sm:$0xff]
        %v997 = vld [vmem:[#allocation6 + $0x70] sm:$0xff]
        %v998 = vld [vmem:[#allocation6 + $0x78] sm:$0xff]
        %v999 = vld [vmem:[#allocation6 + $0x100] sm:$0xff]
        %v1000 = vld [vmem:[#allocation6 + $0x108] sm:$0xff]
        %v1001 = vld [vmem:[#allocation6 + $0x110] sm:$0xff]
        %v1002 = vld [vmem:[#allocation6 + $0x118] sm:$0xff]
        %v1003 = vld [vmem:[#allocation6 + $0x1a0] sm:$0xf]
        %v1004 = vld [vmem:[#allocation6 + $0x1a8] sm:$0xf]
        %v1005 = vld [vmem:[#allocation6 + $0x1b0] sm:$0xf]
        %v1006 = vld [vmem:[#allocation6 + $0x1b8] sm:$0xf]
        %v1008 = vsel %vm342, %v1003, 0
        %v1011 = vsel %vm342, %v1004, 0
        %v1014 = vsel %vm342, %v1005, 0
        %v1017 = vsel %vm342, %v1006, 0
        %1019 = vmatprep.subr.mxu0 %v996
        %1020 = vmatpush1.msra.mxu0 %v995
        %1021 = vmatprep.subr.mxu0 %v1000
        %1022 = vmatpush1.msra.mxu0 %v999
        %1023 = vmatprep.subr.mxu0 %v1011
        %1024 = vmatpush1.msra.mxu0 %v1008
        %1025 = vmatprep.subr.mxu0 0.0
        %1026 = vmatpush1.msra.mxu0 0.0
        %1027 = vmatprep.subr.mxu0 0.0
        %1028 = vmatpush1.msra.mxu0 0.0
        %1029 = vmatprep.subr.mxu0 0.0
        %1030 = vmatpush1.msra.mxu0 0.0
        %1031 = vmatprep.subr.mxu0 0.0
        %1032 = vmatpush1.msra.mxu0 0.0
        %1033 = vmatprep.subr.mxu0 0.0
        %1034 = vmatpush1.msra.mxu0 0.0
        %1035 = vmatprep.subr.mxu0 0.0
        %1036 = vmatpush1.msra.mxu0 0.0
        %1037 = vmatprep.subr.mxu0 0.0
        %1038 = vmatpush1.msra.mxu0 0.0
        %1039 = vmatprep.subr.mxu0 0.0
        %1040 = vmatpush1.msra.mxu0 0.0
        %1041 = vmatprep.subr.mxu0 0.0
        %1042 = vmatpush1.msra.mxu0 0.0
        %1043 = vmatprep.subr.mxu0 0.0
        %1044 = vmatpush1.msra.mxu0 0.0
        %1045 = vmatprep.subr.mxu0 0.0
        %1046 = vmatpush1.msra.mxu0 0.0
        %1047 = vmatprep.subr.mxu0 0.0
        %1048 = vmatpush1.msra.mxu0 0.0
        %1049 = vmatprep.subr.mxu0 0.0
        %1050 = vmatpush1.msra.mxu0 0.0
        %1051 = vmatprep.subr.mxu0 0.0
        %1052 = vmatpush1.msra.mxu0 0.0
        %1053 = vmatprep.subr.mxu0 0.0
        %1054 = vmatpush1.msra.mxu0 0.0
        %1055 = vmatprep.subr.mxu0 0.0
        %1056 = vmatpush1.msra.mxu0 0.0
        %1057 = vmatprep.subr.mxu0 0.0
        %1058 = vmatpush1.msra.mxu0 0.0
        %1059 = vmatprep.subr.mxu0 0.0
        %1060 = vmatpush1.msra.mxu0 0.0
        %1061 = vmatprep.subr.mxu0 0.0
        %1062 = vmatpush1.msra.mxu0 0.0
        %1063 = vmatprep.subr.mxu0 0.0
        %1064 = vmatpush1.msra.mxu0 0.0
        %1065 = vmatprep.subr.mxu0 0.0
        %1066 = vmatpush1.msra.mxu0 0.0
        %1067 = vmatprep.subr.mxu0 0.0
        %1068 = vmatpush1.msra.mxu0 0.0
        %1069 = vmatprep.subr.mxu0 0.0
        %1070 = vmatpush1.msra.mxu0 0.0
        %1071 = vmatprep.subr.mxu0 0.0
        %1072 = vmatpush1.msra.mxu0 0.0
        %1073 = vmatprep.subr.mxu0 0.0
        %1074 = vmatpush1.msra.mxu0 0.0
        %1075 = vmatprep.subr.mxu0 0.0
        %1076 = vmatpush1.msra.mxu0 0.0
        %1077 = vmatprep.subr.mxu0 0.0
        %1078 = vmatpush1.msra.mxu0 0.0
        %1079 = vmatprep.subr.mxu0 0.0
        %1080 = vmatpush1.msra.mxu0 0.0
        %1081 = vmatprep.subr.mxu0 0.0
        %1082 = vmatpush1.msra.mxu0 0.0
        %1083 = vmatprep.mubr.f32.mxu0 0.0
        %1084 = vmatmul.mubr.f32.gmra.mrb[0].mxu0 %v334
        %v1085 = vpop.f32.mrb[0].mxu0
        %v1086 = vadd.f32 0.0, %v1085
        %v1087 = vpop.f32.mrb[0].mxu0
        %v1088 = vadd.f32 0.0, %v1087
        %1089 = vmatprep.mubr.f32.mxu0 0.0
        %1090 = vmatmul.mubr.f32.gmra.mrb[0].mxu0 %v337
        %v1091 = vpop.f32.mrb[0].mxu0
        %v1092 = vadd.f32 0.0, %v1091
        %v1093 = vpop.f32.mrb[0].mxu0
        %v1094 = vadd.f32 0.0, %v1093
        %1095 = vmatprep.mubr.f32.mxu0 0.0
        %1096 = vmatmul.mubr.f32.gmra.mrb[0].mxu0 %v340
        %v1097 = vpop.f32.mrb[0].mxu0
        %v1098 = vadd.f32 0.0, %v1097
        %v1099 = vpop.f32.mrb[0].mxu0
        %v1100 = vadd.f32 0.0, %v1099
        %1101 = vdwg.mxu0
        %1102 = vmatprep.subr.mxu0 %v998
        %1103 = vmatpush1.msra.mxu0 %v997
        %1104 = vmatprep.subr.mxu0 %v1002
        %1105 = vmatpush1.msra.mxu0 %v1001
        %1106 = vmatprep.subr.mxu0 %v1017
        %1107 = vmatpush1.msra.mxu0 %v1014
        %1108 = vmatprep.subr.mxu0 0.0
        %1109 = vmatpush1.msra.mxu0 0.0
        %1110 = vmatprep.subr.mxu0 0.0
        %1111 = vmatpush1.msra.mxu0 0.0
        %1112 = vmatprep.subr.mxu0 0.0
        %1113 = vmatpush1.msra.mxu0 0.0
        %1114 = vmatprep.subr.mxu0 0.0
        %1115 = vmatpush1.msra.mxu0 0.0
        %1116 = vmatprep.subr.mxu0 0.0
        %1117 = vmatpush1.msra.mxu0 0.0
        %1118 = vmatprep.subr.mxu0 0.0
        %1119 = vmatpush1.msra.mxu0 0.0
        %1120 = vmatprep.subr.mxu0 0.0
        %1121 = vmatpush1.msra.mxu0 0.0
        %1122 = vmatprep.subr.mxu0 0.0
        %1123 = vmatpush1.msra.mxu0 0.0
        %1124 = vmatprep.subr.mxu0 0.0
        %1125 = vmatpush1.msra.mxu0 0.0
        %1126 = vmatprep.subr.mxu0 0.0
        %1127 = vmatpush1.msra.mxu0 0.0
        %1128 = vmatprep.subr.mxu0 0.0
        %1129 = vmatpush1.msra.mxu0 0.0
        %1130 = vmatprep.subr.mxu0 0.0
        %1131 = vmatpush1.msra.mxu0 0.0
        %1132 = vmatprep.subr.mxu0 0.0
        %1133 = vmatpush1.msra.mxu0 0.0
        %1134 = vmatprep.subr.mxu0 0.0
        %1135 = vmatpush1.msra.mxu0 0.0
        %1136 = vmatprep.subr.mxu0 0.0
        %1137 = vmatpush1.msra.mxu0 0.0
        %1138 = vmatprep.subr.mxu0 0.0
        %1139 = vmatpush1.msra.mxu0 0.0
        %1140 = vmatprep.subr.mxu0 0.0
        %1141 = vmatpush1.msra.mxu0 0.0
        %1142 = vmatprep.subr.mxu0 0.0
        %1143 = vmatpush1.msra.mxu0 0.0
        %1144 = vmatprep.subr.mxu0 0.0
        %1145 = vmatpush1.msra.mxu0 0.0
        %1146 = vmatprep.subr.mxu0 0.0
        %1147 = vmatpush1.msra.mxu0 0.0
        %1148 = vmatprep.subr.mxu0 0.0
        %1149 = vmatpush1.msra.mxu0 0.0
        %1150 = vmatprep.subr.mxu0 0.0
        %1151 = vmatpush1.msra.mxu0 0.0
        %1152 = vmatprep.subr.mxu0 0.0
        %1153 = vmatpush1.msra.mxu0 0.0
        %1154 = vmatprep.subr.mxu0 0.0
        %1155 = vmatpush1.msra.mxu0 0.0
        %1156 = vmatprep.subr.mxu0 0.0
        %1157 = vmatpush1.msra.mxu0 0.0
        %1158 = vmatprep.subr.mxu0 0.0
        %1159 = vmatpush1.msra.mxu0 0.0
        %1160 = vmatprep.subr.mxu0 0.0
        %1161 = vmatpush1.msra.mxu0 0.0
        %1162 = vmatprep.subr.mxu0 0.0
        %1163 = vmatpush1.msra.mxu0 0.0
        %1164 = vmatprep.subr.mxu0 0.0
        %1165 = vmatpush1.msra.mxu0 0.0
        %1166 = vmatprep.mubr.f32.mxu0 0.0
        %1167 = vmatmul.mubr.f32.gmra.mrb[0].mxu0 %v334
        %v1168 = vpop.f32.mrb[0].mxu0
        %v1169 = vadd.f32 0.0, %v1168
        %v1170 = vpop.f32.mrb[0].mxu0
        %v1171 = vadd.f32 0.0, %v1170
        %1172 = vmatprep.mubr.f32.mxu0 0.0
        %1173 = vmatmul.mubr.f32.gmra.mrb[0].mxu0 %v337
        %v1174 = vpop.f32.mrb[0].mxu0
        %v1175 = vadd.f32 0.0, %v1174
        %v1176 = vpop.f32.mrb[0].mxu0
        %v1177 = vadd.f32 0.0, %v1176
        %1178 = vmatprep.mubr.f32.mxu0 0.0
        %1179 = vmatmul.mubr.f32.gmra.mrb[0].mxu0 %v340
        %v1180 = vpop.f32.mrb[0].mxu0
        %v1181 = vadd.f32 0.0, %v1180
        %v1182 = vpop.f32.mrb[0].mxu0
        %v1183 = vadd.f32 0.0, %v1182
        %1184 = vdwg.mxu0
        %vm1197 = vcmask 1044480
        %v1198 = vrot.slane %v1086, 3
        %v1199 = vrot.slane %v1092, 3
        %v1200 = vsel %vm1197, %v1198, %v1199
        %v1201 = vrot.slane %v1088, 3
        %v1202 = vrot.slane %v1094, 3
        %v1203 = vsel %vm1197, %v1201, %v1202
        %v1204 = vrot.slane %v1169, 3
        %v1205 = vrot.slane %v1175, 3
        %v1206 = vsel %vm1197, %v1204, %v1205
        %v1207 = vrot.slane %v1171, 3
        %v1208 = vrot.slane %v1177, 3
        %v1209 = vsel %vm1197, %v1207, %v1208
        %v1210 = vrot.slane %v1098, 3
        %v1211 = vsel %vm1197, %v1199, %v1210
        %v1212 = vrot.slane %v1100, 3
        %v1213 = vsel %vm1197, %v1202, %v1212
        %v1214 = vrot.slane %v1181, 3
        %v1215 = vsel %vm1197, %v1205, %v1214
        %v1216 = vrot.slane %v1183, 3
        %v1217 = vsel %vm1197, %v1208, %v1216
        %v1226 = vadd.f32 %v987, %v1200
        %v1227 = vadd.f32 %v988, %v1203
        %v1228 = vadd.f32 %v989, %v1206
        %v1229 = vadd.f32 %v990, %v1209
        %v1230 = vadd.f32 %v991, %v1211
        %v1231 = vadd.f32 %v992, %v1213
        %v1232 = vadd.f32 %v993, %v1215
        %v1233 = vadd.f32 %v994, %v1217
        %v1234 = vld [vmem:[#allocation6 + $0x80] sm:$0xff]
        %v1235 = vld [vmem:[#allocation6 + $0x88] sm:$0xff]
        %v1236 = vld [vmem:[#allocation6 + $0x90] sm:$0xff]
        %v1237 = vld [vmem:[#allocation6 + $0x98] sm:$0xff]
        %v1238 = vld [vmem:[#allocation6 + $0x120] sm:$0xff]
        %v1239 = vld [vmem:[#allocation6 + $0x128] sm:$0xff]
        %v1240 = vld [vmem:[#allocation6 + $0x130] sm:$0xff]
        %v1241 = vld [vmem:[#allocation6 + $0x138] sm:$0xff]
        %v1242 = vld [vmem:[#allocation6 + $0x1c0] sm:$0xf]
        %v1243 = vld [vmem:[#allocation6 + $0x1c8] sm:$0xf]
        %v1244 = vld [vmem:[#allocation6 + $0x1d0] sm:$0xf]
        %v1245 = vld [vmem:[#allocation6 + $0x1d8] sm:$0xf]
        %v1247 = vsel %vm342, %v1242, 0
        %v1250 = vsel %vm342, %v1243, 0
        %v1253 = vsel %vm342, %v1244, 0
        %v1256 = vsel %vm342, %v1245, 0
        %1258 = vmatprep.subr.mxu0 %v1235
        %1259 = vmatpush1.msra.mxu0 %v1234
        %1260 = vmatprep.subr.mxu0 %v1239
        %1261 = vmatpush1.msra.mxu0 %v1238
        %1262 = vmatprep.subr.mxu0 %v1250
        %1263 = vmatpush1.msra.mxu0 %v1247
        %1264 = vmatprep.subr.mxu0 0.0
        %1265 = vmatpush1.msra.mxu0 0.0
        %1266 = vmatprep.subr.mxu0 0.0
        %1267 = vmatpush1.msra.mxu0 0.0
        %1268 = vmatprep.subr.mxu0 0.0
        %1269 = vmatpush1.msra.mxu0 0.0
        %1270 = vmatprep.subr.mxu0 0.0
        %1271 = vmatpush1.msra.mxu0 0.0
        %1272 = vmatprep.subr.mxu0 0.0
        %1273 = vmatpush1.msra.mxu0 0.0
        %1274 = vmatprep.subr.mxu0 0.0
        %1275 = vmatpush1.msra.mxu0 0.0
        %1276 = vmatprep.subr.mxu0 0.0
        %1277 = vmatpush1.msra.mxu0 0.0
        %1278 = vmatprep.subr.mxu0 0.0
        %1279 = vmatpush1.msra.mxu0 0.0
        %1280 = vmatprep.subr.mxu0 0.0
        %1281 = vmatpush1.msra.mxu0 0.0
        %1282 = vmatprep.subr.mxu0 0.0
        %1283 = vmatpush1.msra.mxu0 0.0
        %1284 = vmatprep.subr.mxu0 0.0
        %1285 = vmatpush1.msra.mxu0 0.0
        %1286 = vmatprep.subr.mxu0 0.0
        %1287 = vmatpush1.msra.mxu0 0.0
        %1288 = vmatprep.subr.mxu0 0.0
        %1289 = vmatpush1.msra.mxu0 0.0
        %1290 = vmatprep.subr.mxu0 0.0
        %1291 = vmatpush1.msra.mxu0 0.0
        %1292 = vmatprep.subr.mxu0 0.0
        %1293 = vmatpush1.msra.mxu0 0.0
        %1294 = vmatprep.subr.mxu0 0.0
        %1295 = vmatpush1.msra.mxu0 0.0
        %1296 = vmatprep.subr.mxu0 0.0
        %1297 = vmatpush1.msra.mxu0 0.0
        %1298 = vmatprep.subr.mxu0 0.0
        %1299 = vmatpush1.msra.mxu0 0.0
        %1300 = vmatprep.subr.mxu0 0.0
        %1301 = vmatpush1.msra.mxu0 0.0
        %1302 = vmatprep.subr.mxu0 0.0
        %1303 = vmatpush1.msra.mxu0 0.0
        %1304 = vmatprep.subr.mxu0 0.0
        %1305 = vmatpush1.msra.mxu0 0.0
        %1306 = vmatprep.subr.mxu0 0.0
        %1307 = vmatpush1.msra.mxu0 0.0
        %1308 = vmatprep.subr.mxu0 0.0
        %1309 = vmatpush1.msra.mxu0 0.0
        %1310 = vmatprep.subr.mxu0 0.0
        %1311 = vmatpush1.msra.mxu0 0.0
        %1312 = vmatprep.subr.mxu0 0.0
        %1313 = vmatpush1.msra.mxu0 0.0
        %1314 = vmatprep.subr.mxu0 0.0
        %1315 = vmatpush1.msra.mxu0 0.0
        %1316 = vmatprep.subr.mxu0 0.0
        %1317 = vmatpush1.msra.mxu0 0.0
        %1318 = vmatprep.subr.mxu0 0.0
        %1319 = vmatpush1.msra.mxu0 0.0
        %1320 = vmatprep.subr.mxu0 0.0
        %1321 = vmatpush1.msra.mxu0 0.0
        %1322 = vmatprep.mubr.f32.mxu0 0.0
        %1323 = vmatmul.mubr.f32.gmra.mrb[0].mxu0 %v334
        %v1324 = vpop.f32.mrb[0].mxu0
        %v1325 = vadd.f32 0.0, %v1324
        %v1326 = vpop.f32.mrb[0].mxu0
        %v1327 = vadd.f32 0.0, %v1326
        %1328 = vmatprep.mubr.f32.mxu0 0.0
        %1329 = vmatmul.mubr.f32.gmra.mrb[0].mxu0 %v337
        %v1330 = vpop.f32.mrb[0].mxu0
        %v1331 = vadd.f32 0.0, %v1330
        %v1332 = vpop.f32.mrb[0].mxu0
        %v1333 = vadd.f32 0.0, %v1332
        %1334 = vmatprep.mubr.f32.mxu0 0.0
        %1335 = vmatmul.mubr.f32.gmra.mrb[0].mxu0 %v340
        %v1336 = vpop.f32.mrb[0].mxu0
        %v1337 = vadd.f32 0.0, %v1336
        %v1338 = vpop.f32.mrb[0].mxu0
        %v1339 = vadd.f32 0.0, %v1338
        %1340 = vdwg.mxu0
        %1341 = vmatprep.subr.mxu0 %v1237
        %1342 = vmatpush1.msra.mxu0 %v1236
        %1343 = vmatprep.subr.mxu0 %v1241
        %1344 = vmatpush1.msra.mxu0 %v1240
        %1345 = vmatprep.subr.mxu0 %v1256
        %1346 = vmatpush1.msra.mxu0 %v1253
        %1347 = vmatprep.subr.mxu0 0.0
        %1348 = vmatpush1.msra.mxu0 0.0
        %1349 = vmatprep.subr.mxu0 0.0
        %1350 = vmatpush1.msra.mxu0 0.0
        %1351 = vmatprep.subr.mxu0 0.0
        %1352 = vmatpush1.msra.mxu0 0.0
        %1353 = vmatprep.subr.mxu0 0.0
        %1354 = vmatpush1.msra.mxu0 0.0
        %1355 = vmatprep.subr.mxu0 0.0
        %1356 = vmatpush1.msra.mxu0 0.0
        %1357 = vmatprep.subr.mxu0 0.0
        %1358 = vmatpush1.msra.mxu0 0.0
        %1359 = vmatprep.subr.mxu0 0.0
        %1360 = vmatpush1.msra.mxu0 0.0
        %1361 = vmatprep.subr.mxu0 0.0
        %1362 = vmatpush1.msra.mxu0 0.0
        %1363 = vmatprep.subr.mxu0 0.0
        %1364 = vmatpush1.msra.mxu0 0.0
        %1365 = vmatprep.subr.mxu0 0.0
        %1366 = vmatpush1.msra.mxu0 0.0
        %1367 = vmatprep.subr.mxu0 0.0
        %1368 = vmatpush1.msra.mxu0 0.0
        %1369 = vmatprep.subr.mxu0 0.0
        %1370 = vmatpush1.msra.mxu0 0.0
        %1371 = vmatprep.subr.mxu0 0.0
        %1372 = vmatpush1.msra.mxu0 0.0
        %1373 = vmatprep.subr.mxu0 0.0
        %1374 = vmatpush1.msra.mxu0 0.0
        %1375 = vmatprep.subr.mxu0 0.0
        %1376 = vmatpush1.msra.mxu0 0.0
        %1377 = vmatprep.subr.mxu0 0.0
        %1378 = vmatpush1.msra.mxu0 0.0
        %1379 = vmatprep.subr.mxu0 0.0
        %1380 = vmatpush1.msra.mxu0 0.0
        %1381 = vmatprep.subr.mxu0 0.0
        %1382 = vmatpush1.msra.mxu0 0.0
        %1383 = vmatprep.subr.mxu0 0.0
        %1384 = vmatpush1.msra.mxu0 0.0
        %1385 = vmatprep.subr.mxu0 0.0
        %1386 = vmatpush1.msra.mxu0 0.0
        %1387 = vmatprep.subr.mxu0 0.0
        %1388 = vmatpush1.msra.mxu0 0.0
        %1389 = vmatprep.subr.mxu0 0.0
        %1390 = vmatpush1.msra.mxu0 0.0
        %1391 = vmatprep.subr.mxu0 0.0
        %1392 = vmatpush1.msra.mxu0 0.0
        %1393 = vmatprep.subr.mxu0 0.0
        %1394 = vmatpush1.msra.mxu0 0.0
        %1395 = vmatprep.subr.mxu0 0.0
        %1396 = vmatpush1.msra.mxu0 0.0
        %1397 = vmatprep.subr.mxu0 0.0
        %1398 = vmatpush1.msra.mxu0 0.0
        %1399 = vmatprep.subr.mxu0 0.0
        %1400 = vmatpush1.msra.mxu0 0.0
        %1401 = vmatprep.subr.mxu0 0.0
        %1402 = vmatpush1.msra.mxu0 0.0
        %1403 = vmatprep.subr.mxu0 0.0
        %1404 = vmatpush1.msra.mxu0 0.0
        %1405 = vmatprep.mubr.f32.mxu0 0.0
        %1406 = vmatmul.mubr.f32.gmra.mrb[0].mxu0 %v334
        %v1407 = vpop.f32.mrb[0].mxu0
        %v1408 = vadd.f32 0.0, %v1407
        %v1409 = vpop.f32.mrb[0].mxu0
        %v1410 = vadd.f32 0.0, %v1409
        %1411 = vmatprep.mubr.f32.mxu0 0.0
        %1412 = vmatmul.mubr.f32.gmra.mrb[0].mxu0 %v337
        %v1413 = vpop.f32.mrb[0].mxu0
        %v1414 = vadd.f32 0.0, %v1413
        %v1415 = vpop.f32.mrb[0].mxu0
        %v1416 = vadd.f32 0.0, %v1415
        %1417 = vmatprep.mubr.f32.mxu0 0.0
        %1418 = vmatmul.mubr.f32.gmra.mrb[0].mxu0 %v340
        %v1419 = vpop.f32.mrb[0].mxu0
        %v1420 = vadd.f32 0.0, %v1419
        %v1421 = vpop.f32.mrb[0].mxu0
        %v1422 = vadd.f32 0.0, %v1421
        %1423 = vdwg.mxu0
        %v1436 = vrot.slane %v1325, 4
        %v1437 = vrot.slane %v1331, 4
        %v1438 = vsel %vm342, %v1436, %v1437
        %v1439 = vrot.slane %v1327, 4
        %v1440 = vrot.slane %v1333, 4
        %v1441 = vsel %vm342, %v1439, %v1440
        %v1442 = vrot.slane %v1408, 4
        %v1443 = vrot.slane %v1414, 4
        %v1444 = vsel %vm342, %v1442, %v1443
        %v1445 = vrot.slane %v1410, 4
        %v1446 = vrot.slane %v1416, 4
        %v1447 = vsel %vm342, %v1445, %v1446
        %v1448 = vrot.slane %v1337, 4
        %v1449 = vsel %vm342, %v1437, %v1448
        %v1450 = vrot.slane %v1339, 4
        %v1451 = vsel %vm342, %v1440, %v1450
        %v1452 = vrot.slane %v1420, 4
        %v1453 = vsel %vm342, %v1443, %v1452
        %v1454 = vrot.slane %v1422, 4
        %v1455 = vsel %vm342, %v1446, %v1454
        %v1464 = vadd.f32 %v1226, %v1438
        %v1465 = vadd.f32 %v1227, %v1441
        %v1466 = vadd.f32 %v1228, %v1444
        %v1467 = vadd.f32 %v1229, %v1447
        %v1468 = vadd.f32 %v1230, %v1449
        %v1469 = vadd.f32 %v1231, %v1451
        %v1470 = vadd.f32 %v1232, %v1453
        %v1471 = vadd.f32 %v1233, %v1455
        %v1472 = vld [vmem:[#allocation8] sm:$0xf]
        %v1474 = vlaneseq
        %v1475 = vshrl.u32 %v1474, 7
        %v1476 = vsub.s32 0, %v1475
        %v1477 = vrot.slane %v1472, %v1476
        %v1478 = vlaneseq
        %v1479 = vshrl.u32 %v1478, 7
        %v1480 = vsub.s32 1, %v1479
        %v1481 = vrot.slane %v1472, %v1480
        %v1482 = vlaneseq
        %v1483 = vshrl.u32 %v1482, 7
        %v1484 = vsub.s32 2, %v1483
        %v1485 = vrot.slane %v1472, %v1484
        %v1486 = vlaneseq
        %v1487 = vshrl.u32 %v1486, 7
        %v1488 = vsub.s32 3, %v1487
        %v1489 = vrot.slane %v1472, %v1488
        %v1494 = vadd.f32 %v1464, %v1477
        %v1495 = vadd.f32 %v1465, %v1481
        %v1496 = vadd.f32 %v1466, %v1485
        %v1497 = vadd.f32 %v1467, %v1489
        %v1498 = vadd.f32 %v1468, %v1477
        %v1499 = vadd.f32 %v1469, %v1481
        %v1500 = vadd.f32 %v1470, %v1485
        %v1501 = vadd.f32 %v1471, %v1489
        %v1502 = vmax.f32 %v1494, 0.0
        %v1503 = vmax.f32 %v1495, 0.0
        %v1504 = vmax.f32 %v1496, 0.0
        %v1505 = vmax.f32 %v1497, 0.0
        %v1506 = vmax.f32 %v1498, 0.0
        %v1507 = vmax.f32 %v1499, 0.0
        %v1508 = vmax.f32 %v1500, 0.0
        %v1509 = vmax.f32 %v1501, 0.0
        %v1518 = vcombine.low %v1502, %v1503
        %v1519 = vcombine.high %v1502, %v1503
        %v1520 = vcombine.low %v1504, %v1505
        %v1521 = vcombine.high %v1504, %v1505
        %v1523 = vunpack.c.l.s4 1983009808
        %v1524 = vunpack.c.0.s8 %v1523
        %v1525 = vlaneseq
        %v1526 = vshrl.u32 %v1525, 7
        %v1527 = vsub.s32 %v1524, %v1526
        %v1528 = vrot.slane %v1518, %v1527
        %v1530 = vunpack.c.l.s4 1983009808
        %v1531 = vunpack.c.0.s8 %v1530
        %v1532 = vlaneseq
        %v1533 = vshrl.u32 %v1532, 7
        %v1534 = vsub.s32 %v1531, %v1533
        %v1535 = vrot.slane %v1519, %v1534
        %v1537 = vunpack.c.l.s4 1983009808
        %v1538 = vunpack.c.0.s8 %v1537
        %v1539 = vlaneseq
        %v1540 = vshrl.u32 %v1539, 7
        %v1541 = vsub.s32 %v1538, %v1540
        %v1542 = vrot.slane %v1520, %v1541
        %v1544 = vunpack.c.l.s4 1983009808
        %v1545 = vunpack.c.0.s8 %v1544
        %v1546 = vlaneseq
        %v1547 = vshrl.u32 %v1546, 7
        %v1548 = vsub.s32 %v1545, %v1547
        %v1549 = vrot.slane %v1521, %v1548
        %v1550 = vcombine.low %v1528, %v1542
        %v1551 = vcombine.high %v1528, %v1542
        %v1552 = vcombine.low %v1535, %v1549
        %v1553 = vcombine.high %v1535, %v1549
        %v1554 = vcombine.low %v1506, %v1507
        %v1555 = vcombine.high %v1506, %v1507
        %v1556 = vcombine.low %v1508, %v1509
        %v1557 = vcombine.high %v1508, %v1509
        %v1559 = vunpack.c.l.s4 1983009808
        %v1560 = vunpack.c.0.s8 %v1559
        %v1561 = vlaneseq
        %v1562 = vshrl.u32 %v1561, 7
        %v1563 = vsub.s32 %v1560, %v1562
        %v1564 = vrot.slane %v1554, %v1563
        %v1566 = vunpack.c.l.s4 1983009808
        %v1567 = vunpack.c.0.s8 %v1566
        %v1568 = vlaneseq
        %v1569 = vshrl.u32 %v1568, 7
        %v1570 = vsub.s32 %v1567, %v1569
        %v1571 = vrot.slane %v1555, %v1570
        %v1573 = vunpack.c.l.s4 1983009808
        %v1574 = vunpack.c.0.s8 %v1573
        %v1575 = vlaneseq
        %v1576 = vshrl.u32 %v1575, 7
        %v1577 = vsub.s32 %v1574, %v1576
        %v1578 = vrot.slane %v1556, %v1577
        %v1580 = vunpack.c.l.s4 1983009808
        %v1581 = vunpack.c.0.s8 %v1580
        %v1582 = vlaneseq
        %v1583 = vshrl.u32 %v1582, 7
        %v1584 = vsub.s32 %v1581, %v1583
        %v1585 = vrot.slane %v1557, %v1584
        %v1586 = vcombine.low %v1564, %v1578
        %v1587 = vcombine.high %v1564, %v1578
        %v1588 = vcombine.low %v1571, %v1585
        %v1589 = vcombine.high %v1571, %v1585
        %v1598 = vrot.slane %v1550, 7
        %v1599 = vrot.slane %v1598, 2
        %v1600 = vrot.slane %v1551, 7
        %v1601 = vrot.slane %v1600, 2
        %v1602 = vrot.slane %v1552, 7
        %v1603 = vrot.slane %v1602, 2
        %v1604 = vrot.slane %v1553, 7
        %v1605 = vrot.slane %v1604, 2
        %v1606 = vrot.slane %v1586, 7
        %v1607 = vrot.slane %v1606, 2
        %v1608 = vrot.slane %v1587, 7
        %v1609 = vrot.slane %v1608, 2
        %v1610 = vrot.slane %v1588, 7
        %v1611 = vrot.slane %v1610, 2
        %v1612 = vrot.slane %v1589, 7
        %v1613 = vrot.slane %v1612, 2
        %v1622 = vmax.f32 %v1550, %v1599
        %v1623 = vmax.f32 %v1551, %v1601
        %v1624 = vmax.f32 %v1552, %v1603
        %v1625 = vmax.f32 %v1553, %v1605
        %v1626 = vmax.f32 %v1586, %v1607
        %v1627 = vmax.f32 %v1587, %v1609
        %v1628 = vmax.f32 %v1588, %v1611
        %v1629 = vmax.f32 %v1589, %v1613
        %v1638 = vrot.slane %v1622, 4
        %v1639 = vrot.slane %v1623, 4
        %v1640 = vrot.slane %v1624, 4
        %v1641 = vrot.slane %v1625, 4
        %v1642 = vrot.slane %v1626, 4
        %v1643 = vrot.slane %v1627, 4
        %v1644 = vrot.slane %v1628, 4
        %v1645 = vrot.slane %v1629, 4
        %v1654 = vmax.f32 %v1622, %v1638
        %v1655 = vmax.f32 %v1623, %v1639
        %v1656 = vmax.f32 %v1624, %v1640
        %v1657 = vmax.f32 %v1625, %v1641
        %v1658 = vmax.f32 %v1626, %v1642
        %v1659 = vmax.f32 %v1627, %v1643
        %v1660 = vmax.f32 %v1628, %v1644
        %v1661 = vmax.f32 %v1629, %v1645
        %1662 = vst [vmem:[#allocation3] sm:$0xff] 0.0
        %1663 = vst [vmem:[#allocation3 + $0x8] sm:$0xff] 0.0
        %1664 = vst [vmem:[#allocation3 + $0x10] sm:$0xff] 0.0
        %1665 = vst [vmem:[#allocation3 + $0x18] sm:$0xf] 0.0
        %1666 = vst [vmem:[#allocation3 + $0x20] sm:$0xf] 0.0
        %1667 = vst [vmem:[#allocation3 + $0x28] sm:$0xf] 0.0
        %v1676 = vlaneseq
        %v1677 = vshrl.u32 %v1676, 7
        %v1678 = vsub.s32 0, %v1677
        %v1679 = vrot.slane %v1654, %v1678
        %v1680 = vlaneseq
        %v1681 = vshrl.u32 %v1680, 7
        %v1682 = vsub.s32 2, %v1681
        %v1683 = vrot.slane %v1654, %v1682
        %v1684 = vlaneseq
        %v1685 = vshrl.u32 %v1684, 7
        %v1686 = vsub.s32 0, %v1685
        %v1687 = vrot.slane %v1655, %v1686
        %v1688 = vlaneseq
        %v1689 = vshrl.u32 %v1688, 7
        %v1690 = vsub.s32 2, %v1689
        %v1691 = vrot.slane %v1655, %v1690
        %v1692 = vlaneseq
        %v1693 = vshrl.u32 %v1692, 7
        %v1694 = vsub.s32 0, %v1693
        %v1695 = vrot.slane %v1656, %v1694
        %v1696 = vlaneseq
        %v1697 = vshrl.u32 %v1696, 7
        %v1698 = vsub.s32 2, %v1697
        %v1699 = vrot.slane %v1656, %v1698
        %v1700 = vlaneseq
        %v1701 = vshrl.u32 %v1700, 7
        %v1702 = vsub.s32 0, %v1701
        %v1703 = vrot.slane %v1657, %v1702
        %v1704 = vlaneseq
        %v1705 = vshrl.u32 %v1704, 7
        %v1706 = vsub.s32 2, %v1705
        %v1707 = vrot.slane %v1657, %v1706
        %v1708 = vlaneseq
        %v1709 = vshrl.u32 %v1708, 7
        %v1710 = vsub.s32 0, %v1709
        %v1711 = vrot.slane %v1658, %v1710
        %v1712 = vlaneseq
        %v1713 = vshrl.u32 %v1712, 7
        %v1714 = vsub.s32 2, %v1713
        %v1715 = vrot.slane %v1658, %v1714
        %v1716 = vlaneseq
        %v1717 = vshrl.u32 %v1716, 7
        %v1718 = vsub.s32 0, %v1717
        %v1719 = vrot.slane %v1659, %v1718
        %v1720 = vlaneseq
        %v1721 = vshrl.u32 %v1720, 7
        %v1722 = vsub.s32 2, %v1721
        %v1723 = vrot.slane %v1659, %v1722
        %v1724 = vlaneseq
        %v1725 = vshrl.u32 %v1724, 7
        %v1726 = vsub.s32 0, %v1725
        %v1727 = vrot.slane %v1660, %v1726
        %v1728 = vlaneseq
        %v1729 = vshrl.u32 %v1728, 7
        %v1730 = vsub.s32 2, %v1729
        %v1731 = vrot.slane %v1660, %v1730
        %v1732 = vlaneseq
        %v1733 = vshrl.u32 %v1732, 7
        %v1734 = vsub.s32 0, %v1733
        %v1735 = vrot.slane %v1661, %v1734
        %v1736 = vlaneseq
        %v1737 = vshrl.u32 %v1736, 7
        %v1738 = vsub.s32 2, %v1737
        %v1739 = vrot.slane %v1661, %v1738
        %vm1740 = vcmask 1043459
        %v1741 = vsel %vm1740, %v1687, %v1679
        %vm1742 = vcmask 1044484
        %v1743 = vsel %vm1742, %v1695, %v1741
        %vm1744 = vcmask 1045509
        %v1745 = vsel %vm1744, %v1703, %v1743
        %vm1746 = vcmask 1046534
        %v1747 = vsel %vm1746, %v1711, %v1745
        %vm1748 = vcmask 1047559
        %v1749 = vsel %vm1748, %v1719, %v1747
        %v1750 = vsel %vm1740, %v1691, %v1683
        %v1751 = vsel %vm1742, %v1699, %v1750
        %v1752 = vsel %vm1744, %v1707, %v1751
        %v1753 = vsel %vm1746, %v1715, %v1752
        %v1754 = vsel %vm1748, %v1723, %v1753
        %vm1755 = vcmask 1041409
        %v1756 = vsel %vm1755, %v1735, %v1727
        %v1757 = vsel %vm1755, %v1739, %v1731
        %1758 = vrot.lane.b32.xlu0 %v1749, 64
        %v1759 = vpop.permute.xlu0 %1758
        %1760 = vrot.lane.b32.xlu0 %v1754, 64
        %v1761 = vpop.permute.xlu0 %1760
        %1762 = vrot.lane.b32.xlu0 %v1756, 64
        %v1763 = vpop.permute.xlu0 %1762
        %1764 = vrot.lane.b32.xlu0 %v1757, 64
        %v1765 = vpop.permute.xlu0 %1764
        %vm1766 = vcmask 523264
        %v1767 = vsel %vm1766, %v1759, %v1761
        %v1768 = vsel %vm1766, %v1763, %v1765
        %vm1775 = vcmask 1048066
        %1776 = vst.msk [vmem:[#allocation3] sm:$0xfc] %vm1775, %v1759
        %1777 = vst [vmem:[#allocation3 + $0x8] sm:$0xfc] %v1767
        %vm1778 = vcmask 523266
        %1779 = vst.msk [vmem:[#allocation3 + $0x10] sm:$0xfc] %vm1778, %v1761
        %vm1780 = vcmask 1041920
        %1781 = vst.msk [vmem:[#allocation3 + $0x18] sm:$0x3] %vm1780, %v1763
        %1782 = vst [vmem:[#allocation3 + $0x20] sm:$0x3] %v1768
        %vm1783 = vcmask 517120
        %1784 = vst.msk [vmem:[#allocation3 + $0x28] sm:$0x3] %vm1783, %v1765
        %v1785 = vld [vmem:[#allocation3] sm:$0xff]
        %v1786 = vld [vmem:[#allocation3 + $0x8] sm:$0xff]
        %v1787 = vld [vmem:[#allocation3 + $0x10] sm:$0xff]
        %v1788 = vld [vmem:[#allocation3 + $0x18] sm:$0xf]
        %v1789 = vld [vmem:[#allocation3 + $0x20] sm:$0xf]
        %v1790 = vld [vmem:[#allocation3 + $0x28] sm:$0xf]
        %v1791 = vpack.c.bf16 %v1788, %v1785
        %v1792 = vpack.c.bf16 %v1789, %v1786
        %v1793 = vpack.c.bf16 %v1790, %v1787
        %v1794 = vld [vmem:[#allocation9] sm:$0xff]
        %v1795 = vld [vmem:[#allocation9 + $0x8] sm:$0xff]
        %v1796 = vld [vmem:[#allocation9 + $0x50] sm:$0xff]
        %v1797 = vld [vmem:[#allocation9 + $0x58] sm:$0xff]
        %v1798 = vld [vmem:[#allocation9 + $0xa0] sm:$0xff]
        %v1799 = vld [vmem:[#allocation9 + $0xa8] sm:$0xff]
        %v1800 = vld [vmem:[#allocation9 + $0xf0] sm:$0xff]
        %v1801 = vld [vmem:[#allocation9 + $0xf8] sm:$0xff]
        %v1802 = vld [vmem:[#allocation9 + $0x140] sm:$0xff]
        %v1803 = vld [vmem:[#allocation9 + $0x148] sm:$0xff]
        %v1804 = vld [vmem:[#allocation9 + $0x190] sm:$0xff]
        %v1805 = vld [vmem:[#allocation9 + $0x198] sm:$0xff]
        %v1806 = vld [vmem:[#allocation9 + $0x1e0] sm:$0xff]
        %v1807 = vld [vmem:[#allocation9 + $0x1e8] sm:$0xff]
        %v1808 = vld [vmem:[#allocation9 + $0x230] sm:$0xff]
        %v1809 = vld [vmem:[#allocation9 + $0x238] sm:$0xff]
        %v1810 = vld [vmem:[#allocation9 + $0x280] sm:$0xff]
        %v1811 = vld [vmem:[#allocation9 + $0x288] sm:$0xff]
        %v1812 = vld [vmem:[#allocation9 + $0x2d0] sm:$0xff]
        %v1813 = vld [vmem:[#allocation9 + $0x2d8] sm:$0xff]
        %v1814 = vld [vmem:[#allocation9 + $0x320] sm:$0xff]
        %v1815 = vld [vmem:[#allocation9 + $0x328] sm:$0xff]
        %v1816 = vld [vmem:[#allocation9 + $0x370] sm:$0xff]
        %v1817 = vld [vmem:[#allocation9 + $0x378] sm:$0xff]
        %v1818 = vld [vmem:[#allocation9 + $0x3c0] sm:$0xff]
        %v1819 = vld [vmem:[#allocation9 + $0x3c8] sm:$0xff]
        %v1820 = vld [vmem:[#allocation9 + $0x410] sm:$0xff]
        %v1821 = vld [vmem:[#allocation9 + $0x418] sm:$0xff]
        %v1822 = vld [vmem:[#allocation9 + $0x460] sm:$0xff]
        %v1823 = vld [vmem:[#allocation9 + $0x468] sm:$0xff]
        %v1824 = vld [vmem:[#allocation9 + $0x4b0] sm:$0xff]
        %v1825 = vld [vmem:[#allocation9 + $0x4b8] sm:$0xff]
        %v1826 = vld [vmem:[#allocation9 + $0x500] sm:$0xff]
        %v1827 = vld [vmem:[#allocation9 + $0x508] sm:$0xff]
        %v1828 = vld [vmem:[#allocation9 + $0x550] sm:$0xff]
        %v1829 = vld [vmem:[#allocation9 + $0x558] sm:$0xff]
        %v1830 = vld [vmem:[#allocation9 + $0x5a0] sm:$0xff]
        %v1831 = vld [vmem:[#allocation9 + $0x5a8] sm:$0xff]
        %v1832 = vld [vmem:[#allocation9 + $0x5f0] sm:$0xff]
        %v1833 = vld [vmem:[#allocation9 + $0x5f8] sm:$0xff]
        %v1834 = vld [vmem:[#allocation9 + $0x640] sm:$0xff]
        %v1835 = vld [vmem:[#allocation9 + $0x648] sm:$0xff]
        %v1836 = vld [vmem:[#allocation9 + $0x690] sm:$0xff]
        %v1837 = vld [vmem:[#allocation9 + $0x698] sm:$0xff]
        %v1838 = vld [vmem:[#allocation9 + $0x6e0] sm:$0xff]
        %v1839 = vld [vmem:[#allocation9 + $0x6e8] sm:$0xff]
        %v1840 = vld [vmem:[#allocation9 + $0x730] sm:$0xff]
        %v1841 = vld [vmem:[#allocation9 + $0x738] sm:$0xff]
        %v1842 = vld [vmem:[#allocation9 + $0x780] sm:$0xff]
        %v1843 = vld [vmem:[#allocation9 + $0x788] sm:$0xff]
        %v1844 = vld [vmem:[#allocation9 + $0x7d0] sm:$0xff]
        %v1845 = vld [vmem:[#allocation9 + $0x7d8] sm:$0xff]
        %v1846 = vld [vmem:[#allocation9 + $0x820] sm:$0xff]
        %v1847 = vld [vmem:[#allocation9 + $0x828] sm:$0xff]
        %v1848 = vld [vmem:[#allocation9 + $0x870] sm:$0xff]
        %v1849 = vld [vmem:[#allocation9 + $0x878] sm:$0xff]
        %v1850 = vld [vmem:[#allocation9 + $0x8c0] sm:$0xff]
        %v1851 = vld [vmem:[#allocation9 + $0x8c8] sm:$0xff]
        %v1852 = vld [vmem:[#allocation9 + $0x910] sm:$0xff]
        %v1853 = vld [vmem:[#allocation9 + $0x918] sm:$0xff]
        %v1854 = vld [vmem:[#allocation9 + $0x960] sm:$0xff]
        %v1855 = vld [vmem:[#allocation9 + $0x968] sm:$0xff]
        %v1856 = vld [vmem:[#allocation9 + $0x9b0] sm:$0xff]
        %v1857 = vld [vmem:[#allocation9 + $0x9b8] sm:$0xff]
        %v1858 = vld [vmem:[#allocation9 + $0xa00] sm:$0xff]
        %v1859 = vld [vmem:[#allocation9 + $0xa08] sm:$0xff]
        %v1860 = vld [vmem:[#allocation9 + $0xa50] sm:$0xff]
        %v1861 = vld [vmem:[#allocation9 + $0xa58] sm:$0xff]
        %v1862 = vld [vmem:[#allocation9 + $0xaa0] sm:$0xff]
        %v1863 = vld [vmem:[#allocation9 + $0xaa8] sm:$0xff]
        %v1864 = vld [vmem:[#allocation9 + $0xaf0] sm:$0xff]
        %v1865 = vld [vmem:[#allocation9 + $0xaf8] sm:$0xff]
        %v1866 = vld [vmem:[#allocation9 + $0xb40] sm:$0xff]
        %v1867 = vld [vmem:[#allocation9 + $0xb48] sm:$0xff]
        %v1868 = vld [vmem:[#allocation9 + $0xb90] sm:$0xff]
        %v1869 = vld [vmem:[#allocation9 + $0xb98] sm:$0xff]
        %v1870 = vld [vmem:[#allocation9 + $0xbe0] sm:$0xff]
        %v1871 = vld [vmem:[#allocation9 + $0xbe8] sm:$0xff]
        %v1872 = vld [vmem:[#allocation9 + $0xc30] sm:$0xff]
        %v1873 = vld [vmem:[#allocation9 + $0xc38] sm:$0xff]
        %v1874 = vld [vmem:[#allocation9 + $0xc80] sm:$0xff]
        %v1875 = vld [vmem:[#allocation9 + $0xc88] sm:$0xff]
        %v1876 = vld [vmem:[#allocation9 + $0xcd0] sm:$0xff]
        %v1877 = vld [vmem:[#allocation9 + $0xcd8] sm:$0xff]
        %v1878 = vld [vmem:[#allocation9 + $0xd20] sm:$0xff]
        %v1879 = vld [vmem:[#allocation9 + $0xd28] sm:$0xff]
        %v1880 = vld [vmem:[#allocation9 + $0xd70] sm:$0xff]
        %v1881 = vld [vmem:[#allocation9 + $0xd78] sm:$0xff]
        %v1882 = vld [vmem:[#allocation9 + $0xdc0] sm:$0xff]
        %v1883 = vld [vmem:[#allocation9 + $0xdc8] sm:$0xff]
        %v1884 = vld [vmem:[#allocation9 + $0xe10] sm:$0xff]
        %v1885 = vld [vmem:[#allocation9 + $0xe18] sm:$0xff]
        %v1886 = vld [vmem:[#allocation9 + $0xe60] sm:$0xff]
        %v1887 = vld [vmem:[#allocation9 + $0xe68] sm:$0xff]
        %v1888 = vld [vmem:[#allocation9 + $0xeb0] sm:$0xff]
        %v1889 = vld [vmem:[#allocation9 + $0xeb8] sm:$0xff]
        %v1986 = vunpack.c.l.b16 %v1794
        %v1987 = vunpack.c.h.b16 %v1794
        %v1988 = vunpack.c.l.b16 %v1795
        %v1989 = vunpack.c.h.b16 %v1795
        %v1990 = vunpack.c.l.b16 %v1796
        %v1991 = vunpack.c.h.b16 %v1796
        %v1992 = vunpack.c.l.b16 %v1797
        %v1993 = vunpack.c.h.b16 %v1797
        %v1994 = vunpack.c.l.b16 %v1798
        %v1995 = vunpack.c.h.b16 %v1798
        %v1996 = vunpack.c.l.b16 %v1799
        %v1997 = vunpack.c.h.b16 %v1799
        %v1998 = vunpack.c.l.b16 %v1800
        %v1999 = vunpack.c.h.b16 %v1800
        %v2000 = vunpack.c.l.b16 %v1801
        %v2001 = vunpack.c.h.b16 %v1801
        %v2002 = vunpack.c.l.b16 %v1802
        %v2003 = vunpack.c.h.b16 %v1802
        %v2004 = vunpack.c.l.b16 %v1803
        %v2005 = vunpack.c.h.b16 %v1803
        %v2006 = vunpack.c.l.b16 %v1804
        %v2007 = vunpack.c.h.b16 %v1804
        %v2008 = vunpack.c.l.b16 %v1805
        %v2009 = vunpack.c.h.b16 %v1805
        %v2010 = vunpack.c.l.b16 %v1806
        %v2011 = vunpack.c.h.b16 %v1806
        %v2012 = vunpack.c.l.b16 %v1807
        %v2013 = vunpack.c.h.b16 %v1807
        %v2014 = vunpack.c.l.b16 %v1808
        %v2015 = vunpack.c.h.b16 %v1808
        %v2016 = vunpack.c.l.b16 %v1809
        %v2017 = vunpack.c.h.b16 %v1809
        %v2018 = vunpack.c.l.b16 %v1810
        %v2019 = vunpack.c.h.b16 %v1810
        %v2020 = vunpack.c.l.b16 %v1811
        %v2021 = vunpack.c.h.b16 %v1811
        %v2022 = vunpack.c.l.b16 %v1812
        %v2023 = vunpack.c.h.b16 %v1812
        %v2024 = vunpack.c.l.b16 %v1813
        %v2025 = vunpack.c.h.b16 %v1813
        %v2026 = vunpack.c.l.b16 %v1814
        %v2027 = vunpack.c.h.b16 %v1814
        %v2028 = vunpack.c.l.b16 %v1815
        %v2029 = vunpack.c.h.b16 %v1815
        %v2030 = vunpack.c.l.b16 %v1816
        %v2031 = vunpack.c.h.b16 %v1816
        %v2032 = vunpack.c.l.b16 %v1817
        %v2033 = vunpack.c.h.b16 %v1817
        %v2034 = vunpack.c.l.b16 %v1818
        %v2035 = vunpack.c.h.b16 %v1818
        %v2036 = vunpack.c.l.b16 %v1819
        %v2037 = vunpack.c.h.b16 %v1819
        %v2038 = vunpack.c.l.b16 %v1820
        %v2039 = vunpack.c.h.b16 %v1820
        %v2040 = vunpack.c.l.b16 %v1821
        %v2041 = vunpack.c.h.b16 %v1821
        %v2042 = vunpack.c.l.b16 %v1822
        %v2043 = vunpack.c.h.b16 %v1822
        %v2044 = vunpack.c.l.b16 %v1823
        %v2045 = vunpack.c.h.b16 %v1823
        %v2046 = vunpack.c.l.b16 %v1824
        %v2047 = vunpack.c.h.b16 %v1824
        %v2048 = vunpack.c.l.b16 %v1825
        %v2049 = vunpack.c.h.b16 %v1825
        %v2050 = vunpack.c.l.b16 %v1826
        %v2051 = vunpack.c.h.b16 %v1826
        %v2052 = vunpack.c.l.b16 %v1827
        %v2053 = vunpack.c.h.b16 %v1827
        %v2054 = vunpack.c.l.b16 %v1828
        %v2055 = vunpack.c.h.b16 %v1828
        %v2056 = vunpack.c.l.b16 %v1829
        %v2057 = vunpack.c.h.b16 %v1829
        %v2058 = vunpack.c.l.b16 %v1830
        %v2059 = vunpack.c.h.b16 %v1830
        %v2060 = vunpack.c.l.b16 %v1831
        %v2061 = vunpack.c.h.b16 %v1831
        %v2062 = vunpack.c.l.b16 %v1832
        %v2063 = vunpack.c.h.b16 %v1832
        %v2064 = vunpack.c.l.b16 %v1833
        %v2065 = vunpack.c.h.b16 %v1833
        %v2066 = vunpack.c.l.b16 %v1834
        %v2067 = vunpack.c.h.b16 %v1834
        %v2068 = vunpack.c.l.b16 %v1835
        %v2069 = vunpack.c.h.b16 %v1835
        %v2070 = vunpack.c.l.b16 %v1836
        %v2071 = vunpack.c.h.b16 %v1836
        %v2072 = vunpack.c.l.b16 %v1837
        %v2073 = vunpack.c.h.b16 %v1837
        %v2074 = vunpack.c.l.b16 %v1838
        %v2075 = vunpack.c.h.b16 %v1838
        %v2076 = vunpack.c.l.b16 %v1839
        %v2077 = vunpack.c.h.b16 %v1839
        %v2078 = vunpack.c.l.b16 %v1840
        %v2079 = vunpack.c.h.b16 %v1840
        %v2080 = vunpack.c.l.b16 %v1841
        %v2081 = vunpack.c.h.b16 %v1841
        %v2082 = vunpack.c.l.b16 %v1842
        %v2083 = vunpack.c.h.b16 %v1842
        %v2084 = vunpack.c.l.b16 %v1843
        %v2085 = vunpack.c.h.b16 %v1843
        %v2086 = vunpack.c.l.b16 %v1844
        %v2087 = vunpack.c.h.b16 %v1844
        %v2088 = vunpack.c.l.b16 %v1845
        %v2089 = vunpack.c.h.b16 %v1845
        %v2090 = vunpack.c.l.b16 %v1846
        %v2091 = vunpack.c.h.b16 %v1846
        %v2092 = vunpack.c.l.b16 %v1847
        %v2093 = vunpack.c.h.b16 %v1847
        %v2094 = vunpack.c.l.b16 %v1848
        %v2095 = vunpack.c.h.b16 %v1848
        %v2096 = vunpack.c.l.b16 %v1849
        %v2097 = vunpack.c.h.b16 %v1849
        %v2098 = vunpack.c.l.b16 %v1850
        %v2099 = vunpack.c.h.b16 %v1850
        %v2100 = vunpack.c.l.b16 %v1851
        %v2101 = vunpack.c.h.b16 %v1851
        %v2102 = vunpack.c.l.b16 %v1852
        %v2103 = vunpack.c.h.b16 %v1852
        %v2104 = vunpack.c.l.b16 %v1853
        %v2105 = vunpack.c.h.b16 %v1853
        %v2106 = vunpack.c.l.b16 %v1854
        %v2107 = vunpack.c.h.b16 %v1854
        %v2108 = vunpack.c.l.b16 %v1855
        %v2109 = vunpack.c.h.b16 %v1855
        %v2110 = vunpack.c.l.b16 %v1856
        %v2111 = vunpack.c.h.b16 %v1856
        %v2112 = vunpack.c.l.b16 %v1857
        %v2113 = vunpack.c.h.b16 %v1857
        %v2114 = vunpack.c.l.b16 %v1858
        %v2115 = vunpack.c.h.b16 %v1858
        %v2116 = vunpack.c.l.b16 %v1859
        %v2117 = vunpack.c.h.b16 %v1859
        %v2118 = vunpack.c.l.b16 %v1860
        %v2119 = vunpack.c.h.b16 %v1860
        %v2120 = vunpack.c.l.b16 %v1861
        %v2121 = vunpack.c.h.b16 %v1861
        %v2122 = vunpack.c.l.b16 %v1862
        %v2123 = vunpack.c.h.b16 %v1862
        %v2124 = vunpack.c.l.b16 %v1863
        %v2125 = vunpack.c.h.b16 %v1863
        %v2126 = vunpack.c.l.b16 %v1864
        %v2127 = vunpack.c.h.b16 %v1864
        %v2128 = vunpack.c.l.b16 %v1865
        %v2129 = vunpack.c.h.b16 %v1865
        %v2130 = vunpack.c.l.b16 %v1866
        %v2131 = vunpack.c.h.b16 %v1866
        %v2132 = vunpack.c.l.b16 %v1867
        %v2133 = vunpack.c.h.b16 %v1867
        %v2134 = vunpack.c.l.b16 %v1868
        %v2135 = vunpack.c.h.b16 %v1868
        %v2136 = vunpack.c.l.b16 %v1869
        %v2137 = vunpack.c.h.b16 %v1869
        %v2138 = vunpack.c.l.b16 %v1870
        %v2139 = vunpack.c.h.b16 %v1870
        %v2140 = vunpack.c.l.b16 %v1871
        %v2141 = vunpack.c.h.b16 %v1871
        %v2142 = vunpack.c.l.b16 %v1872
        %v2143 = vunpack.c.h.b16 %v1872
        %v2144 = vunpack.c.l.b16 %v1873
        %v2145 = vunpack.c.h.b16 %v1873
        %v2146 = vunpack.c.l.b16 %v1874
        %v2147 = vunpack.c.h.b16 %v1874
        %v2148 = vunpack.c.l.b16 %v1875
        %v2149 = vunpack.c.h.b16 %v1875
        %v2150 = vunpack.c.l.b16 %v1876
        %v2151 = vunpack.c.h.b16 %v1876
        %v2152 = vunpack.c.l.b16 %v1877
        %v2153 = vunpack.c.h.b16 %v1877
        %v2154 = vunpack.c.l.b16 %v1878
        %v2155 = vunpack.c.h.b16 %v1878
        %v2156 = vunpack.c.l.b16 %v1879
        %v2157 = vunpack.c.h.b16 %v1879
        %v2158 = vunpack.c.l.b16 %v1880
        %v2159 = vunpack.c.h.b16 %v1880
        %v2160 = vunpack.c.l.b16 %v1881
        %v2161 = vunpack.c.h.b16 %v1881
        %v2162 = vunpack.c.l.b16 %v1882
        %v2163 = vunpack.c.h.b16 %v1882
        %v2164 = vunpack.c.l.b16 %v1883
        %v2165 = vunpack.c.h.b16 %v1883
        %v2166 = vunpack.c.l.b16 %v1884
        %v2167 = vunpack.c.h.b16 %v1884
        %v2168 = vunpack.c.l.b16 %v1885
        %v2169 = vunpack.c.h.b16 %v1885
        %v2170 = vunpack.c.l.b16 %v1886
        %v2171 = vunpack.c.h.b16 %v1886
        %v2172 = vunpack.c.l.b16 %v1887
        %v2173 = vunpack.c.h.b16 %v1887
        %v2174 = vunpack.c.l.b16 %v1888
        %v2175 = vunpack.c.h.b16 %v1888
        %v2176 = vunpack.c.l.b16 %v1889
        %v2177 = vunpack.c.h.b16 %v1889
        %v2178 = vpack.c.b16 %v1990, %v1986
        %v2179 = vpack.c.b16 %v1991, %v1987
        %v2180 = vpack.c.b16 %v1992, %v1988
        %v2181 = vpack.c.b16 %v1993, %v1989
        %v2182 = vpack.c.b16 %v1998, %v1994
        %v2183 = vpack.c.b16 %v1999, %v1995
        %v2184 = vpack.c.b16 %v2000, %v1996
        %v2185 = vpack.c.b16 %v2001, %v1997
        %v2186 = vpack.c.b16 %v2006, %v2002
        %v2187 = vpack.c.b16 %v2007, %v2003
        %v2188 = vpack.c.b16 %v2008, %v2004
        %v2189 = vpack.c.b16 %v2009, %v2005
        %v2190 = vpack.c.b16 %v2014, %v2010
        %v2191 = vpack.c.b16 %v2015, %v2011
        %v2192 = vpack.c.b16 %v2016, %v2012
        %v2193 = vpack.c.b16 %v2017, %v2013
        %v2194 = vpack.c.b16 %v2022, %v2018
        %v2195 = vpack.c.b16 %v2023, %v2019
        %v2196 = vpack.c.b16 %v2024, %v2020
        %v2197 = vpack.c.b16 %v2025, %v2021
        %v2198 = vpack.c.b16 %v2030, %v2026
        %v2199 = vpack.c.b16 %v2031, %v2027
        %v2200 = vpack.c.b16 %v2032, %v2028
        %v2201 = vpack.c.b16 %v2033, %v2029
        %v2202 = vpack.c.b16 %v2038, %v2034
        %v2203 = vpack.c.b16 %v2039, %v2035
        %v2204 = vpack.c.b16 %v2040, %v2036
        %v2205 = vpack.c.b16 %v2041, %v2037
        %v2206 = vpack.c.b16 %v2046, %v2042
        %v2207 = vpack.c.b16 %v2047, %v2043
        %v2208 = vpack.c.b16 %v2048, %v2044
        %v2209 = vpack.c.b16 %v2049, %v2045
        %v2210 = vpack.c.b16 %v2054, %v2050
        %v2211 = vpack.c.b16 %v2055, %v2051
        %v2212 = vpack.c.b16 %v2056, %v2052
        %v2213 = vpack.c.b16 %v2057, %v2053
        %v2214 = vpack.c.b16 %v2062, %v2058
        %v2215 = vpack.c.b16 %v2063, %v2059
        %v2216 = vpack.c.b16 %v2064, %v2060
        %v2217 = vpack.c.b16 %v2065, %v2061
        %v2218 = vpack.c.b16 %v2070, %v2066
        %v2219 = vpack.c.b16 %v2071, %v2067
        %v2220 = vpack.c.b16 %v2072, %v2068
        %v2221 = vpack.c.b16 %v2073, %v2069
        %v2222 = vpack.c.b16 %v2078, %v2074
        %v2223 = vpack.c.b16 %v2079, %v2075
        %v2224 = vpack.c.b16 %v2080, %v2076
        %v2225 = vpack.c.b16 %v2081, %v2077
        %v2226 = vpack.c.b16 %v2086, %v2082
        %v2227 = vpack.c.b16 %v2087, %v2083
        %v2228 = vpack.c.b16 %v2088, %v2084
        %v2229 = vpack.c.b16 %v2089, %v2085
        %v2230 = vpack.c.b16 %v2094, %v2090
        %v2231 = vpack.c.b16 %v2095, %v2091
        %v2232 = vpack.c.b16 %v2096, %v2092
        %v2233 = vpack.c.b16 %v2097, %v2093
        %v2234 = vpack.c.b16 %v2102, %v2098
        %v2235 = vpack.c.b16 %v2103, %v2099
        %v2236 = vpack.c.b16 %v2104, %v2100
        %v2237 = vpack.c.b16 %v2105, %v2101
        %v2238 = vpack.c.b16 %v2110, %v2106
        %v2239 = vpack.c.b16 %v2111, %v2107
        %v2240 = vpack.c.b16 %v2112, %v2108
        %v2241 = vpack.c.b16 %v2113, %v2109
        %v2242 = vpack.c.b16 %v2118, %v2114
        %v2243 = vpack.c.b16 %v2119, %v2115
        %v2244 = vpack.c.b16 %v2120, %v2116
        %v2245 = vpack.c.b16 %v2121, %v2117
        %v2246 = vpack.c.b16 %v2126, %v2122
        %v2247 = vpack.c.b16 %v2127, %v2123
        %v2248 = vpack.c.b16 %v2128, %v2124
        %v2249 = vpack.c.b16 %v2129, %v2125
        %v2250 = vpack.c.b16 %v2134, %v2130
        %v2251 = vpack.c.b16 %v2135, %v2131
        %v2252 = vpack.c.b16 %v2136, %v2132
        %v2253 = vpack.c.b16 %v2137, %v2133
        %v2254 = vpack.c.b16 %v2142, %v2138
        %v2255 = vpack.c.b16 %v2143, %v2139
        %v2256 = vpack.c.b16 %v2144, %v2140
        %v2257 = vpack.c.b16 %v2145, %v2141
        %v2258 = vpack.c.b16 %v2150, %v2146
        %v2259 = vpack.c.b16 %v2151, %v2147
        %v2260 = vpack.c.b16 %v2152, %v2148
        %v2261 = vpack.c.b16 %v2153, %v2149
        %v2262 = vpack.c.b16 %v2158, %v2154
        %v2263 = vpack.c.b16 %v2159, %v2155
        %v2264 = vpack.c.b16 %v2160, %v2156
        %v2265 = vpack.c.b16 %v2161, %v2157
        %v2266 = vpack.c.b16 %v2166, %v2162
        %v2267 = vpack.c.b16 %v2167, %v2163
        %v2268 = vpack.c.b16 %v2168, %v2164
        %v2269 = vpack.c.b16 %v2169, %v2165
        %v2270 = vpack.c.b16 %v2174, %v2170
        %v2271 = vpack.c.b16 %v2175, %v2171
        %v2272 = vpack.c.b16 %v2176, %v2172
        %v2273 = vpack.c.b16 %v2177, %v2173
        %2370 = vmatprep.subr.bf16.mxu0 %v2179
        %2371 = vmatpush1.bf16.msra.mxu0 %v2178
        %2372 = vmatprep.subr.bf16.mxu0 %v2183
        %2373 = vmatpush1.bf16.msra.mxu0 %v2182
        %2374 = vmatprep.subr.bf16.mxu0 %v2187
        %2375 = vmatpush1.bf16.msra.mxu0 %v2186
        %2376 = vmatprep.subr.bf16.mxu0 %v2191
        %2377 = vmatpush1.bf16.msra.mxu0 %v2190
        %2378 = vmatprep.subr.bf16.mxu0 %v2195
        %2379 = vmatpush1.bf16.msra.mxu0 %v2194
        %2380 = vmatprep.subr.bf16.mxu0 %v2199
        %2381 = vmatpush1.bf16.msra.mxu0 %v2198
        %2382 = vmatprep.subr.bf16.mxu0 %v2203
        %2383 = vmatpush1.bf16.msra.mxu0 %v2202
        %2384 = vmatprep.subr.bf16.mxu0 %v2207
        %2385 = vmatpush1.bf16.msra.mxu0 %v2206
        %2386 = vmatprep.subr.bf16.mxu0 %v2211
        %2387 = vmatpush1.bf16.msra.mxu0 %v2210
        %2388 = vmatprep.subr.bf16.mxu0 %v2215
        %2389 = vmatpush1.bf16.msra.mxu0 %v2214
        %2390 = vmatprep.subr.bf16.mxu0 %v2219
        %2391 = vmatpush1.bf16.msra.mxu0 %v2218
        %2392 = vmatprep.subr.bf16.mxu0 %v2223
        %2393 = vmatpush1.bf16.msra.mxu0 %v2222
        %2394 = vmatprep.subr.bf16.mxu0 %v2227
        %2395 = vmatpush1.bf16.msra.mxu0 %v2226
        %2396 = vmatprep.subr.bf16.mxu0 %v2231
        %2397 = vmatpush1.bf16.msra.mxu0 %v2230
        %2398 = vmatprep.subr.bf16.mxu0 %v2235
        %2399 = vmatpush1.bf16.msra.mxu0 %v2234
        %2400 = vmatprep.subr.bf16.mxu0 %v2239
        %2401 = vmatpush1.bf16.msra.mxu0 %v2238
        %2402 = vmatprep.mubr.bf16.mxu0 %v1792
        %2403 = vmatmul.mubr.bf16.gmra.mrb[0].mxu0 %v1791
        %v2404 = vpop.f32.mrb[0].mxu0
        %v2405 = vadd.f32 0.0, %v2404
        %v2406 = vpop.f32.mrb[0].mxu0
        %v2407 = vadd.f32 0.0, %v2406
        %v2408 = vpop.f32.mrb[0].mxu0
        %v2409 = vpop.f32.mrb[0].mxu0
        %2410 = vdwg.mxu0
        %2411 = vmatprep.subr.bf16.mxu0 %v2243
        %2412 = vmatpush1.bf16.msra.mxu0 %v2242
        %2413 = vmatprep.subr.bf16.mxu0 %v2247
        %2414 = vmatpush1.bf16.msra.mxu0 %v2246
        %2415 = vmatprep.subr.bf16.mxu0 %v2251
        %2416 = vmatpush1.bf16.msra.mxu0 %v2250
        %2417 = vmatprep.subr.bf16.mxu0 %v2255
        %2418 = vmatpush1.bf16.msra.mxu0 %v2254
        %2419 = vmatprep.subr.bf16.mxu0 %v2259
        %2420 = vmatpush1.bf16.msra.mxu0 %v2258
        %2421 = vmatprep.subr.bf16.mxu0 %v2263
        %2422 = vmatpush1.bf16.msra.mxu0 %v2262
        %2423 = vmatprep.subr.bf16.mxu0 %v2267
        %2424 = vmatpush1.bf16.msra.mxu0 %v2266
        %2425 = vmatprep.subr.bf16.mxu0 %v2271
        %2426 = vmatpush1.bf16.msra.mxu0 %v2270
        %2427 = vmatprep.subr.bf16.mxu0 0
        %2428 = vmatpush1.bf16.msra.mxu0 0
        %2429 = vmatprep.subr.bf16.mxu0 0
        %2430 = vmatpush1.bf16.msra.mxu0 0
        %2431 = vmatprep.subr.bf16.mxu0 0
        %2432 = vmatpush1.bf16.msra.mxu0 0
        %2433 = vmatprep.subr.bf16.mxu0 0
        %2434 = vmatpush1.bf16.msra.mxu0 0
        %2435 = vmatprep.subr.bf16.mxu0 0
        %2436 = vmatpush1.bf16.msra.mxu0 0
        %2437 = vmatprep.subr.bf16.mxu0 0
        %2438 = vmatpush1.bf16.msra.mxu0 0
        %2439 = vmatprep.subr.bf16.mxu0 0
        %2440 = vmatpush1.bf16.msra.mxu0 0
        %2441 = vmatprep.subr.bf16.mxu0 0
        %2442 = vmatpush1.bf16.msra.mxu0 0
        %2443 = vmatprep.mubr.bf16.mxu0 0
        %2444 = vmatmul.mubr.bf16.gmra.mrb[0].mxu0 %v1793
        %v2445 = vpop.f32.mrb[0].mxu0
        %v2446 = vadd.f32 %v2405, %v2445
        %v2447 = vpop.f32.mrb[0].mxu0
        %v2448 = vadd.f32 %v2407, %v2447
        %v2449 = vpop.f32.mrb[0].mxu0
        %v2450 = vpop.f32.mrb[0].mxu0
        %2451 = vdwg.mxu0
        %2452 = vmatprep.subr.bf16.mxu0 %v2181
        %2453 = vmatpush1.bf16.msra.mxu0 %v2180
        %2454 = vmatprep.subr.bf16.mxu0 %v2185
        %2455 = vmatpush1.bf16.msra.mxu0 %v2184
        %2456 = vmatprep.subr.bf16.mxu0 %v2189
        %2457 = vmatpush1.bf16.msra.mxu0 %v2188
        %2458 = vmatprep.subr.bf16.mxu0 %v2193
        %2459 = vmatpush1.bf16.msra.mxu0 %v2192
        %2460 = vmatprep.subr.bf16.mxu0 %v2197
        %2461 = vmatpush1.bf16.msra.mxu0 %v2196
        %2462 = vmatprep.subr.bf16.mxu0 %v2201
        %2463 = vmatpush1.bf16.msra.mxu0 %v2200
        %2464 = vmatprep.subr.bf16.mxu0 %v2205
        %2465 = vmatpush1.bf16.msra.mxu0 %v2204
        %2466 = vmatprep.subr.bf16.mxu0 %v2209
        %2467 = vmatpush1.bf16.msra.mxu0 %v2208
        %2468 = vmatprep.subr.bf16.mxu0 %v2213
        %2469 = vmatpush1.bf16.msra.mxu0 %v2212
        %2470 = vmatprep.subr.bf16.mxu0 %v2217
        %2471 = vmatpush1.bf16.msra.mxu0 %v2216
        %2472 = vmatprep.subr.bf16.mxu0 %v2221
        %2473 = vmatpush1.bf16.msra.mxu0 %v2220
        %2474 = vmatprep.subr.bf16.mxu0 %v2225
        %2475 = vmatpush1.bf16.msra.mxu0 %v2224
        %2476 = vmatprep.subr.bf16.mxu0 %v2229
        %2477 = vmatpush1.bf16.msra.mxu0 %v2228
        %2478 = vmatprep.subr.bf16.mxu0 %v2233
        %2479 = vmatpush1.bf16.msra.mxu0 %v2232
        %2480 = vmatprep.subr.bf16.mxu0 %v2237
        %2481 = vmatpush1.bf16.msra.mxu0 %v2236
        %2482 = vmatprep.subr.bf16.mxu0 %v2241
        %2483 = vmatpush1.bf16.msra.mxu0 %v2240
        %2484 = vmatprep.mubr.bf16.mxu0 %v1792
        %2485 = vmatmul.mubr.bf16.gmra.mrb[0].mxu0 %v1791
        %v2486 = vpop.f32.mrb[0].mxu0
        %v2487 = vadd.f32 0.0, %v2486
        %v2488 = vpop.f32.mrb[0].mxu0
        %v2489 = vadd.f32 0.0, %v2488
        %v2490 = vpop.f32.mrb[0].mxu0
        %v2491 = vpop.f32.mrb[0].mxu0
        %2492 = vdwg.mxu0
        %2493 = vmatprep.subr.bf16.mxu0 %v2245
        %2494 = vmatpush1.bf16.msra.mxu0 %v2244
        %2495 = vmatprep.subr.bf16.mxu0 %v2249
        %2496 = vmatpush1.bf16.msra.mxu0 %v2248
        %2497 = vmatprep.subr.bf16.mxu0 %v2253
        %2498 = vmatpush1.bf16.msra.mxu0 %v2252
        %2499 = vmatprep.subr.bf16.mxu0 %v2257
        %2500 = vmatpush1.bf16.msra.mxu0 %v2256
        %2501 = vmatprep.subr.bf16.mxu0 %v2261
        %2502 = vmatpush1.bf16.msra.mxu0 %v2260
        %2503 = vmatprep.subr.bf16.mxu0 %v2265
        %2504 = vmatpush1.bf16.msra.mxu0 %v2264
        %2505 = vmatprep.subr.bf16.mxu0 %v2269
        %2506 = vmatpush1.bf16.msra.mxu0 %v2268
        %2507 = vmatprep.subr.bf16.mxu0 %v2273
        %2508 = vmatpush1.bf16.msra.mxu0 %v2272
        %2509 = vmatprep.subr.bf16.mxu0 0
        %2510 = vmatpush1.bf16.msra.mxu0 0
        %2511 = vmatprep.subr.bf16.mxu0 0
        %2512 = vmatpush1.bf16.msra.mxu0 0
        %2513 = vmatprep.subr.bf16.mxu0 0
        %2514 = vmatpush1.bf16.msra.mxu0 0
        %2515 = vmatprep.subr.bf16.mxu0 0
        %2516 = vmatpush1.bf16.msra.mxu0 0
        %2517 = vmatprep.subr.bf16.mxu0 0
        %2518 = vmatpush1.bf16.msra.mxu0 0
        %2519 = vmatprep.subr.bf16.mxu0 0
        %2520 = vmatpush1.bf16.msra.mxu0 0
        %2521 = vmatprep.subr.bf16.mxu0 0
        %2522 = vmatpush1.bf16.msra.mxu0 0
        %2523 = vmatprep.subr.bf16.mxu0 0
        %2524 = vmatpush1.bf16.msra.mxu0 0
        %2525 = vmatprep.mubr.bf16.mxu0 0
        %2526 = vmatmul.mubr.bf16.gmra.mrb[0].mxu0 %v1793
        %v2527 = vpop.f32.mrb[0].mxu0
        %v2528 = vadd.f32 %v2487, %v2527
        %v2529 = vpop.f32.mrb[0].mxu0
        %v2530 = vadd.f32 %v2489, %v2529
        %v2531 = vpop.f32.mrb[0].mxu0
        %v2532 = vpop.f32.mrb[0].mxu0
        %2533 = vdwg.mxu0
        %v2534 = vld [vmem:[#allocation9 + $0x10] sm:$0xff]
        %v2535 = vld [vmem:[#allocation9 + $0x18] sm:$0xff]
        %v2536 = vld [vmem:[#allocation9 + $0x60] sm:$0xff]
        %v2537 = vld [vmem:[#allocation9 + $0x68] sm:$0xff]
        %v2538 = vld [vmem:[#allocation9 + $0xb0] sm:$0xff]
        %v2539 = vld [vmem:[#allocation9 + $0xb8] sm:$0xff]
        %v2540 = vld [vmem:[#allocation9 + $0x100] sm:$0xff]
        %v2541 = vld [vmem:[#allocation9 + $0x108] sm:$0xff]
        %v2542 = vld [vmem:[#allocation9 + $0x150] sm:$0xff]
        %v2543 = vld [vmem:[#allocation9 + $0x158] sm:$0xff]
        %v2544 = vld [vmem:[#allocation9 + $0x1a0] sm:$0xff]
        %v2545 = vld [vmem:[#allocation9 + $0x1a8] sm:$0xff]
        %v2546 = vld [vmem:[#allocation9 + $0x1f0] sm:$0xff]
        %v2547 = vld [vmem:[#allocation9 + $0x1f8] sm:$0xff]
        %v2548 = vld [vmem:[#allocation9 + $0x240] sm:$0xff]
        %v2549 = vld [vmem:[#allocation9 + $0x248] sm:$0xff]
        %v2550 = vld [vmem:[#allocation9 + $0x290] sm:$0xff]
        %v2551 = vld [vmem:[#allocation9 + $0x298] sm:$0xff]
        %v2552 = vld [vmem:[#allocation9 + $0x2e0] sm:$0xff]
        %v2553 = vld [vmem:[#allocation9 + $0x2e8] sm:$0xff]
        %v2554 = vld [vmem:[#allocation9 + $0x330] sm:$0xff]
        %v2555 = vld [vmem:[#allocation9 + $0x338] sm:$0xff]
        %v2556 = vld [vmem:[#allocation9 + $0x380] sm:$0xff]
        %v2557 = vld [vmem:[#allocation9 + $0x388] sm:$0xff]
        %v2558 = vld [vmem:[#allocation9 + $0x3d0] sm:$0xff]
        %v2559 = vld [vmem:[#allocation9 + $0x3d8] sm:$0xff]
        %v2560 = vld [vmem:[#allocation9 + $0x420] sm:$0xff]
        %v2561 = vld [vmem:[#allocation9 + $0x428] sm:$0xff]
        %v2562 = vld [vmem:[#allocation9 + $0x470] sm:$0xff]
        %v2563 = vld [vmem:[#allocation9 + $0x478] sm:$0xff]
        %v2564 = vld [vmem:[#allocation9 + $0x4c0] sm:$0xff]
        %v2565 = vld [vmem:[#allocation9 + $0x4c8] sm:$0xff]
        %v2566 = vld [vmem:[#allocation9 + $0x510] sm:$0xff]
        %v2567 = vld [vmem:[#allocation9 + $0x518] sm:$0xff]
        %v2568 = vld [vmem:[#allocation9 + $0x560] sm:$0xff]
        %v2569 = vld [vmem:[#allocation9 + $0x568] sm:$0xff]
        %v2570 = vld [vmem:[#allocation9 + $0x5b0] sm:$0xff]
        %v2571 = vld [vmem:[#allocation9 + $0x5b8] sm:$0xff]
        %v2572 = vld [vmem:[#allocation9 + $0x600] sm:$0xff]
        %v2573 = vld [vmem:[#allocation9 + $0x608] sm:$0xff]
        %v2574 = vld [vmem:[#allocation9 + $0x650] sm:$0xff]
        %v2575 = vld [vmem:[#allocation9 + $0x658] sm:$0xff]
        %v2576 = vld [vmem:[#allocation9 + $0x6a0] sm:$0xff]
        %v2577 = vld [vmem:[#allocation9 + $0x6a8] sm:$0xff]
        %v2578 = vld [vmem:[#allocation9 + $0x6f0] sm:$0xff]
        %v2579 = vld [vmem:[#allocation9 + $0x6f8] sm:$0xff]
        %v2580 = vld [vmem:[#allocation9 + $0x740] sm:$0xff]
        %v2581 = vld [vmem:[#allocation9 + $0x748] sm:$0xff]
        %v2582 = vld [vmem:[#allocation9 + $0x790] sm:$0xff]
        %v2583 = vld [vmem:[#allocation9 + $0x798] sm:$0xff]
        %v2584 = vld [vmem:[#allocation9 + $0x7e0] sm:$0xff]
        %v2585 = vld [vmem:[#allocation9 + $0x7e8] sm:$0xff]
        %v2586 = vld [vmem:[#allocation9 + $0x830] sm:$0xff]
        %v2587 = vld [vmem:[#allocation9 + $0x838] sm:$0xff]
        %v2588 = vld [vmem:[#allocation9 + $0x880] sm:$0xff]
        %v2589 = vld [vmem:[#allocation9 + $0x888] sm:$0xff]
        %v2590 = vld [vmem:[#allocation9 + $0x8d0] sm:$0xff]
        %v2591 = vld [vmem:[#allocation9 + $0x8d8] sm:$0xff]
        %v2592 = vld [vmem:[#allocation9 + $0x920] sm:$0xff]
        %v2593 = vld [vmem:[#allocation9 + $0x928] sm:$0xff]
        %v2594 = vld [vmem:[#allocation9 + $0x970] sm:$0xff]
        %v2595 = vld [vmem:[#allocation9 + $0x978] sm:$0xff]
        %v2596 = vld [vmem:[#allocation9 + $0x9c0] sm:$0xff]
        %v2597 = vld [vmem:[#allocation9 + $0x9c8] sm:$0xff]
        %v2598 = vld [vmem:[#allocation9 + $0xa10] sm:$0xff]
        %v2599 = vld [vmem:[#allocation9 + $0xa18] sm:$0xff]
        %v2600 = vld [vmem:[#allocation9 + $0xa60] sm:$0xff]
        %v2601 = vld [vmem:[#allocation9 + $0xa68] sm:$0xff]
        %v2602 = vld [vmem:[#allocation9 + $0xab0] sm:$0xff]
        %v2603 = vld [vmem:[#allocation9 + $0xab8] sm:$0xff]
        %v2604 = vld [vmem:[#allocation9 + $0xb00] sm:$0xff]
        %v2605 = vld [vmem:[#allocation9 + $0xb08] sm:$0xff]
        %v2606 = vld [vmem:[#allocation9 + $0xb50] sm:$0xff]
        %v2607 = vld [vmem:[#allocation9 + $0xb58] sm:$0xff]
        %v2608 = vld [vmem:[#allocation9 + $0xba0] sm:$0xff]
        %v2609 = vld [vmem:[#allocation9 + $0xba8] sm:$0xff]
        %v2610 = vld [vmem:[#allocation9 + $0xbf0] sm:$0xff]
        %v2611 = vld [vmem:[#allocation9 + $0xbf8] sm:$0xff]
        %v2612 = vld [vmem:[#allocation9 + $0xc40] sm:$0xff]
        %v2613 = vld [vmem:[#allocation9 + $0xc48] sm:$0xff]
        %v2614 = vld [vmem:[#allocation9 + $0xc90] sm:$0xff]
        %v2615 = vld [vmem:[#allocation9 + $0xc98] sm:$0xff]
        %v2616 = vld [vmem:[#allocation9 + $0xce0] sm:$0xff]
        %v2617 = vld [vmem:[#allocation9 + $0xce8] sm:$0xff]
        %v2618 = vld [vmem:[#allocation9 + $0xd30] sm:$0xff]
        %v2619 = vld [vmem:[#allocation9 + $0xd38] sm:$0xff]
        %v2620 = vld [vmem:[#allocation9 + $0xd80] sm:$0xff]
        %v2621 = vld [vmem:[#allocation9 + $0xd88] sm:$0xff]
        %v2622 = vld [vmem:[#allocation9 + $0xdd0] sm:$0xff]
        %v2623 = vld [vmem:[#allocation9 + $0xdd8] sm:$0xff]
        %v2624 = vld [vmem:[#allocation9 + $0xe20] sm:$0xff]
        %v2625 = vld [vmem:[#allocation9 + $0xe28] sm:$0xff]
        %v2626 = vld [vmem:[#allocation9 + $0xe70] sm:$0xff]
        %v2627 = vld [vmem:[#allocation9 + $0xe78] sm:$0xff]
        %v2628 = vld [vmem:[#allocation9 + $0xec0] sm:$0xff]
        %v2629 = vld [vmem:[#allocation9 + $0xec8] sm:$0xff]
        %v2726 = vunpack.c.l.b16 %v2534
        %v2727 = vunpack.c.h.b16 %v2534
        %v2728 = vunpack.c.l.b16 %v2535
        %v2729 = vunpack.c.h.b16 %v2535
        %v2730 = vunpack.c.l.b16 %v2536
        %v2731 = vunpack.c.h.b16 %v2536
        %v2732 = vunpack.c.l.b16 %v2537
        %v2733 = vunpack.c.h.b16 %v2537
        %v2734 = vunpack.c.l.b16 %v2538
        %v2735 = vunpack.c.h.b16 %v2538
        %v2736 = vunpack.c.l.b16 %v2539
        %v2737 = vunpack.c.h.b16 %v2539
        %v2738 = vunpack.c.l.b16 %v2540
        %v2739 = vunpack.c.h.b16 %v2540
        %v2740 = vunpack.c.l.b16 %v2541
        %v2741 = vunpack.c.h.b16 %v2541
        %v2742 = vunpack.c.l.b16 %v2542
        %v2743 = vunpack.c.h.b16 %v2542
        %v2744 = vunpack.c.l.b16 %v2543
        %v2745 = vunpack.c.h.b16 %v2543
        %v2746 = vunpack.c.l.b16 %v2544
        %v2747 = vunpack.c.h.b16 %v2544
        %v2748 = vunpack.c.l.b16 %v2545
        %v2749 = vunpack.c.h.b16 %v2545
        %v2750 = vunpack.c.l.b16 %v2546
        %v2751 = vunpack.c.h.b16 %v2546
        %v2752 = vunpack.c.l.b16 %v2547
        %v2753 = vunpack.c.h.b16 %v2547
        %v2754 = vunpack.c.l.b16 %v2548
        %v2755 = vunpack.c.h.b16 %v2548
        %v2756 = vunpack.c.l.b16 %v2549
        %v2757 = vunpack.c.h.b16 %v2549
        %v2758 = vunpack.c.l.b16 %v2550
        %v2759 = vunpack.c.h.b16 %v2550
        %v2760 = vunpack.c.l.b16 %v2551
        %v2761 = vunpack.c.h.b16 %v2551
        %v2762 = vunpack.c.l.b16 %v2552
        %v2763 = vunpack.c.h.b16 %v2552
        %v2764 = vunpack.c.l.b16 %v2553
        %v2765 = vunpack.c.h.b16 %v2553
        %v2766 = vunpack.c.l.b16 %v2554
        %v2767 = vunpack.c.h.b16 %v2554
        %v2768 = vunpack.c.l.b16 %v2555
        %v2769 = vunpack.c.h.b16 %v2555
        %v2770 = vunpack.c.l.b16 %v2556
        %v2771 = vunpack.c.h.b16 %v2556
        %v2772 = vunpack.c.l.b16 %v2557
        %v2773 = vunpack.c.h.b16 %v2557
        %v2774 = vunpack.c.l.b16 %v2558
        %v2775 = vunpack.c.h.b16 %v2558
        %v2776 = vunpack.c.l.b16 %v2559
        %v2777 = vunpack.c.h.b16 %v2559
        %v2778 = vunpack.c.l.b16 %v2560
        %v2779 = vunpack.c.h.b16 %v2560
        %v2780 = vunpack.c.l.b16 %v2561
        %v2781 = vunpack.c.h.b16 %v2561
        %v2782 = vunpack.c.l.b16 %v2562
        %v2783 = vunpack.c.h.b16 %v2562
        %v2784 = vunpack.c.l.b16 %v2563
        %v2785 = vunpack.c.h.b16 %v2563
        %v2786 = vunpack.c.l.b16 %v2564
        %v2787 = vunpack.c.h.b16 %v2564
        %v2788 = vunpack.c.l.b16 %v2565
        %v2789 = vunpack.c.h.b16 %v2565
        %v2790 = vunpack.c.l.b16 %v2566
        %v2791 = vunpack.c.h.b16 %v2566
        %v2792 = vunpack.c.l.b16 %v2567
        %v2793 = vunpack.c.h.b16 %v2567
        %v2794 = vunpack.c.l.b16 %v2568
        %v2795 = vunpack.c.h.b16 %v2568
        %v2796 = vunpack.c.l.b16 %v2569
        %v2797 = vunpack.c.h.b16 %v2569
        %v2798 = vunpack.c.l.b16 %v2570
        %v2799 = vunpack.c.h.b16 %v2570
        %v2800 = vunpack.c.l.b16 %v2571
        %v2801 = vunpack.c.h.b16 %v2571
        %v2802 = vunpack.c.l.b16 %v2572
        %v2803 = vunpack.c.h.b16 %v2572
        %v2804 = vunpack.c.l.b16 %v2573
        %v2805 = vunpack.c.h.b16 %v2573
        %v2806 = vunpack.c.l.b16 %v2574
        %v2807 = vunpack.c.h.b16 %v2574
        %v2808 = vunpack.c.l.b16 %v2575
        %v2809 = vunpack.c.h.b16 %v2575
        %v2810 = vunpack.c.l.b16 %v2576
        %v2811 = vunpack.c.h.b16 %v2576
        %v2812 = vunpack.c.l.b16 %v2577
        %v2813 = vunpack.c.h.b16 %v2577
        %v2814 = vunpack.c.l.b16 %v2578
        %v2815 = vunpack.c.h.b16 %v2578
        %v2816 = vunpack.c.l.b16 %v2579
        %v2817 = vunpack.c.h.b16 %v2579
        %v2818 = vunpack.c.l.b16 %v2580
        %v2819 = vunpack.c.h.b16 %v2580
        %v2820 = vunpack.c.l.b16 %v2581
        %v2821 = vunpack.c.h.b16 %v2581
        %v2822 = vunpack.c.l.b16 %v2582
        %v2823 = vunpack.c.h.b16 %v2582
        %v2824 = vunpack.c.l.b16 %v2583
        %v2825 = vunpack.c.h.b16 %v2583
        %v2826 = vunpack.c.l.b16 %v2584
        %v2827 = vunpack.c.h.b16 %v2584
        %v2828 = vunpack.c.l.b16 %v2585
        %v2829 = vunpack.c.h.b16 %v2585
        %v2830 = vunpack.c.l.b16 %v2586
        %v2831 = vunpack.c.h.b16 %v2586
        %v2832 = vunpack.c.l.b16 %v2587
        %v2833 = vunpack.c.h.b16 %v2587
        %v2834 = vunpack.c.l.b16 %v2588
        %v2835 = vunpack.c.h.b16 %v2588
        %v2836 = vunpack.c.l.b16 %v2589
        %v2837 = vunpack.c.h.b16 %v2589
        %v2838 = vunpack.c.l.b16 %v2590
        %v2839 = vunpack.c.h.b16 %v2590
        %v2840 = vunpack.c.l.b16 %v2591
        %v2841 = vunpack.c.h.b16 %v2591
        %v2842 = vunpack.c.l.b16 %v2592
        %v2843 = vunpack.c.h.b16 %v2592
        %v2844 = vunpack.c.l.b16 %v2593
        %v2845 = vunpack.c.h.b16 %v2593
        %v2846 = vunpack.c.l.b16 %v2594
        %v2847 = vunpack.c.h.b16 %v2594
        %v2848 = vunpack.c.l.b16 %v2595
        %v2849 = vunpack.c.h.b16 %v2595
        %v2850 = vunpack.c.l.b16 %v2596
        %v2851 = vunpack.c.h.b16 %v2596
        %v2852 = vunpack.c.l.b16 %v2597
        %v2853 = vunpack.c.h.b16 %v2597
        %v2854 = vunpack.c.l.b16 %v2598
        %v2855 = vunpack.c.h.b16 %v2598
        %v2856 = vunpack.c.l.b16 %v2599
        %v2857 = vunpack.c.h.b16 %v2599
        %v2858 = vunpack.c.l.b16 %v2600
        %v2859 = vunpack.c.h.b16 %v2600
        %v2860 = vunpack.c.l.b16 %v2601
        %v2861 = vunpack.c.h.b16 %v2601
        %v2862 = vunpack.c.l.b16 %v2602
        %v2863 = vunpack.c.h.b16 %v2602
        %v2864 = vunpack.c.l.b16 %v2603
        %v2865 = vunpack.c.h.b16 %v2603
        %v2866 = vunpack.c.l.b16 %v2604
        %v2867 = vunpack.c.h.b16 %v2604
        %v2868 = vunpack.c.l.b16 %v2605
        %v2869 = vunpack.c.h.b16 %v2605
        %v2870 = vunpack.c.l.b16 %v2606
        %v2871 = vunpack.c.h.b16 %v2606
        %v2872 = vunpack.c.l.b16 %v2607
        %v2873 = vunpack.c.h.b16 %v2607
        %v2874 = vunpack.c.l.b16 %v2608
        %v2875 = vunpack.c.h.b16 %v2608
        %v2876 = vunpack.c.l.b16 %v2609
        %v2877 = vunpack.c.h.b16 %v2609
        %v2878 = vunpack.c.l.b16 %v2610
        %v2879 = vunpack.c.h.b16 %v2610
        %v2880 = vunpack.c.l.b16 %v2611
        %v2881 = vunpack.c.h.b16 %v2611
        %v2882 = vunpack.c.l.b16 %v2612
        %v2883 = vunpack.c.h.b16 %v2612
        %v2884 = vunpack.c.l.b16 %v2613
        %v2885 = vunpack.c.h.b16 %v2613
        %v2886 = vunpack.c.l.b16 %v2614
        %v2887 = vunpack.c.h.b16 %v2614
        %v2888 = vunpack.c.l.b16 %v2615
        %v2889 = vunpack.c.h.b16 %v2615
        %v2890 = vunpack.c.l.b16 %v2616
        %v2891 = vunpack.c.h.b16 %v2616
        %v2892 = vunpack.c.l.b16 %v2617
        %v2893 = vunpack.c.h.b16 %v2617
        %v2894 = vunpack.c.l.b16 %v2618
        %v2895 = vunpack.c.h.b16 %v2618
        %v2896 = vunpack.c.l.b16 %v2619
        %v2897 = vunpack.c.h.b16 %v2619
        %v2898 = vunpack.c.l.b16 %v2620
        %v2899 = vunpack.c.h.b16 %v2620
        %v2900 = vunpack.c.l.b16 %v2621
        %v2901 = vunpack.c.h.b16 %v2621
        %v2902 = vunpack.c.l.b16 %v2622
        %v2903 = vunpack.c.h.b16 %v2622
        %v2904 = vunpack.c.l.b16 %v2623
        %v2905 = vunpack.c.h.b16 %v2623
        %v2906 = vunpack.c.l.b16 %v2624
        %v2907 = vunpack.c.h.b16 %v2624
        %v2908 = vunpack.c.l.b16 %v2625
        %v2909 = vunpack.c.h.b16 %v2625
        %v2910 = vunpack.c.l.b16 %v2626
        %v2911 = vunpack.c.h.b16 %v2626
        %v2912 = vunpack.c.l.b16 %v2627
        %v2913 = vunpack.c.h.b16 %v2627
        %v2914 = vunpack.c.l.b16 %v2628
        %v2915 = vunpack.c.h.b16 %v2628
        %v2916 = vunpack.c.l.b16 %v2629
        %v2917 = vunpack.c.h.b16 %v2629
        %v2918 = vpack.c.b16 %v2730, %v2726
        %v2919 = vpack.c.b16 %v2731, %v2727
        %v2920 = vpack.c.b16 %v2732, %v2728
        %v2921 = vpack.c.b16 %v2733, %v2729
        %v2922 = vpack.c.b16 %v2738, %v2734
        %v2923 = vpack.c.b16 %v2739, %v2735
        %v2924 = vpack.c.b16 %v2740, %v2736
        %v2925 = vpack.c.b16 %v2741, %v2737
        %v2926 = vpack.c.b16 %v2746, %v2742
        %v2927 = vpack.c.b16 %v2747, %v2743
        %v2928 = vpack.c.b16 %v2748, %v2744
        %v2929 = vpack.c.b16 %v2749, %v2745
        %v2930 = vpack.c.b16 %v2754, %v2750
        %v2931 = vpack.c.b16 %v2755, %v2751
        %v2932 = vpack.c.b16 %v2756, %v2752
        %v2933 = vpack.c.b16 %v2757, %v2753
        %v2934 = vpack.c.b16 %v2762, %v2758
        %v2935 = vpack.c.b16 %v2763, %v2759
        %v2936 = vpack.c.b16 %v2764, %v2760
        %v2937 = vpack.c.b16 %v2765, %v2761
        %v2938 = vpack.c.b16 %v2770, %v2766
        %v2939 = vpack.c.b16 %v2771, %v2767
        %v2940 = vpack.c.b16 %v2772, %v2768
        %v2941 = vpack.c.b16 %v2773, %v2769
        %v2942 = vpack.c.b16 %v2778, %v2774
        %v2943 = vpack.c.b16 %v2779, %v2775
        %v2944 = vpack.c.b16 %v2780, %v2776
        %v2945 = vpack.c.b16 %v2781, %v2777
        %v2946 = vpack.c.b16 %v2786, %v2782
        %v2947 = vpack.c.b16 %v2787, %v2783
        %v2948 = vpack.c.b16 %v2788, %v2784
        %v2949 = vpack.c.b16 %v2789, %v2785
        %v2950 = vpack.c.b16 %v2794, %v2790
        %v2951 = vpack.c.b16 %v2795, %v2791
        %v2952 = vpack.c.b16 %v2796, %v2792
        %v2953 = vpack.c.b16 %v2797, %v2793
        %v2954 = vpack.c.b16 %v2802, %v2798
        %v2955 = vpack.c.b16 %v2803, %v2799
        %v2956 = vpack.c.b16 %v2804, %v2800
        %v2957 = vpack.c.b16 %v2805, %v2801
        %v2958 = vpack.c.b16 %v2810, %v2806
        %v2959 = vpack.c.b16 %v2811, %v2807
        %v2960 = vpack.c.b16 %v2812, %v2808
        %v2961 = vpack.c.b16 %v2813, %v2809
        %v2962 = vpack.c.b16 %v2818, %v2814
        %v2963 = vpack.c.b16 %v2819, %v2815
        %v2964 = vpack.c.b16 %v2820, %v2816
        %v2965 = vpack.c.b16 %v2821, %v2817
        %v2966 = vpack.c.b16 %v2826, %v2822
        %v2967 = vpack.c.b16 %v2827, %v2823
        %v2968 = vpack.c.b16 %v2828, %v2824
        %v2969 = vpack.c.b16 %v2829, %v2825
        %v2970 = vpack.c.b16 %v2834, %v2830
        %v2971 = vpack.c.b16 %v2835, %v2831
        %v2972 = vpack.c.b16 %v2836, %v2832
        %v2973 = vpack.c.b16 %v2837, %v2833
        %v2974 = vpack.c.b16 %v2842, %v2838
        %v2975 = vpack.c.b16 %v2843, %v2839
        %v2976 = vpack.c.b16 %v2844, %v2840
        %v2977 = vpack.c.b16 %v2845, %v2841
        %v2978 = vpack.c.b16 %v2850, %v2846
        %v2979 = vpack.c.b16 %v2851, %v2847
        %v2980 = vpack.c.b16 %v2852, %v2848
        %v2981 = vpack.c.b16 %v2853, %v2849
        %v2982 = vpack.c.b16 %v2858, %v2854
        %v2983 = vpack.c.b16 %v2859, %v2855
        %v2984 = vpack.c.b16 %v2860, %v2856
        %v2985 = vpack.c.b16 %v2861, %v2857
        %v2986 = vpack.c.b16 %v2866, %v2862
        %v2987 = vpack.c.b16 %v2867, %v2863
        %v2988 = vpack.c.b16 %v2868, %v2864
        %v2989 = vpack.c.b16 %v2869, %v2865
        %v2990 = vpack.c.b16 %v2874, %v2870
        %v2991 = vpack.c.b16 %v2875, %v2871
        %v2992 = vpack.c.b16 %v2876, %v2872
        %v2993 = vpack.c.b16 %v2877, %v2873
        %v2994 = vpack.c.b16 %v2882, %v2878
        %v2995 = vpack.c.b16 %v2883, %v2879
        %v2996 = vpack.c.b16 %v2884, %v2880
        %v2997 = vpack.c.b16 %v2885, %v2881
        %v2998 = vpack.c.b16 %v2890, %v2886
        %v2999 = vpack.c.b16 %v2891, %v2887
        %v3000 = vpack.c.b16 %v2892, %v2888
        %v3001 = vpack.c.b16 %v2893, %v2889
        %v3002 = vpack.c.b16 %v2898, %v2894
        %v3003 = vpack.c.b16 %v2899, %v2895
        %v3004 = vpack.c.b16 %v2900, %v2896
        %v3005 = vpack.c.b16 %v2901, %v2897
        %v3006 = vpack.c.b16 %v2906, %v2902
        %v3007 = vpack.c.b16 %v2907, %v2903
        %v3008 = vpack.c.b16 %v2908, %v2904
        %v3009 = vpack.c.b16 %v2909, %v2905
        %v3010 = vpack.c.b16 %v2914, %v2910
        %v3011 = vpack.c.b16 %v2915, %v2911
        %v3012 = vpack.c.b16 %v2916, %v2912
        %v3013 = vpack.c.b16 %v2917, %v2913
        %3110 = vmatprep.subr.bf16.mxu0 %v2919
        %3111 = vmatpush1.bf16.msra.mxu0 %v2918
        %3112 = vmatprep.subr.bf16.mxu0 %v2923
        %3113 = vmatpush1.bf16.msra.mxu0 %v2922
        %3114 = vmatprep.subr.bf16.mxu0 %v2927
        %3115 = vmatpush1.bf16.msra.mxu0 %v2926
        %3116 = vmatprep.subr.bf16.mxu0 %v2931
        %3117 = vmatpush1.bf16.msra.mxu0 %v2930
        %3118 = vmatprep.subr.bf16.mxu0 %v2935
        %3119 = vmatpush1.bf16.msra.mxu0 %v2934
        %3120 = vmatprep.subr.bf16.mxu0 %v2939
        %3121 = vmatpush1.bf16.msra.mxu0 %v2938
        %3122 = vmatprep.subr.bf16.mxu0 %v2943
        %3123 = vmatpush1.bf16.msra.mxu0 %v2942
        %3124 = vmatprep.subr.bf16.mxu0 %v2947
        %3125 = vmatpush1.bf16.msra.mxu0 %v2946
        %3126 = vmatprep.subr.bf16.mxu0 %v2951
        %3127 = vmatpush1.bf16.msra.mxu0 %v2950
        %3128 = vmatprep.subr.bf16.mxu0 %v2955
        %3129 = vmatpush1.bf16.msra.mxu0 %v2954
        %3130 = vmatprep.subr.bf16.mxu0 %v2959
        %3131 = vmatpush1.bf16.msra.mxu0 %v2958
        %3132 = vmatprep.subr.bf16.mxu0 %v2963
        %3133 = vmatpush1.bf16.msra.mxu0 %v2962
        %3134 = vmatprep.subr.bf16.mxu0 %v2967
        %3135 = vmatpush1.bf16.msra.mxu0 %v2966
        %3136 = vmatprep.subr.bf16.mxu0 %v2971
        %3137 = vmatpush1.bf16.msra.mxu0 %v2970
        %3138 = vmatprep.subr.bf16.mxu0 %v2975
        %3139 = vmatpush1.bf16.msra.mxu0 %v2974
        %3140 = vmatprep.subr.bf16.mxu0 %v2979
        %3141 = vmatpush1.bf16.msra.mxu0 %v2978
        %3142 = vmatprep.mubr.bf16.mxu0 %v1792
        %3143 = vmatmul.mubr.bf16.gmra.mrb[0].mxu0 %v1791
        %v3144 = vpop.f32.mrb[0].mxu0
        %v3145 = vadd.f32 0.0, %v3144
        %v3146 = vpop.f32.mrb[0].mxu0
        %v3147 = vadd.f32 0.0, %v3146
        %v3148 = vpop.f32.mrb[0].mxu0
        %v3149 = vadd.f32 0.0, %v3148
        %v3150 = vpop.f32.mrb[0].mxu0
        %v3151 = vadd.f32 0.0, %v3150
        %3152 = vdwg.mxu0
        %3153 = vmatprep.subr.bf16.mxu0 %v2983
        %3154 = vmatpush1.bf16.msra.mxu0 %v2982
        %3155 = vmatprep.subr.bf16.mxu0 %v2987
        %3156 = vmatpush1.bf16.msra.mxu0 %v2986
        %3157 = vmatprep.subr.bf16.mxu0 %v2991
        %3158 = vmatpush1.bf16.msra.mxu0 %v2990
        %3159 = vmatprep.subr.bf16.mxu0 %v2995
        %3160 = vmatpush1.bf16.msra.mxu0 %v2994
        %3161 = vmatprep.subr.bf16.mxu0 %v2999
        %3162 = vmatpush1.bf16.msra.mxu0 %v2998
        %3163 = vmatprep.subr.bf16.mxu0 %v3003
        %3164 = vmatpush1.bf16.msra.mxu0 %v3002
        %3165 = vmatprep.subr.bf16.mxu0 %v3007
        %3166 = vmatpush1.bf16.msra.mxu0 %v3006
        %3167 = vmatprep.subr.bf16.mxu0 %v3011
        %3168 = vmatpush1.bf16.msra.mxu0 %v3010
        %3169 = vmatprep.subr.bf16.mxu0 0
        %3170 = vmatpush1.bf16.msra.mxu0 0
        %3171 = vmatprep.subr.bf16.mxu0 0
        %3172 = vmatpush1.bf16.msra.mxu0 0
        %3173 = vmatprep.subr.bf16.mxu0 0
        %3174 = vmatpush1.bf16.msra.mxu0 0
        %3175 = vmatprep.subr.bf16.mxu0 0
        %3176 = vmatpush1.bf16.msra.mxu0 0
        %3177 = vmatprep.subr.bf16.mxu0 0
        %3178 = vmatpush1.bf16.msra.mxu0 0
        %3179 = vmatprep.subr.bf16.mxu0 0
        %3180 = vmatpush1.bf16.msra.mxu0 0
        %3181 = vmatprep.subr.bf16.mxu0 0
        %3182 = vmatpush1.bf16.msra.mxu0 0
        %3183 = vmatprep.subr.bf16.mxu0 0
        %3184 = vmatpush1.bf16.msra.mxu0 0
        %3185 = vmatprep.mubr.bf16.mxu0 0
        %3186 = vmatmul.mubr.bf16.gmra.mrb[0].mxu0 %v1793
        %v3187 = vpop.f32.mrb[0].mxu0
        %v3188 = vadd.f32 %v3145, %v3187
        %v3189 = vpop.f32.mrb[0].mxu0
        %v3190 = vadd.f32 %v3147, %v3189
        %v3191 = vpop.f32.mrb[0].mxu0
        %v3192 = vadd.f32 %v3149, %v3191
        %v3193 = vpop.f32.mrb[0].mxu0
        %v3194 = vadd.f32 %v3151, %v3193
        %3195 = vdwg.mxu0
        %3196 = vmatprep.subr.bf16.mxu0 %v2921
        %3197 = vmatpush1.bf16.msra.mxu0 %v2920
        %3198 = vmatprep.subr.bf16.mxu0 %v2925
        %3199 = vmatpush1.bf16.msra.mxu0 %v2924
        %3200 = vmatprep.subr.bf16.mxu0 %v2929
        %3201 = vmatpush1.bf16.msra.mxu0 %v2928
        %3202 = vmatprep.subr.bf16.mxu0 %v2933
        %3203 = vmatpush1.bf16.msra.mxu0 %v2932
        %3204 = vmatprep.subr.bf16.mxu0 %v2937
        %3205 = vmatpush1.bf16.msra.mxu0 %v2936
        %3206 = vmatprep.subr.bf16.mxu0 %v2941
        %3207 = vmatpush1.bf16.msra.mxu0 %v2940
        %3208 = vmatprep.subr.bf16.mxu0 %v2945
        %3209 = vmatpush1.bf16.msra.mxu0 %v2944
        %3210 = vmatprep.subr.bf16.mxu0 %v2949
        %3211 = vmatpush1.bf16.msra.mxu0 %v2948
        %3212 = vmatprep.subr.bf16.mxu0 %v2953
        %3213 = vmatpush1.bf16.msra.mxu0 %v2952
        %3214 = vmatprep.subr.bf16.mxu0 %v2957
        %3215 = vmatpush1.bf16.msra.mxu0 %v2956
        %3216 = vmatprep.subr.bf16.mxu0 %v2961
        %3217 = vmatpush1.bf16.msra.mxu0 %v2960
        %3218 = vmatprep.subr.bf16.mxu0 %v2965
        %3219 = vmatpush1.bf16.msra.mxu0 %v2964
        %3220 = vmatprep.subr.bf16.mxu0 %v2969
        %3221 = vmatpush1.bf16.msra.mxu0 %v2968
        %3222 = vmatprep.subr.bf16.mxu0 %v2973
        %3223 = vmatpush1.bf16.msra.mxu0 %v2972
        %3224 = vmatprep.subr.bf16.mxu0 %v2977
        %3225 = vmatpush1.bf16.msra.mxu0 %v2976
        %3226 = vmatprep.subr.bf16.mxu0 %v2981
        %3227 = vmatpush1.bf16.msra.mxu0 %v2980
        %3228 = vmatprep.mubr.bf16.mxu0 %v1792
        %3229 = vmatmul.mubr.bf16.gmra.mrb[0].mxu0 %v1791
        %v3230 = vpop.f32.mrb[0].mxu0
        %v3231 = vadd.f32 0.0, %v3230
        %v3232 = vpop.f32.mrb[0].mxu0
        %v3233 = vadd.f32 0.0, %v3232
        %v3234 = vpop.f32.mrb[0].mxu0
        %v3235 = vadd.f32 0.0, %v3234
        %v3236 = vpop.f32.mrb[0].mxu0
        %v3237 = vadd.f32 0.0, %v3236
        %3238 = vdwg.mxu0
        %3239 = vmatprep.subr.bf16.mxu0 %v2985
        %3240 = vmatpush1.bf16.msra.mxu0 %v2984
        %3241 = vmatprep.subr.bf16.mxu0 %v2989
        %3242 = vmatpush1.bf16.msra.mxu0 %v2988
        %3243 = vmatprep.subr.bf16.mxu0 %v2993
        %3244 = vmatpush1.bf16.msra.mxu0 %v2992
        %3245 = vmatprep.subr.bf16.mxu0 %v2997
        %3246 = vmatpush1.bf16.msra.mxu0 %v2996
        %3247 = vmatprep.subr.bf16.mxu0 %v3001
        %3248 = vmatpush1.bf16.msra.mxu0 %v3000
        %3249 = vmatprep.subr.bf16.mxu0 %v3005
        %3250 = vmatpush1.bf16.msra.mxu0 %v3004
        %3251 = vmatprep.subr.bf16.mxu0 %v3009
        %3252 = vmatpush1.bf16.msra.mxu0 %v3008
        %3253 = vmatprep.subr.bf16.mxu0 %v3013
        %3254 = vmatpush1.bf16.msra.mxu0 %v3012
        %3255 = vmatprep.subr.bf16.mxu0 0
        %3256 = vmatpush1.bf16.msra.mxu0 0
        %3257 = vmatprep.subr.bf16.mxu0 0
        %3258 = vmatpush1.bf16.msra.mxu0 0
        %3259 = vmatprep.subr.bf16.mxu0 0
        %3260 = vmatpush1.bf16.msra.mxu0 0
        %3261 = vmatprep.subr.bf16.mxu0 0
        %3262 = vmatpush1.bf16.msra.mxu0 0
        %3263 = vmatprep.subr.bf16.mxu0 0
        %3264 = vmatpush1.bf16.msra.mxu0 0
        %3265 = vmatprep.subr.bf16.mxu0 0
        %3266 = vmatpush1.bf16.msra.mxu0 0
        %3267 = vmatprep.subr.bf16.mxu0 0
        %3268 = vmatpush1.bf16.msra.mxu0 0
        %3269 = vmatprep.subr.bf16.mxu0 0
        %3270 = vmatpush1.bf16.msra.mxu0 0
        %3271 = vmatprep.mubr.bf16.mxu0 0
        %3272 = vmatmul.mubr.bf16.gmra.mrb[0].mxu0 %v1793
        %v3273 = vpop.f32.mrb[0].mxu0
        %v3274 = vadd.f32 %v3231, %v3273
        %v3275 = vpop.f32.mrb[0].mxu0
        %v3276 = vadd.f32 %v3233, %v3275
        %v3277 = vpop.f32.mrb[0].mxu0
        %v3278 = vadd.f32 %v3235, %v3277
        %v3279 = vpop.f32.mrb[0].mxu0
        %v3280 = vadd.f32 %v3237, %v3279
        %3281 = vdwg.mxu0
        %v3290 = vrot.slane %v3188, 1
        %v3291 = vrot.slane %v3192, 1
        %v3292 = vsel %vm719, %v3290, %v3291
        %v3293 = vrot.slane %v3190, 1
        %v3294 = vrot.slane %v3194, 1
        %v3295 = vsel %vm719, %v3293, %v3294
        %v3296 = vrot.slane %v3274, 1
        %v3297 = vrot.slane %v3278, 1
        %v3298 = vsel %vm719, %v3296, %v3297
        %v3299 = vrot.slane %v3276, 1
        %v3300 = vrot.slane %v3280, 1
        %v3301 = vsel %vm719, %v3299, %v3300
        %v3306 = vadd.f32 %v2446, %v3292
        %v3307 = vadd.f32 %v2448, %v3295
        %v3308 = vadd.f32 %v2528, %v3298
        %v3309 = vadd.f32 %v2530, %v3301
        %v3310 = vld [vmem:[#allocation9 + $0x20] sm:$0xff]
        %v3311 = vld [vmem:[#allocation9 + $0x28] sm:$0xff]
        %v3312 = vld [vmem:[#allocation9 + $0x70] sm:$0xff]
        %v3313 = vld [vmem:[#allocation9 + $0x78] sm:$0xff]
        %v3314 = vld [vmem:[#allocation9 + $0xc0] sm:$0xff]
        %v3315 = vld [vmem:[#allocation9 + $0xc8] sm:$0xff]
        %v3316 = vld [vmem:[#allocation9 + $0x110] sm:$0xff]
        %v3317 = vld [vmem:[#allocation9 + $0x118] sm:$0xff]
        %v3318 = vld [vmem:[#allocation9 + $0x160] sm:$0xff]
        %v3319 = vld [vmem:[#allocation9 + $0x168] sm:$0xff]
        %v3320 = vld [vmem:[#allocation9 + $0x1b0] sm:$0xff]
        %v3321 = vld [vmem:[#allocation9 + $0x1b8] sm:$0xff]
        %v3322 = vld [vmem:[#allocation9 + $0x200] sm:$0xff]
        %v3323 = vld [vmem:[#allocation9 + $0x208] sm:$0xff]
        %v3324 = vld [vmem:[#allocation9 + $0x250] sm:$0xff]
        %v3325 = vld [vmem:[#allocation9 + $0x258] sm:$0xff]
        %v3326 = vld [vmem:[#allocation9 + $0x2a0] sm:$0xff]
        %v3327 = vld [vmem:[#allocation9 + $0x2a8] sm:$0xff]
        %v3328 = vld [vmem:[#allocation9 + $0x2f0] sm:$0xff]
        %v3329 = vld [vmem:[#allocation9 + $0x2f8] sm:$0xff]
        %v3330 = vld [vmem:[#allocation9 + $0x340] sm:$0xff]
        %v3331 = vld [vmem:[#allocation9 + $0x348] sm:$0xff]
        %v3332 = vld [vmem:[#allocation9 + $0x390] sm:$0xff]
        %v3333 = vld [vmem:[#allocation9 + $0x398] sm:$0xff]
        %v3334 = vld [vmem:[#allocation9 + $0x3e0] sm:$0xff]
        %v3335 = vld [vmem:[#allocation9 + $0x3e8] sm:$0xff]
        %v3336 = vld [vmem:[#allocation9 + $0x430] sm:$0xff]
        %v3337 = vld [vmem:[#allocation9 + $0x438] sm:$0xff]
        %v3338 = vld [vmem:[#allocation9 + $0x480] sm:$0xff]
        %v3339 = vld [vmem:[#allocation9 + $0x488] sm:$0xff]
        %v3340 = vld [vmem:[#allocation9 + $0x4d0] sm:$0xff]
        %v3341 = vld [vmem:[#allocation9 + $0x4d8] sm:$0xff]
        %v3342 = vld [vmem:[#allocation9 + $0x520] sm:$0xff]
        %v3343 = vld [vmem:[#allocation9 + $0x528] sm:$0xff]
        %v3344 = vld [vmem:[#allocation9 + $0x570] sm:$0xff]
        %v3345 = vld [vmem:[#allocation9 + $0x578] sm:$0xff]
        %v3346 = vld [vmem:[#allocation9 + $0x5c0] sm:$0xff]
        %v3347 = vld [vmem:[#allocation9 + $0x5c8] sm:$0xff]
        %v3348 = vld [vmem:[#allocation9 + $0x610] sm:$0xff]
        %v3349 = vld [vmem:[#allocation9 + $0x618] sm:$0xff]
        %v3350 = vld [vmem:[#allocation9 + $0x660] sm:$0xff]
        %v3351 = vld [vmem:[#allocation9 + $0x668] sm:$0xff]
        %v3352 = vld [vmem:[#allocation9 + $0x6b0] sm:$0xff]
        %v3353 = vld [vmem:[#allocation9 + $0x6b8] sm:$0xff]
        %v3354 = vld [vmem:[#allocation9 + $0x700] sm:$0xff]
        %v3355 = vld [vmem:[#allocation9 + $0x708] sm:$0xff]
        %v3356 = vld [vmem:[#allocation9 + $0x750] sm:$0xff]
        %v3357 = vld [vmem:[#allocation9 + $0x758] sm:$0xff]
        %v3358 = vld [vmem:[#allocation9 + $0x7a0] sm:$0xff]
        %v3359 = vld [vmem:[#allocation9 + $0x7a8] sm:$0xff]
        %v3360 = vld [vmem:[#allocation9 + $0x7f0] sm:$0xff]
        %v3361 = vld [vmem:[#allocation9 + $0x7f8] sm:$0xff]
        %v3362 = vld [vmem:[#allocation9 + $0x840] sm:$0xff]
        %v3363 = vld [vmem:[#allocation9 + $0x848] sm:$0xff]
        %v3364 = vld [vmem:[#allocation9 + $0x890] sm:$0xff]
        %v3365 = vld [vmem:[#allocation9 + $0x898] sm:$0xff]
        %v3366 = vld [vmem:[#allocation9 + $0x8e0] sm:$0xff]
        %v3367 = vld [vmem:[#allocation9 + $0x8e8] sm:$0xff]
        %v3368 = vld [vmem:[#allocation9 + $0x930] sm:$0xff]
        %v3369 = vld [vmem:[#allocation9 + $0x938] sm:$0xff]
        %v3370 = vld [vmem:[#allocation9 + $0x980] sm:$0xff]
        %v3371 = vld [vmem:[#allocation9 + $0x988] sm:$0xff]
        %v3372 = vld [vmem:[#allocation9 + $0x9d0] sm:$0xff]
        %v3373 = vld [vmem:[#allocation9 + $0x9d8] sm:$0xff]
        %v3374 = vld [vmem:[#allocation9 + $0xa20] sm:$0xff]
        %v3375 = vld [vmem:[#allocation9 + $0xa28] sm:$0xff]
        %v3376 = vld [vmem:[#allocation9 + $0xa70] sm:$0xff]
        %v3377 = vld [vmem:[#allocation9 + $0xa78] sm:$0xff]
        %v3378 = vld [vmem:[#allocation9 + $0xac0] sm:$0xff]
        %v3379 = vld [vmem:[#allocation9 + $0xac8] sm:$0xff]
        %v3380 = vld [vmem:[#allocation9 + $0xb10] sm:$0xff]
        %v3381 = vld [vmem:[#allocation9 + $0xb18] sm:$0xff]
        %v3382 = vld [vmem:[#allocation9 + $0xb60] sm:$0xff]
        %v3383 = vld [vmem:[#allocation9 + $0xb68] sm:$0xff]
        %v3384 = vld [vmem:[#allocation9 + $0xbb0] sm:$0xff]
        %v3385 = vld [vmem:[#allocation9 + $0xbb8] sm:$0xff]
        %v3386 = vld [vmem:[#allocation9 + $0xc00] sm:$0xff]
        %v3387 = vld [vmem:[#allocation9 + $0xc08] sm:$0xff]
        %v3388 = vld [vmem:[#allocation9 + $0xc50] sm:$0xff]
        %v3389 = vld [vmem:[#allocation9 + $0xc58] sm:$0xff]
        %v3390 = vld [vmem:[#allocation9 + $0xca0] sm:$0xff]
        %v3391 = vld [vmem:[#allocation9 + $0xca8] sm:$0xff]
        %v3392 = vld [vmem:[#allocation9 + $0xcf0] sm:$0xff]
        %v3393 = vld [vmem:[#allocation9 + $0xcf8] sm:$0xff]
        %v3394 = vld [vmem:[#allocation9 + $0xd40] sm:$0xff]
        %v3395 = vld [vmem:[#allocation9 + $0xd48] sm:$0xff]
        %v3396 = vld [vmem:[#allocation9 + $0xd90] sm:$0xff]
        %v3397 = vld [vmem:[#allocation9 + $0xd98] sm:$0xff]
        %v3398 = vld [vmem:[#allocation9 + $0xde0] sm:$0xff]
        %v3399 = vld [vmem:[#allocation9 + $0xde8] sm:$0xff]
        %v3400 = vld [vmem:[#allocation9 + $0xe30] sm:$0xff]
        %v3401 = vld [vmem:[#allocation9 + $0xe38] sm:$0xff]
        %v3402 = vld [vmem:[#allocation9 + $0xe80] sm:$0xff]
        %v3403 = vld [vmem:[#allocation9 + $0xe88] sm:$0xff]
        %v3404 = vld [vmem:[#allocation9 + $0xed0] sm:$0xff]
        %v3405 = vld [vmem:[#allocation9 + $0xed8] sm:$0xff]
        %v3502 = vunpack.c.l.b16 %v3310
        %v3503 = vunpack.c.h.b16 %v3310
        %v3504 = vunpack.c.l.b16 %v3311
        %v3505 = vunpack.c.h.b16 %v3311
        %v3506 = vunpack.c.l.b16 %v3312
        %v3507 = vunpack.c.h.b16 %v3312
        %v3508 = vunpack.c.l.b16 %v3313
        %v3509 = vunpack.c.h.b16 %v3313
        %v3510 = vunpack.c.l.b16 %v3314
        %v3511 = vunpack.c.h.b16 %v3314
        %v3512 = vunpack.c.l.b16 %v3315
        %v3513 = vunpack.c.h.b16 %v3315
        %v3514 = vunpack.c.l.b16 %v3316
        %v3515 = vunpack.c.h.b16 %v3316
        %v3516 = vunpack.c.l.b16 %v3317
        %v3517 = vunpack.c.h.b16 %v3317
        %v3518 = vunpack.c.l.b16 %v3318
        %v3519 = vunpack.c.h.b16 %v3318
        %v3520 = vunpack.c.l.b16 %v3319
        %v3521 = vunpack.c.h.b16 %v3319
        %v3522 = vunpack.c.l.b16 %v3320
        %v3523 = vunpack.c.h.b16 %v3320
        %v3524 = vunpack.c.l.b16 %v3321
        %v3525 = vunpack.c.h.b16 %v3321
        %v3526 = vunpack.c.l.b16 %v3322
        %v3527 = vunpack.c.h.b16 %v3322
        %v3528 = vunpack.c.l.b16 %v3323
        %v3529 = vunpack.c.h.b16 %v3323
        %v3530 = vunpack.c.l.b16 %v3324
        %v3531 = vunpack.c.h.b16 %v3324
        %v3532 = vunpack.c.l.b16 %v3325
        %v3533 = vunpack.c.h.b16 %v3325
        %v3534 = vunpack.c.l.b16 %v3326
        %v3535 = vunpack.c.h.b16 %v3326
        %v3536 = vunpack.c.l.b16 %v3327
        %v3537 = vunpack.c.h.b16 %v3327
        %v3538 = vunpack.c.l.b16 %v3328
        %v3539 = vunpack.c.h.b16 %v3328
        %v3540 = vunpack.c.l.b16 %v3329
        %v3541 = vunpack.c.h.b16 %v3329
        %v3542 = vunpack.c.l.b16 %v3330
        %v3543 = vunpack.c.h.b16 %v3330
        %v3544 = vunpack.c.l.b16 %v3331
        %v3545 = vunpack.c.h.b16 %v3331
        %v3546 = vunpack.c.l.b16 %v3332
        %v3547 = vunpack.c.h.b16 %v3332
        %v3548 = vunpack.c.l.b16 %v3333
        %v3549 = vunpack.c.h.b16 %v3333
        %v3550 = vunpack.c.l.b16 %v3334
        %v3551 = vunpack.c.h.b16 %v3334
        %v3552 = vunpack.c.l.b16 %v3335
        %v3553 = vunpack.c.h.b16 %v3335
        %v3554 = vunpack.c.l.b16 %v3336
        %v3555 = vunpack.c.h.b16 %v3336
        %v3556 = vunpack.c.l.b16 %v3337
        %v3557 = vunpack.c.h.b16 %v3337
        %v3558 = vunpack.c.l.b16 %v3338
        %v3559 = vunpack.c.h.b16 %v3338
        %v3560 = vunpack.c.l.b16 %v3339
        %v3561 = vunpack.c.h.b16 %v3339
        %v3562 = vunpack.c.l.b16 %v3340
        %v3563 = vunpack.c.h.b16 %v3340
        %v3564 = vunpack.c.l.b16 %v3341
        %v3565 = vunpack.c.h.b16 %v3341
        %v3566 = vunpack.c.l.b16 %v3342
        %v3567 = vunpack.c.h.b16 %v3342
        %v3568 = vunpack.c.l.b16 %v3343
        %v3569 = vunpack.c.h.b16 %v3343
        %v3570 = vunpack.c.l.b16 %v3344
        %v3571 = vunpack.c.h.b16 %v3344
        %v3572 = vunpack.c.l.b16 %v3345
        %v3573 = vunpack.c.h.b16 %v3345
        %v3574 = vunpack.c.l.b16 %v3346
        %v3575 = vunpack.c.h.b16 %v3346
        %v3576 = vunpack.c.l.b16 %v3347
        %v3577 = vunpack.c.h.b16 %v3347
        %v3578 = vunpack.c.l.b16 %v3348
        %v3579 = vunpack.c.h.b16 %v3348
        %v3580 = vunpack.c.l.b16 %v3349
        %v3581 = vunpack.c.h.b16 %v3349
        %v3582 = vunpack.c.l.b16 %v3350
        %v3583 = vunpack.c.h.b16 %v3350
        %v3584 = vunpack.c.l.b16 %v3351
        %v3585 = vunpack.c.h.b16 %v3351
        %v3586 = vunpack.c.l.b16 %v3352
        %v3587 = vunpack.c.h.b16 %v3352
        %v3588 = vunpack.c.l.b16 %v3353
        %v3589 = vunpack.c.h.b16 %v3353
        %v3590 = vunpack.c.l.b16 %v3354
        %v3591 = vunpack.c.h.b16 %v3354
        %v3592 = vunpack.c.l.b16 %v3355
        %v3593 = vunpack.c.h.b16 %v3355
        %v3594 = vunpack.c.l.b16 %v3356
        %v3595 = vunpack.c.h.b16 %v3356
        %v3596 = vunpack.c.l.b16 %v3357
        %v3597 = vunpack.c.h.b16 %v3357
        %v3598 = vunpack.c.l.b16 %v3358
        %v3599 = vunpack.c.h.b16 %v3358
        %v3600 = vunpack.c.l.b16 %v3359
        %v3601 = vunpack.c.h.b16 %v3359
        %v3602 = vunpack.c.l.b16 %v3360
        %v3603 = vunpack.c.h.b16 %v3360
        %v3604 = vunpack.c.l.b16 %v3361
        %v3605 = vunpack.c.h.b16 %v3361
        %v3606 = vunpack.c.l.b16 %v3362
        %v3607 = vunpack.c.h.b16 %v3362
        %v3608 = vunpack.c.l.b16 %v3363
        %v3609 = vunpack.c.h.b16 %v3363
        %v3610 = vunpack.c.l.b16 %v3364
        %v3611 = vunpack.c.h.b16 %v3364
        %v3612 = vunpack.c.l.b16 %v3365
        %v3613 = vunpack.c.h.b16 %v3365
        %v3614 = vunpack.c.l.b16 %v3366
        %v3615 = vunpack.c.h.b16 %v3366
        %v3616 = vunpack.c.l.b16 %v3367
        %v3617 = vunpack.c.h.b16 %v3367
        %v3618 = vunpack.c.l.b16 %v3368
        %v3619 = vunpack.c.h.b16 %v3368
        %v3620 = vunpack.c.l.b16 %v3369
        %v3621 = vunpack.c.h.b16 %v3369
        %v3622 = vunpack.c.l.b16 %v3370
        %v3623 = vunpack.c.h.b16 %v3370
        %v3624 = vunpack.c.l.b16 %v3371
        %v3625 = vunpack.c.h.b16 %v3371
        %v3626 = vunpack.c.l.b16 %v3372
        %v3627 = vunpack.c.h.b16 %v3372
        %v3628 = vunpack.c.l.b16 %v3373
        %v3629 = vunpack.c.h.b16 %v3373
        %v3630 = vunpack.c.l.b16 %v3374
        %v3631 = vunpack.c.h.b16 %v3374
        %v3632 = vunpack.c.l.b16 %v3375
        %v3633 = vunpack.c.h.b16 %v3375
        %v3634 = vunpack.c.l.b16 %v3376
        %v3635 = vunpack.c.h.b16 %v3376
        %v3636 = vunpack.c.l.b16 %v3377
        %v3637 = vunpack.c.h.b16 %v3377
        %v3638 = vunpack.c.l.b16 %v3378
        %v3639 = vunpack.c.h.b16 %v3378
        %v3640 = vunpack.c.l.b16 %v3379
        %v3641 = vunpack.c.h.b16 %v3379
        %v3642 = vunpack.c.l.b16 %v3380
        %v3643 = vunpack.c.h.b16 %v3380
        %v3644 = vunpack.c.l.b16 %v3381
        %v3645 = vunpack.c.h.b16 %v3381
        %v3646 = vunpack.c.l.b16 %v3382
        %v3647 = vunpack.c.h.b16 %v3382
        %v3648 = vunpack.c.l.b16 %v3383
        %v3649 = vunpack.c.h.b16 %v3383
        %v3650 = vunpack.c.l.b16 %v3384
        %v3651 = vunpack.c.h.b16 %v3384
        %v3652 = vunpack.c.l.b16 %v3385
        %v3653 = vunpack.c.h.b16 %v3385
        %v3654 = vunpack.c.l.b16 %v3386
        %v3655 = vunpack.c.h.b16 %v3386
        %v3656 = vunpack.c.l.b16 %v3387
        %v3657 = vunpack.c.h.b16 %v3387
        %v3658 = vunpack.c.l.b16 %v3388
        %v3659 = vunpack.c.h.b16 %v3388
        %v3660 = vunpack.c.l.b16 %v3389
        %v3661 = vunpack.c.h.b16 %v3389
        %v3662 = vunpack.c.l.b16 %v3390
        %v3663 = vunpack.c.h.b16 %v3390
        %v3664 = vunpack.c.l.b16 %v3391
        %v3665 = vunpack.c.h.b16 %v3391
        %v3666 = vunpack.c.l.b16 %v3392
        %v3667 = vunpack.c.h.b16 %v3392
        %v3668 = vunpack.c.l.b16 %v3393
        %v3669 = vunpack.c.h.b16 %v3393
        %v3670 = vunpack.c.l.b16 %v3394
        %v3671 = vunpack.c.h.b16 %v3394
        %v3672 = vunpack.c.l.b16 %v3395
        %v3673 = vunpack.c.h.b16 %v3395
        %v3674 = vunpack.c.l.b16 %v3396
        %v3675 = vunpack.c.h.b16 %v3396
        %v3676 = vunpack.c.l.b16 %v3397
        %v3677 = vunpack.c.h.b16 %v3397
        %v3678 = vunpack.c.l.b16 %v3398
        %v3679 = vunpack.c.h.b16 %v3398
        %v3680 = vunpack.c.l.b16 %v3399
        %v3681 = vunpack.c.h.b16 %v3399
        %v3682 = vunpack.c.l.b16 %v3400
        %v3683 = vunpack.c.h.b16 %v3400
        %v3684 = vunpack.c.l.b16 %v3401
        %v3685 = vunpack.c.h.b16 %v3401
        %v3686 = vunpack.c.l.b16 %v3402
        %v3687 = vunpack.c.h.b16 %v3402
        %v3688 = vunpack.c.l.b16 %v3403
        %v3689 = vunpack.c.h.b16 %v3403
        %v3690 = vunpack.c.l.b16 %v3404
        %v3691 = vunpack.c.h.b16 %v3404
        %v3692 = vunpack.c.l.b16 %v3405
        %v3693 = vunpack.c.h.b16 %v3405
        %v3694 = vpack.c.b16 %v3506, %v3502
        %v3695 = vpack.c.b16 %v3507, %v3503
        %v3696 = vpack.c.b16 %v3508, %v3504
        %v3697 = vpack.c.b16 %v3509, %v3505
        %v3698 = vpack.c.b16 %v3514, %v3510
        %v3699 = vpack.c.b16 %v3515, %v3511
        %v3700 = vpack.c.b16 %v3516, %v3512
        %v3701 = vpack.c.b16 %v3517, %v3513
        %v3702 = vpack.c.b16 %v3522, %v3518
        %v3703 = vpack.c.b16 %v3523, %v3519
        %v3704 = vpack.c.b16 %v3524, %v3520
        %v3705 = vpack.c.b16 %v3525, %v3521
        %v3706 = vpack.c.b16 %v3530, %v3526
        %v3707 = vpack.c.b16 %v3531, %v3527
        %v3708 = vpack.c.b16 %v3532, %v3528
        %v3709 = vpack.c.b16 %v3533, %v3529
        %v3710 = vpack.c.b16 %v3538, %v3534
        %v3711 = vpack.c.b16 %v3539, %v3535
        %v3712 = vpack.c.b16 %v3540, %v3536
        %v3713 = vpack.c.b16 %v3541, %v3537
        %v3714 = vpack.c.b16 %v3546, %v3542
        %v3715 = vpack.c.b16 %v3547, %v3543
        %v3716 = vpack.c.b16 %v3548, %v3544
        %v3717 = vpack.c.b16 %v3549, %v3545
        %v3718 = vpack.c.b16 %v3554, %v3550
        %v3719 = vpack.c.b16 %v3555, %v3551
        %v3720 = vpack.c.b16 %v3556, %v3552
        %v3721 = vpack.c.b16 %v3557, %v3553
        %v3722 = vpack.c.b16 %v3562, %v3558
        %v3723 = vpack.c.b16 %v3563, %v3559
        %v3724 = vpack.c.b16 %v3564, %v3560
        %v3725 = vpack.c.b16 %v3565, %v3561
        %v3726 = vpack.c.b16 %v3570, %v3566
        %v3727 = vpack.c.b16 %v3571, %v3567
        %v3728 = vpack.c.b16 %v3572, %v3568
        %v3729 = vpack.c.b16 %v3573, %v3569
        %v3730 = vpack.c.b16 %v3578, %v3574
        %v3731 = vpack.c.b16 %v3579, %v3575
        %v3732 = vpack.c.b16 %v3580, %v3576
        %v3733 = vpack.c.b16 %v3581, %v3577
        %v3734 = vpack.c.b16 %v3586, %v3582
        %v3735 = vpack.c.b16 %v3587, %v3583
        %v3736 = vpack.c.b16 %v3588, %v3584
        %v3737 = vpack.c.b16 %v3589, %v3585
        %v3738 = vpack.c.b16 %v3594, %v3590
        %v3739 = vpack.c.b16 %v3595, %v3591
        %v3740 = vpack.c.b16 %v3596, %v3592
        %v3741 = vpack.c.b16 %v3597, %v3593
        %v3742 = vpack.c.b16 %v3602, %v3598
        %v3743 = vpack.c.b16 %v3603, %v3599
        %v3744 = vpack.c.b16 %v3604, %v3600
        %v3745 = vpack.c.b16 %v3605, %v3601
        %v3746 = vpack.c.b16 %v3610, %v3606
        %v3747 = vpack.c.b16 %v3611, %v3607
        %v3748 = vpack.c.b16 %v3612, %v3608
        %v3749 = vpack.c.b16 %v3613, %v3609
        %v3750 = vpack.c.b16 %v3618, %v3614
        %v3751 = vpack.c.b16 %v3619, %v3615
        %v3752 = vpack.c.b16 %v3620, %v3616
        %v3753 = vpack.c.b16 %v3621, %v3617
        %v3754 = vpack.c.b16 %v3626, %v3622
        %v3755 = vpack.c.b16 %v3627, %v3623
        %v3756 = vpack.c.b16 %v3628, %v3624
        %v3757 = vpack.c.b16 %v3629, %v3625
        %v3758 = vpack.c.b16 %v3634, %v3630
        %v3759 = vpack.c.b16 %v3635, %v3631
        %v3760 = vpack.c.b16 %v3636, %v3632
        %v3761 = vpack.c.b16 %v3637, %v3633
        %v3762 = vpack.c.b16 %v3642, %v3638
        %v3763 = vpack.c.b16 %v3643, %v3639
        %v3764 = vpack.c.b16 %v3644, %v3640
        %v3765 = vpack.c.b16 %v3645, %v3641
        %v3766 = vpack.c.b16 %v3650, %v3646
        %v3767 = vpack.c.b16 %v3651, %v3647
        %v3768 = vpack.c.b16 %v3652, %v3648
        %v3769 = vpack.c.b16 %v3653, %v3649
        %v3770 = vpack.c.b16 %v3658, %v3654
        %v3771 = vpack.c.b16 %v3659, %v3655
        %v3772 = vpack.c.b16 %v3660, %v3656
        %v3773 = vpack.c.b16 %v3661, %v3657
        %v3774 = vpack.c.b16 %v3666, %v3662
        %v3775 = vpack.c.b16 %v3667, %v3663
        %v3776 = vpack.c.b16 %v3668, %v3664
        %v3777 = vpack.c.b16 %v3669, %v3665
        %v3778 = vpack.c.b16 %v3674, %v3670
        %v3779 = vpack.c.b16 %v3675, %v3671
        %v3780 = vpack.c.b16 %v3676, %v3672
        %v3781 = vpack.c.b16 %v3677, %v3673
        %v3782 = vpack.c.b16 %v3682, %v3678
        %v3783 = vpack.c.b16 %v3683, %v3679
        %v3784 = vpack.c.b16 %v3684, %v3680
        %v3785 = vpack.c.b16 %v3685, %v3681
        %v3786 = vpack.c.b16 %v3690, %v3686
        %v3787 = vpack.c.b16 %v3691, %v3687
        %v3788 = vpack.c.b16 %v3692, %v3688
        %v3789 = vpack.c.b16 %v3693, %v3689
        %3886 = vmatprep.subr.bf16.mxu0 %v3695
        %3887 = vmatpush1.bf16.msra.mxu0 %v3694
        %3888 = vmatprep.subr.bf16.mxu0 %v3699
        %3889 = vmatpush1.bf16.msra.mxu0 %v3698
        %3890 = vmatprep.subr.bf16.mxu0 %v3703
        %3891 = vmatpush1.bf16.msra.mxu0 %v3702
        %3892 = vmatprep.subr.bf16.mxu0 %v3707
        %3893 = vmatpush1.bf16.msra.mxu0 %v3706
        %3894 = vmatprep.subr.bf16.mxu0 %v3711
        %3895 = vmatpush1.bf16.msra.mxu0 %v3710
        %3896 = vmatprep.subr.bf16.mxu0 %v3715
        %3897 = vmatpush1.bf16.msra.mxu0 %v3714
        %3898 = vmatprep.subr.bf16.mxu0 %v3719
        %3899 = vmatpush1.bf16.msra.mxu0 %v3718
        %3900 = vmatprep.subr.bf16.mxu0 %v3723
        %3901 = vmatpush1.bf16.msra.mxu0 %v3722
        %3902 = vmatprep.subr.bf16.mxu0 %v3727
        %3903 = vmatpush1.bf16.msra.mxu0 %v3726
        %3904 = vmatprep.subr.bf16.mxu0 %v3731
        %3905 = vmatpush1.bf16.msra.mxu0 %v3730
        %3906 = vmatprep.subr.bf16.mxu0 %v3735
        %3907 = vmatpush1.bf16.msra.mxu0 %v3734
        %3908 = vmatprep.subr.bf16.mxu0 %v3739
        %3909 = vmatpush1.bf16.msra.mxu0 %v3738
        %3910 = vmatprep.subr.bf16.mxu0 %v3743
        %3911 = vmatpush1.bf16.msra.mxu0 %v3742
        %3912 = vmatprep.subr.bf16.mxu0 %v3747
        %3913 = vmatpush1.bf16.msra.mxu0 %v3746
        %3914 = vmatprep.subr.bf16.mxu0 %v3751
        %3915 = vmatpush1.bf16.msra.mxu0 %v3750
        %3916 = vmatprep.subr.bf16.mxu0 %v3755
        %3917 = vmatpush1.bf16.msra.mxu0 %v3754
        %3918 = vmatprep.mubr.bf16.mxu0 %v1792
        %3919 = vmatmul.mubr.bf16.gmra.mrb[0].mxu0 %v1791
        %v3920 = vpop.f32.mrb[0].mxu0
        %v3921 = vadd.f32 0.0, %v3920
        %v3922 = vpop.f32.mrb[0].mxu0
        %v3923 = vadd.f32 0.0, %v3922
        %v3924 = vpop.f32.mrb[0].mxu0
        %v3925 = vadd.f32 0.0, %v3924
        %v3926 = vpop.f32.mrb[0].mxu0
        %v3927 = vadd.f32 0.0, %v3926
        %3928 = vdwg.mxu0
        %3929 = vmatprep.subr.bf16.mxu0 %v3759
        %3930 = vmatpush1.bf16.msra.mxu0 %v3758
        %3931 = vmatprep.subr.bf16.mxu0 %v3763
        %3932 = vmatpush1.bf16.msra.mxu0 %v3762
        %3933 = vmatprep.subr.bf16.mxu0 %v3767
        %3934 = vmatpush1.bf16.msra.mxu0 %v3766
        %3935 = vmatprep.subr.bf16.mxu0 %v3771
        %3936 = vmatpush1.bf16.msra.mxu0 %v3770
        %3937 = vmatprep.subr.bf16.mxu0 %v3775
        %3938 = vmatpush1.bf16.msra.mxu0 %v3774
        %3939 = vmatprep.subr.bf16.mxu0 %v3779
        %3940 = vmatpush1.bf16.msra.mxu0 %v3778
        %3941 = vmatprep.subr.bf16.mxu0 %v3783
        %3942 = vmatpush1.bf16.msra.mxu0 %v3782
        %3943 = vmatprep.subr.bf16.mxu0 %v3787
        %3944 = vmatpush1.bf16.msra.mxu0 %v3786
        %3945 = vmatprep.subr.bf16.mxu0 0
        %3946 = vmatpush1.bf16.msra.mxu0 0
        %3947 = vmatprep.subr.bf16.mxu0 0
        %3948 = vmatpush1.bf16.msra.mxu0 0
        %3949 = vmatprep.subr.bf16.mxu0 0
        %3950 = vmatpush1.bf16.msra.mxu0 0
        %3951 = vmatprep.subr.bf16.mxu0 0
        %3952 = vmatpush1.bf16.msra.mxu0 0
        %3953 = vmatprep.subr.bf16.mxu0 0
        %3954 = vmatpush1.bf16.msra.mxu0 0
        %3955 = vmatprep.subr.bf16.mxu0 0
        %3956 = vmatpush1.bf16.msra.mxu0 0
        %3957 = vmatprep.subr.bf16.mxu0 0
        %3958 = vmatpush1.bf16.msra.mxu0 0
        %3959 = vmatprep.subr.bf16.mxu0 0
        %3960 = vmatpush1.bf16.msra.mxu0 0
        %3961 = vmatprep.mubr.bf16.mxu0 0
        %3962 = vmatmul.mubr.bf16.gmra.mrb[0].mxu0 %v1793
        %v3963 = vpop.f32.mrb[0].mxu0
        %v3964 = vadd.f32 %v3921, %v3963
        %v3965 = vpop.f32.mrb[0].mxu0
        %v3966 = vadd.f32 %v3923, %v3965
        %v3967 = vpop.f32.mrb[0].mxu0
        %v3968 = vadd.f32 %v3925, %v3967
        %v3969 = vpop.f32.mrb[0].mxu0
        %v3970 = vadd.f32 %v3927, %v3969
        %3971 = vdwg.mxu0
        %3972 = vmatprep.subr.bf16.mxu0 %v3697
        %3973 = vmatpush1.bf16.msra.mxu0 %v3696
        %3974 = vmatprep.subr.bf16.mxu0 %v3701
        %3975 = vmatpush1.bf16.msra.mxu0 %v3700
        %3976 = vmatprep.subr.bf16.mxu0 %v3705
        %3977 = vmatpush1.bf16.msra.mxu0 %v3704
        %3978 = vmatprep.subr.bf16.mxu0 %v3709
        %3979 = vmatpush1.bf16.msra.mxu0 %v3708
        %3980 = vmatprep.subr.bf16.mxu0 %v3713
        %3981 = vmatpush1.bf16.msra.mxu0 %v3712
        %3982 = vmatprep.subr.bf16.mxu0 %v3717
        %3983 = vmatpush1.bf16.msra.mxu0 %v3716
        %3984 = vmatprep.subr.bf16.mxu0 %v3721
        %3985 = vmatpush1.bf16.msra.mxu0 %v3720
        %3986 = vmatprep.subr.bf16.mxu0 %v3725
        %3987 = vmatpush1.bf16.msra.mxu0 %v3724
        %3988 = vmatprep.subr.bf16.mxu0 %v3729
        %3989 = vmatpush1.bf16.msra.mxu0 %v3728
        %3990 = vmatprep.subr.bf16.mxu0 %v3733
        %3991 = vmatpush1.bf16.msra.mxu0 %v3732
        %3992 = vmatprep.subr.bf16.mxu0 %v3737
        %3993 = vmatpush1.bf16.msra.mxu0 %v3736
        %3994 = vmatprep.subr.bf16.mxu0 %v3741
        %3995 = vmatpush1.bf16.msra.mxu0 %v3740
        %3996 = vmatprep.subr.bf16.mxu0 %v3745
        %3997 = vmatpush1.bf16.msra.mxu0 %v3744
        %3998 = vmatprep.subr.bf16.mxu0 %v3749
        %3999 = vmatpush1.bf16.msra.mxu0 %v3748
        %4000 = vmatprep.subr.bf16.mxu0 %v3753
        %4001 = vmatpush1.bf16.msra.mxu0 %v3752
        %4002 = vmatprep.subr.bf16.mxu0 %v3757
        %4003 = vmatpush1.bf16.msra.mxu0 %v3756
        %4004 = vmatprep.mubr.bf16.mxu0 %v1792
        %4005 = vmatmul.mubr.bf16.gmra.mrb[0].mxu0 %v1791
        %v4006 = vpop.f32.mrb[0].mxu0
        %v4007 = vadd.f32 0.0, %v4006
        %v4008 = vpop.f32.mrb[0].mxu0
        %v4009 = vadd.f32 0.0, %v4008
        %v4010 = vpop.f32.mrb[0].mxu0
        %v4011 = vadd.f32 0.0, %v4010
        %v4012 = vpop.f32.mrb[0].mxu0
        %v4013 = vadd.f32 0.0, %v4012
        %4014 = vdwg.mxu0
        %4015 = vmatprep.subr.bf16.mxu0 %v3761
        %4016 = vmatpush1.bf16.msra.mxu0 %v3760
        %4017 = vmatprep.subr.bf16.mxu0 %v3765
        %4018 = vmatpush1.bf16.msra.mxu0 %v3764
        %4019 = vmatprep.subr.bf16.mxu0 %v3769
        %4020 = vmatpush1.bf16.msra.mxu0 %v3768
        %4021 = vmatprep.subr.bf16.mxu0 %v3773
        %4022 = vmatpush1.bf16.msra.mxu0 %v3772
        %4023 = vmatprep.subr.bf16.mxu0 %v3777
        %4024 = vmatpush1.bf16.msra.mxu0 %v3776
        %4025 = vmatprep.subr.bf16.mxu0 %v3781
        %4026 = vmatpush1.bf16.msra.mxu0 %v3780
        %4027 = vmatprep.subr.bf16.mxu0 %v3785
        %4028 = vmatpush1.bf16.msra.mxu0 %v3784
        %4029 = vmatprep.subr.bf16.mxu0 %v3789
        %4030 = vmatpush1.bf16.msra.mxu0 %v3788
        %4031 = vmatprep.subr.bf16.mxu0 0
        %4032 = vmatpush1.bf16.msra.mxu0 0
        %4033 = vmatprep.subr.bf16.mxu0 0
        %4034 = vmatpush1.bf16.msra.mxu0 0
        %4035 = vmatprep.subr.bf16.mxu0 0
        %4036 = vmatpush1.bf16.msra.mxu0 0
        %4037 = vmatprep.subr.bf16.mxu0 0
        %4038 = vmatpush1.bf16.msra.mxu0 0
        %4039 = vmatprep.subr.bf16.mxu0 0
        %4040 = vmatpush1.bf16.msra.mxu0 0
        %4041 = vmatprep.subr.bf16.mxu0 0
        %4042 = vmatpush1.bf16.msra.mxu0 0
        %4043 = vmatprep.subr.bf16.mxu0 0
        %4044 = vmatpush1.bf16.msra.mxu0 0
        %4045 = vmatprep.subr.bf16.mxu0 0
        %4046 = vmatpush1.bf16.msra.mxu0 0
        %4047 = vmatprep.mubr.bf16.mxu0 0
        %4048 = vmatmul.mubr.bf16.gmra.mrb[0].mxu0 %v1793
        %v4049 = vpop.f32.mrb[0].mxu0
        %v4050 = vadd.f32 %v4007, %v4049
        %v4051 = vpop.f32.mrb[0].mxu0
        %v4052 = vadd.f32 %v4009, %v4051
        %v4053 = vpop.f32.mrb[0].mxu0
        %v4054 = vadd.f32 %v4011, %v4053
        %v4055 = vpop.f32.mrb[0].mxu0
        %v4056 = vadd.f32 %v4013, %v4055
        %4057 = vdwg.mxu0
        %v4066 = vrot.slane %v3964, 2
        %v4067 = vrot.slane %v3968, 2
        %v4068 = vsel %vm958, %v4066, %v4067
        %v4069 = vrot.slane %v3966, 2
        %v4070 = vrot.slane %v3970, 2
        %v4071 = vsel %vm958, %v4069, %v4070
        %v4072 = vrot.slane %v4050, 2
        %v4073 = vrot.slane %v4054, 2
        %v4074 = vsel %vm958, %v4072, %v4073
        %v4075 = vrot.slane %v4052, 2
        %v4076 = vrot.slane %v4056, 2
        %v4077 = vsel %vm958, %v4075, %v4076
        %v4082 = vadd.f32 %v3306, %v4068
        %v4083 = vadd.f32 %v3307, %v4071
        %v4084 = vadd.f32 %v3308, %v4074
        %v4085 = vadd.f32 %v3309, %v4077
        %v4086 = vld [vmem:[#allocation9 + $0x30] sm:$0xff]
        %v4087 = vld [vmem:[#allocation9 + $0x38] sm:$0xff]
        %v4088 = vld [vmem:[#allocation9 + $0x80] sm:$0xff]
        %v4089 = vld [vmem:[#allocation9 + $0x88] sm:$0xff]
        %v4090 = vld [vmem:[#allocation9 + $0xd0] sm:$0xff]
        %v4091 = vld [vmem:[#allocation9 + $0xd8] sm:$0xff]
        %v4092 = vld [vmem:[#allocation9 + $0x120] sm:$0xff]
        %v4093 = vld [vmem:[#allocation9 + $0x128] sm:$0xff]
        %v4094 = vld [vmem:[#allocation9 + $0x170] sm:$0xff]
        %v4095 = vld [vmem:[#allocation9 + $0x178] sm:$0xff]
        %v4096 = vld [vmem:[#allocation9 + $0x1c0] sm:$0xff]
        %v4097 = vld [vmem:[#allocation9 + $0x1c8] sm:$0xff]
        %v4098 = vld [vmem:[#allocation9 + $0x210] sm:$0xff]
        %v4099 = vld [vmem:[#allocation9 + $0x218] sm:$0xff]
        %v4100 = vld [vmem:[#allocation9 + $0x260] sm:$0xff]
        %v4101 = vld [vmem:[#allocation9 + $0x268] sm:$0xff]
        %v4102 = vld [vmem:[#allocation9 + $0x2b0] sm:$0xff]
        %v4103 = vld [vmem:[#allocation9 + $0x2b8] sm:$0xff]
        %v4104 = vld [vmem:[#allocation9 + $0x300] sm:$0xff]
        %v4105 = vld [vmem:[#allocation9 + $0x308] sm:$0xff]
        %v4106 = vld [vmem:[#allocation9 + $0x350] sm:$0xff]
        %v4107 = vld [vmem:[#allocation9 + $0x358] sm:$0xff]
        %v4108 = vld [vmem:[#allocation9 + $0x3a0] sm:$0xff]
        %v4109 = vld [vmem:[#allocation9 + $0x3a8] sm:$0xff]
        %v4110 = vld [vmem:[#allocation9 + $0x3f0] sm:$0xff]
        %v4111 = vld [vmem:[#allocation9 + $0x3f8] sm:$0xff]
        %v4112 = vld [vmem:[#allocation9 + $0x440] sm:$0xff]
        %v4113 = vld [vmem:[#allocation9 + $0x448] sm:$0xff]
        %v4114 = vld [vmem:[#allocation9 + $0x490] sm:$0xff]
        %v4115 = vld [vmem:[#allocation9 + $0x498] sm:$0xff]
        %v4116 = vld [vmem:[#allocation9 + $0x4e0] sm:$0xff]
        %v4117 = vld [vmem:[#allocation9 + $0x4e8] sm:$0xff]
        %v4118 = vld [vmem:[#allocation9 + $0x530] sm:$0xff]
        %v4119 = vld [vmem:[#allocation9 + $0x538] sm:$0xff]
        %v4120 = vld [vmem:[#allocation9 + $0x580] sm:$0xff]
        %v4121 = vld [vmem:[#allocation9 + $0x588] sm:$0xff]
        %v4122 = vld [vmem:[#allocation9 + $0x5d0] sm:$0xff]
        %v4123 = vld [vmem:[#allocation9 + $0x5d8] sm:$0xff]
        %v4124 = vld [vmem:[#allocation9 + $0x620] sm:$0xff]
        %v4125 = vld [vmem:[#allocation9 + $0x628] sm:$0xff]
        %v4126 = vld [vmem:[#allocation9 + $0x670] sm:$0xff]
        %v4127 = vld [vmem:[#allocation9 + $0x678] sm:$0xff]
        %v4128 = vld [vmem:[#allocation9 + $0x6c0] sm:$0xff]
        %v4129 = vld [vmem:[#allocation9 + $0x6c8] sm:$0xff]
        %v4130 = vld [vmem:[#allocation9 + $0x710] sm:$0xff]
        %v4131 = vld [vmem:[#allocation9 + $0x718] sm:$0xff]
        %v4132 = vld [vmem:[#allocation9 + $0x760] sm:$0xff]
        %v4133 = vld [vmem:[#allocation9 + $0x768] sm:$0xff]
        %v4134 = vld [vmem:[#allocation9 + $0x7b0] sm:$0xff]
        %v4135 = vld [vmem:[#allocation9 + $0x7b8] sm:$0xff]
        %v4136 = vld [vmem:[#allocation9 + $0x800] sm:$0xff]
        %v4137 = vld [vmem:[#allocation9 + $0x808] sm:$0xff]
        %v4138 = vld [vmem:[#allocation9 + $0x850] sm:$0xff]
        %v4139 = vld [vmem:[#allocation9 + $0x858] sm:$0xff]
        %v4140 = vld [vmem:[#allocation9 + $0x8a0] sm:$0xff]
        %v4141 = vld [vmem:[#allocation9 + $0x8a8] sm:$0xff]
        %v4142 = vld [vmem:[#allocation9 + $0x8f0] sm:$0xff]
        %v4143 = vld [vmem:[#allocation9 + $0x8f8] sm:$0xff]
        %v4144 = vld [vmem:[#allocation9 + $0x940] sm:$0xff]
        %v4145 = vld [vmem:[#allocation9 + $0x948] sm:$0xff]
        %v4146 = vld [vmem:[#allocation9 + $0x990] sm:$0xff]
        %v4147 = vld [vmem:[#allocation9 + $0x998] sm:$0xff]
        %v4148 = vld [vmem:[#allocation9 + $0x9e0] sm:$0xff]
        %v4149 = vld [vmem:[#allocation9 + $0x9e8] sm:$0xff]
        %v4150 = vld [vmem:[#allocation9 + $0xa30] sm:$0xff]
        %v4151 = vld [vmem:[#allocation9 + $0xa38] sm:$0xff]
        %v4152 = vld [vmem:[#allocation9 + $0xa80] sm:$0xff]
        %v4153 = vld [vmem:[#allocation9 + $0xa88] sm:$0xff]
        %v4154 = vld [vmem:[#allocation9 + $0xad0] sm:$0xff]
        %v4155 = vld [vmem:[#allocation9 + $0xad8] sm:$0xff]
        %v4156 = vld [vmem:[#allocation9 + $0xb20] sm:$0xff]
        %v4157 = vld [vmem:[#allocation9 + $0xb28] sm:$0xff]
        %v4158 = vld [vmem:[#allocation9 + $0xb70] sm:$0xff]
        %v4159 = vld [vmem:[#allocation9 + $0xb78] sm:$0xff]
        %v4160 = vld [vmem:[#allocation9 + $0xbc0] sm:$0xff]
        %v4161 = vld [vmem:[#allocation9 + $0xbc8] sm:$0xff]
        %v4162 = vld [vmem:[#allocation9 + $0xc10] sm:$0xff]
        %v4163 = vld [vmem:[#allocation9 + $0xc18] sm:$0xff]
        %v4164 = vld [vmem:[#allocation9 + $0xc60] sm:$0xff]
        %v4165 = vld [vmem:[#allocation9 + $0xc68] sm:$0xff]
        %v4166 = vld [vmem:[#allocation9 + $0xcb0] sm:$0xff]
        %v4167 = vld [vmem:[#allocation9 + $0xcb8] sm:$0xff]
        %v4168 = vld [vmem:[#allocation9 + $0xd00] sm:$0xff]
        %v4169 = vld [vmem:[#allocation9 + $0xd08] sm:$0xff]
        %v4170 = vld [vmem:[#allocation9 + $0xd50] sm:$0xff]
        %v4171 = vld [vmem:[#allocation9 + $0xd58] sm:$0xff]
        %v4172 = vld [vmem:[#allocation9 + $0xda0] sm:$0xff]
        %v4173 = vld [vmem:[#allocation9 + $0xda8] sm:$0xff]
        %v4174 = vld [vmem:[#allocation9 + $0xdf0] sm:$0xff]
        %v4175 = vld [vmem:[#allocation9 + $0xdf8] sm:$0xff]
        %v4176 = vld [vmem:[#allocation9 + $0xe40] sm:$0xff]
        %v4177 = vld [vmem:[#allocation9 + $0xe48] sm:$0xff]
        %v4178 = vld [vmem:[#allocation9 + $0xe90] sm:$0xff]
        %v4179 = vld [vmem:[#allocation9 + $0xe98] sm:$0xff]
        %v4180 = vld [vmem:[#allocation9 + $0xee0] sm:$0xff]
        %v4181 = vld [vmem:[#allocation9 + $0xee8] sm:$0xff]
        %v4278 = vunpack.c.l.b16 %v4086
        %v4279 = vunpack.c.h.b16 %v4086
        %v4280 = vunpack.c.l.b16 %v4087
        %v4281 = vunpack.c.h.b16 %v4087
        %v4282 = vunpack.c.l.b16 %v4088
        %v4283 = vunpack.c.h.b16 %v4088
        %v4284 = vunpack.c.l.b16 %v4089
        %v4285 = vunpack.c.h.b16 %v4089
        %v4286 = vunpack.c.l.b16 %v4090
        %v4287 = vunpack.c.h.b16 %v4090
        %v4288 = vunpack.c.l.b16 %v4091
        %v4289 = vunpack.c.h.b16 %v4091
        %v4290 = vunpack.c.l.b16 %v4092
        %v4291 = vunpack.c.h.b16 %v4092
        %v4292 = vunpack.c.l.b16 %v4093
        %v4293 = vunpack.c.h.b16 %v4093
        %v4294 = vunpack.c.l.b16 %v4094
        %v4295 = vunpack.c.h.b16 %v4094
        %v4296 = vunpack.c.l.b16 %v4095
        %v4297 = vunpack.c.h.b16 %v4095
        %v4298 = vunpack.c.l.b16 %v4096
        %v4299 = vunpack.c.h.b16 %v4096
        %v4300 = vunpack.c.l.b16 %v4097
        %v4301 = vunpack.c.h.b16 %v4097
        %v4302 = vunpack.c.l.b16 %v4098
        %v4303 = vunpack.c.h.b16 %v4098
        %v4304 = vunpack.c.l.b16 %v4099
        %v4305 = vunpack.c.h.b16 %v4099
        %v4306 = vunpack.c.l.b16 %v4100
        %v4307 = vunpack.c.h.b16 %v4100
        %v4308 = vunpack.c.l.b16 %v4101
        %v4309 = vunpack.c.h.b16 %v4101
        %v4310 = vunpack.c.l.b16 %v4102
        %v4311 = vunpack.c.h.b16 %v4102
        %v4312 = vunpack.c.l.b16 %v4103
        %v4313 = vunpack.c.h.b16 %v4103
        %v4314 = vunpack.c.l.b16 %v4104
        %v4315 = vunpack.c.h.b16 %v4104
        %v4316 = vunpack.c.l.b16 %v4105
        %v4317 = vunpack.c.h.b16 %v4105
        %v4318 = vunpack.c.l.b16 %v4106
        %v4319 = vunpack.c.h.b16 %v4106
        %v4320 = vunpack.c.l.b16 %v4107
        %v4321 = vunpack.c.h.b16 %v4107
        %v4322 = vunpack.c.l.b16 %v4108
        %v4323 = vunpack.c.h.b16 %v4108
        %v4324 = vunpack.c.l.b16 %v4109
        %v4325 = vunpack.c.h.b16 %v4109
        %v4326 = vunpack.c.l.b16 %v4110
        %v4327 = vunpack.c.h.b16 %v4110
        %v4328 = vunpack.c.l.b16 %v4111
        %v4329 = vunpack.c.h.b16 %v4111
        %v4330 = vunpack.c.l.b16 %v4112
        %v4331 = vunpack.c.h.b16 %v4112
        %v4332 = vunpack.c.l.b16 %v4113
        %v4333 = vunpack.c.h.b16 %v4113
        %v4334 = vunpack.c.l.b16 %v4114
        %v4335 = vunpack.c.h.b16 %v4114
        %v4336 = vunpack.c.l.b16 %v4115
        %v4337 = vunpack.c.h.b16 %v4115
        %v4338 = vunpack.c.l.b16 %v4116
        %v4339 = vunpack.c.h.b16 %v4116
        %v4340 = vunpack.c.l.b16 %v4117
        %v4341 = vunpack.c.h.b16 %v4117
        %v4342 = vunpack.c.l.b16 %v4118
        %v4343 = vunpack.c.h.b16 %v4118
        %v4344 = vunpack.c.l.b16 %v4119
        %v4345 = vunpack.c.h.b16 %v4119
        %v4346 = vunpack.c.l.b16 %v4120
        %v4347 = vunpack.c.h.b16 %v4120
        %v4348 = vunpack.c.l.b16 %v4121
        %v4349 = vunpack.c.h.b16 %v4121
        %v4350 = vunpack.c.l.b16 %v4122
        %v4351 = vunpack.c.h.b16 %v4122
        %v4352 = vunpack.c.l.b16 %v4123
        %v4353 = vunpack.c.h.b16 %v4123
        %v4354 = vunpack.c.l.b16 %v4124
        %v4355 = vunpack.c.h.b16 %v4124
        %v4356 = vunpack.c.l.b16 %v4125
        %v4357 = vunpack.c.h.b16 %v4125
        %v4358 = vunpack.c.l.b16 %v4126
        %v4359 = vunpack.c.h.b16 %v4126
        %v4360 = vunpack.c.l.b16 %v4127
        %v4361 = vunpack.c.h.b16 %v4127
        %v4362 = vunpack.c.l.b16 %v4128
        %v4363 = vunpack.c.h.b16 %v4128
        %v4364 = vunpack.c.l.b16 %v4129
        %v4365 = vunpack.c.h.b16 %v4129
        %v4366 = vunpack.c.l.b16 %v4130
        %v4367 = vunpack.c.h.b16 %v4130
        %v4368 = vunpack.c.l.b16 %v4131
        %v4369 = vunpack.c.h.b16 %v4131
        %v4370 = vunpack.c.l.b16 %v4132
        %v4371 = vunpack.c.h.b16 %v4132
        %v4372 = vunpack.c.l.b16 %v4133
        %v4373 = vunpack.c.h.b16 %v4133
        %v4374 = vunpack.c.l.b16 %v4134
        %v4375 = vunpack.c.h.b16 %v4134
        %v4376 = vunpack.c.l.b16 %v4135
        %v4377 = vunpack.c.h.b16 %v4135
        %v4378 = vunpack.c.l.b16 %v4136
        %v4379 = vunpack.c.h.b16 %v4136
        %v4380 = vunpack.c.l.b16 %v4137
        %v4381 = vunpack.c.h.b16 %v4137
        %v4382 = vunpack.c.l.b16 %v4138
        %v4383 = vunpack.c.h.b16 %v4138
        %v4384 = vunpack.c.l.b16 %v4139
        %v4385 = vunpack.c.h.b16 %v4139
        %v4386 = vunpack.c.l.b16 %v4140
        %v4387 = vunpack.c.h.b16 %v4140
        %v4388 = vunpack.c.l.b16 %v4141
        %v4389 = vunpack.c.h.b16 %v4141
        %v4390 = vunpack.c.l.b16 %v4142
        %v4391 = vunpack.c.h.b16 %v4142
        %v4392 = vunpack.c.l.b16 %v4143
        %v4393 = vunpack.c.h.b16 %v4143
        %v4394 = vunpack.c.l.b16 %v4144
        %v4395 = vunpack.c.h.b16 %v4144
        %v4396 = vunpack.c.l.b16 %v4145
        %v4397 = vunpack.c.h.b16 %v4145
        %v4398 = vunpack.c.l.b16 %v4146
        %v4399 = vunpack.c.h.b16 %v4146
        %v4400 = vunpack.c.l.b16 %v4147
        %v4401 = vunpack.c.h.b16 %v4147
        %v4402 = vunpack.c.l.b16 %v4148
        %v4403 = vunpack.c.h.b16 %v4148
        %v4404 = vunpack.c.l.b16 %v4149
        %v4405 = vunpack.c.h.b16 %v4149
        %v4406 = vunpack.c.l.b16 %v4150
        %v4407 = vunpack.c.h.b16 %v4150
        %v4408 = vunpack.c.l.b16 %v4151
        %v4409 = vunpack.c.h.b16 %v4151
        %v4410 = vunpack.c.l.b16 %v4152
        %v4411 = vunpack.c.h.b16 %v4152
        %v4412 = vunpack.c.l.b16 %v4153
        %v4413 = vunpack.c.h.b16 %v4153
        %v4414 = vunpack.c.l.b16 %v4154
        %v4415 = vunpack.c.h.b16 %v4154
        %v4416 = vunpack.c.l.b16 %v4155
        %v4417 = vunpack.c.h.b16 %v4155
        %v4418 = vunpack.c.l.b16 %v4156
        %v4419 = vunpack.c.h.b16 %v4156
        %v4420 = vunpack.c.l.b16 %v4157
        %v4421 = vunpack.c.h.b16 %v4157
        %v4422 = vunpack.c.l.b16 %v4158
        %v4423 = vunpack.c.h.b16 %v4158
        %v4424 = vunpack.c.l.b16 %v4159
        %v4425 = vunpack.c.h.b16 %v4159
        %v4426 = vunpack.c.l.b16 %v4160
        %v4427 = vunpack.c.h.b16 %v4160
        %v4428 = vunpack.c.l.b16 %v4161
        %v4429 = vunpack.c.h.b16 %v4161
        %v4430 = vunpack.c.l.b16 %v4162
        %v4431 = vunpack.c.h.b16 %v4162
        %v4432 = vunpack.c.l.b16 %v4163
        %v4433 = vunpack.c.h.b16 %v4163
        %v4434 = vunpack.c.l.b16 %v4164
        %v4435 = vunpack.c.h.b16 %v4164
        %v4436 = vunpack.c.l.b16 %v4165
        %v4437 = vunpack.c.h.b16 %v4165
        %v4438 = vunpack.c.l.b16 %v4166
        %v4439 = vunpack.c.h.b16 %v4166
        %v4440 = vunpack.c.l.b16 %v4167
        %v4441 = vunpack.c.h.b16 %v4167
        %v4442 = vunpack.c.l.b16 %v4168
        %v4443 = vunpack.c.h.b16 %v4168
        %v4444 = vunpack.c.l.b16 %v4169
        %v4445 = vunpack.c.h.b16 %v4169
        %v4446 = vunpack.c.l.b16 %v4170
        %v4447 = vunpack.c.h.b16 %v4170
        %v4448 = vunpack.c.l.b16 %v4171
        %v4449 = vunpack.c.h.b16 %v4171
        %v4450 = vunpack.c.l.b16 %v4172
        %v4451 = vunpack.c.h.b16 %v4172
        %v4452 = vunpack.c.l.b16 %v4173
        %v4453 = vunpack.c.h.b16 %v4173
        %v4454 = vunpack.c.l.b16 %v4174
        %v4455 = vunpack.c.h.b16 %v4174
        %v4456 = vunpack.c.l.b16 %v4175
        %v4457 = vunpack.c.h.b16 %v4175
        %v4458 = vunpack.c.l.b16 %v4176
        %v4459 = vunpack.c.h.b16 %v4176
        %v4460 = vunpack.c.l.b16 %v4177
        %v4461 = vunpack.c.h.b16 %v4177
        %v4462 = vunpack.c.l.b16 %v4178
        %v4463 = vunpack.c.h.b16 %v4178
        %v4464 = vunpack.c.l.b16 %v4179
        %v4465 = vunpack.c.h.b16 %v4179
        %v4466 = vunpack.c.l.b16 %v4180
        %v4467 = vunpack.c.h.b16 %v4180
        %v4468 = vunpack.c.l.b16 %v4181
        %v4469 = vunpack.c.h.b16 %v4181
        %v4470 = vpack.c.b16 %v4282, %v4278
        %v4471 = vpack.c.b16 %v4283, %v4279
        %v4472 = vpack.c.b16 %v4284, %v4280
        %v4473 = vpack.c.b16 %v4285, %v4281
        %v4474 = vpack.c.b16 %v4290, %v4286
        %v4475 = vpack.c.b16 %v4291, %v4287
        %v4476 = vpack.c.b16 %v4292, %v4288
        %v4477 = vpack.c.b16 %v4293, %v4289
        %v4478 = vpack.c.b16 %v4298, %v4294
        %v4479 = vpack.c.b16 %v4299, %v4295
        %v4480 = vpack.c.b16 %v4300, %v4296
        %v4481 = vpack.c.b16 %v4301, %v4297
        %v4482 = vpack.c.b16 %v4306, %v4302
        %v4483 = vpack.c.b16 %v4307, %v4303
        %v4484 = vpack.c.b16 %v4308, %v4304
        %v4485 = vpack.c.b16 %v4309, %v4305
        %v4486 = vpack.c.b16 %v4314, %v4310
        %v4487 = vpack.c.b16 %v4315, %v4311
        %v4488 = vpack.c.b16 %v4316, %v4312
        %v4489 = vpack.c.b16 %v4317, %v4313
        %v4490 = vpack.c.b16 %v4322, %v4318
        %v4491 = vpack.c.b16 %v4323, %v4319
        %v4492 = vpack.c.b16 %v4324, %v4320
        %v4493 = vpack.c.b16 %v4325, %v4321
        %v4494 = vpack.c.b16 %v4330, %v4326
        %v4495 = vpack.c.b16 %v4331, %v4327
        %v4496 = vpack.c.b16 %v4332, %v4328
        %v4497 = vpack.c.b16 %v4333, %v4329
        %v4498 = vpack.c.b16 %v4338, %v4334
        %v4499 = vpack.c.b16 %v4339, %v4335
        %v4500 = vpack.c.b16 %v4340, %v4336
        %v4501 = vpack.c.b16 %v4341, %v4337
        %v4502 = vpack.c.b16 %v4346, %v4342
        %v4503 = vpack.c.b16 %v4347, %v4343
        %v4504 = vpack.c.b16 %v4348, %v4344
        %v4505 = vpack.c.b16 %v4349, %v4345
        %v4506 = vpack.c.b16 %v4354, %v4350
        %v4507 = vpack.c.b16 %v4355, %v4351
        %v4508 = vpack.c.b16 %v4356, %v4352
        %v4509 = vpack.c.b16 %v4357, %v4353
        %v4510 = vpack.c.b16 %v4362, %v4358
        %v4511 = vpack.c.b16 %v4363, %v4359
        %v4512 = vpack.c.b16 %v4364, %v4360
        %v4513 = vpack.c.b16 %v4365, %v4361
        %v4514 = vpack.c.b16 %v4370, %v4366
        %v4515 = vpack.c.b16 %v4371, %v4367
        %v4516 = vpack.c.b16 %v4372, %v4368
        %v4517 = vpack.c.b16 %v4373, %v4369
        %v4518 = vpack.c.b16 %v4378, %v4374
        %v4519 = vpack.c.b16 %v4379, %v4375
        %v4520 = vpack.c.b16 %v4380, %v4376
        %v4521 = vpack.c.b16 %v4381, %v4377
        %v4522 = vpack.c.b16 %v4386, %v4382
        %v4523 = vpack.c.b16 %v4387, %v4383
        %v4524 = vpack.c.b16 %v4388, %v4384
        %v4525 = vpack.c.b16 %v4389, %v4385
        %v4526 = vpack.c.b16 %v4394, %v4390
        %v4527 = vpack.c.b16 %v4395, %v4391
        %v4528 = vpack.c.b16 %v4396, %v4392
        %v4529 = vpack.c.b16 %v4397, %v4393
        %v4530 = vpack.c.b16 %v4402, %v4398
        %v4531 = vpack.c.b16 %v4403, %v4399
        %v4532 = vpack.c.b16 %v4404, %v4400
        %v4533 = vpack.c.b16 %v4405, %v4401
        %v4534 = vpack.c.b16 %v4410, %v4406
        %v4535 = vpack.c.b16 %v4411, %v4407
        %v4536 = vpack.c.b16 %v4412, %v4408
        %v4537 = vpack.c.b16 %v4413, %v4409
        %v4538 = vpack.c.b16 %v4418, %v4414
        %v4539 = vpack.c.b16 %v4419, %v4415
        %v4540 = vpack.c.b16 %v4420, %v4416
        %v4541 = vpack.c.b16 %v4421, %v4417
        %v4542 = vpack.c.b16 %v4426, %v4422
        %v4543 = vpack.c.b16 %v4427, %v4423
        %v4544 = vpack.c.b16 %v4428, %v4424
        %v4545 = vpack.c.b16 %v4429, %v4425
        %v4546 = vpack.c.b16 %v4434, %v4430
        %v4547 = vpack.c.b16 %v4435, %v4431
        %v4548 = vpack.c.b16 %v4436, %v4432
        %v4549 = vpack.c.b16 %v4437, %v4433
        %v4550 = vpack.c.b16 %v4442, %v4438
        %v4551 = vpack.c.b16 %v4443, %v4439
        %v4552 = vpack.c.b16 %v4444, %v4440
        %v4553 = vpack.c.b16 %v4445, %v4441
        %v4554 = vpack.c.b16 %v4450, %v4446
        %v4555 = vpack.c.b16 %v4451, %v4447
        %v4556 = vpack.c.b16 %v4452, %v4448
        %v4557 = vpack.c.b16 %v4453, %v4449
        %v4558 = vpack.c.b16 %v4458, %v4454
        %v4559 = vpack.c.b16 %v4459, %v4455
        %v4560 = vpack.c.b16 %v4460, %v4456
        %v4561 = vpack.c.b16 %v4461, %v4457
        %v4562 = vpack.c.b16 %v4466, %v4462
        %v4563 = vpack.c.b16 %v4467, %v4463
        %v4564 = vpack.c.b16 %v4468, %v4464
        %v4565 = vpack.c.b16 %v4469, %v4465
        %4662 = vmatprep.subr.bf16.mxu0 %v4471
        %4663 = vmatpush1.bf16.msra.mxu0 %v4470
        %4664 = vmatprep.subr.bf16.mxu0 %v4475
        %4665 = vmatpush1.bf16.msra.mxu0 %v4474
        %4666 = vmatprep.subr.bf16.mxu0 %v4479
        %4667 = vmatpush1.bf16.msra.mxu0 %v4478
        %4668 = vmatprep.subr.bf16.mxu0 %v4483
        %4669 = vmatpush1.bf16.msra.mxu0 %v4482
        %4670 = vmatprep.subr.bf16.mxu0 %v4487
        %4671 = vmatpush1.bf16.msra.mxu0 %v4486
        %4672 = vmatprep.subr.bf16.mxu0 %v4491
        %4673 = vmatpush1.bf16.msra.mxu0 %v4490
        %4674 = vmatprep.subr.bf16.mxu0 %v4495
        %4675 = vmatpush1.bf16.msra.mxu0 %v4494
        %4676 = vmatprep.subr.bf16.mxu0 %v4499
        %4677 = vmatpush1.bf16.msra.mxu0 %v4498
        %4678 = vmatprep.subr.bf16.mxu0 %v4503
        %4679 = vmatpush1.bf16.msra.mxu0 %v4502
        %4680 = vmatprep.subr.bf16.mxu0 %v4507
        %4681 = vmatpush1.bf16.msra.mxu0 %v4506
        %4682 = vmatprep.subr.bf16.mxu0 %v4511
        %4683 = vmatpush1.bf16.msra.mxu0 %v4510
        %4684 = vmatprep.subr.bf16.mxu0 %v4515
        %4685 = vmatpush1.bf16.msra.mxu0 %v4514
        %4686 = vmatprep.subr.bf16.mxu0 %v4519
        %4687 = vmatpush1.bf16.msra.mxu0 %v4518
        %4688 = vmatprep.subr.bf16.mxu0 %v4523
        %4689 = vmatpush1.bf16.msra.mxu0 %v4522
        %4690 = vmatprep.subr.bf16.mxu0 %v4527
        %4691 = vmatpush1.bf16.msra.mxu0 %v4526
        %4692 = vmatprep.subr.bf16.mxu0 %v4531
        %4693 = vmatpush1.bf16.msra.mxu0 %v4530
        %4694 = vmatprep.mubr.bf16.mxu0 %v1792
        %4695 = vmatmul.mubr.bf16.gmra.mrb[0].mxu0 %v1791
        %v4696 = vpop.f32.mrb[0].mxu0
        %v4697 = vadd.f32 0.0, %v4696
        %v4698 = vpop.f32.mrb[0].mxu0
        %v4699 = vadd.f32 0.0, %v4698
        %v4700 = vpop.f32.mrb[0].mxu0
        %v4701 = vadd.f32 0.0, %v4700
        %v4702 = vpop.f32.mrb[0].mxu0
        %v4703 = vadd.f32 0.0, %v4702
        %4704 = vdwg.mxu0
        %4705 = vmatprep.subr.bf16.mxu0 %v4535
        %4706 = vmatpush1.bf16.msra.mxu0 %v4534
        %4707 = vmatprep.subr.bf16.mxu0 %v4539
        %4708 = vmatpush1.bf16.msra.mxu0 %v4538
        %4709 = vmatprep.subr.bf16.mxu0 %v4543
        %4710 = vmatpush1.bf16.msra.mxu0 %v4542
        %4711 = vmatprep.subr.bf16.mxu0 %v4547
        %4712 = vmatpush1.bf16.msra.mxu0 %v4546
        %4713 = vmatprep.subr.bf16.mxu0 %v4551
        %4714 = vmatpush1.bf16.msra.mxu0 %v4550
        %4715 = vmatprep.subr.bf16.mxu0 %v4555
        %4716 = vmatpush1.bf16.msra.mxu0 %v4554
        %4717 = vmatprep.subr.bf16.mxu0 %v4559
        %4718 = vmatpush1.bf16.msra.mxu0 %v4558
        %4719 = vmatprep.subr.bf16.mxu0 %v4563
        %4720 = vmatpush1.bf16.msra.mxu0 %v4562
        %4721 = vmatprep.subr.bf16.mxu0 0
        %4722 = vmatpush1.bf16.msra.mxu0 0
        %4723 = vmatprep.subr.bf16.mxu0 0
        %4724 = vmatpush1.bf16.msra.mxu0 0
        %4725 = vmatprep.subr.bf16.mxu0 0
        %4726 = vmatpush1.bf16.msra.mxu0 0
        %4727 = vmatprep.subr.bf16.mxu0 0
        %4728 = vmatpush1.bf16.msra.mxu0 0
        %4729 = vmatprep.subr.bf16.mxu0 0
        %4730 = vmatpush1.bf16.msra.mxu0 0
        %4731 = vmatprep.subr.bf16.mxu0 0
        %4732 = vmatpush1.bf16.msra.mxu0 0
        %4733 = vmatprep.subr.bf16.mxu0 0
        %4734 = vmatpush1.bf16.msra.mxu0 0
        %4735 = vmatprep.subr.bf16.mxu0 0
        %4736 = vmatpush1.bf16.msra.mxu0 0
        %4737 = vmatprep.mubr.bf16.mxu0 0
        %4738 = vmatmul.mubr.bf16.gmra.mrb[0].mxu0 %v1793
        %v4739 = vpop.f32.mrb[0].mxu0
        %v4740 = vadd.f32 %v4697, %v4739
        %v4741 = vpop.f32.mrb[0].mxu0
        %v4742 = vadd.f32 %v4699, %v4741
        %v4743 = vpop.f32.mrb[0].mxu0
        %v4744 = vadd.f32 %v4701, %v4743
        %v4745 = vpop.f32.mrb[0].mxu0
        %v4746 = vadd.f32 %v4703, %v4745
        %4747 = vdwg.mxu0
        %4748 = vmatprep.subr.bf16.mxu0 %v4473
        %4749 = vmatpush1.bf16.msra.mxu0 %v4472
        %4750 = vmatprep.subr.bf16.mxu0 %v4477
        %4751 = vmatpush1.bf16.msra.mxu0 %v4476
        %4752 = vmatprep.subr.bf16.mxu0 %v4481
        %4753 = vmatpush1.bf16.msra.mxu0 %v4480
        %4754 = vmatprep.subr.bf16.mxu0 %v4485
        %4755 = vmatpush1.bf16.msra.mxu0 %v4484
        %4756 = vmatprep.subr.bf16.mxu0 %v4489
        %4757 = vmatpush1.bf16.msra.mxu0 %v4488
        %4758 = vmatprep.subr.bf16.mxu0 %v4493
        %4759 = vmatpush1.bf16.msra.mxu0 %v4492
        %4760 = vmatprep.subr.bf16.mxu0 %v4497
        %4761 = vmatpush1.bf16.msra.mxu0 %v4496
        %4762 = vmatprep.subr.bf16.mxu0 %v4501
        %4763 = vmatpush1.bf16.msra.mxu0 %v4500
        %4764 = vmatprep.subr.bf16.mxu0 %v4505
        %4765 = vmatpush1.bf16.msra.mxu0 %v4504
        %4766 = vmatprep.subr.bf16.mxu0 %v4509
        %4767 = vmatpush1.bf16.msra.mxu0 %v4508
        %4768 = vmatprep.subr.bf16.mxu0 %v4513
        %4769 = vmatpush1.bf16.msra.mxu0 %v4512
        %4770 = vmatprep.subr.bf16.mxu0 %v4517
        %4771 = vmatpush1.bf16.msra.mxu0 %v4516
        %4772 = vmatprep.subr.bf16.mxu0 %v4521
        %4773 = vmatpush1.bf16.msra.mxu0 %v4520
        %4774 = vmatprep.subr.bf16.mxu0 %v4525
        %4775 = vmatpush1.bf16.msra.mxu0 %v4524
        %4776 = vmatprep.subr.bf16.mxu0 %v4529
        %4777 = vmatpush1.bf16.msra.mxu0 %v4528
        %4778 = vmatprep.subr.bf16.mxu0 %v4533
        %4779 = vmatpush1.bf16.msra.mxu0 %v4532
        %4780 = vmatprep.mubr.bf16.mxu0 %v1792
        %4781 = vmatmul.mubr.bf16.gmra.mrb[0].mxu0 %v1791
        %v4782 = vpop.f32.mrb[0].mxu0
        %v4783 = vadd.f32 0.0, %v4782
        %v4784 = vpop.f32.mrb[0].mxu0
        %v4785 = vadd.f32 0.0, %v4784
        %v4786 = vpop.f32.mrb[0].mxu0
        %v4787 = vadd.f32 0.0, %v4786
        %v4788 = vpop.f32.mrb[0].mxu0
        %v4789 = vadd.f32 0.0, %v4788
        %4790 = vdwg.mxu0
        %4791 = vmatprep.subr.bf16.mxu0 %v4537
        %4792 = vmatpush1.bf16.msra.mxu0 %v4536
        %4793 = vmatprep.subr.bf16.mxu0 %v4541
        %4794 = vmatpush1.bf16.msra.mxu0 %v4540
        %4795 = vmatprep.subr.bf16.mxu0 %v4545
        %4796 = vmatpush1.bf16.msra.mxu0 %v4544
        %4797 = vmatprep.subr.bf16.mxu0 %v4549
        %4798 = vmatpush1.bf16.msra.mxu0 %v4548
        %4799 = vmatprep.subr.bf16.mxu0 %v4553
        %4800 = vmatpush1.bf16.msra.mxu0 %v4552
        %4801 = vmatprep.subr.bf16.mxu0 %v4557
        %4802 = vmatpush1.bf16.msra.mxu0 %v4556
        %4803 = vmatprep.subr.bf16.mxu0 %v4561
        %4804 = vmatpush1.bf16.msra.mxu0 %v4560
        %4805 = vmatprep.subr.bf16.mxu0 %v4565
        %4806 = vmatpush1.bf16.msra.mxu0 %v4564
        %4807 = vmatprep.subr.bf16.mxu0 0
        %4808 = vmatpush1.bf16.msra.mxu0 0
        %4809 = vmatprep.subr.bf16.mxu0 0
        %4810 = vmatpush1.bf16.msra.mxu0 0
        %4811 = vmatprep.subr.bf16.mxu0 0
        %4812 = vmatpush1.bf16.msra.mxu0 0
        %4813 = vmatprep.subr.bf16.mxu0 0
        %4814 = vmatpush1.bf16.msra.mxu0 0
        %4815 = vmatprep.subr.bf16.mxu0 0
        %4816 = vmatpush1.bf16.msra.mxu0 0
        %4817 = vmatprep.subr.bf16.mxu0 0
        %4818 = vmatpush1.bf16.msra.mxu0 0
        %4819 = vmatprep.subr.bf16.mxu0 0
        %4820 = vmatpush1.bf16.msra.mxu0 0
        %4821 = vmatprep.subr.bf16.mxu0 0
        %4822 = vmatpush1.bf16.msra.mxu0 0
        %4823 = vmatprep.mubr.bf16.mxu0 0
        %4824 = vmatmul.mubr.bf16.gmra.mrb[0].mxu0 %v1793
        %v4825 = vpop.f32.mrb[0].mxu0
        %v4826 = vadd.f32 %v4783, %v4825
        %v4827 = vpop.f32.mrb[0].mxu0
        %v4828 = vadd.f32 %v4785, %v4827
        %v4829 = vpop.f32.mrb[0].mxu0
        %v4830 = vadd.f32 %v4787, %v4829
        %v4831 = vpop.f32.mrb[0].mxu0
        %v4832 = vadd.f32 %v4789, %v4831
        %4833 = vdwg.mxu0
        %v4842 = vrot.slane %v4740, 3
        %v4843 = vrot.slane %v4744, 3
        %v4844 = vsel %vm1197, %v4842, %v4843
        %v4845 = vrot.slane %v4742, 3
        %v4846 = vrot.slane %v4746, 3
        %v4847 = vsel %vm1197, %v4845, %v4846
        %v4848 = vrot.slane %v4826, 3
        %v4849 = vrot.slane %v4830, 3
        %v4850 = vsel %vm1197, %v4848, %v4849
        %v4851 = vrot.slane %v4828, 3
        %v4852 = vrot.slane %v4832, 3
        %v4853 = vsel %vm1197, %v4851, %v4852
        %v4858 = vadd.f32 %v4082, %v4844
        %v4859 = vadd.f32 %v4083, %v4847
        %v4860 = vadd.f32 %v4084, %v4850
        %v4861 = vadd.f32 %v4085, %v4853
        %v4862 = vld [vmem:[#allocation9 + $0x40] sm:$0xff]
        %v4863 = vld [vmem:[#allocation9 + $0x48] sm:$0xff]
        %v4864 = vld [vmem:[#allocation9 + $0x90] sm:$0xff]
        %v4865 = vld [vmem:[#allocation9 + $0x98] sm:$0xff]
        %v4866 = vld [vmem:[#allocation9 + $0xe0] sm:$0xff]
        %v4867 = vld [vmem:[#allocation9 + $0xe8] sm:$0xff]
        %v4868 = vld [vmem:[#allocation9 + $0x130] sm:$0xff]
        %v4869 = vld [vmem:[#allocation9 + $0x138] sm:$0xff]
        %v4870 = vld [vmem:[#allocation9 + $0x180] sm:$0xff]
        %v4871 = vld [vmem:[#allocation9 + $0x188] sm:$0xff]
        %v4872 = vld [vmem:[#allocation9 + $0x1d0] sm:$0xff]
        %v4873 = vld [vmem:[#allocation9 + $0x1d8] sm:$0xff]
        %v4874 = vld [vmem:[#allocation9 + $0x220] sm:$0xff]
        %v4875 = vld [vmem:[#allocation9 + $0x228] sm:$0xff]
        %v4876 = vld [vmem:[#allocation9 + $0x270] sm:$0xff]
        %v4877 = vld [vmem:[#allocation9 + $0x278] sm:$0xff]
        %v4878 = vld [vmem:[#allocation9 + $0x2c0] sm:$0xff]
        %v4879 = vld [vmem:[#allocation9 + $0x2c8] sm:$0xff]
        %v4880 = vld [vmem:[#allocation9 + $0x310] sm:$0xff]
        %v4881 = vld [vmem:[#allocation9 + $0x318] sm:$0xff]
        %v4882 = vld [vmem:[#allocation9 + $0x360] sm:$0xff]
        %v4883 = vld [vmem:[#allocation9 + $0x368] sm:$0xff]
        %v4884 = vld [vmem:[#allocation9 + $0x3b0] sm:$0xff]
        %v4885 = vld [vmem:[#allocation9 + $0x3b8] sm:$0xff]
        %v4886 = vld [vmem:[#allocation9 + $0x400] sm:$0xff]
        %v4887 = vld [vmem:[#allocation9 + $0x408] sm:$0xff]
        %v4888 = vld [vmem:[#allocation9 + $0x450] sm:$0xff]
        %v4889 = vld [vmem:[#allocation9 + $0x458] sm:$0xff]
        %v4890 = vld [vmem:[#allocation9 + $0x4a0] sm:$0xff]
        %v4891 = vld [vmem:[#allocation9 + $0x4a8] sm:$0xff]
        %v4892 = vld [vmem:[#allocation9 + $0x4f0] sm:$0xff]
        %v4893 = vld [vmem:[#allocation9 + $0x4f8] sm:$0xff]
        %v4894 = vld [vmem:[#allocation9 + $0x540] sm:$0xff]
        %v4895 = vld [vmem:[#allocation9 + $0x548] sm:$0xff]
        %v4896 = vld [vmem:[#allocation9 + $0x590] sm:$0xff]
        %v4897 = vld [vmem:[#allocation9 + $0x598] sm:$0xff]
        %v4898 = vld [vmem:[#allocation9 + $0x5e0] sm:$0xff]
        %v4899 = vld [vmem:[#allocation9 + $0x5e8] sm:$0xff]
        %v4900 = vld [vmem:[#allocation9 + $0x630] sm:$0xff]
        %v4901 = vld [vmem:[#allocation9 + $0x638] sm:$0xff]
        %v4902 = vld [vmem:[#allocation9 + $0x680] sm:$0xff]
        %v4903 = vld [vmem:[#allocation9 + $0x688] sm:$0xff]
        %v4904 = vld [vmem:[#allocation9 + $0x6d0] sm:$0xff]
        %v4905 = vld [vmem:[#allocation9 + $0x6d8] sm:$0xff]
        %v4906 = vld [vmem:[#allocation9 + $0x720] sm:$0xff]
        %v4907 = vld [vmem:[#allocation9 + $0x728] sm:$0xff]
        %v4908 = vld [vmem:[#allocation9 + $0x770] sm:$0xff]
        %v4909 = vld [vmem:[#allocation9 + $0x778] sm:$0xff]
        %v4910 = vld [vmem:[#allocation9 + $0x7c0] sm:$0xff]
        %v4911 = vld [vmem:[#allocation9 + $0x7c8] sm:$0xff]
        %v4912 = vld [vmem:[#allocation9 + $0x810] sm:$0xff]
        %v4913 = vld [vmem:[#allocation9 + $0x818] sm:$0xff]
        %v4914 = vld [vmem:[#allocation9 + $0x860] sm:$0xff]
        %v4915 = vld [vmem:[#allocation9 + $0x868] sm:$0xff]
        %v4916 = vld [vmem:[#allocation9 + $0x8b0] sm:$0xff]
        %v4917 = vld [vmem:[#allocation9 + $0x8b8] sm:$0xff]
        %v4918 = vld [vmem:[#allocation9 + $0x900] sm:$0xff]
        %v4919 = vld [vmem:[#allocation9 + $0x908] sm:$0xff]
        %v4920 = vld [vmem:[#allocation9 + $0x950] sm:$0xff]
        %v4921 = vld [vmem:[#allocation9 + $0x958] sm:$0xff]
        %v4922 = vld [vmem:[#allocation9 + $0x9a0] sm:$0xff]
        %v4923 = vld [vmem:[#allocation9 + $0x9a8] sm:$0xff]
        %v4924 = vld [vmem:[#allocation9 + $0x9f0] sm:$0xff]
        %v4925 = vld [vmem:[#allocation9 + $0x9f8] sm:$0xff]
        %v4926 = vld [vmem:[#allocation9 + $0xa40] sm:$0xff]
        %v4927 = vld [vmem:[#allocation9 + $0xa48] sm:$0xff]
        %v4928 = vld [vmem:[#allocation9 + $0xa90] sm:$0xff]
        %v4929 = vld [vmem:[#allocation9 + $0xa98] sm:$0xff]
        %v4930 = vld [vmem:[#allocation9 + $0xae0] sm:$0xff]
        %v4931 = vld [vmem:[#allocation9 + $0xae8] sm:$0xff]
        %v4932 = vld [vmem:[#allocation9 + $0xb30] sm:$0xff]
        %v4933 = vld [vmem:[#allocation9 + $0xb38] sm:$0xff]
        %v4934 = vld [vmem:[#allocation9 + $0xb80] sm:$0xff]
        %v4935 = vld [vmem:[#allocation9 + $0xb88] sm:$0xff]
        %v4936 = vld [vmem:[#allocation9 + $0xbd0] sm:$0xff]
        %v4937 = vld [vmem:[#allocation9 + $0xbd8] sm:$0xff]
        %v4938 = vld [vmem:[#allocation9 + $0xc20] sm:$0xff]
        %v4939 = vld [vmem:[#allocation9 + $0xc28] sm:$0xff]
        %v4940 = vld [vmem:[#allocation9 + $0xc70] sm:$0xff]
        %v4941 = vld [vmem:[#allocation9 + $0xc78] sm:$0xff]
        %v4942 = vld [vmem:[#allocation9 + $0xcc0] sm:$0xff]
        %v4943 = vld [vmem:[#allocation9 + $0xcc8] sm:$0xff]
        %v4944 = vld [vmem:[#allocation9 + $0xd10] sm:$0xff]
        %v4945 = vld [vmem:[#allocation9 + $0xd18] sm:$0xff]
        %v4946 = vld [vmem:[#allocation9 + $0xd60] sm:$0xff]
        %v4947 = vld [vmem:[#allocation9 + $0xd68] sm:$0xff]
        %v4948 = vld [vmem:[#allocation9 + $0xdb0] sm:$0xff]
        %v4949 = vld [vmem:[#allocation9 + $0xdb8] sm:$0xff]
        %v4950 = vld [vmem:[#allocation9 + $0xe00] sm:$0xff]
        %v4951 = vld [vmem:[#allocation9 + $0xe08] sm:$0xff]
        %v4952 = vld [vmem:[#allocation9 + $0xe50] sm:$0xff]
        %v4953 = vld [vmem:[#allocation9 + $0xe58] sm:$0xff]
        %v4954 = vld [vmem:[#allocation9 + $0xea0] sm:$0xff]
        %v4955 = vld [vmem:[#allocation9 + $0xea8] sm:$0xff]
        %v4956 = vld [vmem:[#allocation9 + $0xef0] sm:$0xff]
        %v4957 = vld [vmem:[#allocation9 + $0xef8] sm:$0xff]
        %v5054 = vunpack.c.l.b16 %v4862
        %v5055 = vunpack.c.h.b16 %v4862
        %v5056 = vunpack.c.l.b16 %v4863
        %v5057 = vunpack.c.h.b16 %v4863
        %v5058 = vunpack.c.l.b16 %v4864
        %v5059 = vunpack.c.h.b16 %v4864
        %v5060 = vunpack.c.l.b16 %v4865
        %v5061 = vunpack.c.h.b16 %v4865
        %v5062 = vunpack.c.l.b16 %v4866
        %v5063 = vunpack.c.h.b16 %v4866
        %v5064 = vunpack.c.l.b16 %v4867
        %v5065 = vunpack.c.h.b16 %v4867
        %v5066 = vunpack.c.l.b16 %v4868
        %v5067 = vunpack.c.h.b16 %v4868
        %v5068 = vunpack.c.l.b16 %v4869
        %v5069 = vunpack.c.h.b16 %v4869
        %v5070 = vunpack.c.l.b16 %v4870
        %v5071 = vunpack.c.h.b16 %v4870
        %v5072 = vunpack.c.l.b16 %v4871
        %v5073 = vunpack.c.h.b16 %v4871
        %v5074 = vunpack.c.l.b16 %v4872
        %v5075 = vunpack.c.h.b16 %v4872
        %v5076 = vunpack.c.l.b16 %v4873
        %v5077 = vunpack.c.h.b16 %v4873
        %v5078 = vunpack.c.l.b16 %v4874
        %v5079 = vunpack.c.h.b16 %v4874
        %v5080 = vunpack.c.l.b16 %v4875
        %v5081 = vunpack.c.h.b16 %v4875
        %v5082 = vunpack.c.l.b16 %v4876
        %v5083 = vunpack.c.h.b16 %v4876
        %v5084 = vunpack.c.l.b16 %v4877
        %v5085 = vunpack.c.h.b16 %v4877
        %v5086 = vunpack.c.l.b16 %v4878
        %v5087 = vunpack.c.h.b16 %v4878
        %v5088 = vunpack.c.l.b16 %v4879
        %v5089 = vunpack.c.h.b16 %v4879
        %v5090 = vunpack.c.l.b16 %v4880
        %v5091 = vunpack.c.h.b16 %v4880
        %v5092 = vunpack.c.l.b16 %v4881
        %v5093 = vunpack.c.h.b16 %v4881
        %v5094 = vunpack.c.l.b16 %v4882
        %v5095 = vunpack.c.h.b16 %v4882
        %v5096 = vunpack.c.l.b16 %v4883
        %v5097 = vunpack.c.h.b16 %v4883
        %v5098 = vunpack.c.l.b16 %v4884
        %v5099 = vunpack.c.h.b16 %v4884
        %v5100 = vunpack.c.l.b16 %v4885
        %v5101 = vunpack.c.h.b16 %v4885
        %v5102 = vunpack.c.l.b16 %v4886
        %v5103 = vunpack.c.h.b16 %v4886
        %v5104 = vunpack.c.l.b16 %v4887
        %v5105 = vunpack.c.h.b16 %v4887
        %v5106 = vunpack.c.l.b16 %v4888
        %v5107 = vunpack.c.h.b16 %v4888
        %v5108 = vunpack.c.l.b16 %v4889
        %v5109 = vunpack.c.h.b16 %v4889
        %v5110 = vunpack.c.l.b16 %v4890
        %v5111 = vunpack.c.h.b16 %v4890
        %v5112 = vunpack.c.l.b16 %v4891
        %v5113 = vunpack.c.h.b16 %v4891
        %v5114 = vunpack.c.l.b16 %v4892
        %v5115 = vunpack.c.h.b16 %v4892
        %v5116 = vunpack.c.l.b16 %v4893
        %v5117 = vunpack.c.h.b16 %v4893
        %v5118 = vunpack.c.l.b16 %v4894
        %v5119 = vunpack.c.h.b16 %v4894
        %v5120 = vunpack.c.l.b16 %v4895
        %v5121 = vunpack.c.h.b16 %v4895
        %v5122 = vunpack.c.l.b16 %v4896
        %v5123 = vunpack.c.h.b16 %v4896
        %v5124 = vunpack.c.l.b16 %v4897
        %v5125 = vunpack.c.h.b16 %v4897
        %v5126 = vunpack.c.l.b16 %v4898
        %v5127 = vunpack.c.h.b16 %v4898
        %v5128 = vunpack.c.l.b16 %v4899
        %v5129 = vunpack.c.h.b16 %v4899
        %v5130 = vunpack.c.l.b16 %v4900
        %v5131 = vunpack.c.h.b16 %v4900
        %v5132 = vunpack.c.l.b16 %v4901
        %v5133 = vunpack.c.h.b16 %v4901
        %v5134 = vunpack.c.l.b16 %v4902
        %v5135 = vunpack.c.h.b16 %v4902
        %v5136 = vunpack.c.l.b16 %v4903
        %v5137 = vunpack.c.h.b16 %v4903
        %v5138 = vunpack.c.l.b16 %v4904
        %v5139 = vunpack.c.h.b16 %v4904
        %v5140 = vunpack.c.l.b16 %v4905
        %v5141 = vunpack.c.h.b16 %v4905
        %v5142 = vunpack.c.l.b16 %v4906
        %v5143 = vunpack.c.h.b16 %v4906
        %v5144 = vunpack.c.l.b16 %v4907
        %v5145 = vunpack.c.h.b16 %v4907
        %v5146 = vunpack.c.l.b16 %v4908
        %v5147 = vunpack.c.h.b16 %v4908
        %v5148 = vunpack.c.l.b16 %v4909
        %v5149 = vunpack.c.h.b16 %v4909
        %v5150 = vunpack.c.l.b16 %v4910
        %v5151 = vunpack.c.h.b16 %v4910
        %v5152 = vunpack.c.l.b16 %v4911
        %v5153 = vunpack.c.h.b16 %v4911
        %v5154 = vunpack.c.l.b16 %v4912
        %v5155 = vunpack.c.h.b16 %v4912
        %v5156 = vunpack.c.l.b16 %v4913
        %v5157 = vunpack.c.h.b16 %v4913
        %v5158 = vunpack.c.l.b16 %v4914
        %v5159 = vunpack.c.h.b16 %v4914
        %v5160 = vunpack.c.l.b16 %v4915
        %v5161 = vunpack.c.h.b16 %v4915
        %v5162 = vunpack.c.l.b16 %v4916
        %v5163 = vunpack.c.h.b16 %v4916
        %v5164 = vunpack.c.l.b16 %v4917
        %v5165 = vunpack.c.h.b16 %v4917
        %v5166 = vunpack.c.l.b16 %v4918
        %v5167 = vunpack.c.h.b16 %v4918
        %v5168 = vunpack.c.l.b16 %v4919
        %v5169 = vunpack.c.h.b16 %v4919
        %v5170 = vunpack.c.l.b16 %v4920
        %v5171 = vunpack.c.h.b16 %v4920
        %v5172 = vunpack.c.l.b16 %v4921
        %v5173 = vunpack.c.h.b16 %v4921
        %v5174 = vunpack.c.l.b16 %v4922
        %v5175 = vunpack.c.h.b16 %v4922
        %v5176 = vunpack.c.l.b16 %v4923
        %v5177 = vunpack.c.h.b16 %v4923
        %v5178 = vunpack.c.l.b16 %v4924
        %v5179 = vunpack.c.h.b16 %v4924
        %v5180 = vunpack.c.l.b16 %v4925
        %v5181 = vunpack.c.h.b16 %v4925
        %v5182 = vunpack.c.l.b16 %v4926
        %v5183 = vunpack.c.h.b16 %v4926
        %v5184 = vunpack.c.l.b16 %v4927
        %v5185 = vunpack.c.h.b16 %v4927
        %v5186 = vunpack.c.l.b16 %v4928
        %v5187 = vunpack.c.h.b16 %v4928
        %v5188 = vunpack.c.l.b16 %v4929
        %v5189 = vunpack.c.h.b16 %v4929
        %v5190 = vunpack.c.l.b16 %v4930
        %v5191 = vunpack.c.h.b16 %v4930
        %v5192 = vunpack.c.l.b16 %v4931
        %v5193 = vunpack.c.h.b16 %v4931
        %v5194 = vunpack.c.l.b16 %v4932
        %v5195 = vunpack.c.h.b16 %v4932
        %v5196 = vunpack.c.l.b16 %v4933
        %v5197 = vunpack.c.h.b16 %v4933
        %v5198 = vunpack.c.l.b16 %v4934
        %v5199 = vunpack.c.h.b16 %v4934
        %v5200 = vunpack.c.l.b16 %v4935
        %v5201 = vunpack.c.h.b16 %v4935
        %v5202 = vunpack.c.l.b16 %v4936
        %v5203 = vunpack.c.h.b16 %v4936
        %v5204 = vunpack.c.l.b16 %v4937
        %v5205 = vunpack.c.h.b16 %v4937
        %v5206 = vunpack.c.l.b16 %v4938
        %v5207 = vunpack.c.h.b16 %v4938
        %v5208 = vunpack.c.l.b16 %v4939
        %v5209 = vunpack.c.h.b16 %v4939
        %v5210 = vunpack.c.l.b16 %v4940
        %v5211 = vunpack.c.h.b16 %v4940
        %v5212 = vunpack.c.l.b16 %v4941
        %v5213 = vunpack.c.h.b16 %v4941
        %v5214 = vunpack.c.l.b16 %v4942
        %v5215 = vunpack.c.h.b16 %v4942
        %v5216 = vunpack.c.l.b16 %v4943
        %v5217 = vunpack.c.h.b16 %v4943
        %v5218 = vunpack.c.l.b16 %v4944
        %v5219 = vunpack.c.h.b16 %v4944
        %v5220 = vunpack.c.l.b16 %v4945
        %v5221 = vunpack.c.h.b16 %v4945
        %v5222 = vunpack.c.l.b16 %v4946
        %v5223 = vunpack.c.h.b16 %v4946
        %v5224 = vunpack.c.l.b16 %v4947
        %v5225 = vunpack.c.h.b16 %v4947
        %v5226 = vunpack.c.l.b16 %v4948
        %v5227 = vunpack.c.h.b16 %v4948
        %v5228 = vunpack.c.l.b16 %v4949
        %v5229 = vunpack.c.h.b16 %v4949
        %v5230 = vunpack.c.l.b16 %v4950
        %v5231 = vunpack.c.h.b16 %v4950
        %v5232 = vunpack.c.l.b16 %v4951
        %v5233 = vunpack.c.h.b16 %v4951
        %v5234 = vunpack.c.l.b16 %v4952
        %v5235 = vunpack.c.h.b16 %v4952
        %v5236 = vunpack.c.l.b16 %v4953
        %v5237 = vunpack.c.h.b16 %v4953
        %v5238 = vunpack.c.l.b16 %v4954
        %v5239 = vunpack.c.h.b16 %v4954
        %v5240 = vunpack.c.l.b16 %v4955
        %v5241 = vunpack.c.h.b16 %v4955
        %v5242 = vunpack.c.l.b16 %v4956
        %v5243 = vunpack.c.h.b16 %v4956
        %v5244 = vunpack.c.l.b16 %v4957
        %v5245 = vunpack.c.h.b16 %v4957
        %v5246 = vpack.c.b16 %v5058, %v5054
        %v5247 = vpack.c.b16 %v5059, %v5055
        %v5248 = vpack.c.b16 %v5060, %v5056
        %v5249 = vpack.c.b16 %v5061, %v5057
        %v5250 = vpack.c.b16 %v5066, %v5062
        %v5251 = vpack.c.b16 %v5067, %v5063
        %v5252 = vpack.c.b16 %v5068, %v5064
        %v5253 = vpack.c.b16 %v5069, %v5065
        %v5254 = vpack.c.b16 %v5074, %v5070
        %v5255 = vpack.c.b16 %v5075, %v5071
        %v5256 = vpack.c.b16 %v5076, %v5072
        %v5257 = vpack.c.b16 %v5077, %v5073
        %v5258 = vpack.c.b16 %v5082, %v5078
        %v5259 = vpack.c.b16 %v5083, %v5079
        %v5260 = vpack.c.b16 %v5084, %v5080
        %v5261 = vpack.c.b16 %v5085, %v5081
        %v5262 = vpack.c.b16 %v5090, %v5086
        %v5263 = vpack.c.b16 %v5091, %v5087
        %v5264 = vpack.c.b16 %v5092, %v5088
        %v5265 = vpack.c.b16 %v5093, %v5089
        %v5266 = vpack.c.b16 %v5098, %v5094
        %v5267 = vpack.c.b16 %v5099, %v5095
        %v5268 = vpack.c.b16 %v5100, %v5096
        %v5269 = vpack.c.b16 %v5101, %v5097
        %v5270 = vpack.c.b16 %v5106, %v5102
        %v5271 = vpack.c.b16 %v5107, %v5103
        %v5272 = vpack.c.b16 %v5108, %v5104
        %v5273 = vpack.c.b16 %v5109, %v5105
        %v5274 = vpack.c.b16 %v5114, %v5110
        %v5275 = vpack.c.b16 %v5115, %v5111
        %v5276 = vpack.c.b16 %v5116, %v5112
        %v5277 = vpack.c.b16 %v5117, %v5113
        %v5278 = vpack.c.b16 %v5122, %v5118
        %v5279 = vpack.c.b16 %v5123, %v5119
        %v5280 = vpack.c.b16 %v5124, %v5120
        %v5281 = vpack.c.b16 %v5125, %v5121
        %v5282 = vpack.c.b16 %v5130, %v5126
        %v5283 = vpack.c.b16 %v5131, %v5127
        %v5284 = vpack.c.b16 %v5132, %v5128
        %v5285 = vpack.c.b16 %v5133, %v5129
        %v5286 = vpack.c.b16 %v5138, %v5134
        %v5287 = vpack.c.b16 %v5139, %v5135
        %v5288 = vpack.c.b16 %v5140, %v5136
        %v5289 = vpack.c.b16 %v5141, %v5137
        %v5290 = vpack.c.b16 %v5146, %v5142
        %v5291 = vpack.c.b16 %v5147, %v5143
        %v5292 = vpack.c.b16 %v5148, %v5144
        %v5293 = vpack.c.b16 %v5149, %v5145
        %v5294 = vpack.c.b16 %v5154, %v5150
        %v5295 = vpack.c.b16 %v5155, %v5151
        %v5296 = vpack.c.b16 %v5156, %v5152
        %v5297 = vpack.c.b16 %v5157, %v5153
        %v5298 = vpack.c.b16 %v5162, %v5158
        %v5299 = vpack.c.b16 %v5163, %v5159
        %v5300 = vpack.c.b16 %v5164, %v5160
        %v5301 = vpack.c.b16 %v5165, %v5161
        %v5302 = vpack.c.b16 %v5170, %v5166
        %v5303 = vpack.c.b16 %v5171, %v5167
        %v5304 = vpack.c.b16 %v5172, %v5168
        %v5305 = vpack.c.b16 %v5173, %v5169
        %v5306 = vpack.c.b16 %v5178, %v5174
        %v5307 = vpack.c.b16 %v5179, %v5175
        %v5308 = vpack.c.b16 %v5180, %v5176
        %v5309 = vpack.c.b16 %v5181, %v5177
        %v5310 = vpack.c.b16 %v5186, %v5182
        %v5311 = vpack.c.b16 %v5187, %v5183
        %v5312 = vpack.c.b16 %v5188, %v5184
        %v5313 = vpack.c.b16 %v5189, %v5185
        %v5314 = vpack.c.b16 %v5194, %v5190
        %v5315 = vpack.c.b16 %v5195, %v5191
        %v5316 = vpack.c.b16 %v5196, %v5192
        %v5317 = vpack.c.b16 %v5197, %v5193
        %v5318 = vpack.c.b16 %v5202, %v5198
        %v5319 = vpack.c.b16 %v5203, %v5199
        %v5320 = vpack.c.b16 %v5204, %v5200
        %v5321 = vpack.c.b16 %v5205, %v5201
        %v5322 = vpack.c.b16 %v5210, %v5206
        %v5323 = vpack.c.b16 %v5211, %v5207
        %v5324 = vpack.c.b16 %v5212, %v5208
        %v5325 = vpack.c.b16 %v5213, %v5209
        %v5326 = vpack.c.b16 %v5218, %v5214
        %v5327 = vpack.c.b16 %v5219, %v5215
        %v5328 = vpack.c.b16 %v5220, %v5216
        %v5329 = vpack.c.b16 %v5221, %v5217
        %v5330 = vpack.c.b16 %v5226, %v5222
        %v5331 = vpack.c.b16 %v5227, %v5223
        %v5332 = vpack.c.b16 %v5228, %v5224
        %v5333 = vpack.c.b16 %v5229, %v5225
        %v5334 = vpack.c.b16 %v5234, %v5230
        %v5335 = vpack.c.b16 %v5235, %v5231
        %v5336 = vpack.c.b16 %v5236, %v5232
        %v5337 = vpack.c.b16 %v5237, %v5233
        %v5338 = vpack.c.b16 %v5242, %v5238
        %v5339 = vpack.c.b16 %v5243, %v5239
        %v5340 = vpack.c.b16 %v5244, %v5240
        %v5341 = vpack.c.b16 %v5245, %v5241
        %5438 = vmatprep.subr.bf16.mxu0 %v5247
        %5439 = vmatpush1.bf16.msra.mxu0 %v5246
        %5440 = vmatprep.subr.bf16.mxu0 %v5251
        %5441 = vmatpush1.bf16.msra.mxu0 %v5250
        %5442 = vmatprep.subr.bf16.mxu0 %v5255
        %5443 = vmatpush1.bf16.msra.mxu0 %v5254
        %5444 = vmatprep.subr.bf16.mxu0 %v5259
        %5445 = vmatpush1.bf16.msra.mxu0 %v5258
        %5446 = vmatprep.subr.bf16.mxu0 %v5263
        %5447 = vmatpush1.bf16.msra.mxu0 %v5262
        %5448 = vmatprep.subr.bf16.mxu0 %v5267
        %5449 = vmatpush1.bf16.msra.mxu0 %v5266
        %5450 = vmatprep.subr.bf16.mxu0 %v5271
        %5451 = vmatpush1.bf16.msra.mxu0 %v5270
        %5452 = vmatprep.subr.bf16.mxu0 %v5275
        %5453 = vmatpush1.bf16.msra.mxu0 %v5274
        %5454 = vmatprep.subr.bf16.mxu0 %v5279
        %5455 = vmatpush1.bf16.msra.mxu0 %v5278
        %5456 = vmatprep.subr.bf16.mxu0 %v5283
        %5457 = vmatpush1.bf16.msra.mxu0 %v5282
        %5458 = vmatprep.subr.bf16.mxu0 %v5287
        %5459 = vmatpush1.bf16.msra.mxu0 %v5286
        %5460 = vmatprep.subr.bf16.mxu0 %v5291
        %5461 = vmatpush1.bf16.msra.mxu0 %v5290
        %5462 = vmatprep.subr.bf16.mxu0 %v5295
        %5463 = vmatpush1.bf16.msra.mxu0 %v5294
        %5464 = vmatprep.subr.bf16.mxu0 %v5299
        %5465 = vmatpush1.bf16.msra.mxu0 %v5298
        %5466 = vmatprep.subr.bf16.mxu0 %v5303
        %5467 = vmatpush1.bf16.msra.mxu0 %v5302
        %5468 = vmatprep.subr.bf16.mxu0 %v5307
        %5469 = vmatpush1.bf16.msra.mxu0 %v5306
        %5470 = vmatprep.mubr.bf16.mxu0 %v1792
        %5471 = vmatmul.mubr.bf16.gmra.mrb[0].mxu0 %v1791
        %v5472 = vpop.f32.mrb[0].mxu0
        %v5473 = vadd.f32 0.0, %v5472
        %v5474 = vpop.f32.mrb[0].mxu0
        %v5475 = vadd.f32 0.0, %v5474
        %v5476 = vpop.f32.mrb[0].mxu0
        %v5477 = vadd.f32 0.0, %v5476
        %v5478 = vpop.f32.mrb[0].mxu0
        %v5479 = vadd.f32 0.0, %v5478
        %5480 = vdwg.mxu0
        %5481 = vmatprep.subr.bf16.mxu0 %v5311
        %5482 = vmatpush1.bf16.msra.mxu0 %v5310
        %5483 = vmatprep.subr.bf16.mxu0 %v5315
        %5484 = vmatpush1.bf16.msra.mxu0 %v5314
        %5485 = vmatprep.subr.bf16.mxu0 %v5319
        %5486 = vmatpush1.bf16.msra.mxu0 %v5318
        %5487 = vmatprep.subr.bf16.mxu0 %v5323
        %5488 = vmatpush1.bf16.msra.mxu0 %v5322
        %5489 = vmatprep.subr.bf16.mxu0 %v5327
        %5490 = vmatpush1.bf16.msra.mxu0 %v5326
        %5491 = vmatprep.subr.bf16.mxu0 %v5331
        %5492 = vmatpush1.bf16.msra.mxu0 %v5330
        %5493 = vmatprep.subr.bf16.mxu0 %v5335
        %5494 = vmatpush1.bf16.msra.mxu0 %v5334
        %5495 = vmatprep.subr.bf16.mxu0 %v5339
        %5496 = vmatpush1.bf16.msra.mxu0 %v5338
        %5497 = vmatprep.subr.bf16.mxu0 0
        %5498 = vmatpush1.bf16.msra.mxu0 0
        %5499 = vmatprep.subr.bf16.mxu0 0
        %5500 = vmatpush1.bf16.msra.mxu0 0
        %5501 = vmatprep.subr.bf16.mxu0 0
        %5502 = vmatpush1.bf16.msra.mxu0 0
        %5503 = vmatprep.subr.bf16.mxu0 0
        %5504 = vmatpush1.bf16.msra.mxu0 0
        %5505 = vmatprep.subr.bf16.mxu0 0
        %5506 = vmatpush1.bf16.msra.mxu0 0
        %5507 = vmatprep.subr.bf16.mxu0 0
        %5508 = vmatpush1.bf16.msra.mxu0 0
        %5509 = vmatprep.subr.bf16.mxu0 0
        %5510 = vmatpush1.bf16.msra.mxu0 0
        %5511 = vmatprep.subr.bf16.mxu0 0
        %5512 = vmatpush1.bf16.msra.mxu0 0
        %5513 = vmatprep.mubr.bf16.mxu0 0
        %5514 = vmatmul.mubr.bf16.gmra.mrb[0].mxu0 %v1793
        %v5515 = vpop.f32.mrb[0].mxu0
        %v5516 = vadd.f32 %v5473, %v5515
        %v5517 = vpop.f32.mrb[0].mxu0
        %v5518 = vadd.f32 %v5475, %v5517
        %v5519 = vpop.f32.mrb[0].mxu0
        %v5520 = vadd.f32 %v5477, %v5519
        %v5521 = vpop.f32.mrb[0].mxu0
        %v5522 = vadd.f32 %v5479, %v5521
        %5523 = vdwg.mxu0
        %5524 = vmatprep.subr.bf16.mxu0 %v5249
        %5525 = vmatpush1.bf16.msra.mxu0 %v5248
        %5526 = vmatprep.subr.bf16.mxu0 %v5253
        %5527 = vmatpush1.bf16.msra.mxu0 %v5252
        %5528 = vmatprep.subr.bf16.mxu0 %v5257
        %5529 = vmatpush1.bf16.msra.mxu0 %v5256
        %5530 = vmatprep.subr.bf16.mxu0 %v5261
        %5531 = vmatpush1.bf16.msra.mxu0 %v5260
        %5532 = vmatprep.subr.bf16.mxu0 %v5265
        %5533 = vmatpush1.bf16.msra.mxu0 %v5264
        %5534 = vmatprep.subr.bf16.mxu0 %v5269
        %5535 = vmatpush1.bf16.msra.mxu0 %v5268
        %5536 = vmatprep.subr.bf16.mxu0 %v5273
        %5537 = vmatpush1.bf16.msra.mxu0 %v5272
        %5538 = vmatprep.subr.bf16.mxu0 %v5277
        %5539 = vmatpush1.bf16.msra.mxu0 %v5276
        %5540 = vmatprep.subr.bf16.mxu0 %v5281
        %5541 = vmatpush1.bf16.msra.mxu0 %v5280
        %5542 = vmatprep.subr.bf16.mxu0 %v5285
        %5543 = vmatpush1.bf16.msra.mxu0 %v5284
        %5544 = vmatprep.subr.bf16.mxu0 %v5289
        %5545 = vmatpush1.bf16.msra.mxu0 %v5288
        %5546 = vmatprep.subr.bf16.mxu0 %v5293
        %5547 = vmatpush1.bf16.msra.mxu0 %v5292
        %5548 = vmatprep.subr.bf16.mxu0 %v5297
        %5549 = vmatpush1.bf16.msra.mxu0 %v5296
        %5550 = vmatprep.subr.bf16.mxu0 %v5301
        %5551 = vmatpush1.bf16.msra.mxu0 %v5300
        %5552 = vmatprep.subr.bf16.mxu0 %v5305
        %5553 = vmatpush1.bf16.msra.mxu0 %v5304
        %5554 = vmatprep.subr.bf16.mxu0 %v5309
        %5555 = vmatpush1.bf16.msra.mxu0 %v5308
        %5556 = vmatprep.mubr.bf16.mxu0 %v1792
        %5557 = vmatmul.mubr.bf16.gmra.mrb[0].mxu0 %v1791
        %v5558 = vpop.f32.mrb[0].mxu0
        %v5559 = vadd.f32 0.0, %v5558
        %v5560 = vpop.f32.mrb[0].mxu0
        %v5561 = vadd.f32 0.0, %v5560
        %v5562 = vpop.f32.mrb[0].mxu0
        %v5563 = vadd.f32 0.0, %v5562
        %v5564 = vpop.f32.mrb[0].mxu0
        %v5565 = vadd.f32 0.0, %v5564
        %5566 = vdwg.mxu0
        %5567 = vmatprep.subr.bf16.mxu0 %v5313
        %5568 = vmatpush1.bf16.msra.mxu0 %v5312
        %5569 = vmatprep.subr.bf16.mxu0 %v5317
        %5570 = vmatpush1.bf16.msra.mxu0 %v5316
        %5571 = vmatprep.subr.bf16.mxu0 %v5321
        %5572 = vmatpush1.bf16.msra.mxu0 %v5320
        %5573 = vmatprep.subr.bf16.mxu0 %v5325
        %5574 = vmatpush1.bf16.msra.mxu0 %v5324
        %5575 = vmatprep.subr.bf16.mxu0 %v5329
        %5576 = vmatpush1.bf16.msra.mxu0 %v5328
        %5577 = vmatprep.subr.bf16.mxu0 %v5333
        %5578 = vmatpush1.bf16.msra.mxu0 %v5332
        %5579 = vmatprep.subr.bf16.mxu0 %v5337
        %5580 = vmatpush1.bf16.msra.mxu0 %v5336
        %5581 = vmatprep.subr.bf16.mxu0 %v5341
        %5582 = vmatpush1.bf16.msra.mxu0 %v5340
        %5583 = vmatprep.subr.bf16.mxu0 0
        %5584 = vmatpush1.bf16.msra.mxu0 0
        %5585 = vmatprep.subr.bf16.mxu0 0
        %5586 = vmatpush1.bf16.msra.mxu0 0
        %5587 = vmatprep.subr.bf16.mxu0 0
        %5588 = vmatpush1.bf16.msra.mxu0 0
        %5589 = vmatprep.subr.bf16.mxu0 0
        %5590 = vmatpush1.bf16.msra.mxu0 0
        %5591 = vmatprep.subr.bf16.mxu0 0
        %5592 = vmatpush1.bf16.msra.mxu0 0
        %5593 = vmatprep.subr.bf16.mxu0 0
        %5594 = vmatpush1.bf16.msra.mxu0 0
        %5595 = vmatprep.subr.bf16.mxu0 0
        %5596 = vmatpush1.bf16.msra.mxu0 0
        %5597 = vmatprep.subr.bf16.mxu0 0
        %5598 = vmatpush1.bf16.msra.mxu0 0
        %5599 = vmatprep.mubr.bf16.mxu0 0
        %5600 = vmatmul.mubr.bf16.gmra.mrb[0].mxu0 %v1793
        %v5601 = vpop.f32.mrb[0].mxu0
        %v5602 = vadd.f32 %v5559, %v5601
        %v5603 = vpop.f32.mrb[0].mxu0
        %v5604 = vadd.f32 %v5561, %v5603
        %v5605 = vpop.f32.mrb[0].mxu0
        %v5606 = vadd.f32 %v5563, %v5605
        %v5607 = vpop.f32.mrb[0].mxu0
        %v5608 = vadd.f32 %v5565, %v5607
        %5609 = vdwg.mxu0
        %v5618 = vrot.slane %v5516, 4
        %v5619 = vrot.slane %v5520, 4
        %v5620 = vsel %vm342, %v5618, %v5619
        %v5621 = vrot.slane %v5518, 4
        %v5622 = vrot.slane %v5522, 4
        %v5623 = vsel %vm342, %v5621, %v5622
        %v5624 = vrot.slane %v5602, 4
        %v5625 = vrot.slane %v5606, 4
        %v5626 = vsel %vm342, %v5624, %v5625
        %v5627 = vrot.slane %v5604, 4
        %v5628 = vrot.slane %v5608, 4
        %v5629 = vsel %vm342, %v5627, %v5628
        %v5634 = vadd.f32 %v4858, %v5620
        %v5635 = vadd.f32 %v4859, %v5623
        %v5636 = vadd.f32 %v4860, %v5626
        %v5637 = vadd.f32 %v4861, %v5629
        %v5638 = vld [vmem:[#allocation11] sm:$0xf]
        %v5640 = vlaneseq
        %v5641 = vshrl.u32 %v5640, 7
        %v5642 = vsub.s32 0, %v5641
        %v5643 = vrot.slane %v5638, %v5642
        %v5644 = vlaneseq
        %v5645 = vshrl.u32 %v5644, 7
        %v5646 = vsub.s32 1, %v5645
        %v5647 = vrot.slane %v5638, %v5646
        %v5648 = vlaneseq
        %v5649 = vshrl.u32 %v5648, 7
        %v5650 = vsub.s32 2, %v5649
        %v5651 = vrot.slane %v5638, %v5650
        %v5652 = vlaneseq
        %v5653 = vshrl.u32 %v5652, 7
        %v5654 = vsub.s32 3, %v5653
        %v5655 = vrot.slane %v5638, %v5654
        %v5660 = vadd.f32 %v5634, %v5643
        %v5661 = vadd.f32 %v5635, %v5647
        %v5662 = vadd.f32 %v5636, %v5651
        %v5663 = vadd.f32 %v5637, %v5655
        %v5664 = vmax.f32 %v5660, 0.0
        %v5665 = vmax.f32 %v5661, 0.0
        %v5666 = vmax.f32 %v5662, 0.0
        %v5667 = vmax.f32 %v5663, 0.0
        %v5672 = vcombine.low %v5664, %v5665
        %v5673 = vcombine.high %v5664, %v5665
        %v5674 = vcombine.low %v5666, %v5667
        %v5675 = vcombine.high %v5666, %v5667
        %v5677 = vunpack.c.l.s4 1983009808
        %v5678 = vunpack.c.0.s8 %v5677
        %v5679 = vlaneseq
        %v5680 = vshrl.u32 %v5679, 7
        %v5681 = vsub.s32 %v5678, %v5680
        %v5682 = vrot.slane %v5672, %v5681
        %v5684 = vunpack.c.l.s4 1983009808
        %v5685 = vunpack.c.0.s8 %v5684
        %v5686 = vlaneseq
        %v5687 = vshrl.u32 %v5686, 7
        %v5688 = vsub.s32 %v5685, %v5687
        %v5689 = vrot.slane %v5673, %v5688
        %v5691 = vunpack.c.l.s4 1983009808
        %v5692 = vunpack.c.0.s8 %v5691
        %v5693 = vlaneseq
        %v5694 = vshrl.u32 %v5693, 7
        %v5695 = vsub.s32 %v5692, %v5694
        %v5696 = vrot.slane %v5674, %v5695
        %v5698 = vunpack.c.l.s4 1983009808
        %v5699 = vunpack.c.0.s8 %v5698
        %v5700 = vlaneseq
        %v5701 = vshrl.u32 %v5700, 7
        %v5702 = vsub.s32 %v5699, %v5701
        %v5703 = vrot.slane %v5675, %v5702
        %v5704 = vcombine.low %v5682, %v5696
        %v5705 = vcombine.high %v5682, %v5696
        %v5706 = vcombine.low %v5689, %v5703
        %v5707 = vcombine.high %v5689, %v5703
        %v5712 = vrot.slane %v5704, 7
        %v5713 = vrot.slane %v5712, 2
        %v5714 = vrot.slane %v5705, 7
        %v5715 = vrot.slane %v5714, 2
        %v5716 = vrot.slane %v5706, 7
        %v5717 = vrot.slane %v5716, 2
        %v5718 = vrot.slane %v5707, 7
        %v5719 = vrot.slane %v5718, 2
        %v5724 = vmax.f32 %v5704, %v5713
        %v5725 = vmax.f32 %v5705, %v5715
        %v5726 = vmax.f32 %v5706, %v5717
        %v5727 = vmax.f32 %v5707, %v5719
        %v5732 = vrot.slane %v5724, 4
        %v5733 = vrot.slane %v5725, 4
        %v5734 = vrot.slane %v5726, 4
        %v5735 = vrot.slane %v5727, 4
        %v5740 = vmax.f32 %v5724, %v5732
        %v5741 = vmax.f32 %v5725, %v5733
        %v5742 = vmax.f32 %v5726, %v5734
        %v5743 = vmax.f32 %v5727, %v5735
        %v5748 = vlaneseq
        %v5749 = vshrl.u32 %v5748, 7
        %v5750 = vsub.s32 0, %v5749
        %v5751 = vrot.slane %v5740, %v5750
        %v5752 = vlaneseq
        %v5753 = vshrl.u32 %v5752, 7
        %v5754 = vsub.s32 2, %v5753
        %v5755 = vrot.slane %v5740, %v5754
        %v5756 = vlaneseq
        %v5757 = vshrl.u32 %v5756, 7
        %v5758 = vsub.s32 0, %v5757
        %v5759 = vrot.slane %v5741, %v5758
        %v5760 = vlaneseq
        %v5761 = vshrl.u32 %v5760, 7
        %v5762 = vsub.s32 2, %v5761
        %v5763 = vrot.slane %v5741, %v5762
        %v5764 = vlaneseq
        %v5765 = vshrl.u32 %v5764, 7
        %v5766 = vsub.s32 0, %v5765
        %v5767 = vrot.slane %v5742, %v5766
        %v5768 = vlaneseq
        %v5769 = vshrl.u32 %v5768, 7
        %v5770 = vsub.s32 2, %v5769
        %v5771 = vrot.slane %v5742, %v5770
        %v5772 = vlaneseq
        %v5773 = vshrl.u32 %v5772, 7
        %v5774 = vsub.s32 0, %v5773
        %v5775 = vrot.slane %v5743, %v5774
        %v5776 = vlaneseq
        %v5777 = vshrl.u32 %v5776, 7
        %v5778 = vsub.s32 2, %v5777
        %v5779 = vrot.slane %v5743, %v5778
        %v5788 = vpack.c.bf16 %v5751, %v5751
        %v5789 = vpack.c.bf16 %v5755, %v5755
        %v5790 = vpack.c.bf16 %v5759, %v5759
        %v5791 = vpack.c.bf16 %v5763, %v5763
        %v5792 = vpack.c.bf16 %v5767, %v5767
        %v5793 = vpack.c.bf16 %v5771, %v5771
        %v5794 = vpack.c.bf16 %v5775, %v5775
        %v5795 = vpack.c.bf16 %v5779, %v5779
        %v5804 = vcombine.low %v5788, %v5789
        %v5806 = vunpack.c.l.s4 1983009808
        %v5807 = vunpack.c.0.s8 %v5806
        %v5808 = vlaneseq
        %v5809 = vshrl.u32 %v5808, 7
        %v5810 = vsub.s32 %v5807, %v5809
        %v5811 = vrot.slane %v5804, %v5810
        %v5812 = vcombine.low %v5790, %v5791
        %v5814 = vunpack.c.l.s4 1983009808
        %v5815 = vunpack.c.0.s8 %v5814
        %v5816 = vlaneseq
        %v5817 = vshrl.u32 %v5816, 7
        %v5818 = vsub.s32 %v5815, %v5817
        %v5819 = vrot.slane %v5812, %v5818
        %v5820 = vcombine.low %v5792, %v5793
        %v5822 = vunpack.c.l.s4 1983009808
        %v5823 = vunpack.c.0.s8 %v5822
        %v5824 = vlaneseq
        %v5825 = vshrl.u32 %v5824, 7
        %v5826 = vsub.s32 %v5823, %v5825
        %v5827 = vrot.slane %v5820, %v5826
        %v5828 = vcombine.low %v5794, %v5795
        %v5830 = vunpack.c.l.s4 1983009808
        %v5831 = vunpack.c.0.s8 %v5830
        %v5832 = vlaneseq
        %v5833 = vshrl.u32 %v5832, 7
        %v5834 = vsub.s32 %v5831, %v5833
        %v5835 = vrot.slane %v5828, %v5834
        %v5837 = vunpack.c.l.s4 1983009808
        %v5838 = vunpack.c.0.s8 %v5837
        %v5839 = vlaneseq
        %v5840 = vshrl.u32 %v5839, 7
        %v5841 = vsub.s32 %v5838, %v5840
        %v5842 = vrot.slane %v5811, %v5841
        %v5844 = vunpack.c.l.s4 1983009808
        %v5845 = vunpack.c.0.s8 %v5844
        %v5846 = vlaneseq
        %v5847 = vshrl.u32 %v5846, 7
        %v5848 = vsub.s32 %v5845, %v5847
        %v5849 = vrot.slane %v5819, %v5848
        %v5851 = vunpack.c.l.s4 1983009808
        %v5852 = vunpack.c.0.s8 %v5851
        %v5853 = vlaneseq
        %v5854 = vshrl.u32 %v5853, 7
        %v5855 = vsub.s32 %v5852, %v5854
        %v5856 = vrot.slane %v5827, %v5855
        %v5858 = vunpack.c.l.s4 1983009808
        %v5859 = vunpack.c.0.s8 %v5858
        %v5860 = vlaneseq
        %v5861 = vshrl.u32 %v5860, 7
        %v5862 = vsub.s32 %v5859, %v5861
        %v5863 = vrot.slane %v5835, %v5862
        %v5864 = vunpack.c.l.b16 %v5842
        %v5865 = vunpack.c.h.b16 %v5842
        %v5866 = vunpack.c.l.b16 %v5849
        %v5867 = vunpack.c.h.b16 %v5849
        %v5868 = vunpack.c.l.b16 %v5856
        %v5869 = vunpack.c.h.b16 %v5856
        %v5870 = vunpack.c.l.b16 %v5863
        %v5871 = vunpack.c.h.b16 %v5863
        %v5872 = vrot.slane %v5866, 7
        %v5873 = vsel %vm1755, %v5872, %v5864
        %v5874 = vrot.slane %v5868, 6
        %vm5875 = vcmask 1042434
        %v5876 = vsel %vm5875, %v5874, %v5873
        %v5877 = vrot.slane %v5870, 5
        %v5878 = vsel %vm1740, %v5877, %v5876
        %v5879 = vrot.slane %v5867, 7
        %v5880 = vsel %vm1755, %v5879, %v5865
        %v5881 = vrot.slane %v5869, 6
        %v5882 = vsel %vm5875, %v5881, %v5880
        %v5883 = vrot.slane %v5871, 5
        %v5884 = vsel %vm1740, %v5883, %v5882
        %v5885 = vpack.c.b16 %v5884, %v5878
        %v5887 = vunpack.c.l.s4 1983009808
        %v5888 = vunpack.c.0.s8 %v5887
        %v5889 = vlaneseq
        %v5890 = vshrl.u32 %v5889, 7
        %v5891 = vsub.s32 %v5888, %v5890
        %v5892 = vrot.slane %v5885, %v5891
        %5894 = vst [vmem:[%s298] sm:$0xf] %v5892
        %p5895 = scmp.lt.s32.totalorder %s21, 1
        %s5896 = scalar_select %p5895, %s21, 1
        %s5897 = smul.addr %s5896, 2
        %s5898 = smul.addr %s5897, 2
        %s5899 = scalar_lea.vmem %s5, %s5898
        // Predicated region
        $region61: #{astrodash_forward.3} parent=39 // pred_check
          %p5900 = pneg %p149
        $region62: #{astrodash_forward.3} parent=39 // pred_check_branch
          %5902 = sbr.rel (%p5900) target = $region64
        $region63: #{astrodash_forward.3} parent=39 // pred_region
          _
        $region64: #{astrodash_forward.3} parent=39 // pred_fallthru
          _
      $region40: #{astrodash_forward.3} parent=5 // pred_fallthru
        _
      %p5903 = scmp.le.s32.totalorder 2, %s16
      // Predicated region
      $region65: #{astrodash_forward.3} parent=5 // pred_check
        %p5904 = pneg %p5903
      $region66: #{astrodash_forward.3} parent=5 // pred_check_branch
        %5906 = sbr.rel (%p5904) target = $region68
      $region67: #{astrodash_forward.3} parent=5 // pred_region
        %s5907 = ssub.s32 %s16, 2
        // Predicated region
        $region69: #{astrodash_forward.3} parent=67 // pred_check
          %p5908 = pneg %p155
        $region70: #{astrodash_forward.3} parent=67 // pred_check_branch
          %5910 = sbr.rel (%p5908) target = $region72
        $region71: #{astrodash_forward.3} parent=67 // pred_region
          %p5911 = scmp.lt.s32.totalorder %s22, 1
          %s5912 = scalar_select %p5911, %s22, 1
          %s5913 = smul.addr %s5912, 2
          %s5914 = smul.addr %s5913, 2
          %s5915 = scalar_lea.vmem %s5, %s5914
        $region72: #{astrodash_forward.3} parent=67 // pred_fallthru
          _
      $region68: #{astrodash_forward.3} parent=5 // pred_fallthru
        _
    $region6: #{astrodash_forward.3} parent=1 // loop_footer
      %s20 = sadd.s32 1, %s16
    $region7: #{astrodash_forward.3} parent=1 // loop_footer_branch
      %15 = sbr.rel target = $region3
    $region8: #{astrodash_forward.3} parent=1 // loop_exit
      _
    %5916 = vsyncpa [#allocation5], 1
    %s5917 = scalar_lea.sflag [#allocation5], 1
    %5918 = vsyncpa %s5917, 1
    %5919 = vsyncpa [#allocation7], 1
    %5920 = vsyncpa [#allocation10], 1

</llo_original>
